<compile_context>
chip_gen: v5e
topology: v5e:2x2
jax: 0.10.0
libtpu: 0.0.40
codegen_flags: <defaults>
</compile_context>

<pallas_src>
import functools
import math

import jax
import jax.numpy as jnp
from jax.experimental import pallas as pl
from jax.experimental.pallas import tpu as pltpu

# ---------------- model configuration (scaled-down ResNet-152) --------------
BATCH = 2
IMG = 32                       # input spatial size (NCHW: 2, 3, 32, 32)
STEM = 8                       # scaled from 64
PLANES = (8, 16, 32, 64)       # scaled from (64, 128, 256, 512)
BLOCKS = (2, 2, 2, 2)          # TODO(synk): real ResNet-152 is (3, 8, 36, 3)
EMB = PLANES[3] * 4            # 256 (stands in for 2048)
NUM_CLASS = 32                 # stands in for 4468
S1, M1, S2 = 64.0, 0.5, 64.0
BN_EPS = 1e-5


# ------------------------------ small helpers -------------------------------
def _round_up(x, m):
    return ((x + m - 1) // m) * m


def _pick_tile(dim, cands):
    for c in cands:
        if dim % c == 0:
            return c
    return dim


def _pad2(a, rows, cols):
    r, c = a.shape
    if r == rows and c == cols:
        return a
    return jnp.pad(a, ((0, rows - r), (0, cols - c)))


# ------------------------------ Pallas kernels ------------------------------
def _matmul_bn_act_kernel(x_ref, w_ref, scale_ref, shift_ref, o_ref, acc_ref,
                          *, relu):
    # (tm, tk) @ (tk, tn) on the MXU, f32 accumulator, fused BN + optional ReLU.
    @pl.when(pl.program_id(2) == 0)
    def _init():
        acc_ref[...] = jnp.zeros_like(acc_ref)

    acc_ref[...] += jnp.dot(x_ref[...], w_ref[...],
                            preferred_element_type=jnp.float32)

    @pl.when(pl.program_id(2) == pl.num_programs(2) - 1)
    def _finalize():
        y = acc_ref[...] * scale_ref[...] + shift_ref[...]
        if relu:
            y = jnp.maximum(y, 0.0)
        o_ref[...] = y


def _matmul_bn_add_act_kernel(x_ref, w_ref, scale_ref, shift_ref, res_ref,
                              o_ref, acc_ref, *, relu):
    # Same as above but with the residual add fused into the epilogue.
    @pl.when(pl.program_id(2) == 0)
    def _init():
        acc_ref[...] = jnp.zeros_like(acc_ref)

    acc_ref[...] += jnp.dot(x_ref[...], w_ref[...],
                            preferred_element_type=jnp.float32)

    @pl.when(pl.program_id(2) == pl.num_programs(2) - 1)
    def _finalize():
        y = acc_ref[...] * scale_ref[...] + shift_ref[...] + res_ref[...]
        if relu:
            y = jnp.maximum(y, 0.0)
        o_ref[...] = y


def _maxpool9_kernel(ee_ref, eo_ref, oe_ref, oo_ref, o_ref):
    # 3x3/stride-2 max pool over a parity-decomposed padded map; only
    # contiguous slices in VMEM, no 9x-duplicated HBM slab.
    parts = ((ee_ref[...], eo_ref[...]), (oe_ref[...], oo_ref[...]))
    ho, wo = o_ref.shape[1], o_ref.shape[2]
    out = None
    for di in range(3):
        for dj in range(3):
            src = parts[di % 2][dj % 2]
            win = src[:, di // 2:di // 2 + ho, dj // 2:dj // 2 + wo, :]
            out = win if out is None else jnp.maximum(out, win)
    o_ref[...] = out


def _gap_bn_kernel(x_ref, scale_ref, shift_ref, o_ref):
    # global average pool over spatial + fused BatchNorm1d affine (eval mode).
    o_ref[...] = (jnp.mean(x_ref[...], axis=1) * scale_ref[...]
                  + shift_ref[...])


def _heads_kernel(fea_ref, w_ref, b_ref, o_ref, *, nc, s2):
    # Fused BinaryHead + MarginHead cosine: one l2-norm, one matmul against
    # the concatenated [bin_w | l2-normalized margin_w] matrix.
    fea = fea_ref[...]
    inv = jax.lax.rsqrt(jnp.sum(fea * fea, axis=1, keepdims=True) + 1e-12)
    y = jnp.dot(fea * inv, w_ref[...], preferred_element_type=jnp.float32)
    y = y + b_ref[...]
    col = jax.lax.broadcasted_iota(jnp.int32, y.shape, 1)
    o_ref[...] = jnp.where(col < nc, y * s2, jnp.clip(y, -1.0, 1.0))


def _pcall(kernel, out_shape, *args):
    """Single-block pallas_call for the tiny tail kernels (pool/GAP/heads)."""
    return pl.pallas_call(
        kernel,
        out_shape=jax.ShapeDtypeStruct(out_shape, jnp.float32),
        grid=(1,),
        in_specs=[pl.BlockSpec(a.shape, lambda i, n=a.ndim: (0,) * n)
                  for a in args],
        out_specs=pl.BlockSpec(out_shape, lambda i: (0,) * len(out_shape)),
    )(*args)


# --------------------------- tiled fused conv matmul ------------------------
def fused_matmul_bn_act(x, w, scale, shift, res=None, relu=True):
    """[relu]((x @ w) * scale + shift [+ res]); x:(M,K), w:(K,N), res:(M,N)."""
    M, K = x.shape
    N = w.shape[1]
    Mp = _round_up(M, 8)
    Kp = _round_up(K, 128)
    Np = _round_up(N, 128)
    tm = _pick_tile(Mp, (256, 128, 64, 32, 16, 8))
    tk = _pick_tile(Kp, (512, 384, 256, 128))
    tn = _pick_tile(Np, (256, 128))

    # bf16 MXU operands (f32 accumulation + f32 epilogue); lane-dense padding.
    xp = _pad2(x, Mp, Kp).astype(jnp.bfloat16)
    wp = _pad2(w, Kp, Np).astype(jnp.bfloat16)
    scp = _pad2(scale.reshape(1, N), 1, Np)
    shp = _pad2(shift.reshape(1, N), 1, Np)

    args = [xp, wp, scp, shp]
    in_specs = [
        pl.BlockSpec((tm, tk), lambda i, j, k: (i, k)),
        pl.BlockSpec((tk, tn), lambda i, j, k: (k, j)),
        pl.BlockSpec((1, tn), lambda i, j, k: (0, j)),
        pl.BlockSpec((1, tn), lambda i, j, k: (0, j)),
    ]
    res_bytes = 0
    if res is not None:
        resp = _pad2(res, Mp, Np)
        args.append(resp)
        in_specs.append(pl.BlockSpec((tm, tn), lambda i, j, k: (i, j)))
        kernel = functools.partial(_matmul_bn_add_act_kernel, relu=relu)
        res_bytes = resp.size * 4
    else:
        kernel = functools.partial(_matmul_bn_act_kernel, relu=relu)

    grid = (Mp // tm, Np // tn, Kp // tk)
    out = pl.pallas_call(
        kernel,
        out_shape=jax.ShapeDtypeStruct((Mp, Np), jnp.float32),
        grid=grid,
        in_specs=in_specs,
        out_specs=pl.BlockSpec((tm, tn), lambda i, j, k: (i, j)),
        scratch_shapes=[pltpu.VMEM((tm, tn), jnp.float32)],
        compiler_params=pltpu.CompilerParams(
            dimension_semantics=("parallel", "parallel", "arbitrary"),
            # explicit scoped-VMEM budget; safe on v5e/v6e (128 MiB phys) and
            # v7x (64 MiB phys) — tiles here use only a couple of MiB.
            vmem_limit_bytes=32 * 1024 * 1024),
        cost_estimate=pl.CostEstimate(
            flops=2 * Mp * Kp * Np,
            transcendentals=0,
            bytes_accessed=xp.size * 2 + wp.size * 2 + Mp * Np * 4 + res_bytes),
    )(*args)
    return out[:M, :N]


# ------------------------------ glue: im2col etc ----------------------------
def _im2col(x, kh, kw, stride, pad):
    # TODO(synk): at full ResNet-152 scale, move patch extraction inside the
    # Pallas kernel (index over (n, ho-tile, wo-tile) of the padded NHWC map)
    # to avoid the kh*kw HBM blow-up of materialized patches.
    n, h, w, c = x.shape
    if pad:
        x = jnp.pad(x, ((0, 0), (pad, pad), (pad, pad), (0, 0)))
    hp, wp = h + 2 * pad, w + 2 * pad
    ho = (hp - kh) // stride + 1
    wo = (wp - kw) // stride + 1
    cols = []
    for di in range(kh):
        for dj in range(kw):
            cols.append(x[:, di:di + stride * (ho - 1) + 1:stride,
                            dj:dj + stride * (wo - 1) + 1:stride, :])
    patches = jnp.concatenate(cols, axis=-1)        # (N, Ho, Wo, kh*kw*C)
    return patches.reshape(n * ho * wo, kh * kw * c), (n, ho, wo)


def conv_bn_act(x, p, stride, pad, relu, res=None, w_scale=None):
    kh, kw, cin, cout = p['w'].shape
    patches, (n, ho, wo) = _im2col(x, kh, kw, stride, pad)
    w = p['w']
    if w_scale is not None:                         # fold 1/std into the stem
        w = w * w_scale.reshape(1, 1, cin, 1)
    wmat = w.reshape(kh * kw * cin, cout)
    scale = p['gamma'] * jax.lax.rsqrt(p['rv'] + BN_EPS)
    shift = p['beta'] - p['rm'] * scale
    y = fused_matmul_bn_act(patches, wmat, scale, shift, res=res, relu=relu)
    return y.reshape(n, ho, wo, cout)


def bottleneck(x, p, stride):
    if 'down' in p:
        ident = conv_bn_act(x, p['down'], stride, 0, relu=False)
    else:
        ident = x
    out = conv_bn_act(x, p['c1'], 1, 0, relu=True)
    out = conv_bn_act(out, p['c2'], stride, 1, relu=True)
    # residual add + final ReLU fused into the c3 matmul epilogue
    out = conv_bn_act(out, p['c3'], 1, 0, relu=True,
                      res=ident.reshape(-1, ident.shape[-1]))
    return out


def maxpool3x3s2(x):
    n, h, w, c = x.shape
    ho = (h + 2 - 3) // 2 + 1
    wo = (w + 2 - 3) // 2 + 1
    pad_val = float(jnp.finfo(jnp.float32).min)     # finite, robust vs -inf
    xp = jnp.pad(x, ((0, 0), (1, 1), (1, 1), (0, 0)),
                 constant_values=pad_val)
    xp = xp[:, :2 * ho + 1, :2 * wo + 1, :]
    # Parity split in glue (1x traffic); the kernel then only needs
    # contiguous slices to assemble all 9 window taps.
    ee = xp[:, 0::2, 0::2, :]
    eo = xp[:, 0::2, 1::2, :]
    oe = xp[:, 1::2, 0::2, :]
    oo = xp[:, 1::2, 1::2, :]
    return _pcall(_maxpool9_kernel, (n, ho, wo, c), ee, eo, oe, oo)


def arcface_margin(cos_theta, label, s, m):
    cos_m, sin_m = math.cos(m), math.sin(m)
    threshold = math.cos(math.pi - m)
    mm = math.sin(math.pi - m) * m
    sin_theta = jnp.sqrt(jnp.clip(1.0 - cos_theta * cos_theta, 0.0, 1.0))
    cos_theta_m = cos_theta * cos_m - sin_theta * sin_m
    cos_theta_m = jnp.where(cos_theta - threshold > 0,
                            cos_theta_m, cos_theta - mm)
    onehot = jax.nn.one_hot(label, cos_theta.shape[1], dtype=cos_theta.dtype)
    return jnp.where(onehot > 0, cos_theta_m, cos_theta) * s


# ------------------------------ parameter init ------------------------------
def init_conv_bn(key, kh, kw, cin, cout):
    k = jax.random.split(key, 5)
    fan_in = kh * kw * cin
    return dict(
        w=jax.random.normal(k[0], (kh, kw, cin, cout), jnp.float32)
          * (2.0 / fan_in) ** 0.5,
        gamma=1.0 + 0.1 * jax.random.normal(k[1], (cout,), jnp.float32),
        beta=0.1 * jax.random.normal(k[2], (cout,), jnp.float32),
        rm=0.1 * jax.random.normal(k[3], (cout,), jnp.float32),
        rv=1.0 + 0.1 * jax.random.uniform(k[4], (cout,), jnp.float32),
    )


def init_bottleneck(key, cin, planes, stride):
    k = jax.random.split(key, 4)
    p = dict(
        c1=init_conv_bn(k[0], 1, 1, cin, planes),
        c2=init_conv_bn(k[1], 3, 3, planes, planes),
        c3=init_conv_bn(k[2], 1, 1, planes, planes * 4),
    )
    if stride != 1 or cin != planes * 4:
        p['down'] = init_conv_bn(k[3], 1, 1, cin, planes * 4)
    return p


def init_params(key):
    ks = iter(jax.random.split(key, 64))
    nk = lambda: next(ks)
    params = {'stem': init_conv_bn(nk(), 7, 7, 3, STEM)}
    cin = STEM
    layers = []
    for li, (planes, nblocks) in enumerate(zip(PLANES, BLOCKS)):
        layer_stride = 1 if li == 0 else 2
        blocks = []
        for bi in range(nblocks):
            s = layer_stride if bi == 0 else 1
            blocks.append(init_bottleneck(nk(), cin, planes, s))
            cin = planes * 4
        layers.append(blocks)
    params['layers'] = layers
    # fea_bn: bias frozen at 0 (requires_grad_(False)), gamma default 1.
    params['fea_bn'] = dict(
        gamma=jnp.ones((EMB,), jnp.float32),
        beta=jnp.zeros((EMB,), jnp.float32),
        rm=0.1 * jax.random.normal(nk(), (EMB,), jnp.float32),
        rv=1.0 + 0.1 * jax.random.uniform(nk(), (EMB,), jnp.float32),
    )
    params['bin_w'] = (jax.random.normal(nk(), (EMB, NUM_CLASS), jnp.float32)
                       / math.sqrt(EMB))
    params['bin_b'] = 0.01 * jax.random.normal(nk(), (NUM_CLASS,), jnp.float32)
    params['margin_w'] = jax.random.normal(nk(), (EMB, NUM_CLASS), jnp.float32)
    return params


# --------------------------------- forward ----------------------------------
def forward(params, x, label, is_infer):
    # x: NCHW float32 in [0, 1]  (like the torch input)
    mean = jnp.array([0.485, 0.456, 0.406], jnp.float32)
    std = jnp.array([0.229, 0.224, 0.225], jnp.float32)
    x = jnp.transpose(x, (0, 2, 3, 1)) - mean        # NCHW -> NHWC, mean folded
    # stem: conv7x7/2 + BN + ReLU with the 1/std normalization folded into the
    # conv weights (exact, since padding of (x - mean) with zeros matches
    # zero-padding of the normalized input).
    x = conv_bn_act(x, params['stem'], stride=2, pad=3, relu=True,
                    w_scale=1.0 / std)
    x = maxpool3x3s2(x)

    # layer1..layer4 (bottleneck blocks, residual add+ReLU fused into c3)
    for li, blocks in enumerate(params['layers']):
        for bi, bp in enumerate(blocks):
            s = (1 if li == 0 else 2) if bi == 0 else 1
            x = bottleneck(x, bp, s)

    # adaptive_avg_pool2d(1) + flatten + fea_bn, fused in one kernel
    nb, ho, wo, cc = x.shape
    bn = params['fea_bn']
    sc = bn['gamma'] * jax.lax.rsqrt(bn['rv'] + BN_EPS)
    sh = bn['beta'] - bn['rm'] * sc
    fea = _pcall(_gap_bn_kernel, (nb, cc),
                 x.reshape(nb, ho * wo, cc), sc.reshape(1, cc),
                 sh.reshape(1, cc))

    # Fused heads: l2_norm(fea) once, one matmul vs [bin_w | l2norm(margin_w)].
    w_m = params['margin_w']
    w_norm = w_m * jax.lax.rsqrt(jnp.sum(w_m * w_m, axis=0, keepdims=True))
    w_cat = jnp.concatenate([params['bin_w'], w_norm], axis=1)
    b_cat = jnp.concatenate(
        [params['bin_b'], jnp.zeros((NUM_CLASS,), jnp.float32)]).reshape(1, -1)
    logits = _pcall(functools.partial(_heads_kernel, nc=NUM_CLASS, s2=S2),
                    (nb, 2 * NUM_CLASS), fea, w_cat, b_cat)
    logit_binary = logits[:, :NUM_CLASS]
    cos_theta = logits[:, NUM_CLASS:]
    if is_infer:
        logit_margin = cos_theta * S1
    else:
        logit_margin = arcface_margin(cos_theta, label, S1, M1)

    return logit_binary, logit_margin, fea


# ----------------------------------- main ------------------------------------
if __name__ == "__main__":
    key = jax.random.PRNGKey(0)
    pkey, xkey, lkey = jax.random.split(key, 3)
    params = init_params(pkey)
    x = jax.random.uniform(xkey, (BATCH, 3, IMG, IMG), jnp.float32)   # NCHW
    label = jax.random.randint(lkey, (BATCH,), 0, NUM_CLASS)

    fwd = jax.jit(functools.partial(forward, is_infer=False))
    logit_binary, logit_margin, fea = fwd(params, x, label)
    jax.block_until_ready((logit_binary, logit_margin, fea))

    assert logit_binary.shape == (BATCH, NUM_CLASS)
    assert logit_margin.shape == (BATCH, NUM_CLASS)
    assert fea.shape == (BATCH, EMB)
    print("KERNEL_OK")
</pallas_src>

<mosaic_0001>
module attributes {stable_mosaic.version = 11 : i64} {
  func.func @_matmul_bn_act_kernel(%arg0: i32, %arg1: i32, %arg2: i32, %arg3: memref<256x256xbf16, #tpu.memory_space<vmem>>, %arg4: memref<256x128xbf16, #tpu.memory_space<vmem>>, %arg5: memref<1x128xf32, #tpu.memory_space<vmem>>, %arg6: memref<1x128xf32, #tpu.memory_space<vmem>>, %arg7: memref<256x128xf32, #tpu.memory_space<vmem>>, %arg8: memref<256x128xf32, #tpu.memory_space<vmem>>) attributes {dimension_semantics = [#tpu.dimension_semantics<parallel>, #tpu.dimension_semantics<parallel>, #tpu.dimension_semantics<arbitrary>], iteration_bounds = array<i64: 2, 1, 1>, scalar_prefetch = 0 : i64, scratch_operands = 1 : i64, tpu.core_type = #tpu.core_type<tc>, window_params = [{transform_indices = @transform_0, window_bounds = array<i64: 256, 256>}, {transform_indices = @transform_1, window_bounds = array<i64: 256, 128>}, {transform_indices = @transform_2, window_bounds = array<i64: 1, 128>}, {transform_indices = @transform_3, window_bounds = array<i64: 1, 128>}, {transform_indices = @transform_4, window_bounds = array<i64: 256, 128>}]} {
    %c0_i32 = arith.constant 0 : i32
    %0 = arith.cmpi eq, %arg2, %c0_i32 : i32
    %1 = arith.extui %0 : i1 to i32
    %c0_i32_0 = arith.constant 0 : i32
    %2 = arith.cmpi ne, %1, %c0_i32_0 : i32
    scf.if %2 {
      %cst_10 = arith.constant 0.000000e+00 : f32
      %12 = vector.broadcast %cst_10 : f32 to vector<256x128xf32>
      %c0_11 = arith.constant 0 : index
      %c0_12 = arith.constant 0 : index
      %13 = vector.load %arg8[%c0_11, %c0_12] : memref<256x128xf32, #tpu.memory_space<vmem>>, vector<256x128xf32>
      tpu.vector_store %arg8[%c0_11, %c0_12], %12 {strides = array<i32>} : memref<256x128xf32, #tpu.memory_space<vmem>>, vector<256x128xf32>,
    } else {
    }
    %c0 = arith.constant 0 : index
    %c0_1 = arith.constant 0 : index
    %3 = vector.load %arg8[%c0, %c0_1] : memref<256x128xf32, #tpu.memory_space<vmem>>, vector<256x128xf32>
    %c0_2 = arith.constant 0 : index
    %c0_3 = arith.constant 0 : index
    %4 = vector.load %arg3[%c0_2, %c0_3] : memref<256x256xbf16, #tpu.memory_space<vmem>>, vector<256x256xbf16>
    %c0_4 = arith.constant 0 : index
    %c0_5 = arith.constant 0 : index
    %5 = vector.load %arg4[%c0_4, %c0_5] : memref<256x128xbf16, #tpu.memory_space<vmem>>, vector<256x128xbf16>
    %cst = arith.constant dense<0.000000e+00> : vector<256x128xf32>
    %6 = tpu.matmul %4, %5, %cst {dimension_numbers = #tpu.dot_dimension_numbers<[1], [0], [0], [1], [0, 0, 1, 1], [], []>} : vector<256x256xbf16>, vector<256x128xbf16>, vector<256x128xf32> -> vector<256x128xf32>
    %7 = arith.addf %3, %6 : vector<256x128xf32>
    %c0_6 = arith.constant 0 : index
    %c0_7 = arith.constant 0 : index
    %8 = vector.load %arg8[%c0_6, %c0_7] : memref<256x128xf32, #tpu.memory_space<vmem>>, vector<256x128xf32>
    tpu.vector_store %arg8[%c0_6, %c0_7], %7 {strides = array<i32>} : memref<256x128xf32, #tpu.memory_space<vmem>>, vector<256x128xf32>,
    %c0_i32_8 = arith.constant 0 : i32
    %9 = arith.cmpi eq, %arg2, %c0_i32_8 : i32
    %10 = arith.extui %9 : i1 to i32
    %c0_i32_9 = arith.constant 0 : i32
    %11 = arith.cmpi ne, %10, %c0_i32_9 : i32
    scf.if %11 {
      %c0_10 = arith.constant 0 : index
      %c0_11 = arith.constant 0 : index
      %12 = vector.load %arg8[%c0_10, %c0_11] : memref<256x128xf32, #tpu.memory_space<vmem>>, vector<256x128xf32>
      %c0_12 = arith.constant 0 : index
      %c0_13 = arith.constant 0 : index
      %13 = vector.load %arg5[%c0_12, %c0_13] : memref<1x128xf32, #tpu.memory_space<vmem>>, vector<1x128xf32>
      %14 = vector.broadcast %13 : vector<1x128xf32> to vector<256x128xf32>
      %15 = arith.mulf %12, %14 : vector<256x128xf32>
      %c0_14 = arith.constant 0 : index
      %c0_15 = arith.constant 0 : index
      %16 = vector.load %arg6[%c0_14, %c0_15] : memref<1x128xf32, #tpu.memory_space<vmem>>, vector<1x128xf32>
      %17 = vector.broadcast %16 : vector<1x128xf32> to vector<256x128xf32>
      %18 = arith.addf %15, %17 : vector<256x128xf32>
      %cst_16 = arith.constant 0.000000e+00 : f32
      %19 = vector.broadcast %cst_16 : f32 to vector<256x128xf32>
      %20 = arith.maximumf %18, %19 : vector<256x128xf32>
      %c0_17 = arith.constant 0 : index
      %c0_18 = arith.constant 0 : index
      %21 = vector.load %arg7[%c0_17, %c0_18] : memref<256x128xf32, #tpu.memory_space<vmem>>, vector<256x128xf32>
      tpu.vector_store %arg7[%c0_17, %c0_18], %20 {strides = array<i32>} : memref<256x128xf32, #tpu.memory_space<vmem>>, vector<256x128xf32>,
    } else {
    }
    return
  }
  func.func @transform_0(%arg0: i32, %arg1: i32, %arg2: i32) -> (i32, i32) {
    %c0_i32 = arith.constant 0 : i32
    return %arg0, %arg2 : i32, i32
  }
  func.func @transform_1(%arg0: i32, %arg1: i32, %arg2: i32) -> (i32, i32) {
    %c0_i32 = arith.constant 0 : i32
    return %arg2, %arg1 : i32, i32
  }
  func.func @transform_2(%arg0: i32, %arg1: i32, %arg2: i32) -> (i32, i32) {
    %c0_i32 = arith.constant 0 : i32
    %c0_i32_0 = arith.constant 0 : i32
    return %c0_i32, %arg1 : i32, i32
  }
  func.func @transform_3(%arg0: i32, %arg1: i32, %arg2: i32) -> (i32, i32) {
    %c0_i32 = arith.constant 0 : i32
    %c0_i32_0 = arith.constant 0 : i32
    return %c0_i32, %arg1 : i32, i32
  }
  func.func @transform_4(%arg0: i32, %arg1: i32, %arg2: i32) -> (i32, i32) {
    %c0_i32 = arith.constant 0 : i32
    return %arg0, %arg1 : i32, i32
  }
}

module attributes {stable_mosaic.version = 11 : i64} {
  func.func @_maxpool9_kernel(%arg0: i32, %arg1: memref<2x9x9x8xf32, #tpu.memory_space<vmem>>, %arg2: memref<2x9x8x8xf32, #tpu.memory_space<vmem>>, %arg3: memref<2x8x9x8xf32, #tpu.memory_space<vmem>>, %arg4: memref<2x8x8x8xf32, #tpu.memory_space<vmem>>, %arg5: memref<2x8x8x8xf32, #tpu.memory_space<vmem>>) attributes {dimension_semantics = [#tpu.dimension_semantics<arbitrary>], iteration_bounds = array<i64: 1>, scalar_prefetch = 0 : i64, scratch_operands = 0 : i64, tpu.core_type = #tpu.core_type<tc>, window_params = [{pipeline_mode = #tpu.pipeline_mode<synchronous>, transform_indices = @transform_0, window_bounds = array<i64: 2, 9, 9, 8>}, {pipeline_mode = #tpu.pipeline_mode<synchronous>, transform_indices = @transform_1, window_bounds = array<i64: 2, 9, 8, 8>}, {pipeline_mode = #tpu.pipeline_mode<synchronous>, transform_indices = @transform_2, window_bounds = array<i64: 2, 8, 9, 8>}, {pipeline_mode = #tpu.pipeline_mode<synchronous>, transform_indices = @transform_3, window_bounds = array<i64: 2, 8, 8, 8>}, {pipeline_mode = #tpu.pipeline_mode<synchronous>, transform_indices = @transform_4, window_bounds = array<i64: 2, 8, 8, 8>}]} {
    %c0 = arith.constant 0 : index
    %c0_0 = arith.constant 0 : index
    %c0_1 = arith.constant 0 : index
    %c0_2 = arith.constant 0 : index
    %0 = vector.load %arg1[%c0, %c0_0, %c0_1, %c0_2] : memref<2x9x9x8xf32, #tpu.memory_space<vmem>>, vector<2x9x9x8xf32>
    %c0_3 = arith.constant 0 : index
    %c0_4 = arith.constant 0 : index
    %c0_5 = arith.constant 0 : index
    %c0_6 = arith.constant 0 : index
    %1 = vector.load %arg2[%c0_3, %c0_4, %c0_5, %c0_6] : memref<2x9x8x8xf32, #tpu.memory_space<vmem>>, vector<2x9x8x8xf32>
    %c0_7 = arith.constant 0 : index
    %c0_8 = arith.constant 0 : index
    %c0_9 = arith.constant 0 : index
    %c0_10 = arith.constant 0 : index
    %2 = vector.load %arg3[%c0_7, %c0_8, %c0_9, %c0_10] : memref<2x8x9x8xf32, #tpu.memory_space<vmem>>, vector<2x8x9x8xf32>
    %c0_11 = arith.constant 0 : index
    %c0_12 = arith.constant 0 : index
    %c0_13 = arith.constant 0 : index
    %c0_14 = arith.constant 0 : index
    %3 = vector.load %arg4[%c0_11, %c0_12, %c0_13, %c0_14] : memref<2x8x8x8xf32, #tpu.memory_space<vmem>>, vector<2x8x8x8xf32>
    %4 = vector.extract_strided_slice %0 {offsets = [0, 0, 0, 0], sizes = [2, 8, 8, 8], strides = [1, 1, 1, 1]} : vector<2x9x9x8xf32> to vector<2x8x8x8xf32>
    %5 = vector.extract_strided_slice %1 {offsets = [0, 0, 0, 0], sizes = [2, 8, 8, 8], strides = [1, 1, 1, 1]} : vector<2x9x8x8xf32> to vector<2x8x8x8xf32>
    %6 = arith.maximumf %4, %5 : vector<2x8x8x8xf32>
    %7 = vector.extract_strided_slice %0 {offsets = [0, 0, 1, 0], sizes = [2, 8, 8, 8], strides = [1, 1, 1, 1]} : vector<2x9x9x8xf32> to vector<2x8x8x8xf32>
    %8 = arith.maximumf %6, %7 : vector<2x8x8x8xf32>
    %9 = vector.extract_strided_slice %2 {offsets = [0, 0, 0, 0], sizes = [2, 8, 8, 8], strides = [1, 1, 1, 1]} : vector<2x8x9x8xf32> to vector<2x8x8x8xf32>
    %10 = arith.maximumf %8, %9 : vector<2x8x8x8xf32>
    %11 = arith.maximumf %10, %3 : vector<2x8x8x8xf32>
    %12 = vector.extract_strided_slice %2 {offsets = [0, 0, 1, 0], sizes = [2, 8, 8, 8], strides = [1, 1, 1, 1]} : vector<2x8x9x8xf32> to vector<2x8x8x8xf32>
    %13 = arith.maximumf %11, %12 : vector<2x8x8x8xf32>
    %14 = vector.extract_strided_slice %0 {offsets = [0, 1, 0, 0], sizes = [2, 8, 8, 8], strides = [1, 1, 1, 1]} : vector<2x9x9x8xf32> to vector<2x8x8x8xf32>
    %15 = arith.maximumf %13, %14 : vector<2x8x8x8xf32>
    %16 = vector.extract_strided_slice %1 {offsets = [0, 1, 0, 0], sizes = [2, 8, 8, 8], strides = [1, 1, 1, 1]} : vector<2x9x8x8xf32> to vector<2x8x8x8xf32>
    %17 = arith.maximumf %15, %16 : vector<2x8x8x8xf32>
    %18 = vector.extract_strided_slice %0 {offsets = [0, 1, 1, 0], sizes = [2, 8, 8, 8], strides = [1, 1, 1, 1]} : vector<2x9x9x8xf32> to vector<2x8x8x8xf32>
    %19 = arith.maximumf %17, %18 : vector<2x8x8x8xf32>
    %c0_15 = arith.constant 0 : index
    %c0_16 = arith.constant 0 : index
    %c0_17 = arith.constant 0 : index
    %c0_18 = arith.constant 0 : index
    %20 = vector.load %arg5[%c0_15, %c0_16, %c0_17, %c0_18] : memref<2x8x8x8xf32, #tpu.memory_space<vmem>>, vector<2x8x8x8xf32>
    tpu.vector_store %arg5[%c0_15, %c0_16, %c0_17, %c0_18], %19 {strides = array<i32>} : memref<2x8x8x8xf32, #tpu.memory_space<vmem>>, vector<2x8x8x8xf32>,
    return
  }
  func.func @transform_0(%arg0: i32) -> (i32, i32, i32, i32) {
    %c0_i32 = arith.constant 0 : i32
    %c0_i32_0 = arith.constant 0 : i32
    %c0_i32_1 = arith.constant 0 : i32
    %c0_i32_2 = arith.constant 0 : i32
    %c0_i32_3 = arith.constant 0 : i32
    return %c0_i32, %c0_i32_0, %c0_i32_1, %c0_i32_2 : i32, i32, i32, i32
  }
  func.func @transform_1(%arg0: i32) -> (i32, i32, i32, i32) {
    %c0_i32 = arith.constant 0 : i32
    %c0_i32_0 = arith.constant 0 : i32
    %c0_i32_1 = arith.constant 0 : i32
    %c0_i32_2 = arith.constant 0 : i32
    %c0_i32_3 = arith.constant 0 : i32
    return %c0_i32, %c0_i32_0, %c0_i32_1, %c0_i32_2 : i32, i32, i32, i32
  }
  func.func @transform_2(%arg0: i32) -> (i32, i32, i32, i32) {
    %c0_i32 = arith.constant 0 : i32
    %c0_i32_0 = arith.constant 0 : i32
    %c0_i32_1 = arith.constant 0 : i32
    %c0_i32_2 = arith.constant 0 : i32
    %c0_i32_3 = arith.constant 0 : i32
    return %c0_i32, %c0_i32_0, %c0_i32_1, %c0_i32_2 : i32, i32, i32, i32
  }
  func.func @transform_3(%arg0: i32) -> (i32, i32, i32, i32) {
    %c0_i32 = arith.constant 0 : i32
    %c0_i32_0 = arith.constant 0 : i32
    %c0_i32_1 = arith.constant 0 : i32
    %c0_i32_2 = arith.constant 0 : i32
    %c0_i32_3 = arith.constant 0 : i32
    return %c0_i32, %c0_i32_0, %c0_i32_1, %c0_i32_2 : i32, i32, i32, i32
  }
  func.func @transform_4(%arg0: i32) -> (i32, i32, i32, i32) {
    %c0_i32 = arith.constant 0 : i32
    %c0_i32_0 = arith.constant 0 : i32
    %c0_i32_1 = arith.constant 0 : i32
    %c0_i32_2 = arith.constant 0 : i32
    %c0_i32_3 = arith.constant 0 : i32
    return %c0_i32, %c0_i32_0, %c0_i32_1, %c0_i32_2 : i32, i32, i32, i32
  }
}

module attributes {stable_mosaic.version = 11 : i64} {
  func.func @_matmul_bn_act_kernel(%arg0: i32, %arg1: i32, %arg2: i32, %arg3: memref<128x128xbf16, #tpu.memory_space<vmem>>, %arg4: memref<128x128xbf16, #tpu.memory_space<vmem>>, %arg5: memref<1x128xf32, #tpu.memory_space<vmem>>, %arg6: memref<1x128xf32, #tpu.memory_space<vmem>>, %arg7: memref<128x128xf32, #tpu.memory_space<vmem>>, %arg8: memref<128x128xf32, #tpu.memory_space<vmem>>) attributes {dimension_semantics = [#tpu.dimension_semantics<parallel>, #tpu.dimension_semantics<parallel>, #tpu.dimension_semantics<arbitrary>], iteration_bounds = array<i64: 1, 1, 1>, scalar_prefetch = 0 : i64, scratch_operands = 1 : i64, tpu.core_type = #tpu.core_type<tc>, window_params = [{transform_indices = @transform_0, window_bounds = array<i64: 128, 128>}, {transform_indices = @transform_1, window_bounds = array<i64: 128, 128>}, {transform_indices = @transform_2, window_bounds = array<i64: 1, 128>}, {transform_indices = @transform_3, window_bounds = array<i64: 1, 128>}, {transform_indices = @transform_4, window_bounds = array<i64: 128, 128>}]} {
    %c0_i32 = arith.constant 0 : i32
    %0 = arith.cmpi eq, %arg2, %c0_i32 : i32
    %1 = arith.extui %0 : i1 to i32
    %c0_i32_0 = arith.constant 0 : i32
    %2 = arith.cmpi ne, %1, %c0_i32_0 : i32
    scf.if %2 {
      %cst_10 = arith.constant 0.000000e+00 : f32
      %12 = vector.broadcast %cst_10 : f32 to vector<128x128xf32>
      %c0_11 = arith.constant 0 : index
      %c0_12 = arith.constant 0 : index
      %13 = vector.load %arg8[%c0_11, %c0_12] : memref<128x128xf32, #tpu.memory_space<vmem>>, vector<128x128xf32>
      tpu.vector_store %arg8[%c0_11, %c0_12], %12 {strides = array<i32>} : memref<128x128xf32, #tpu.memory_space<vmem>>, vector<128x128xf32>,
    } else {
    }
    %c0 = arith.constant 0 : index
    %c0_1 = arith.constant 0 : index
    %3 = vector.load %arg8[%c0, %c0_1] : memref<128x128xf32, #tpu.memory_space<vmem>>, vector<128x128xf32>
    %c0_2 = arith.constant 0 : index
    %c0_3 = arith.constant 0 : index
    %4 = vector.load %arg3[%c0_2, %c0_3] : memref<128x128xbf16, #tpu.memory_space<vmem>>, vector<128x128xbf16>
    %c0_4 = arith.constant 0 : index
    %c0_5 = arith.constant 0 : index
    %5 = vector.load %arg4[%c0_4, %c0_5] : memref<128x128xbf16, #tpu.memory_space<vmem>>, vector<128x128xbf16>
    %cst = arith.constant dense<0.000000e+00> : vector<128x128xf32>
    %6 = tpu.matmul %4, %5, %cst {dimension_numbers = #tpu.dot_dimension_numbers<[1], [0], [0], [1], [0, 0, 1, 1], [], []>} : vector<128x128xbf16>, vector<128x128xbf16>, vector<128x128xf32> -> vector<128x128xf32>
    %7 = arith.addf %3, %6 : vector<128x128xf32>
    %c0_6 = arith.constant 0 : index
    %c0_7 = arith.constant 0 : index
    %8 = vector.load %arg8[%c0_6, %c0_7] : memref<128x128xf32, #tpu.memory_space<vmem>>, vector<128x128xf32>
    tpu.vector_store %arg8[%c0_6, %c0_7], %7 {strides = array<i32>} : memref<128x128xf32, #tpu.memory_space<vmem>>, vector<128x128xf32>,
    %c0_i32_8 = arith.constant 0 : i32
    %9 = arith.cmpi eq, %arg2, %c0_i32_8 : i32
    %10 = arith.extui %9 : i1 to i32
    %c0_i32_9 = arith.constant 0 : i32
    %11 = arith.cmpi ne, %10, %c0_i32_9 : i32
    scf.if %11 {
      %c0_10 = arith.constant 0 : index
      %c0_11 = arith.constant 0 : index
      %12 = vector.load %arg8[%c0_10, %c0_11] : memref<128x128xf32, #tpu.memory_space<vmem>>, vector<128x128xf32>
      %c0_12 = arith.constant 0 : index
      %c0_13 = arith.constant 0 : index
      %13 = vector.load %arg5[%c0_12, %c0_13] : memref<1x128xf32, #tpu.memory_space<vmem>>, vector<1x128xf32>
      %14 = vector.broadcast %13 : vector<1x128xf32> to vector<128x128xf32>
      %15 = arith.mulf %12, %14 : vector<128x128xf32>
      %c0_14 = arith.constant 0 : index
      %c0_15 = arith.constant 0 : index
      %16 = vector.load %arg6[%c0_14, %c0_15] : memref<1x128xf32, #tpu.memory_space<vmem>>, vector<1x128xf32>
      %17 = vector.broadcast %16 : vector<1x128xf32> to vector<128x128xf32>
      %18 = arith.addf %15, %17 : vector<128x128xf32>
      %cst_16 = arith.constant 0.000000e+00 : f32
      %19 = vector.broadcast %cst_16 : f32 to vector<128x128xf32>
      %20 = arith.maximumf %18, %19 : vector<128x128xf32>
      %c0_17 = arith.constant 0 : index
      %c0_18 = arith.constant 0 : index
      %21 = vector.load %arg7[%c0_17, %c0_18] : memref<128x128xf32, #tpu.memory_space<vmem>>, vector<128x128xf32>
      tpu.vector_store %arg7[%c0_17, %c0_18], %20 {strides = array<i32>} : memref<128x128xf32, #tpu.memory_space<vmem>>, vector<128x128xf32>,
    } else {
    }
    return
  }
  func.func @transform_0(%arg0: i32, %arg1: i32, %arg2: i32) -> (i32, i32) {
    %c0_i32 = arith.constant 0 : i32
    return %arg0, %arg2 : i32, i32
  }
  func.func @transform_1(%arg0: i32, %arg1: i32, %arg2: i32) -> (i32, i32) {
    %c0_i32 = arith.constant 0 : i32
    return %arg2, %arg1 : i32, i32
  }
  func.func @transform_2(%arg0: i32, %arg1: i32, %arg2: i32) -> (i32, i32) {
    %c0_i32 = arith.constant 0 : i32
    %c0_i32_0 = arith.constant 0 : i32
    return %c0_i32, %arg1 : i32, i32
  }
  func.func @transform_3(%arg0: i32, %arg1: i32, %arg2: i32) -> (i32, i32) {
    %c0_i32 = arith.constant 0 : i32
    %c0_i32_0 = arith.constant 0 : i32
    return %c0_i32, %arg1 : i32, i32
  }
  func.func @transform_4(%arg0: i32, %arg1: i32, %arg2: i32) -> (i32, i32) {
    %c0_i32 = arith.constant 0 : i32
    return %arg0, %arg1 : i32, i32
  }
}

module attributes {stable_mosaic.version = 11 : i64} {
  func.func @_matmul_bn_add_act_kernel(%arg0: i32, %arg1: i32, %arg2: i32, %arg3: memref<128x128xbf16, #tpu.memory_space<vmem>>, %arg4: memref<128x128xbf16, #tpu.memory_space<vmem>>, %arg5: memref<1x128xf32, #tpu.memory_space<vmem>>, %arg6: memref<1x128xf32, #tpu.memory_space<vmem>>, %arg7: memref<128x128xf32, #tpu.memory_space<vmem>>, %arg8: memref<128x128xf32, #tpu.memory_space<vmem>>, %arg9: memref<128x128xf32, #tpu.memory_space<vmem>>) attributes {dimension_semantics = [#tpu.dimension_semantics<parallel>, #tpu.dimension_semantics<parallel>, #tpu.dimension_semantics<arbitrary>], iteration_bounds = array<i64: 1, 1, 1>, scalar_prefetch = 0 : i64, scratch_operands = 1 : i64, tpu.core_type = #tpu.core_type<tc>, window_params = [{transform_indices = @transform_0, window_bounds = array<i64: 128, 128>}, {transform_indices = @transform_1, window_bounds = array<i64: 128, 128>}, {transform_indices = @transform_2, window_bounds = array<i64: 1, 128>}, {transform_indices = @transform_3, window_bounds = array<i64: 1, 128>}, {transform_indices = @transform_4, window_bounds = array<i64: 128, 128>}, {transform_indices = @transform_5, window_bounds = array<i64: 128, 128>}]} {
    %c0_i32 = arith.constant 0 : i32
    %0 = arith.cmpi eq, %arg2, %c0_i32 : i32
    %1 = arith.extui %0 : i1 to i32
    %c0_i32_0 = arith.constant 0 : i32
    %2 = arith.cmpi ne, %1, %c0_i32_0 : i32
    scf.if %2 {
      %cst_10 = arith.constant 0.000000e+00 : f32
      %12 = vector.broadcast %cst_10 : f32 to vector<128x128xf32>
      %c0_11 = arith.constant 0 : index
      %c0_12 = arith.constant 0 : index
      %13 = vector.load %arg9[%c0_11, %c0_12] : memref<128x128xf32, #tpu.memory_space<vmem>>, vector<128x128xf32>
      tpu.vector_store %arg9[%c0_11, %c0_12], %12 {strides = array<i32>} : memref<128x128xf32, #tpu.memory_space<vmem>>, vector<128x128xf32>,
    } else {
    }
    %c0 = arith.constant 0 : index
    %c0_1 = arith.constant 0 : index
    %3 = vector.load %arg9[%c0, %c0_1] : memref<128x128xf32, #tpu.memory_space<vmem>>, vector<128x128xf32>
    %c0_2 = arith.constant 0 : index
    %c0_3 = arith.constant 0 : index
    %4 = vector.load %arg3[%c0_2, %c0_3] : memref<128x128xbf16, #tpu.memory_space<vmem>>, vector<128x128xbf16>
    %c0_4 = arith.constant 0 : index
    %c0_5 = arith.constant 0 : index
    %5 = vector.load %arg4[%c0_4, %c0_5] : memref<128x128xbf16, #tpu.memory_space<vmem>>, vector<128x128xbf16>
    %cst = arith.constant dense<0.000000e+00> : vector<128x128xf32>
    %6 = tpu.matmul %4, %5, %cst {dimension_numbers = #tpu.dot_dimension_numbers<[1], [0], [0], [1], [0, 0, 1, 1], [], []>} : vector<128x128xbf16>, vector<128x128xbf16>, vector<128x128xf32> -> vector<128x128xf32>
    %7 = arith.addf %3, %6 : vector<128x128xf32>
    %c0_6 = arith.constant 0 : index
    %c0_7 = arith.constant 0 : index
    %8 = vector.load %arg9[%c0_6, %c0_7] : memref<128x128xf32, #tpu.memory_space<vmem>>, vector<128x128xf32>
    tpu.vector_store %arg9[%c0_6, %c0_7], %7 {strides = array<i32>} : memref<128x128xf32, #tpu.memory_space<vmem>>, vector<128x128xf32>,
    %c0_i32_8 = arith.constant 0 : i32
    %9 = arith.cmpi eq, %arg2, %c0_i32_8 : i32
    %10 = arith.extui %9 : i1 to i32
    %c0_i32_9 = arith.constant 0 : i32
    %11 = arith.cmpi ne, %10, %c0_i32_9 : i32
    scf.if %11 {
      %c0_10 = arith.constant 0 : index
      %c0_11 = arith.constant 0 : index
      %12 = vector.load %arg9[%c0_10, %c0_11] : memref<128x128xf32, #tpu.memory_space<vmem>>, vector<128x128xf32>
      %c0_12 = arith.constant 0 : index
      %c0_13 = arith.constant 0 : index
      %13 = vector.load %arg5[%c0_12, %c0_13] : memref<1x128xf32, #tpu.memory_space<vmem>>, vector<1x128xf32>
      %14 = vector.broadcast %13 : vector<1x128xf32> to vector<128x128xf32>
      %15 = arith.mulf %12, %14 : vector<128x128xf32>
      %c0_14 = arith.constant 0 : index
      %c0_15 = arith.constant 0 : index
      %16 = vector.load %arg6[%c0_14, %c0_15] : memref<1x128xf32, #tpu.memory_space<vmem>>, vector<1x128xf32>
      %17 = vector.broadcast %16 : vector<1x128xf32> to vector<128x128xf32>
      %18 = arith.addf %15, %17 : vector<128x128xf32>
      %c0_16 = arith.constant 0 : index
      %c0_17 = arith.constant 0 : index
      %19 = vector.load %arg7[%c0_16, %c0_17] : memref<128x128xf32, #tpu.memory_space<vmem>>, vector<128x128xf32>
      %20 = arith.addf %18, %19 : vector<128x128xf32>
      %cst_18 = arith.constant 0.000000e+00 : f32
      %21 = vector.broadcast %cst_18 : f32 to vector<128x128xf32>
      %22 = arith.maximumf %20, %21 : vector<128x128xf32>
      %c0_19 = arith.constant 0 : index
      %c0_20 = arith.constant 0 : index
      %23 = vector.load %arg8[%c0_19, %c0_20] : memref<128x128xf32, #tpu.memory_space<vmem>>, vector<128x128xf32>
      tpu.vector_store %arg8[%c0_19, %c0_20], %22 {strides = array<i32>} : memref<128x128xf32, #tpu.memory_space<vmem>>, vector<128x128xf32>,
    } else {
    }
    return
  }
  func.func @transform_0(%arg0: i32, %arg1: i32, %arg2: i32) -> (i32, i32) {
    %c0_i32 = arith.constant 0 : i32
    return %arg0, %arg2 : i32, i32
  }
  func.func @transform_1(%arg0: i32, %arg1: i32, %arg2: i32) -> (i32, i32) {
    %c0_i32 = arith.constant 0 : i32
    return %arg2, %arg1 : i32, i32
  }
  func.func @transform_2(%arg0: i32, %arg1: i32, %arg2: i32) -> (i32, i32) {
    %c0_i32 = arith.constant 0 : i32
    %c0_i32_0 = arith.constant 0 : i32
    return %c0_i32, %arg1 : i32, i32
  }
  func.func @transform_3(%arg0: i32, %arg1: i32, %arg2: i32) -> (i32, i32) {
    %c0_i32 = arith.constant 0 : i32
    %c0_i32_0 = arith.constant 0 : i32
    return %c0_i32, %arg1 : i32, i32
  }
  func.func @transform_4(%arg0: i32, %arg1: i32, %arg2: i32) -> (i32, i32) {
    %c0_i32 = arith.constant 0 : i32
    return %arg0, %arg1 : i32, i32
  }
  func.func @transform_5(%arg0: i32, %arg1: i32, %arg2: i32) -> (i32, i32) {
    %c0_i32 = arith.constant 0 : i32
    return %arg0, %arg1 : i32, i32
  }
}

module attributes {stable_mosaic.version = 11 : i64} {
  func.func @_matmul_bn_act_kernel(%arg0: i32, %arg1: i32, %arg2: i32, %arg3: memref<128x128xbf16, #tpu.memory_space<vmem>>, %arg4: memref<128x128xbf16, #tpu.memory_space<vmem>>, %arg5: memref<1x128xf32, #tpu.memory_space<vmem>>, %arg6: memref<1x128xf32, #tpu.memory_space<vmem>>, %arg7: memref<128x128xf32, #tpu.memory_space<vmem>>, %arg8: memref<128x128xf32, #tpu.memory_space<vmem>>) attributes {dimension_semantics = [#tpu.dimension_semantics<parallel>, #tpu.dimension_semantics<parallel>, #tpu.dimension_semantics<arbitrary>], iteration_bounds = array<i64: 1, 1, 1>, scalar_prefetch = 0 : i64, scratch_operands = 1 : i64, tpu.core_type = #tpu.core_type<tc>, window_params = [{transform_indices = @transform_0, window_bounds = array<i64: 128, 128>}, {transform_indices = @transform_1, window_bounds = array<i64: 128, 128>}, {transform_indices = @transform_2, window_bounds = array<i64: 1, 128>}, {transform_indices = @transform_3, window_bounds = array<i64: 1, 128>}, {transform_indices = @transform_4, window_bounds = array<i64: 128, 128>}]} {
    %c0_i32 = arith.constant 0 : i32
    %0 = arith.cmpi eq, %arg2, %c0_i32 : i32
    %1 = arith.extui %0 : i1 to i32
    %c0_i32_0 = arith.constant 0 : i32
    %2 = arith.cmpi ne, %1, %c0_i32_0 : i32
    scf.if %2 {
      %cst_10 = arith.constant 0.000000e+00 : f32
      %12 = vector.broadcast %cst_10 : f32 to vector<128x128xf32>
      %c0_11 = arith.constant 0 : index
      %c0_12 = arith.constant 0 : index
      %13 = vector.load %arg8[%c0_11, %c0_12] : memref<128x128xf32, #tpu.memory_space<vmem>>, vector<128x128xf32>
      tpu.vector_store %arg8[%c0_11, %c0_12], %12 {strides = array<i32>} : memref<128x128xf32, #tpu.memory_space<vmem>>, vector<128x128xf32>,
    } else {
    }
    %c0 = arith.constant 0 : index
    %c0_1 = arith.constant 0 : index
    %3 = vector.load %arg8[%c0, %c0_1] : memref<128x128xf32, #tpu.memory_space<vmem>>, vector<128x128xf32>
    %c0_2 = arith.constant 0 : index
    %c0_3 = arith.constant 0 : index
    %4 = vector.load %arg3[%c0_2, %c0_3] : memref<128x128xbf16, #tpu.memory_space<vmem>>, vector<128x128xbf16>
    %c0_4 = arith.constant 0 : index
    %c0_5 = arith.constant 0 : index
    %5 = vector.load %arg4[%c0_4, %c0_5] : memref<128x128xbf16, #tpu.memory_space<vmem>>, vector<128x128xbf16>
    %cst = arith.constant dense<0.000000e+00> : vector<128x128xf32>
    %6 = tpu.matmul %4, %5, %cst {dimension_numbers = #tpu.dot_dimension_numbers<[1], [0], [0], [1], [0, 0, 1, 1], [], []>} : vector<128x128xbf16>, vector<128x128xbf16>, vector<128x128xf32> -> vector<128x128xf32>
    %7 = arith.addf %3, %6 : vector<128x128xf32>
    %c0_6 = arith.constant 0 : index
    %c0_7 = arith.constant 0 : index
    %8 = vector.load %arg8[%c0_6, %c0_7] : memref<128x128xf32, #tpu.memory_space<vmem>>, vector<128x128xf32>
    tpu.vector_store %arg8[%c0_6, %c0_7], %7 {strides = array<i32>} : memref<128x128xf32, #tpu.memory_space<vmem>>, vector<128x128xf32>,
    %c0_i32_8 = arith.constant 0 : i32
    %9 = arith.cmpi eq, %arg2, %c0_i32_8 : i32
    %10 = arith.extui %9 : i1 to i32
    %c0_i32_9 = arith.constant 0 : i32
    %11 = arith.cmpi ne, %10, %c0_i32_9 : i32
    scf.if %11 {
      %c0_10 = arith.constant 0 : index
      %c0_11 = arith.constant 0 : index
      %12 = vector.load %arg8[%c0_10, %c0_11] : memref<128x128xf32, #tpu.memory_space<vmem>>, vector<128x128xf32>
      %c0_12 = arith.constant 0 : index
      %c0_13 = arith.constant 0 : index
      %13 = vector.load %arg5[%c0_12, %c0_13] : memref<1x128xf32, #tpu.memory_space<vmem>>, vector<1x128xf32>
      %14 = vector.broadcast %13 : vector<1x128xf32> to vector<128x128xf32>
      %15 = arith.mulf %12, %14 : vector<128x128xf32>
      %c0_14 = arith.constant 0 : index
      %c0_15 = arith.constant 0 : index
      %16 = vector.load %arg6[%c0_14, %c0_15] : memref<1x128xf32, #tpu.memory_space<vmem>>, vector<1x128xf32>
      %17 = vector.broadcast %16 : vector<1x128xf32> to vector<128x128xf32>
      %18 = arith.addf %15, %17 : vector<128x128xf32>
      %c0_16 = arith.constant 0 : index
      %c0_17 = arith.constant 0 : index
      %19 = vector.load %arg7[%c0_16, %c0_17] : memref<128x128xf32, #tpu.memory_space<vmem>>, vector<128x128xf32>
      tpu.vector_store %arg7[%c0_16, %c0_17], %18 {strides = array<i32>} : memref<128x128xf32, #tpu.memory_space<vmem>>, vector<128x128xf32>,
    } else {
    }
    return
  }
  func.func @transform_0(%arg0: i32, %arg1: i32, %arg2: i32) -> (i32, i32) {
    %c0_i32 = arith.constant 0 : i32
    return %arg0, %arg2 : i32, i32
  }
  func.func @transform_1(%arg0: i32, %arg1: i32, %arg2: i32) -> (i32, i32) {
    %c0_i32 = arith.constant 0 : i32
    return %arg2, %arg1 : i32, i32
  }
  func.func @transform_2(%arg0: i32, %arg1: i32, %arg2: i32) -> (i32, i32) {
    %c0_i32 = arith.constant 0 : i32
    %c0_i32_0 = arith.constant 0 : i32
    return %c0_i32, %arg1 : i32, i32
  }
  func.func @transform_3(%arg0: i32, %arg1: i32, %arg2: i32) -> (i32, i32) {
    %c0_i32 = arith.constant 0 : i32
    %c0_i32_0 = arith.constant 0 : i32
    return %c0_i32, %arg1 : i32, i32
  }
  func.func @transform_4(%arg0: i32, %arg1: i32, %arg2: i32) -> (i32, i32) {
    %c0_i32 = arith.constant 0 : i32
    return %arg0, %arg1 : i32, i32
  }
}

module attributes {stable_mosaic.version = 11 : i64} {
  func.func @_matmul_bn_act_kernel(%arg0: i32, %arg1: i32, %arg2: i32, %arg3: memref<32x256xbf16, #tpu.memory_space<vmem>>, %arg4: memref<256x128xbf16, #tpu.memory_space<vmem>>, %arg5: memref<1x128xf32, #tpu.memory_space<vmem>>, %arg6: memref<1x128xf32, #tpu.memory_space<vmem>>, %arg7: memref<32x128xf32, #tpu.memory_space<vmem>>, %arg8: memref<32x128xf32, #tpu.memory_space<vmem>>) attributes {dimension_semantics = [#tpu.dimension_semantics<parallel>, #tpu.dimension_semantics<parallel>, #tpu.dimension_semantics<arbitrary>], iteration_bounds = array<i64: 1, 1, 1>, scalar_prefetch = 0 : i64, scratch_operands = 1 : i64, tpu.core_type = #tpu.core_type<tc>, window_params = [{transform_indices = @transform_0, window_bounds = array<i64: 32, 256>}, {transform_indices = @transform_1, window_bounds = array<i64: 256, 128>}, {transform_indices = @transform_2, window_bounds = array<i64: 1, 128>}, {transform_indices = @transform_3, window_bounds = array<i64: 1, 128>}, {transform_indices = @transform_4, window_bounds = array<i64: 32, 128>}]} {
    %c0_i32 = arith.constant 0 : i32
    %0 = arith.cmpi eq, %arg2, %c0_i32 : i32
    %1 = arith.extui %0 : i1 to i32
    %c0_i32_0 = arith.constant 0 : i32
    %2 = arith.cmpi ne, %1, %c0_i32_0 : i32
    scf.if %2 {
      %cst_10 = arith.constant 0.000000e+00 : f32
      %12 = vector.broadcast %cst_10 : f32 to vector<32x128xf32>
      %c0_11 = arith.constant 0 : index
      %c0_12 = arith.constant 0 : index
      %13 = vector.load %arg8[%c0_11, %c0_12] : memref<32x128xf32, #tpu.memory_space<vmem>>, vector<32x128xf32>
      tpu.vector_store %arg8[%c0_11, %c0_12], %12 {strides = array<i32>} : memref<32x128xf32, #tpu.memory_space<vmem>>, vector<32x128xf32>,
    } else {
    }
    %c0 = arith.constant 0 : index
    %c0_1 = arith.constant 0 : index
    %3 = vector.load %arg8[%c0, %c0_1] : memref<32x128xf32, #tpu.memory_space<vmem>>, vector<32x128xf32>
    %c0_2 = arith.constant 0 : index
    %c0_3 = arith.constant 0 : index
    %4 = vector.load %arg3[%c0_2, %c0_3] : memref<32x256xbf16, #tpu.memory_space<vmem>>, vector<32x256xbf16>
    %c0_4 = arith.constant 0 : index
    %c0_5 = arith.constant 0 : index
    %5 = vector.load %arg4[%c0_4, %c0_5] : memref<256x128xbf16, #tpu.memory_space<vmem>>, vector<256x128xbf16>
    %cst = arith.constant dense<0.000000e+00> : vector<32x128xf32>
    %6 = tpu.matmul %4, %5, %cst {dimension_numbers = #tpu.dot_dimension_numbers<[1], [0], [0], [1], [0, 0, 1, 1], [], []>} : vector<32x256xbf16>, vector<256x128xbf16>, vector<32x128xf32> -> vector<32x128xf32>
    %7 = arith.addf %3, %6 : vector<32x128xf32>
    %c0_6 = arith.constant 0 : index
    %c0_7 = arith.constant 0 : index
    %8 = vector.load %arg8[%c0_6, %c0_7] : memref<32x128xf32, #tpu.memory_space<vmem>>, vector<32x128xf32>
    tpu.vector_store %arg8[%c0_6, %c0_7], %7 {strides = array<i32>} : memref<32x128xf32, #tpu.memory_space<vmem>>, vector<32x128xf32>,
    %c0_i32_8 = arith.constant 0 : i32
    %9 = arith.cmpi eq, %arg2, %c0_i32_8 : i32
    %10 = arith.extui %9 : i1 to i32
    %c0_i32_9 = arith.constant 0 : i32
    %11 = arith.cmpi ne, %10, %c0_i32_9 : i32
    scf.if %11 {
      %c0_10 = arith.constant 0 : index
      %c0_11 = arith.constant 0 : index
      %12 = vector.load %arg8[%c0_10, %c0_11] : memref<32x128xf32, #tpu.memory_space<vmem>>, vector<32x128xf32>
      %c0_12 = arith.constant 0 : index
      %c0_13 = arith.constant 0 : index
      %13 = vector.load %arg5[%c0_12, %c0_13] : memref<1x128xf32, #tpu.memory_space<vmem>>, vector<1x128xf32>
      %14 = vector.broadcast %13 : vector<1x128xf32> to vector<32x128xf32>
      %15 = arith.mulf %12, %14 : vector<32x128xf32>
      %c0_14 = arith.constant 0 : index
      %c0_15 = arith.constant 0 : index
      %16 = vector.load %arg6[%c0_14, %c0_15] : memref<1x128xf32, #tpu.memory_space<vmem>>, vector<1x128xf32>
      %17 = vector.broadcast %16 : vector<1x128xf32> to vector<32x128xf32>
      %18 = arith.addf %15, %17 : vector<32x128xf32>
      %cst_16 = arith.constant 0.000000e+00 : f32
      %19 = vector.broadcast %cst_16 : f32 to vector<32x128xf32>
      %20 = arith.maximumf %18, %19 : vector<32x128xf32>
      %c0_17 = arith.constant 0 : index
      %c0_18 = arith.constant 0 : index
      %21 = vector.load %arg7[%c0_17, %c0_18] : memref<32x128xf32, #tpu.memory_space<vmem>>, vector<32x128xf32>
      tpu.vector_store %arg7[%c0_17, %c0_18], %20 {strides = array<i32>} : memref<32x128xf32, #tpu.memory_space<vmem>>, vector<32x128xf32>,
    } else {
    }
    return
  }
  func.func @transform_0(%arg0: i32, %arg1: i32, %arg2: i32) -> (i32, i32) {
    %c0_i32 = arith.constant 0 : i32
    return %arg0, %arg2 : i32, i32
  }
  func.func @transform_1(%arg0: i32, %arg1: i32, %arg2: i32) -> (i32, i32) {
    %c0_i32 = arith.constant 0 : i32
    return %arg2, %arg1 : i32, i32
  }
  func.func @transform_2(%arg0: i32, %arg1: i32, %arg2: i32) -> (i32, i32) {
    %c0_i32 = arith.constant 0 : i32
    %c0_i32_0 = arith.constant 0 : i32
    return %c0_i32, %arg1 : i32, i32
  }
  func.func @transform_3(%arg0: i32, %arg1: i32, %arg2: i32) -> (i32, i32) {
    %c0_i32 = arith.constant 0 : i32
    %c0_i32_0 = arith.constant 0 : i32
    return %c0_i32, %arg1 : i32, i32
  }
  func.func @transform_4(%arg0: i32, %arg1: i32, %arg2: i32) -> (i32, i32) {
    %c0_i32 = arith.constant 0 : i32
    return %arg0, %arg1 : i32, i32
  }
}

module attributes {stable_mosaic.version = 11 : i64} {
  func.func @_matmul_bn_act_kernel(%arg0: i32, %arg1: i32, %arg2: i32, %arg3: memref<32x128xbf16, #tpu.memory_space<vmem>>, %arg4: memref<128x128xbf16, #tpu.memory_space<vmem>>, %arg5: memref<1x128xf32, #tpu.memory_space<vmem>>, %arg6: memref<1x128xf32, #tpu.memory_space<vmem>>, %arg7: memref<32x128xf32, #tpu.memory_space<vmem>>, %arg8: memref<32x128xf32, #tpu.memory_space<vmem>>) attributes {dimension_semantics = [#tpu.dimension_semantics<parallel>, #tpu.dimension_semantics<parallel>, #tpu.dimension_semantics<arbitrary>], iteration_bounds = array<i64: 1, 1, 1>, scalar_prefetch = 0 : i64, scratch_operands = 1 : i64, tpu.core_type = #tpu.core_type<tc>, window_params = [{transform_indices = @transform_0, window_bounds = array<i64: 32, 128>}, {transform_indices = @transform_1, window_bounds = array<i64: 128, 128>}, {transform_indices = @transform_2, window_bounds = array<i64: 1, 128>}, {transform_indices = @transform_3, window_bounds = array<i64: 1, 128>}, {transform_indices = @transform_4, window_bounds = array<i64: 32, 128>}]} {
    %c0_i32 = arith.constant 0 : i32
    %0 = arith.cmpi eq, %arg2, %c0_i32 : i32
    %1 = arith.extui %0 : i1 to i32
    %c0_i32_0 = arith.constant 0 : i32
    %2 = arith.cmpi ne, %1, %c0_i32_0 : i32
    scf.if %2 {
      %cst_10 = arith.constant 0.000000e+00 : f32
      %12 = vector.broadcast %cst_10 : f32 to vector<32x128xf32>
      %c0_11 = arith.constant 0 : index
      %c0_12 = arith.constant 0 : index
      %13 = vector.load %arg8[%c0_11, %c0_12] : memref<32x128xf32, #tpu.memory_space<vmem>>, vector<32x128xf32>
      tpu.vector_store %arg8[%c0_11, %c0_12], %12 {strides = array<i32>} : memref<32x128xf32, #tpu.memory_space<vmem>>, vector<32x128xf32>,
    } else {
    }
    %c0 = arith.constant 0 : index
    %c0_1 = arith.constant 0 : index
    %3 = vector.load %arg8[%c0, %c0_1] : memref<32x128xf32, #tpu.memory_space<vmem>>, vector<32x128xf32>
    %c0_2 = arith.constant 0 : index
    %c0_3 = arith.constant 0 : index
    %4 = vector.load %arg3[%c0_2, %c0_3] : memref<32x128xbf16, #tpu.memory_space<vmem>>, vector<32x128xbf16>
    %c0_4 = arith.constant 0 : index
    %c0_5 = arith.constant 0 : index
    %5 = vector.load %arg4[%c0_4, %c0_5] : memref<128x128xbf16, #tpu.memory_space<vmem>>, vector<128x128xbf16>
    %cst = arith.constant dense<0.000000e+00> : vector<32x128xf32>
    %6 = tpu.matmul %4, %5, %cst {dimension_numbers = #tpu.dot_dimension_numbers<[1], [0], [0], [1], [0, 0, 1, 1], [], []>} : vector<32x128xbf16>, vector<128x128xbf16>, vector<32x128xf32> -> vector<32x128xf32>
    %7 = arith.addf %3, %6 : vector<32x128xf32>
    %c0_6 = arith.constant 0 : index
    %c0_7 = arith.constant 0 : index
    %8 = vector.load %arg8[%c0_6, %c0_7] : memref<32x128xf32, #tpu.memory_space<vmem>>, vector<32x128xf32>
    tpu.vector_store %arg8[%c0_6, %c0_7], %7 {strides = array<i32>} : memref<32x128xf32, #tpu.memory_space<vmem>>, vector<32x128xf32>,
    %c0_i32_8 = arith.constant 0 : i32
    %9 = arith.cmpi eq, %arg2, %c0_i32_8 : i32
    %10 = arith.extui %9 : i1 to i32
    %c0_i32_9 = arith.constant 0 : i32
    %11 = arith.cmpi ne, %10, %c0_i32_9 : i32
    scf.if %11 {
      %c0_10 = arith.constant 0 : index
      %c0_11 = arith.constant 0 : index
      %12 = vector.load %arg8[%c0_10, %c0_11] : memref<32x128xf32, #tpu.memory_space<vmem>>, vector<32x128xf32>
      %c0_12 = arith.constant 0 : index
      %c0_13 = arith.constant 0 : index
      %13 = vector.load %arg5[%c0_12, %c0_13] : memref<1x128xf32, #tpu.memory_space<vmem>>, vector<1x128xf32>
      %14 = vector.broadcast %13 : vector<1x128xf32> to vector<32x128xf32>
      %15 = arith.mulf %12, %14 : vector<32x128xf32>
      %c0_14 = arith.constant 0 : index
      %c0_15 = arith.constant 0 : index
      %16 = vector.load %arg6[%c0_14, %c0_15] : memref<1x128xf32, #tpu.memory_space<vmem>>, vector<1x128xf32>
      %17 = vector.broadcast %16 : vector<1x128xf32> to vector<32x128xf32>
      %18 = arith.addf %15, %17 : vector<32x128xf32>
      %c0_16 = arith.constant 0 : index
      %c0_17 = arith.constant 0 : index
      %19 = vector.load %arg7[%c0_16, %c0_17] : memref<32x128xf32, #tpu.memory_space<vmem>>, vector<32x128xf32>
      tpu.vector_store %arg7[%c0_16, %c0_17], %18 {strides = array<i32>} : memref<32x128xf32, #tpu.memory_space<vmem>>, vector<32x128xf32>,
    } else {
    }
    return
  }
  func.func @transform_0(%arg0: i32, %arg1: i32, %arg2: i32) -> (i32, i32) {
    %c0_i32 = arith.constant 0 : i32
    return %arg0, %arg2 : i32, i32
  }
  func.func @transform_1(%arg0: i32, %arg1: i32, %arg2: i32) -> (i32, i32) {
    %c0_i32 = arith.constant 0 : i32
    return %arg2, %arg1 : i32, i32
  }
  func.func @transform_2(%arg0: i32, %arg1: i32, %arg2: i32) -> (i32, i32) {
    %c0_i32 = arith.constant 0 : i32
    %c0_i32_0 = arith.constant 0 : i32
    return %c0_i32, %arg1 : i32, i32
  }
  func.func @transform_3(%arg0: i32, %arg1: i32, %arg2: i32) -> (i32, i32) {
    %c0_i32 = arith.constant 0 : i32
    %c0_i32_0 = arith.constant 0 : i32
    return %c0_i32, %arg1 : i32, i32
  }
  func.func @transform_4(%arg0: i32, %arg1: i32, %arg2: i32) -> (i32, i32) {
    %c0_i32 = arith.constant 0 : i32
    return %arg0, %arg1 : i32, i32
  }
}

module attributes {stable_mosaic.version = 11 : i64} {
  func.func @_matmul_bn_add_act_kernel(%arg0: i32, %arg1: i32, %arg2: i32, %arg3: memref<32x128xbf16, #tpu.memory_space<vmem>>, %arg4: memref<128x128xbf16, #tpu.memory_space<vmem>>, %arg5: memref<1x128xf32, #tpu.memory_space<vmem>>, %arg6: memref<1x128xf32, #tpu.memory_space<vmem>>, %arg7: memref<32x128xf32, #tpu.memory_space<vmem>>, %arg8: memref<32x128xf32, #tpu.memory_space<vmem>>, %arg9: memref<32x128xf32, #tpu.memory_space<vmem>>) attributes {dimension_semantics = [#tpu.dimension_semantics<parallel>, #tpu.dimension_semantics<parallel>, #tpu.dimension_semantics<arbitrary>], iteration_bounds = array<i64: 1, 1, 1>, scalar_prefetch = 0 : i64, scratch_operands = 1 : i64, tpu.core_type = #tpu.core_type<tc>, window_params = [{transform_indices = @transform_0, window_bounds = array<i64: 32, 128>}, {transform_indices = @transform_1, window_bounds = array<i64: 128, 128>}, {transform_indices = @transform_2, window_bounds = array<i64: 1, 128>}, {transform_indices = @transform_3, window_bounds = array<i64: 1, 128>}, {transform_indices = @transform_4, window_bounds = array<i64: 32, 128>}, {transform_indices = @transform_5, window_bounds = array<i64: 32, 128>}]} {
    %c0_i32 = arith.constant 0 : i32
    %0 = arith.cmpi eq, %arg2, %c0_i32 : i32
    %1 = arith.extui %0 : i1 to i32
    %c0_i32_0 = arith.constant 0 : i32
    %2 = arith.cmpi ne, %1, %c0_i32_0 : i32
    scf.if %2 {
      %cst_10 = arith.constant 0.000000e+00 : f32
      %12 = vector.broadcast %cst_10 : f32 to vector<32x128xf32>
      %c0_11 = arith.constant 0 : index
      %c0_12 = arith.constant 0 : index
      %13 = vector.load %arg9[%c0_11, %c0_12] : memref<32x128xf32, #tpu.memory_space<vmem>>, vector<32x128xf32>
      tpu.vector_store %arg9[%c0_11, %c0_12], %12 {strides = array<i32>} : memref<32x128xf32, #tpu.memory_space<vmem>>, vector<32x128xf32>,
    } else {
    }
    %c0 = arith.constant 0 : index
    %c0_1 = arith.constant 0 : index
    %3 = vector.load %arg9[%c0, %c0_1] : memref<32x128xf32, #tpu.memory_space<vmem>>, vector<32x128xf32>
    %c0_2 = arith.constant 0 : index
    %c0_3 = arith.constant 0 : index
    %4 = vector.load %arg3[%c0_2, %c0_3] : memref<32x128xbf16, #tpu.memory_space<vmem>>, vector<32x128xbf16>
    %c0_4 = arith.constant 0 : index
    %c0_5 = arith.constant 0 : index
    %5 = vector.load %arg4[%c0_4, %c0_5] : memref<128x128xbf16, #tpu.memory_space<vmem>>, vector<128x128xbf16>
    %cst = arith.constant dense<0.000000e+00> : vector<32x128xf32>
    %6 = tpu.matmul %4, %5, %cst {dimension_numbers = #tpu.dot_dimension_numbers<[1], [0], [0], [1], [0, 0, 1, 1], [], []>} : vector<32x128xbf16>, vector<128x128xbf16>, vector<32x128xf32> -> vector<32x128xf32>
    %7 = arith.addf %3, %6 : vector<32x128xf32>
    %c0_6 = arith.constant 0 : index
    %c0_7 = arith.constant 0 : index
    %8 = vector.load %arg9[%c0_6, %c0_7] : memref<32x128xf32, #tpu.memory_space<vmem>>, vector<32x128xf32>
    tpu.vector_store %arg9[%c0_6, %c0_7], %7 {strides = array<i32>} : memref<32x128xf32, #tpu.memory_space<vmem>>, vector<32x128xf32>,
    %c0_i32_8 = arith.constant 0 : i32
    %9 = arith.cmpi eq, %arg2, %c0_i32_8 : i32
    %10 = arith.extui %9 : i1 to i32
    %c0_i32_9 = arith.constant 0 : i32
    %11 = arith.cmpi ne, %10, %c0_i32_9 : i32
    scf.if %11 {
      %c0_10 = arith.constant 0 : index
      %c0_11 = arith.constant 0 : index
      %12 = vector.load %arg9[%c0_10, %c0_11] : memref<32x128xf32, #tpu.memory_space<vmem>>, vector<32x128xf32>
      %c0_12 = arith.constant 0 : index
      %c0_13 = arith.constant 0 : index
      %13 = vector.load %arg5[%c0_12, %c0_13] : memref<1x128xf32, #tpu.memory_space<vmem>>, vector<1x128xf32>
      %14 = vector.broadcast %13 : vector<1x128xf32> to vector<32x128xf32>
      %15 = arith.mulf %12, %14 : vector<32x128xf32>
      %c0_14 = arith.constant 0 : index
      %c0_15 = arith.constant 0 : index
      %16 = vector.load %arg6[%c0_14, %c0_15] : memref<1x128xf32, #tpu.memory_space<vmem>>, vector<1x128xf32>
      %17 = vector.broadcast %16 : vector<1x128xf32> to vector<32x128xf32>
      %18 = arith.addf %15, %17 : vector<32x128xf32>
      %c0_16 = arith.constant 0 : index
      %c0_17 = arith.constant 0 : index
      %19 = vector.load %arg7[%c0_16, %c0_17] : memref<32x128xf32, #tpu.memory_space<vmem>>, vector<32x128xf32>
      %20 = arith.addf %18, %19 : vector<32x128xf32>
      %cst_18 = arith.constant 0.000000e+00 : f32
      %21 = vector.broadcast %cst_18 : f32 to vector<32x128xf32>
      %22 = arith.maximumf %20, %21 : vector<32x128xf32>
      %c0_19 = arith.constant 0 : index
      %c0_20 = arith.constant 0 : index
      %23 = vector.load %arg8[%c0_19, %c0_20] : memref<32x128xf32, #tpu.memory_space<vmem>>, vector<32x128xf32>
      tpu.vector_store %arg8[%c0_19, %c0_20], %22 {strides = array<i32>} : memref<32x128xf32, #tpu.memory_space<vmem>>, vector<32x128xf32>,
    } else {
    }
    return
  }
  func.func @transform_0(%arg0: i32, %arg1: i32, %arg2: i32) -> (i32, i32) {
    %c0_i32 = arith.constant 0 : i32
    return %arg0, %arg2 : i32, i32
  }
  func.func @transform_1(%arg0: i32, %arg1: i32, %arg2: i32) -> (i32, i32) {
    %c0_i32 = arith.constant 0 : i32
    return %arg2, %arg1 : i32, i32
  }
  func.func @transform_2(%arg0: i32, %arg1: i32, %arg2: i32) -> (i32, i32) {
    %c0_i32 = arith.constant 0 : i32
    %c0_i32_0 = arith.constant 0 : i32
    return %c0_i32, %arg1 : i32, i32
  }
  func.func @transform_3(%arg0: i32, %arg1: i32, %arg2: i32) -> (i32, i32) {
    %c0_i32 = arith.constant 0 : i32
    %c0_i32_0 = arith.constant 0 : i32
    return %c0_i32, %arg1 : i32, i32
  }
  func.func @transform_4(%arg0: i32, %arg1: i32, %arg2: i32) -> (i32, i32) {
    %c0_i32 = arith.constant 0 : i32
    return %arg0, %arg1 : i32, i32
  }
  func.func @transform_5(%arg0: i32, %arg1: i32, %arg2: i32) -> (i32, i32) {
    %c0_i32 = arith.constant 0 : i32
    return %arg0, %arg1 : i32, i32
  }
}

module attributes {stable_mosaic.version = 11 : i64} {
  func.func @_matmul_bn_act_kernel(%arg0: i32, %arg1: i32, %arg2: i32, %arg3: memref<32x128xbf16, #tpu.memory_space<vmem>>, %arg4: memref<128x128xbf16, #tpu.memory_space<vmem>>, %arg5: memref<1x128xf32, #tpu.memory_space<vmem>>, %arg6: memref<1x128xf32, #tpu.memory_space<vmem>>, %arg7: memref<32x128xf32, #tpu.memory_space<vmem>>, %arg8: memref<32x128xf32, #tpu.memory_space<vmem>>) attributes {dimension_semantics = [#tpu.dimension_semantics<parallel>, #tpu.dimension_semantics<parallel>, #tpu.dimension_semantics<arbitrary>], iteration_bounds = array<i64: 1, 1, 1>, scalar_prefetch = 0 : i64, scratch_operands = 1 : i64, tpu.core_type = #tpu.core_type<tc>, window_params = [{transform_indices = @transform_0, window_bounds = array<i64: 32, 128>}, {transform_indices = @transform_1, window_bounds = array<i64: 128, 128>}, {transform_indices = @transform_2, window_bounds = array<i64: 1, 128>}, {transform_indices = @transform_3, window_bounds = array<i64: 1, 128>}, {transform_indices = @transform_4, window_bounds = array<i64: 32, 128>}]} {
    %c0_i32 = arith.constant 0 : i32
    %0 = arith.cmpi eq, %arg2, %c0_i32 : i32
    %1 = arith.extui %0 : i1 to i32
    %c0_i32_0 = arith.constant 0 : i32
    %2 = arith.cmpi ne, %1, %c0_i32_0 : i32
    scf.if %2 {
      %cst_10 = arith.constant 0.000000e+00 : f32
      %12 = vector.broadcast %cst_10 : f32 to vector<32x128xf32>
      %c0_11 = arith.constant 0 : index
      %c0_12 = arith.constant 0 : index
      %13 = vector.load %arg8[%c0_11, %c0_12] : memref<32x128xf32, #tpu.memory_space<vmem>>, vector<32x128xf32>
      tpu.vector_store %arg8[%c0_11, %c0_12], %12 {strides = array<i32>} : memref<32x128xf32, #tpu.memory_space<vmem>>, vector<32x128xf32>,
    } else {
    }
    %c0 = arith.constant 0 : index
    %c0_1 = arith.constant 0 : index
    %3 = vector.load %arg8[%c0, %c0_1] : memref<32x128xf32, #tpu.memory_space<vmem>>, vector<32x128xf32>
    %c0_2 = arith.constant 0 : index
    %c0_3 = arith.constant 0 : index
    %4 = vector.load %arg3[%c0_2, %c0_3] : memref<32x128xbf16, #tpu.memory_space<vmem>>, vector<32x128xbf16>
    %c0_4 = arith.constant 0 : index
    %c0_5 = arith.constant 0 : index
    %5 = vector.load %arg4[%c0_4, %c0_5] : memref<128x128xbf16, #tpu.memory_space<vmem>>, vector<128x128xbf16>
    %cst = arith.constant dense<0.000000e+00> : vector<32x128xf32>
    %6 = tpu.matmul %4, %5, %cst {dimension_numbers = #tpu.dot_dimension_numbers<[1], [0], [0], [1], [0, 0, 1, 1], [], []>} : vector<32x128xbf16>, vector<128x128xbf16>, vector<32x128xf32> -> vector<32x128xf32>
    %7 = arith.addf %3, %6 : vector<32x128xf32>
    %c0_6 = arith.constant 0 : index
    %c0_7 = arith.constant 0 : index
    %8 = vector.load %arg8[%c0_6, %c0_7] : memref<32x128xf32, #tpu.memory_space<vmem>>, vector<32x128xf32>
    tpu.vector_store %arg8[%c0_6, %c0_7], %7 {strides = array<i32>} : memref<32x128xf32, #tpu.memory_space<vmem>>, vector<32x128xf32>,
    %c0_i32_8 = arith.constant 0 : i32
    %9 = arith.cmpi eq, %arg2, %c0_i32_8 : i32
    %10 = arith.extui %9 : i1 to i32
    %c0_i32_9 = arith.constant 0 : i32
    %11 = arith.cmpi ne, %10, %c0_i32_9 : i32
    scf.if %11 {
      %c0_10 = arith.constant 0 : index
      %c0_11 = arith.constant 0 : index
      %12 = vector.load %arg8[%c0_10, %c0_11] : memref<32x128xf32, #tpu.memory_space<vmem>>, vector<32x128xf32>
      %c0_12 = arith.constant 0 : index
      %c0_13 = arith.constant 0 : index
      %13 = vector.load %arg5[%c0_12, %c0_13] : memref<1x128xf32, #tpu.memory_space<vmem>>, vector<1x128xf32>
      %14 = vector.broadcast %13 : vector<1x128xf32> to vector<32x128xf32>
      %15 = arith.mulf %12, %14 : vector<32x128xf32>
      %c0_14 = arith.constant 0 : index
      %c0_15 = arith.constant 0 : index
      %16 = vector.load %arg6[%c0_14, %c0_15] : memref<1x128xf32, #tpu.memory_space<vmem>>, vector<1x128xf32>
      %17 = vector.broadcast %16 : vector<1x128xf32> to vector<32x128xf32>
      %18 = arith.addf %15, %17 : vector<32x128xf32>
      %cst_16 = arith.constant 0.000000e+00 : f32
      %19 = vector.broadcast %cst_16 : f32 to vector<32x128xf32>
      %20 = arith.maximumf %18, %19 : vector<32x128xf32>
      %c0_17 = arith.constant 0 : index
      %c0_18 = arith.constant 0 : index
      %21 = vector.load %arg7[%c0_17, %c0_18] : memref<32x128xf32, #tpu.memory_space<vmem>>, vector<32x128xf32>
      tpu.vector_store %arg7[%c0_17, %c0_18], %20 {strides = array<i32>} : memref<32x128xf32, #tpu.memory_space<vmem>>, vector<32x128xf32>,
    } else {
    }
    return
  }
  func.func @transform_0(%arg0: i32, %arg1: i32, %arg2: i32) -> (i32, i32) {
    %c0_i32 = arith.constant 0 : i32
    return %arg0, %arg2 : i32, i32
  }
  func.func @transform_1(%arg0: i32, %arg1: i32, %arg2: i32) -> (i32, i32) {
    %c0_i32 = arith.constant 0 : i32
    return %arg2, %arg1 : i32, i32
  }
  func.func @transform_2(%arg0: i32, %arg1: i32, %arg2: i32) -> (i32, i32) {
    %c0_i32 = arith.constant 0 : i32
    %c0_i32_0 = arith.constant 0 : i32
    return %c0_i32, %arg1 : i32, i32
  }
  func.func @transform_3(%arg0: i32, %arg1: i32, %arg2: i32) -> (i32, i32) {
    %c0_i32 = arith.constant 0 : i32
    %c0_i32_0 = arith.constant 0 : i32
    return %c0_i32, %arg1 : i32, i32
  }
  func.func @transform_4(%arg0: i32, %arg1: i32, %arg2: i32) -> (i32, i32) {
    %c0_i32 = arith.constant 0 : i32
    return %arg0, %arg1 : i32, i32
  }
}

module attributes {stable_mosaic.version = 11 : i64} {
  func.func @_matmul_bn_act_kernel(%arg0: i32, %arg1: i32, %arg2: i32, %arg3: memref<8x384xbf16, #tpu.memory_space<vmem>>, %arg4: memref<384x128xbf16, #tpu.memory_space<vmem>>, %arg5: memref<1x128xf32, #tpu.memory_space<vmem>>, %arg6: memref<1x128xf32, #tpu.memory_space<vmem>>, %arg7: memref<8x128xf32, #tpu.memory_space<vmem>>, %arg8: memref<8x128xf32, #tpu.memory_space<vmem>>) attributes {dimension_semantics = [#tpu.dimension_semantics<parallel>, #tpu.dimension_semantics<parallel>, #tpu.dimension_semantics<arbitrary>], iteration_bounds = array<i64: 1, 1, 1>, scalar_prefetch = 0 : i64, scratch_operands = 1 : i64, tpu.core_type = #tpu.core_type<tc>, window_params = [{transform_indices = @transform_0, window_bounds = array<i64: 8, 384>}, {transform_indices = @transform_1, window_bounds = array<i64: 384, 128>}, {transform_indices = @transform_2, window_bounds = array<i64: 1, 128>}, {transform_indices = @transform_3, window_bounds = array<i64: 1, 128>}, {transform_indices = @transform_4, window_bounds = array<i64: 8, 128>}]} {
    %c0_i32 = arith.constant 0 : i32
    %0 = arith.cmpi eq, %arg2, %c0_i32 : i32
    %1 = arith.extui %0 : i1 to i32
    %c0_i32_0 = arith.constant 0 : i32
    %2 = arith.cmpi ne, %1, %c0_i32_0 : i32
    scf.if %2 {
      %cst_10 = arith.constant 0.000000e+00 : f32
      %12 = vector.broadcast %cst_10 : f32 to vector<8x128xf32>
      %c0_11 = arith.constant 0 : index
      %c0_12 = arith.constant 0 : index
      %13 = vector.load %arg8[%c0_11, %c0_12] : memref<8x128xf32, #tpu.memory_space<vmem>>, vector<8x128xf32>
      tpu.vector_store %arg8[%c0_11, %c0_12], %12 {strides = array<i32>} : memref<8x128xf32, #tpu.memory_space<vmem>>, vector<8x128xf32>,
    } else {
    }
    %c0 = arith.constant 0 : index
    %c0_1 = arith.constant 0 : index
    %3 = vector.load %arg8[%c0, %c0_1] : memref<8x128xf32, #tpu.memory_space<vmem>>, vector<8x128xf32>
    %c0_2 = arith.constant 0 : index
    %c0_3 = arith.constant 0 : index
    %4 = vector.load %arg3[%c0_2, %c0_3] : memref<8x384xbf16, #tpu.memory_space<vmem>>, vector<8x384xbf16>
    %c0_4 = arith.constant 0 : index
    %c0_5 = arith.constant 0 : index
    %5 = vector.load %arg4[%c0_4, %c0_5] : memref<384x128xbf16, #tpu.memory_space<vmem>>, vector<384x128xbf16>
    %cst = arith.constant dense<0.000000e+00> : vector<8x128xf32>
    %6 = tpu.matmul %4, %5, %cst {dimension_numbers = #tpu.dot_dimension_numbers<[1], [0], [0], [1], [0, 0, 1, 1], [], []>} : vector<8x384xbf16>, vector<384x128xbf16>, vector<8x128xf32> -> vector<8x128xf32>
    %7 = arith.addf %3, %6 : vector<8x128xf32>
    %c0_6 = arith.constant 0 : index
    %c0_7 = arith.constant 0 : index
    %8 = vector.load %arg8[%c0_6, %c0_7] : memref<8x128xf32, #tpu.memory_space<vmem>>, vector<8x128xf32>
    tpu.vector_store %arg8[%c0_6, %c0_7], %7 {strides = array<i32>} : memref<8x128xf32, #tpu.memory_space<vmem>>, vector<8x128xf32>,
    %c0_i32_8 = arith.constant 0 : i32
    %9 = arith.cmpi eq, %arg2, %c0_i32_8 : i32
    %10 = arith.extui %9 : i1 to i32
    %c0_i32_9 = arith.constant 0 : i32
    %11 = arith.cmpi ne, %10, %c0_i32_9 : i32
    scf.if %11 {
      %c0_10 = arith.constant 0 : index
      %c0_11 = arith.constant 0 : index
      %12 = vector.load %arg8[%c0_10, %c0_11] : memref<8x128xf32, #tpu.memory_space<vmem>>, vector<8x128xf32>
      %c0_12 = arith.constant 0 : index
      %c0_13 = arith.constant 0 : index
      %13 = vector.load %arg5[%c0_12, %c0_13] : memref<1x128xf32, #tpu.memory_space<vmem>>, vector<1x128xf32>
      %14 = vector.broadcast %13 : vector<1x128xf32> to vector<8x128xf32>
      %15 = arith.mulf %12, %14 : vector<8x128xf32>
      %c0_14 = arith.constant 0 : index
      %c0_15 = arith.constant 0 : index
      %16 = vector.load %arg6[%c0_14, %c0_15] : memref<1x128xf32, #tpu.memory_space<vmem>>, vector<1x128xf32>
      %17 = vector.broadcast %16 : vector<1x128xf32> to vector<8x128xf32>
      %18 = arith.addf %15, %17 : vector<8x128xf32>
      %cst_16 = arith.constant 0.000000e+00 : f32
      %19 = vector.broadcast %cst_16 : f32 to vector<8x128xf32>
      %20 = arith.maximumf %18, %19 : vector<8x128xf32>
      %c0_17 = arith.constant 0 : index
      %c0_18 = arith.constant 0 : index
      %21 = vector.load %arg7[%c0_17, %c0_18] : memref<8x128xf32, #tpu.memory_space<vmem>>, vector<8x128xf32>
      tpu.vector_store %arg7[%c0_17, %c0_18], %20 {strides = array<i32>} : memref<8x128xf32, #tpu.memory_space<vmem>>, vector<8x128xf32>,
    } else {
    }
    return
  }
  func.func @transform_0(%arg0: i32, %arg1: i32, %arg2: i32) -> (i32, i32) {
    %c0_i32 = arith.constant 0 : i32
    return %arg0, %arg2 : i32, i32
  }
  func.func @transform_1(%arg0: i32, %arg1: i32, %arg2: i32) -> (i32, i32) {
    %c0_i32 = arith.constant 0 : i32
    return %arg2, %arg1 : i32, i32
  }
  func.func @transform_2(%arg0: i32, %arg1: i32, %arg2: i32) -> (i32, i32) {
    %c0_i32 = arith.constant 0 : i32
    %c0_i32_0 = arith.constant 0 : i32
    return %c0_i32, %arg1 : i32, i32
  }
  func.func @transform_3(%arg0: i32, %arg1: i32, %arg2: i32) -> (i32, i32) {
    %c0_i32 = arith.constant 0 : i32
    %c0_i32_0 = arith.constant 0 : i32
    return %c0_i32, %arg1 : i32, i32
  }
  func.func @transform_4(%arg0: i32, %arg1: i32, %arg2: i32) -> (i32, i32) {
    %c0_i32 = arith.constant 0 : i32
    return %arg0, %arg1 : i32, i32
  }
}

module attributes {stable_mosaic.version = 11 : i64} {
  func.func @_matmul_bn_act_kernel(%arg0: i32, %arg1: i32, %arg2: i32, %arg3: memref<8x128xbf16, #tpu.memory_space<vmem>>, %arg4: memref<128x128xbf16, #tpu.memory_space<vmem>>, %arg5: memref<1x128xf32, #tpu.memory_space<vmem>>, %arg6: memref<1x128xf32, #tpu.memory_space<vmem>>, %arg7: memref<8x128xf32, #tpu.memory_space<vmem>>, %arg8: memref<8x128xf32, #tpu.memory_space<vmem>>) attributes {dimension_semantics = [#tpu.dimension_semantics<parallel>, #tpu.dimension_semantics<parallel>, #tpu.dimension_semantics<arbitrary>], iteration_bounds = array<i64: 1, 1, 1>, scalar_prefetch = 0 : i64, scratch_operands = 1 : i64, tpu.core_type = #tpu.core_type<tc>, window_params = [{transform_indices = @transform_0, window_bounds = array<i64: 8, 128>}, {transform_indices = @transform_1, window_bounds = array<i64: 128, 128>}, {transform_indices = @transform_2, window_bounds = array<i64: 1, 128>}, {transform_indices = @transform_3, window_bounds = array<i64: 1, 128>}, {transform_indices = @transform_4, window_bounds = array<i64: 8, 128>}]} {
    %c0_i32 = arith.constant 0 : i32
    %0 = arith.cmpi eq, %arg2, %c0_i32 : i32
    %1 = arith.extui %0 : i1 to i32
    %c0_i32_0 = arith.constant 0 : i32
    %2 = arith.cmpi ne, %1, %c0_i32_0 : i32
    scf.if %2 {
      %cst_10 = arith.constant 0.000000e+00 : f32
      %12 = vector.broadcast %cst_10 : f32 to vector<8x128xf32>
      %c0_11 = arith.constant 0 : index
      %c0_12 = arith.constant 0 : index
      %13 = vector.load %arg8[%c0_11, %c0_12] : memref<8x128xf32, #tpu.memory_space<vmem>>, vector<8x128xf32>
      tpu.vector_store %arg8[%c0_11, %c0_12], %12 {strides = array<i32>} : memref<8x128xf32, #tpu.memory_space<vmem>>, vector<8x128xf32>,
    } else {
    }
    %c0 = arith.constant 0 : index
    %c0_1 = arith.constant 0 : index
    %3 = vector.load %arg8[%c0, %c0_1] : memref<8x128xf32, #tpu.memory_space<vmem>>, vector<8x128xf32>
    %c0_2 = arith.constant 0 : index
    %c0_3 = arith.constant 0 : index
    %4 = vector.load %arg3[%c0_2, %c0_3] : memref<8x128xbf16, #tpu.memory_space<vmem>>, vector<8x128xbf16>
    %c0_4 = arith.constant 0 : index
    %c0_5 = arith.constant 0 : index
    %5 = vector.load %arg4[%c0_4, %c0_5] : memref<128x128xbf16, #tpu.memory_space<vmem>>, vector<128x128xbf16>
    %cst = arith.constant dense<0.000000e+00> : vector<8x128xf32>
    %6 = tpu.matmul %4, %5, %cst {dimension_numbers = #tpu.dot_dimension_numbers<[1], [0], [0], [1], [0, 0, 1, 1], [], []>} : vector<8x128xbf16>, vector<128x128xbf16>, vector<8x128xf32> -> vector<8x128xf32>
    %7 = arith.addf %3, %6 : vector<8x128xf32>
    %c0_6 = arith.constant 0 : index
    %c0_7 = arith.constant 0 : index
    %8 = vector.load %arg8[%c0_6, %c0_7] : memref<8x128xf32, #tpu.memory_space<vmem>>, vector<8x128xf32>
    tpu.vector_store %arg8[%c0_6, %c0_7], %7 {strides = array<i32>} : memref<8x128xf32, #tpu.memory_space<vmem>>, vector<8x128xf32>,
    %c0_i32_8 = arith.constant 0 : i32
    %9 = arith.cmpi eq, %arg2, %c0_i32_8 : i32
    %10 = arith.extui %9 : i1 to i32
    %c0_i32_9 = arith.constant 0 : i32
    %11 = arith.cmpi ne, %10, %c0_i32_9 : i32
    scf.if %11 {
      %c0_10 = arith.constant 0 : index
      %c0_11 = arith.constant 0 : index
      %12 = vector.load %arg8[%c0_10, %c0_11] : memref<8x128xf32, #tpu.memory_space<vmem>>, vector<8x128xf32>
      %c0_12 = arith.constant 0 : index
      %c0_13 = arith.constant 0 : index
      %13 = vector.load %arg5[%c0_12, %c0_13] : memref<1x128xf32, #tpu.memory_space<vmem>>, vector<1x128xf32>
      %14 = vector.broadcast %13 : vector<1x128xf32> to vector<8x128xf32>
      %15 = arith.mulf %12, %14 : vector<8x128xf32>
      %c0_14 = arith.constant 0 : index
      %c0_15 = arith.constant 0 : index
      %16 = vector.load %arg6[%c0_14, %c0_15] : memref<1x128xf32, #tpu.memory_space<vmem>>, vector<1x128xf32>
      %17 = vector.broadcast %16 : vector<1x128xf32> to vector<8x128xf32>
      %18 = arith.addf %15, %17 : vector<8x128xf32>
      %c0_16 = arith.constant 0 : index
      %c0_17 = arith.constant 0 : index
      %19 = vector.load %arg7[%c0_16, %c0_17] : memref<8x128xf32, #tpu.memory_space<vmem>>, vector<8x128xf32>
      tpu.vector_store %arg7[%c0_16, %c0_17], %18 {strides = array<i32>} : memref<8x128xf32, #tpu.memory_space<vmem>>, vector<8x128xf32>,
    } else {
    }
    return
  }
  func.func @transform_0(%arg0: i32, %arg1: i32, %arg2: i32) -> (i32, i32) {
    %c0_i32 = arith.constant 0 : i32
    return %arg0, %arg2 : i32, i32
  }
  func.func @transform_1(%arg0: i32, %arg1: i32, %arg2: i32) -> (i32, i32) {
    %c0_i32 = arith.constant 0 : i32
    return %arg2, %arg1 : i32, i32
  }
  func.func @transform_2(%arg0: i32, %arg1: i32, %arg2: i32) -> (i32, i32) {
    %c0_i32 = arith.constant 0 : i32
    %c0_i32_0 = arith.constant 0 : i32
    return %c0_i32, %arg1 : i32, i32
  }
  func.func @transform_3(%arg0: i32, %arg1: i32, %arg2: i32) -> (i32, i32) {
    %c0_i32 = arith.constant 0 : i32
    %c0_i32_0 = arith.constant 0 : i32
    return %c0_i32, %arg1 : i32, i32
  }
  func.func @transform_4(%arg0: i32, %arg1: i32, %arg2: i32) -> (i32, i32) {
    %c0_i32 = arith.constant 0 : i32
    return %arg0, %arg1 : i32, i32
  }
}

module attributes {stable_mosaic.version = 11 : i64} {
  func.func @_matmul_bn_add_act_kernel(%arg0: i32, %arg1: i32, %arg2: i32, %arg3: memref<8x128xbf16, #tpu.memory_space<vmem>>, %arg4: memref<128x128xbf16, #tpu.memory_space<vmem>>, %arg5: memref<1x128xf32, #tpu.memory_space<vmem>>, %arg6: memref<1x128xf32, #tpu.memory_space<vmem>>, %arg7: memref<8x128xf32, #tpu.memory_space<vmem>>, %arg8: memref<8x128xf32, #tpu.memory_space<vmem>>, %arg9: memref<8x128xf32, #tpu.memory_space<vmem>>) attributes {dimension_semantics = [#tpu.dimension_semantics<parallel>, #tpu.dimension_semantics<parallel>, #tpu.dimension_semantics<arbitrary>], iteration_bounds = array<i64: 1, 1, 1>, scalar_prefetch = 0 : i64, scratch_operands = 1 : i64, tpu.core_type = #tpu.core_type<tc>, window_params = [{transform_indices = @transform_0, window_bounds = array<i64: 8, 128>}, {transform_indices = @transform_1, window_bounds = array<i64: 128, 128>}, {transform_indices = @transform_2, window_bounds = array<i64: 1, 128>}, {transform_indices = @transform_3, window_bounds = array<i64: 1, 128>}, {transform_indices = @transform_4, window_bounds = array<i64: 8, 128>}, {transform_indices = @transform_5, window_bounds = array<i64: 8, 128>}]} {
    %c0_i32 = arith.constant 0 : i32
    %0 = arith.cmpi eq, %arg2, %c0_i32 : i32
    %1 = arith.extui %0 : i1 to i32
    %c0_i32_0 = arith.constant 0 : i32
    %2 = arith.cmpi ne, %1, %c0_i32_0 : i32
    scf.if %2 {
      %cst_10 = arith.constant 0.000000e+00 : f32
      %12 = vector.broadcast %cst_10 : f32 to vector<8x128xf32>
      %c0_11 = arith.constant 0 : index
      %c0_12 = arith.constant 0 : index
      %13 = vector.load %arg9[%c0_11, %c0_12] : memref<8x128xf32, #tpu.memory_space<vmem>>, vector<8x128xf32>
      tpu.vector_store %arg9[%c0_11, %c0_12], %12 {strides = array<i32>} : memref<8x128xf32, #tpu.memory_space<vmem>>, vector<8x128xf32>,
    } else {
    }
    %c0 = arith.constant 0 : index
    %c0_1 = arith.constant 0 : index
    %3 = vector.load %arg9[%c0, %c0_1] : memref<8x128xf32, #tpu.memory_space<vmem>>, vector<8x128xf32>
    %c0_2 = arith.constant 0 : index
    %c0_3 = arith.constant 0 : index
    %4 = vector.load %arg3[%c0_2, %c0_3] : memref<8x128xbf16, #tpu.memory_space<vmem>>, vector<8x128xbf16>
    %c0_4 = arith.constant 0 : index
    %c0_5 = arith.constant 0 : index
    %5 = vector.load %arg4[%c0_4, %c0_5] : memref<128x128xbf16, #tpu.memory_space<vmem>>, vector<128x128xbf16>
    %cst = arith.constant dense<0.000000e+00> : vector<8x128xf32>
    %6 = tpu.matmul %4, %5, %cst {dimension_numbers = #tpu.dot_dimension_numbers<[1], [0], [0], [1], [0, 0, 1, 1], [], []>} : vector<8x128xbf16>, vector<128x128xbf16>, vector<8x128xf32> -> vector<8x128xf32>
    %7 = arith.addf %3, %6 : vector<8x128xf32>
    %c0_6 = arith.constant 0 : index
    %c0_7 = arith.constant 0 : index
    %8 = vector.load %arg9[%c0_6, %c0_7] : memref<8x128xf32, #tpu.memory_space<vmem>>, vector<8x128xf32>
    tpu.vector_store %arg9[%c0_6, %c0_7], %7 {strides = array<i32>} : memref<8x128xf32, #tpu.memory_space<vmem>>, vector<8x128xf32>,
    %c0_i32_8 = arith.constant 0 : i32
    %9 = arith.cmpi eq, %arg2, %c0_i32_8 : i32
    %10 = arith.extui %9 : i1 to i32
    %c0_i32_9 = arith.constant 0 : i32
    %11 = arith.cmpi ne, %10, %c0_i32_9 : i32
    scf.if %11 {
      %c0_10 = arith.constant 0 : index
      %c0_11 = arith.constant 0 : index
      %12 = vector.load %arg9[%c0_10, %c0_11] : memref<8x128xf32, #tpu.memory_space<vmem>>, vector<8x128xf32>
      %c0_12 = arith.constant 0 : index
      %c0_13 = arith.constant 0 : index
      %13 = vector.load %arg5[%c0_12, %c0_13] : memref<1x128xf32, #tpu.memory_space<vmem>>, vector<1x128xf32>
      %14 = vector.broadcast %13 : vector<1x128xf32> to vector<8x128xf32>
      %15 = arith.mulf %12, %14 : vector<8x128xf32>
      %c0_14 = arith.constant 0 : index
      %c0_15 = arith.constant 0 : index
      %16 = vector.load %arg6[%c0_14, %c0_15] : memref<1x128xf32, #tpu.memory_space<vmem>>, vector<1x128xf32>
      %17 = vector.broadcast %16 : vector<1x128xf32> to vector<8x128xf32>
      %18 = arith.addf %15, %17 : vector<8x128xf32>
      %c0_16 = arith.constant 0 : index
      %c0_17 = arith.constant 0 : index
      %19 = vector.load %arg7[%c0_16, %c0_17] : memref<8x128xf32, #tpu.memory_space<vmem>>, vector<8x128xf32>
      %20 = arith.addf %18, %19 : vector<8x128xf32>
      %cst_18 = arith.constant 0.000000e+00 : f32
      %21 = vector.broadcast %cst_18 : f32 to vector<8x128xf32>
      %22 = arith.maximumf %20, %21 : vector<8x128xf32>
      %c0_19 = arith.constant 0 : index
      %c0_20 = arith.constant 0 : index
      %23 = vector.load %arg8[%c0_19, %c0_20] : memref<8x128xf32, #tpu.memory_space<vmem>>, vector<8x128xf32>
      tpu.vector_store %arg8[%c0_19, %c0_20], %22 {strides = array<i32>} : memref<8x128xf32, #tpu.memory_space<vmem>>, vector<8x128xf32>,
    } else {
    }
    return
  }
  func.func @transform_0(%arg0: i32, %arg1: i32, %arg2: i32) -> (i32, i32) {
    %c0_i32 = arith.constant 0 : i32
    return %arg0, %arg2 : i32, i32
  }
  func.func @transform_1(%arg0: i32, %arg1: i32, %arg2: i32) -> (i32, i32) {
    %c0_i32 = arith.constant 0 : i32
    return %arg2, %arg1 : i32, i32
  }
  func.func @transform_2(%arg0: i32, %arg1: i32, %arg2: i32) -> (i32, i32) {
    %c0_i32 = arith.constant 0 : i32
    %c0_i32_0 = arith.constant 0 : i32
    return %c0_i32, %arg1 : i32, i32
  }
  func.func @transform_3(%arg0: i32, %arg1: i32, %arg2: i32) -> (i32, i32) {
    %c0_i32 = arith.constant 0 : i32
    %c0_i32_0 = arith.constant 0 : i32
    return %c0_i32, %arg1 : i32, i32
  }
  func.func @transform_4(%arg0: i32, %arg1: i32, %arg2: i32) -> (i32, i32) {
    %c0_i32 = arith.constant 0 : i32
    return %arg0, %arg1 : i32, i32
  }
  func.func @transform_5(%arg0: i32, %arg1: i32, %arg2: i32) -> (i32, i32) {
    %c0_i32 = arith.constant 0 : i32
    return %arg0, %arg1 : i32, i32
  }
}

module attributes {stable_mosaic.version = 11 : i64} {
  func.func @_matmul_bn_act_kernel(%arg0: i32, %arg1: i32, %arg2: i32, %arg3: memref<8x128xbf16, #tpu.memory_space<vmem>>, %arg4: memref<128x128xbf16, #tpu.memory_space<vmem>>, %arg5: memref<1x128xf32, #tpu.memory_space<vmem>>, %arg6: memref<1x128xf32, #tpu.memory_space<vmem>>, %arg7: memref<8x128xf32, #tpu.memory_space<vmem>>, %arg8: memref<8x128xf32, #tpu.memory_space<vmem>>) attributes {dimension_semantics = [#tpu.dimension_semantics<parallel>, #tpu.dimension_semantics<parallel>, #tpu.dimension_semantics<arbitrary>], iteration_bounds = array<i64: 1, 1, 1>, scalar_prefetch = 0 : i64, scratch_operands = 1 : i64, tpu.core_type = #tpu.core_type<tc>, window_params = [{transform_indices = @transform_0, window_bounds = array<i64: 8, 128>}, {transform_indices = @transform_1, window_bounds = array<i64: 128, 128>}, {transform_indices = @transform_2, window_bounds = array<i64: 1, 128>}, {transform_indices = @transform_3, window_bounds = array<i64: 1, 128>}, {transform_indices = @transform_4, window_bounds = array<i64: 8, 128>}]} {
    %c0_i32 = arith.constant 0 : i32
    %0 = arith.cmpi eq, %arg2, %c0_i32 : i32
    %1 = arith.extui %0 : i1 to i32
    %c0_i32_0 = arith.constant 0 : i32
    %2 = arith.cmpi ne, %1, %c0_i32_0 : i32
    scf.if %2 {
      %cst_10 = arith.constant 0.000000e+00 : f32
      %12 = vector.broadcast %cst_10 : f32 to vector<8x128xf32>
      %c0_11 = arith.constant 0 : index
      %c0_12 = arith.constant 0 : index
      %13 = vector.load %arg8[%c0_11, %c0_12] : memref<8x128xf32, #tpu.memory_space<vmem>>, vector<8x128xf32>
      tpu.vector_store %arg8[%c0_11, %c0_12], %12 {strides = array<i32>} : memref<8x128xf32, #tpu.memory_space<vmem>>, vector<8x128xf32>,
    } else {
    }
    %c0 = arith.constant 0 : index
    %c0_1 = arith.constant 0 : index
    %3 = vector.load %arg8[%c0, %c0_1] : memref<8x128xf32, #tpu.memory_space<vmem>>, vector<8x128xf32>
    %c0_2 = arith.constant 0 : index
    %c0_3 = arith.constant 0 : index
    %4 = vector.load %arg3[%c0_2, %c0_3] : memref<8x128xbf16, #tpu.memory_space<vmem>>, vector<8x128xbf16>
    %c0_4 = arith.constant 0 : index
    %c0_5 = arith.constant 0 : index
    %5 = vector.load %arg4[%c0_4, %c0_5] : memref<128x128xbf16, #tpu.memory_space<vmem>>, vector<128x128xbf16>
    %cst = arith.constant dense<0.000000e+00> : vector<8x128xf32>
    %6 = tpu.matmul %4, %5, %cst {dimension_numbers = #tpu.dot_dimension_numbers<[1], [0], [0], [1], [0, 0, 1, 1], [], []>} : vector<8x128xbf16>, vector<128x128xbf16>, vector<8x128xf32> -> vector<8x128xf32>
    %7 = arith.addf %3, %6 : vector<8x128xf32>
    %c0_6 = arith.constant 0 : index
    %c0_7 = arith.constant 0 : index
    %8 = vector.load %arg8[%c0_6, %c0_7] : memref<8x128xf32, #tpu.memory_space<vmem>>, vector<8x128xf32>
    tpu.vector_store %arg8[%c0_6, %c0_7], %7 {strides = array<i32>} : memref<8x128xf32, #tpu.memory_space<vmem>>, vector<8x128xf32>,
    %c0_i32_8 = arith.constant 0 : i32
    %9 = arith.cmpi eq, %arg2, %c0_i32_8 : i32
    %10 = arith.extui %9 : i1 to i32
    %c0_i32_9 = arith.constant 0 : i32
    %11 = arith.cmpi ne, %10, %c0_i32_9 : i32
    scf.if %11 {
      %c0_10 = arith.constant 0 : index
      %c0_11 = arith.constant 0 : index
      %12 = vector.load %arg8[%c0_10, %c0_11] : memref<8x128xf32, #tpu.memory_space<vmem>>, vector<8x128xf32>
      %c0_12 = arith.constant 0 : index
      %c0_13 = arith.constant 0 : index
      %13 = vector.load %arg5[%c0_12, %c0_13] : memref<1x128xf32, #tpu.memory_space<vmem>>, vector<1x128xf32>
      %14 = vector.broadcast %13 : vector<1x128xf32> to vector<8x128xf32>
      %15 = arith.mulf %12, %14 : vector<8x128xf32>
      %c0_14 = arith.constant 0 : index
      %c0_15 = arith.constant 0 : index
      %16 = vector.load %arg6[%c0_14, %c0_15] : memref<1x128xf32, #tpu.memory_space<vmem>>, vector<1x128xf32>
      %17 = vector.broadcast %16 : vector<1x128xf32> to vector<8x128xf32>
      %18 = arith.addf %15, %17 : vector<8x128xf32>
      %cst_16 = arith.constant 0.000000e+00 : f32
      %19 = vector.broadcast %cst_16 : f32 to vector<8x128xf32>
      %20 = arith.maximumf %18, %19 : vector<8x128xf32>
      %c0_17 = arith.constant 0 : index
      %c0_18 = arith.constant 0 : index
      %21 = vector.load %arg7[%c0_17, %c0_18] : memref<8x128xf32, #tpu.memory_space<vmem>>, vector<8x128xf32>
      tpu.vector_store %arg7[%c0_17, %c0_18], %20 {strides = array<i32>} : memref<8x128xf32, #tpu.memory_space<vmem>>, vector<8x128xf32>,
    } else {
    }
    return
  }
  func.func @transform_0(%arg0: i32, %arg1: i32, %arg2: i32) -> (i32, i32) {
    %c0_i32 = arith.constant 0 : i32
    return %arg0, %arg2 : i32, i32
  }
  func.func @transform_1(%arg0: i32, %arg1: i32, %arg2: i32) -> (i32, i32) {
    %c0_i32 = arith.constant 0 : i32
    return %arg2, %arg1 : i32, i32
  }
  func.func @transform_2(%arg0: i32, %arg1: i32, %arg2: i32) -> (i32, i32) {
    %c0_i32 = arith.constant 0 : i32
    %c0_i32_0 = arith.constant 0 : i32
    return %c0_i32, %arg1 : i32, i32
  }
  func.func @transform_3(%arg0: i32, %arg1: i32, %arg2: i32) -> (i32, i32) {
    %c0_i32 = arith.constant 0 : i32
    %c0_i32_0 = arith.constant 0 : i32
    return %c0_i32, %arg1 : i32, i32
  }
  func.func @transform_4(%arg0: i32, %arg1: i32, %arg2: i32) -> (i32, i32) {
    %c0_i32 = arith.constant 0 : i32
    return %arg0, %arg1 : i32, i32
  }
}

module attributes {stable_mosaic.version = 11 : i64} {
  func.func @_matmul_bn_act_kernel(%arg0: i32, %arg1: i32, %arg2: i32, %arg3: memref<8x128xbf16, #tpu.memory_space<vmem>>, %arg4: memref<128x128xbf16, #tpu.memory_space<vmem>>, %arg5: memref<1x128xf32, #tpu.memory_space<vmem>>, %arg6: memref<1x128xf32, #tpu.memory_space<vmem>>, %arg7: memref<8x128xf32, #tpu.memory_space<vmem>>, %arg8: memref<8x128xf32, #tpu.memory_space<vmem>>) attributes {dimension_semantics = [#tpu.dimension_semantics<parallel>, #tpu.dimension_semantics<parallel>, #tpu.dimension_semantics<arbitrary>], iteration_bounds = array<i64: 1, 1, 5>, scalar_prefetch = 0 : i64, scratch_operands = 1 : i64, tpu.core_type = #tpu.core_type<tc>, window_params = [{transform_indices = @transform_0, window_bounds = array<i64: 8, 128>}, {transform_indices = @transform_1, window_bounds = array<i64: 128, 128>}, {transform_indices = @transform_2, window_bounds = array<i64: 1, 128>}, {transform_indices = @transform_3, window_bounds = array<i64: 1, 128>}, {transform_indices = @transform_4, window_bounds = array<i64: 8, 128>}]} {
    %c0_i32 = arith.constant 0 : i32
    %0 = arith.cmpi eq, %arg2, %c0_i32 : i32
    %1 = arith.extui %0 : i1 to i32
    %c0_i32_0 = arith.constant 0 : i32
    %2 = arith.cmpi ne, %1, %c0_i32_0 : i32
    scf.if %2 {
      %cst_9 = arith.constant 0.000000e+00 : f32
      %12 = vector.broadcast %cst_9 : f32 to vector<8x128xf32>
      %c0_10 = arith.constant 0 : index
      %c0_11 = arith.constant 0 : index
      %13 = vector.load %arg8[%c0_10, %c0_11] : memref<8x128xf32, #tpu.memory_space<vmem>>, vector<8x128xf32>
      tpu.vector_store %arg8[%c0_10, %c0_11], %12 {strides = array<i32>} : memref<8x128xf32, #tpu.memory_space<vmem>>, vector<8x128xf32>,
    } else {
    }
    %c0 = arith.constant 0 : index
    %c0_1 = arith.constant 0 : index
    %3 = vector.load %arg8[%c0, %c0_1] : memref<8x128xf32, #tpu.memory_space<vmem>>, vector<8x128xf32>
    %c0_2 = arith.constant 0 : index
    %c0_3 = arith.constant 0 : index
    %4 = vector.load %arg3[%c0_2, %c0_3] : memref<8x128xbf16, #tpu.memory_space<vmem>>, vector<8x128xbf16>
    %c0_4 = arith.constant 0 : index
    %c0_5 = arith.constant 0 : index
    %5 = vector.load %arg4[%c0_4, %c0_5] : memref<128x128xbf16, #tpu.memory_space<vmem>>, vector<128x128xbf16>
    %cst = arith.constant dense<0.000000e+00> : vector<8x128xf32>
    %6 = tpu.matmul %4, %5, %cst {dimension_numbers = #tpu.dot_dimension_numbers<[1], [0], [0], [1], [0, 0, 1, 1], [], []>} : vector<8x128xbf16>, vector<128x128xbf16>, vector<8x128xf32> -> vector<8x128xf32>
    %7 = arith.addf %3, %6 : vector<8x128xf32>
    %c0_6 = arith.constant 0 : index
    %c0_7 = arith.constant 0 : index
    %8 = vector.load %arg8[%c0_6, %c0_7] : memref<8x128xf32, #tpu.memory_space<vmem>>, vector<8x128xf32>
    tpu.vector_store %arg8[%c0_6, %c0_7], %7 {strides = array<i32>} : memref<8x128xf32, #tpu.memory_space<vmem>>, vector<8x128xf32>,
    %c4_i32 = arith.constant 4 : i32
    %9 = arith.cmpi eq, %arg2, %c4_i32 : i32
    %10 = arith.extui %9 : i1 to i32
    %c0_i32_8 = arith.constant 0 : i32
    %11 = arith.cmpi ne, %10, %c0_i32_8 : i32
    scf.if %11 {
      %c0_9 = arith.constant 0 : index
      %c0_10 = arith.constant 0 : index
      %12 = vector.load %arg8[%c0_9, %c0_10] : memref<8x128xf32, #tpu.memory_space<vmem>>, vector<8x128xf32>
      %c0_11 = arith.constant 0 : index
      %c0_12 = arith.constant 0 : index
      %13 = vector.load %arg5[%c0_11, %c0_12] : memref<1x128xf32, #tpu.memory_space<vmem>>, vector<1x128xf32>
      %14 = vector.broadcast %13 : vector<1x128xf32> to vector<8x128xf32>
      %15 = arith.mulf %12, %14 : vector<8x128xf32>
      %c0_13 = arith.constant 0 : index
      %c0_14 = arith.constant 0 : index
      %16 = vector.load %arg6[%c0_13, %c0_14] : memref<1x128xf32, #tpu.memory_space<vmem>>, vector<1x128xf32>
      %17 = vector.broadcast %16 : vector<1x128xf32> to vector<8x128xf32>
      %18 = arith.addf %15, %17 : vector<8x128xf32>
      %cst_15 = arith.constant 0.000000e+00 : f32
      %19 = vector.broadcast %cst_15 : f32 to vector<8x128xf32>
      %20 = arith.maximumf %18, %19 : vector<8x128xf32>
      %c0_16 = arith.constant 0 : index
      %c0_17 = arith.constant 0 : index
      %21 = vector.load %arg7[%c0_16, %c0_17] : memref<8x128xf32, #tpu.memory_space<vmem>>, vector<8x128xf32>
      tpu.vector_store %arg7[%c0_16, %c0_17], %20 {strides = array<i32>} : memref<8x128xf32, #tpu.memory_space<vmem>>, vector<8x128xf32>,
    } else {
    }
    return
  }
  func.func @transform_0(%arg0: i32, %arg1: i32, %arg2: i32) -> (i32, i32) {
    %c0_i32 = arith.constant 0 : i32
    return %arg0, %arg2 : i32, i32
  }
  func.func @transform_1(%arg0: i32, %arg1: i32, %arg2: i32) -> (i32, i32) {
    %c0_i32 = arith.constant 0 : i32
    return %arg2, %arg1 : i32, i32
  }
  func.func @transform_2(%arg0: i32, %arg1: i32, %arg2: i32) -> (i32, i32) {
    %c0_i32 = arith.constant 0 : i32
    %c0_i32_0 = arith.constant 0 : i32
    return %c0_i32, %arg1 : i32, i32
  }
  func.func @transform_3(%arg0: i32, %arg1: i32, %arg2: i32) -> (i32, i32) {
    %c0_i32 = arith.constant 0 : i32
    %c0_i32_0 = arith.constant 0 : i32
    return %c0_i32, %arg1 : i32, i32
  }
  func.func @transform_4(%arg0: i32, %arg1: i32, %arg2: i32) -> (i32, i32) {
    %c0_i32 = arith.constant 0 : i32
    return %arg0, %arg1 : i32, i32
  }
}

module attributes {stable_mosaic.version = 11 : i64} {
  func.func @_matmul_bn_act_kernel(%arg0: i32, %arg1: i32, %arg2: i32, %arg3: memref<8x128xbf16, #tpu.memory_space<vmem>>, %arg4: memref<128x256xbf16, #tpu.memory_space<vmem>>, %arg5: memref<1x256xf32, #tpu.memory_space<vmem>>, %arg6: memref<1x256xf32, #tpu.memory_space<vmem>>, %arg7: memref<8x256xf32, #tpu.memory_space<vmem>>, %arg8: memref<8x256xf32, #tpu.memory_space<vmem>>) attributes {dimension_semantics = [#tpu.dimension_semantics<parallel>, #tpu.dimension_semantics<parallel>, #tpu.dimension_semantics<arbitrary>], iteration_bounds = array<i64: 1, 1, 1>, scalar_prefetch = 0 : i64, scratch_operands = 1 : i64, tpu.core_type = #tpu.core_type<tc>, window_params = [{transform_indices = @transform_0, window_bounds = array<i64: 8, 128>}, {transform_indices = @transform_1, window_bounds = array<i64: 128, 256>}, {transform_indices = @transform_2, window_bounds = array<i64: 1, 256>}, {transform_indices = @transform_3, window_bounds = array<i64: 1, 256>}, {transform_indices = @transform_4, window_bounds = array<i64: 8, 256>}]} {
    %c0_i32 = arith.constant 0 : i32
    %0 = arith.cmpi eq, %arg2, %c0_i32 : i32
    %1 = arith.extui %0 : i1 to i32
    %c0_i32_0 = arith.constant 0 : i32
    %2 = arith.cmpi ne, %1, %c0_i32_0 : i32
    scf.if %2 {
      %cst_10 = arith.constant 0.000000e+00 : f32
      %12 = vector.broadcast %cst_10 : f32 to vector<8x256xf32>
      %c0_11 = arith.constant 0 : index
      %c0_12 = arith.constant 0 : index
      %13 = vector.load %arg8[%c0_11, %c0_12] : memref<8x256xf32, #tpu.memory_space<vmem>>, vector<8x256xf32>
      tpu.vector_store %arg8[%c0_11, %c0_12], %12 {strides = array<i32>} : memref<8x256xf32, #tpu.memory_space<vmem>>, vector<8x256xf32>,
    } else {
    }
    %c0 = arith.constant 0 : index
    %c0_1 = arith.constant 0 : index
    %3 = vector.load %arg8[%c0, %c0_1] : memref<8x256xf32, #tpu.memory_space<vmem>>, vector<8x256xf32>
    %c0_2 = arith.constant 0 : index
    %c0_3 = arith.constant 0 : index
    %4 = vector.load %arg3[%c0_2, %c0_3] : memref<8x128xbf16, #tpu.memory_space<vmem>>, vector<8x128xbf16>
    %c0_4 = arith.constant 0 : index
    %c0_5 = arith.constant 0 : index
    %5 = vector.load %arg4[%c0_4, %c0_5] : memref<128x256xbf16, #tpu.memory_space<vmem>>, vector<128x256xbf16>
    %cst = arith.constant dense<0.000000e+00> : vector<8x256xf32>
    %6 = tpu.matmul %4, %5, %cst {dimension_numbers = #tpu.dot_dimension_numbers<[1], [0], [0], [1], [0, 0, 1, 1], [], []>} : vector<8x128xbf16>, vector<128x256xbf16>, vector<8x256xf32> -> vector<8x256xf32>
    %7 = arith.addf %3, %6 : vector<8x256xf32>
    %c0_6 = arith.constant 0 : index
    %c0_7 = arith.constant 0 : index
    %8 = vector.load %arg8[%c0_6, %c0_7] : memref<8x256xf32, #tpu.memory_space<vmem>>, vector<8x256xf32>
    tpu.vector_store %arg8[%c0_6, %c0_7], %7 {strides = array<i32>} : memref<8x256xf32, #tpu.memory_space<vmem>>, vector<8x256xf32>,
    %c0_i32_8 = arith.constant 0 : i32
    %9 = arith.cmpi eq, %arg2, %c0_i32_8 : i32
    %10 = arith.extui %9 : i1 to i32
    %c0_i32_9 = arith.constant 0 : i32
    %11 = arith.cmpi ne, %10, %c0_i32_9 : i32
    scf.if %11 {
      %c0_10 = arith.constant 0 : index
      %c0_11 = arith.constant 0 : index
      %12 = vector.load %arg8[%c0_10, %c0_11] : memref<8x256xf32, #tpu.memory_space<vmem>>, vector<8x256xf32>
      %c0_12 = arith.constant 0 : index
      %c0_13 = arith.constant 0 : index
      %13 = vector.load %arg5[%c0_12, %c0_13] : memref<1x256xf32, #tpu.memory_space<vmem>>, vector<1x256xf32>
      %14 = vector.broadcast %13 : vector<1x256xf32> to vector<8x256xf32>
      %15 = arith.mulf %12, %14 : vector<8x256xf32>
      %c0_14 = arith.constant 0 : index
      %c0_15 = arith.constant 0 : index
      %16 = vector.load %arg6[%c0_14, %c0_15] : memref<1x256xf32, #tpu.memory_space<vmem>>, vector<1x256xf32>
      %17 = vector.broadcast %16 : vector<1x256xf32> to vector<8x256xf32>
      %18 = arith.addf %15, %17 : vector<8x256xf32>
      %c0_16 = arith.constant 0 : index
      %c0_17 = arith.constant 0 : index
      %19 = vector.load %arg7[%c0_16, %c0_17] : memref<8x256xf32, #tpu.memory_space<vmem>>, vector<8x256xf32>
      tpu.vector_store %arg7[%c0_16, %c0_17], %18 {strides = array<i32>} : memref<8x256xf32, #tpu.memory_space<vmem>>, vector<8x256xf32>,
    } else {
    }
    return
  }
  func.func @transform_0(%arg0: i32, %arg1: i32, %arg2: i32) -> (i32, i32) {
    %c0_i32 = arith.constant 0 : i32
    return %arg0, %arg2 : i32, i32
  }
  func.func @transform_1(%arg0: i32, %arg1: i32, %arg2: i32) -> (i32, i32) {
    %c0_i32 = arith.constant 0 : i32
    return %arg2, %arg1 : i32, i32
  }
  func.func @transform_2(%arg0: i32, %arg1: i32, %arg2: i32) -> (i32, i32) {
    %c0_i32 = arith.constant 0 : i32
    %c0_i32_0 = arith.constant 0 : i32
    return %c0_i32, %arg1 : i32, i32
  }
  func.func @transform_3(%arg0: i32, %arg1: i32, %arg2: i32) -> (i32, i32) {
    %c0_i32 = arith.constant 0 : i32
    %c0_i32_0 = arith.constant 0 : i32
    return %c0_i32, %arg1 : i32, i32
  }
  func.func @transform_4(%arg0: i32, %arg1: i32, %arg2: i32) -> (i32, i32) {
    %c0_i32 = arith.constant 0 : i32
    return %arg0, %arg1 : i32, i32
  }
}

module attributes {stable_mosaic.version = 11 : i64} {
  func.func @_matmul_bn_add_act_kernel(%arg0: i32, %arg1: i32, %arg2: i32, %arg3: memref<8x128xbf16, #tpu.memory_space<vmem>>, %arg4: memref<128x256xbf16, #tpu.memory_space<vmem>>, %arg5: memref<1x256xf32, #tpu.memory_space<vmem>>, %arg6: memref<1x256xf32, #tpu.memory_space<vmem>>, %arg7: memref<8x256xf32, #tpu.memory_space<vmem>>, %arg8: memref<8x256xf32, #tpu.memory_space<vmem>>, %arg9: memref<8x256xf32, #tpu.memory_space<vmem>>) attributes {dimension_semantics = [#tpu.dimension_semantics<parallel>, #tpu.dimension_semantics<parallel>, #tpu.dimension_semantics<arbitrary>], iteration_bounds = array<i64: 1, 1, 1>, scalar_prefetch = 0 : i64, scratch_operands = 1 : i64, tpu.core_type = #tpu.core_type<tc>, window_params = [{transform_indices = @transform_0, window_bounds = array<i64: 8, 128>}, {transform_indices = @transform_1, window_bounds = array<i64: 128, 256>}, {transform_indices = @transform_2, window_bounds = array<i64: 1, 256>}, {transform_indices = @transform_3, window_bounds = array<i64: 1, 256>}, {transform_indices = @transform_4, window_bounds = array<i64: 8, 256>}, {transform_indices = @transform_5, window_bounds = array<i64: 8, 256>}]} {
    %c0_i32 = arith.constant 0 : i32
    %0 = arith.cmpi eq, %arg2, %c0_i32 : i32
    %1 = arith.extui %0 : i1 to i32
    %c0_i32_0 = arith.constant 0 : i32
    %2 = arith.cmpi ne, %1, %c0_i32_0 : i32
    scf.if %2 {
      %cst_10 = arith.constant 0.000000e+00 : f32
      %12 = vector.broadcast %cst_10 : f32 to vector<8x256xf32>
      %c0_11 = arith.constant 0 : index
      %c0_12 = arith.constant 0 : index
      %13 = vector.load %arg9[%c0_11, %c0_12] : memref<8x256xf32, #tpu.memory_space<vmem>>, vector<8x256xf32>
      tpu.vector_store %arg9[%c0_11, %c0_12], %12 {strides = array<i32>} : memref<8x256xf32, #tpu.memory_space<vmem>>, vector<8x256xf32>,
    } else {
    }
    %c0 = arith.constant 0 : index
    %c0_1 = arith.constant 0 : index
    %3 = vector.load %arg9[%c0, %c0_1] : memref<8x256xf32, #tpu.memory_space<vmem>>, vector<8x256xf32>
    %c0_2 = arith.constant 0 : index
    %c0_3 = arith.constant 0 : index
    %4 = vector.load %arg3[%c0_2, %c0_3] : memref<8x128xbf16, #tpu.memory_space<vmem>>, vector<8x128xbf16>
    %c0_4 = arith.constant 0 : index
    %c0_5 = arith.constant 0 : index
    %5 = vector.load %arg4[%c0_4, %c0_5] : memref<128x256xbf16, #tpu.memory_space<vmem>>, vector<128x256xbf16>
    %cst = arith.constant dense<0.000000e+00> : vector<8x256xf32>
    %6 = tpu.matmul %4, %5, %cst {dimension_numbers = #tpu.dot_dimension_numbers<[1], [0], [0], [1], [0, 0, 1, 1], [], []>} : vector<8x128xbf16>, vector<128x256xbf16>, vector<8x256xf32> -> vector<8x256xf32>
    %7 = arith.addf %3, %6 : vector<8x256xf32>
    %c0_6 = arith.constant 0 : index
    %c0_7 = arith.constant 0 : index
    %8 = vector.load %arg9[%c0_6, %c0_7] : memref<8x256xf32, #tpu.memory_space<vmem>>, vector<8x256xf32>
    tpu.vector_store %arg9[%c0_6, %c0_7], %7 {strides = array<i32>} : memref<8x256xf32, #tpu.memory_space<vmem>>, vector<8x256xf32>,
    %c0_i32_8 = arith.constant 0 : i32
    %9 = arith.cmpi eq, %arg2, %c0_i32_8 : i32
    %10 = arith.extui %9 : i1 to i32
    %c0_i32_9 = arith.constant 0 : i32
    %11 = arith.cmpi ne, %10, %c0_i32_9 : i32
    scf.if %11 {
      %c0_10 = arith.constant 0 : index
      %c0_11 = arith.constant 0 : index
      %12 = vector.load %arg9[%c0_10, %c0_11] : memref<8x256xf32, #tpu.memory_space<vmem>>, vector<8x256xf32>
      %c0_12 = arith.constant 0 : index
      %c0_13 = arith.constant 0 : index
      %13 = vector.load %arg5[%c0_12, %c0_13] : memref<1x256xf32, #tpu.memory_space<vmem>>, vector<1x256xf32>
      %14 = vector.broadcast %13 : vector<1x256xf32> to vector<8x256xf32>
      %15 = arith.mulf %12, %14 : vector<8x256xf32>
      %c0_14 = arith.constant 0 : index
      %c0_15 = arith.constant 0 : index
      %16 = vector.load %arg6[%c0_14, %c0_15] : memref<1x256xf32, #tpu.memory_space<vmem>>, vector<1x256xf32>
      %17 = vector.broadcast %16 : vector<1x256xf32> to vector<8x256xf32>
      %18 = arith.addf %15, %17 : vector<8x256xf32>
      %c0_16 = arith.constant 0 : index
      %c0_17 = arith.constant 0 : index
      %19 = vector.load %arg7[%c0_16, %c0_17] : memref<8x256xf32, #tpu.memory_space<vmem>>, vector<8x256xf32>
      %20 = arith.addf %18, %19 : vector<8x256xf32>
      %cst_18 = arith.constant 0.000000e+00 : f32
      %21 = vector.broadcast %cst_18 : f32 to vector<8x256xf32>
      %22 = arith.maximumf %20, %21 : vector<8x256xf32>
      %c0_19 = arith.constant 0 : index
      %c0_20 = arith.constant 0 : index
      %23 = vector.load %arg8[%c0_19, %c0_20] : memref<8x256xf32, #tpu.memory_space<vmem>>, vector<8x256xf32>
      tpu.vector_store %arg8[%c0_19, %c0_20], %22 {strides = array<i32>} : memref<8x256xf32, #tpu.memory_space<vmem>>, vector<8x256xf32>,
    } else {
    }
    return
  }
  func.func @transform_0(%arg0: i32, %arg1: i32, %arg2: i32) -> (i32, i32) {
    %c0_i32 = arith.constant 0 : i32
    return %arg0, %arg2 : i32, i32
  }
  func.func @transform_1(%arg0: i32, %arg1: i32, %arg2: i32) -> (i32, i32) {
    %c0_i32 = arith.constant 0 : i32
    return %arg2, %arg1 : i32, i32
  }
  func.func @transform_2(%arg0: i32, %arg1: i32, %arg2: i32) -> (i32, i32) {
    %c0_i32 = arith.constant 0 : i32
    %c0_i32_0 = arith.constant 0 : i32
    return %c0_i32, %arg1 : i32, i32
  }
  func.func @transform_3(%arg0: i32, %arg1: i32, %arg2: i32) -> (i32, i32) {
    %c0_i32 = arith.constant 0 : i32
    %c0_i32_0 = arith.constant 0 : i32
    return %c0_i32, %arg1 : i32, i32
  }
  func.func @transform_4(%arg0: i32, %arg1: i32, %arg2: i32) -> (i32, i32) {
    %c0_i32 = arith.constant 0 : i32
    return %arg0, %arg1 : i32, i32
  }
  func.func @transform_5(%arg0: i32, %arg1: i32, %arg2: i32) -> (i32, i32) {
    %c0_i32 = arith.constant 0 : i32
    return %arg0, %arg1 : i32, i32
  }
}

module attributes {stable_mosaic.version = 11 : i64} {
  func.func @_matmul_bn_act_kernel(%arg0: i32, %arg1: i32, %arg2: i32, %arg3: memref<8x256xbf16, #tpu.memory_space<vmem>>, %arg4: memref<256x128xbf16, #tpu.memory_space<vmem>>, %arg5: memref<1x128xf32, #tpu.memory_space<vmem>>, %arg6: memref<1x128xf32, #tpu.memory_space<vmem>>, %arg7: memref<8x128xf32, #tpu.memory_space<vmem>>, %arg8: memref<8x128xf32, #tpu.memory_space<vmem>>) attributes {dimension_semantics = [#tpu.dimension_semantics<parallel>, #tpu.dimension_semantics<parallel>, #tpu.dimension_semantics<arbitrary>], iteration_bounds = array<i64: 1, 1, 1>, scalar_prefetch = 0 : i64, scratch_operands = 1 : i64, tpu.core_type = #tpu.core_type<tc>, window_params = [{transform_indices = @transform_0, window_bounds = array<i64: 8, 256>}, {transform_indices = @transform_1, window_bounds = array<i64: 256, 128>}, {transform_indices = @transform_2, window_bounds = array<i64: 1, 128>}, {transform_indices = @transform_3, window_bounds = array<i64: 1, 128>}, {transform_indices = @transform_4, window_bounds = array<i64: 8, 128>}]} {
    %c0_i32 = arith.constant 0 : i32
    %0 = arith.cmpi eq, %arg2, %c0_i32 : i32
    %1 = arith.extui %0 : i1 to i32
    %c0_i32_0 = arith.constant 0 : i32
    %2 = arith.cmpi ne, %1, %c0_i32_0 : i32
    scf.if %2 {
      %cst_10 = arith.constant 0.000000e+00 : f32
      %12 = vector.broadcast %cst_10 : f32 to vector<8x128xf32>
      %c0_11 = arith.constant 0 : index
      %c0_12 = arith.constant 0 : index
      %13 = vector.load %arg8[%c0_11, %c0_12] : memref<8x128xf32, #tpu.memory_space<vmem>>, vector<8x128xf32>
      tpu.vector_store %arg8[%c0_11, %c0_12], %12 {strides = array<i32>} : memref<8x128xf32, #tpu.memory_space<vmem>>, vector<8x128xf32>,
    } else {
    }
    %c0 = arith.constant 0 : index
    %c0_1 = arith.constant 0 : index
    %3 = vector.load %arg8[%c0, %c0_1] : memref<8x128xf32, #tpu.memory_space<vmem>>, vector<8x128xf32>
    %c0_2 = arith.constant 0 : index
    %c0_3 = arith.constant 0 : index
    %4 = vector.load %arg3[%c0_2, %c0_3] : memref<8x256xbf16, #tpu.memory_space<vmem>>, vector<8x256xbf16>
    %c0_4 = arith.constant 0 : index
    %c0_5 = arith.constant 0 : index
    %5 = vector.load %arg4[%c0_4, %c0_5] : memref<256x128xbf16, #tpu.memory_space<vmem>>, vector<256x128xbf16>
    %cst = arith.constant dense<0.000000e+00> : vector<8x128xf32>
    %6 = tpu.matmul %4, %5, %cst {dimension_numbers = #tpu.dot_dimension_numbers<[1], [0], [0], [1], [0, 0, 1, 1], [], []>} : vector<8x256xbf16>, vector<256x128xbf16>, vector<8x128xf32> -> vector<8x128xf32>
    %7 = arith.addf %3, %6 : vector<8x128xf32>
    %c0_6 = arith.constant 0 : index
    %c0_7 = arith.constant 0 : index
    %8 = vector.load %arg8[%c0_6, %c0_7] : memref<8x128xf32, #tpu.memory_space<vmem>>, vector<8x128xf32>
    tpu.vector_store %arg8[%c0_6, %c0_7], %7 {strides = array<i32>} : memref<8x128xf32, #tpu.memory_space<vmem>>, vector<8x128xf32>,
    %c0_i32_8 = arith.constant 0 : i32
    %9 = arith.cmpi eq, %arg2, %c0_i32_8 : i32
    %10 = arith.extui %9 : i1 to i32
    %c0_i32_9 = arith.constant 0 : i32
    %11 = arith.cmpi ne, %10, %c0_i32_9 : i32
    scf.if %11 {
      %c0_10 = arith.constant 0 : index
      %c0_11 = arith.constant 0 : index
      %12 = vector.load %arg8[%c0_10, %c0_11] : memref<8x128xf32, #tpu.memory_space<vmem>>, vector<8x128xf32>
      %c0_12 = arith.constant 0 : index
      %c0_13 = arith.constant 0 : index
      %13 = vector.load %arg5[%c0_12, %c0_13] : memref<1x128xf32, #tpu.memory_space<vmem>>, vector<1x128xf32>
      %14 = vector.broadcast %13 : vector<1x128xf32> to vector<8x128xf32>
      %15 = arith.mulf %12, %14 : vector<8x128xf32>
      %c0_14 = arith.constant 0 : index
      %c0_15 = arith.constant 0 : index
      %16 = vector.load %arg6[%c0_14, %c0_15] : memref<1x128xf32, #tpu.memory_space<vmem>>, vector<1x128xf32>
      %17 = vector.broadcast %16 : vector<1x128xf32> to vector<8x128xf32>
      %18 = arith.addf %15, %17 : vector<8x128xf32>
      %cst_16 = arith.constant 0.000000e+00 : f32
      %19 = vector.broadcast %cst_16 : f32 to vector<8x128xf32>
      %20 = arith.maximumf %18, %19 : vector<8x128xf32>
      %c0_17 = arith.constant 0 : index
      %c0_18 = arith.constant 0 : index
      %21 = vector.load %arg7[%c0_17, %c0_18] : memref<8x128xf32, #tpu.memory_space<vmem>>, vector<8x128xf32>
      tpu.vector_store %arg7[%c0_17, %c0_18], %20 {strides = array<i32>} : memref<8x128xf32, #tpu.memory_space<vmem>>, vector<8x128xf32>,
    } else {
    }
    return
  }
  func.func @transform_0(%arg0: i32, %arg1: i32, %arg2: i32) -> (i32, i32) {
    %c0_i32 = arith.constant 0 : i32
    return %arg0, %arg2 : i32, i32
  }
  func.func @transform_1(%arg0: i32, %arg1: i32, %arg2: i32) -> (i32, i32) {
    %c0_i32 = arith.constant 0 : i32
    return %arg2, %arg1 : i32, i32
  }
  func.func @transform_2(%arg0: i32, %arg1: i32, %arg2: i32) -> (i32, i32) {
    %c0_i32 = arith.constant 0 : i32
    %c0_i32_0 = arith.constant 0 : i32
    return %c0_i32, %arg1 : i32, i32
  }
  func.func @transform_3(%arg0: i32, %arg1: i32, %arg2: i32) -> (i32, i32) {
    %c0_i32 = arith.constant 0 : i32
    %c0_i32_0 = arith.constant 0 : i32
    return %c0_i32, %arg1 : i32, i32
  }
  func.func @transform_4(%arg0: i32, %arg1: i32, %arg2: i32) -> (i32, i32) {
    %c0_i32 = arith.constant 0 : i32
    return %arg0, %arg1 : i32, i32
  }
}

module attributes {stable_mosaic.version = 11 : i64} {
  func.func @_gap_bn_kernel(%arg0: i32, %arg1: memref<2x1x256xf32, #tpu.memory_space<vmem>>, %arg2: memref<1x256xf32, #tpu.memory_space<vmem>>, %arg3: memref<1x256xf32, #tpu.memory_space<vmem>>, %arg4: memref<2x256xf32, #tpu.memory_space<vmem>>) attributes {dimension_semantics = [#tpu.dimension_semantics<arbitrary>], iteration_bounds = array<i64: 1>, scalar_prefetch = 0 : i64, scratch_operands = 0 : i64, tpu.core_type = #tpu.core_type<tc>, window_params = [{pipeline_mode = #tpu.pipeline_mode<synchronous>, transform_indices = @transform_0, window_bounds = array<i64: 2, 1, 256>}, {pipeline_mode = #tpu.pipeline_mode<synchronous>, transform_indices = @transform_1, window_bounds = array<i64: 1, 256>}, {pipeline_mode = #tpu.pipeline_mode<synchronous>, transform_indices = @transform_2, window_bounds = array<i64: 1, 256>}, {pipeline_mode = #tpu.pipeline_mode<synchronous>, transform_indices = @transform_3, window_bounds = array<i64: 2, 256>}]} {
    %c0 = arith.constant 0 : index
    %c0_0 = arith.constant 0 : index
    %c0_1 = arith.constant 0 : index
    %0 = vector.load %arg1[%c0, %c0_0, %c0_1] : memref<2x1x256xf32, #tpu.memory_space<vmem>>, vector<2x1x256xf32>
    %cst = arith.constant dense<0.000000e+00> : vector<2x256xf32>
    %1 = vector.multi_reduction <add>, %0, %cst [1] : vector<2x1x256xf32> to vector<2x256xf32>
    %cst_2 = arith.constant 1.000000e+00 : f32
    %2 = vector.broadcast %cst_2 : f32 to vector<2x256xf32>
    %3 = arith.divf %1, %2 : vector<2x256xf32>
    %c0_3 = arith.constant 0 : index
    %c0_4 = arith.constant 0 : index
    %4 = vector.load %arg2[%c0_3, %c0_4] : memref<1x256xf32, #tpu.memory_space<vmem>>, vector<1x256xf32>
    %5 = vector.broadcast %4 : vector<1x256xf32> to vector<2x256xf32>
    %6 = arith.mulf %3, %5 : vector<2x256xf32>
    %c0_5 = arith.constant 0 : index
    %c0_6 = arith.constant 0 : index
    %7 = vector.load %arg3[%c0_5, %c0_6] : memref<1x256xf32, #tpu.memory_space<vmem>>, vector<1x256xf32>
    %8 = vector.broadcast %7 : vector<1x256xf32> to vector<2x256xf32>
    %9 = arith.addf %6, %8 : vector<2x256xf32>
    %c0_7 = arith.constant 0 : index
    %c0_8 = arith.constant 0 : index
    %10 = vector.load %arg4[%c0_7, %c0_8] : memref<2x256xf32, #tpu.memory_space<vmem>>, vector<2x256xf32>
    tpu.vector_store %arg4[%c0_7, %c0_8], %9 {strides = array<i32>} : memref<2x256xf32, #tpu.memory_space<vmem>>, vector<2x256xf32>,
    return
  }
  func.func @transform_0(%arg0: i32) -> (i32, i32, i32) {
    %c0_i32 = arith.constant 0 : i32
    %c0_i32_0 = arith.constant 0 : i32
    %c0_i32_1 = arith.constant 0 : i32
    %c0_i32_2 = arith.constant 0 : i32
    return %c0_i32, %c0_i32_0, %c0_i32_1 : i32, i32, i32
  }
  func.func @transform_1(%arg0: i32) -> (i32, i32) {
    %c0_i32 = arith.constant 0 : i32
    %c0_i32_0 = arith.constant 0 : i32
    %c0_i32_1 = arith.constant 0 : i32
    return %c0_i32, %c0_i32_0 : i32, i32
  }
  func.func @transform_2(%arg0: i32) -> (i32, i32) {
    %c0_i32 = arith.constant 0 : i32
    %c0_i32_0 = arith.constant 0 : i32
    %c0_i32_1 = arith.constant 0 : i32
    return %c0_i32, %c0_i32_0 : i32, i32
  }
  func.func @transform_3(%arg0: i32) -> (i32, i32) {
    %c0_i32 = arith.constant 0 : i32
    %c0_i32_0 = arith.constant 0 : i32
    %c0_i32_1 = arith.constant 0 : i32
    return %c0_i32, %c0_i32_0 : i32, i32
  }
}

module attributes {stable_mosaic.version = 11 : i64} {
  func.func @_heads_kernel(%arg0: i32, %arg1: memref<2x256xf32, #tpu.memory_space<vmem>>, %arg2: memref<256x64xf32, #tpu.memory_space<vmem>>, %arg3: memref<1x64xf32, #tpu.memory_space<vmem>>, %arg4: memref<2x64xf32, #tpu.memory_space<vmem>>) attributes {dimension_semantics = [#tpu.dimension_semantics<arbitrary>], iteration_bounds = array<i64: 1>, scalar_prefetch = 0 : i64, scratch_operands = 0 : i64, tpu.core_type = #tpu.core_type<tc>, window_params = [{pipeline_mode = #tpu.pipeline_mode<synchronous>, transform_indices = @transform_0, window_bounds = array<i64: 2, 256>}, {pipeline_mode = #tpu.pipeline_mode<synchronous>, transform_indices = @transform_1, window_bounds = array<i64: 256, 64>}, {pipeline_mode = #tpu.pipeline_mode<synchronous>, transform_indices = @transform_2, window_bounds = array<i64: 1, 64>}, {pipeline_mode = #tpu.pipeline_mode<synchronous>, transform_indices = @transform_3, window_bounds = array<i64: 2, 64>}]} {
    %c0 = arith.constant 0 : index
    %c0_0 = arith.constant 0 : index
    %0 = vector.load %arg1[%c0, %c0_0] : memref<2x256xf32, #tpu.memory_space<vmem>>, vector<2x256xf32>
    %1 = arith.mulf %0, %0 : vector<2x256xf32>
    %cst = arith.constant dense<0.000000e+00> : vector<2xf32>
    %2 = vector.multi_reduction <add>, %1, %cst [1] : vector<2x256xf32> to vector<2xf32>
    %3 = vector.shape_cast %2 : vector<2xf32> to vector<2x1xf32>
    %cst_1 = arith.constant 9.99999996E-13 : f32
    %4 = vector.broadcast %cst_1 : f32 to vector<2x1xf32>
    %5 = arith.addf %3, %4 : vector<2x1xf32>
    %6 = math.rsqrt %5 : vector<2x1xf32>
    %7 = vector.broadcast %6 : vector<2x1xf32> to vector<2x256xf32>
    %8 = arith.mulf %0, %7 : vector<2x256xf32>
    %c0_2 = arith.constant 0 : index
    %c0_3 = arith.constant 0 : index
    %9 = vector.load %arg2[%c0_2, %c0_3] : memref<256x64xf32, #tpu.memory_space<vmem>>, vector<256x64xf32>
    %cst_4 = arith.constant dense<0.000000e+00> : vector<2x64xf32>
    %10 = tpu.matmul %8, %9, %cst_4 {dimension_numbers = #tpu.dot_dimension_numbers<[1], [0], [0], [1], [0, 0, 1, 1], [], []>} : vector<2x256xf32>, vector<256x64xf32>, vector<2x64xf32> -> vector<2x64xf32>
    %c0_5 = arith.constant 0 : index
    %c0_6 = arith.constant 0 : index
    %11 = vector.load %arg3[%c0_5, %c0_6] : memref<1x64xf32, #tpu.memory_space<vmem>>, vector<1x64xf32>
    %12 = vector.broadcast %11 : vector<1x64xf32> to vector<2x64xf32>
    %13 = arith.addf %10, %12 : vector<2x64xf32>
    %14 = tpu.iota {dimensions = array<i32: 1>} : vector<2x64xi32>
    %c32_i32 = arith.constant 32 : i32
    %15 = vector.broadcast %c32_i32 : i32 to vector<2x64xi32>
    %16 = arith.cmpi slt, %14, %15 : vector<2x64xi32>
    %cst_7 = arith.constant 6.400000e+01 : f32
    %17 = vector.broadcast %cst_7 : f32 to vector<2x64xf32>
    %18 = arith.mulf %13, %17 : vector<2x64xf32>
    %cst_8 = arith.constant -1.000000e+00 : f32
    %cst_9 = arith.constant 1.000000e+00 : f32
    %19 = vector.broadcast %cst_8 : f32 to vector<2x64xf32>
    %20 = arith.maximumf %19, %13 : vector<2x64xf32>
    %21 = vector.broadcast %cst_9 : f32 to vector<2x64xf32>
    %22 = arith.minimumf %21, %20 : vector<2x64xf32>
    %23 = arith.select %16, %18, %22 : vector<2x64xi1>, vector<2x64xf32>
    %c0_10 = arith.constant 0 : index
    %c0_11 = arith.constant 0 : index
    %24 = vector.load %arg4[%c0_10, %c0_11] : memref<2x64xf32, #tpu.memory_space<vmem>>, vector<2x64xf32>
    tpu.vector_store %arg4[%c0_10, %c0_11], %23 {strides = array<i32>} : memref<2x64xf32, #tpu.memory_space<vmem>>, vector<2x64xf32>,
    return
  }
  func.func @transform_0(%arg0: i32) -> (i32, i32) {
    %c0_i32 = arith.constant 0 : i32
    %c0_i32_0 = arith.constant 0 : i32
    %c0_i32_1 = arith.constant 0 : i32
    return %c0_i32, %c0_i32_0 : i32, i32
  }
  func.func @transform_1(%arg0: i32) -> (i32, i32) {
    %c0_i32 = arith.constant 0 : i32
    %c0_i32_0 = arith.constant 0 : i32
    %c0_i32_1 = arith.constant 0 : i32
    return %c0_i32, %c0_i32_0 : i32, i32
  }
  func.func @transform_2(%arg0: i32) -> (i32, i32) {
    %c0_i32 = arith.constant 0 : i32
    %c0_i32_0 = arith.constant 0 : i32
    %c0_i32_1 = arith.constant 0 : i32
    return %c0_i32, %c0_i32_0 : i32, i32
  }
  func.func @transform_3(%arg0: i32) -> (i32, i32) {
    %c0_i32 = arith.constant 0 : i32
    %c0_i32_0 = arith.constant 0 : i32
    %c0_i32_1 = arith.constant 0 : i32
    return %c0_i32, %c0_i32_0 : i32, i32
  }
}

</mosaic_0001>

<llo_original>
// kernel: forward.33
$region0: #{forward.33}
  #allocation0 [shape = 'u32[]', space=smem, size = 0x4, offset = 0x4, fixed_abs, tag = 'smem constant byte address 0x4 - core index']
  #allocation1 [shape = 'u32[72,128]{1,0:T(1,128)}', space=vmem, size = 0x9000, scoped, tag = 'internal scratch']
  %s0 = inlined_call_operand.vmem [shape: f32[2,9,9,8], index: 0, kind: input, shape index: {}]
  %s1 = inlined_call_operand.vmem [shape: f32[2,9,8,8], index: 1, kind: input, shape index: {}]
  %s2 = inlined_call_operand.vmem [shape: f32[2,8,9,8], index: 2, kind: input, shape index: {}]
  %s3 = inlined_call_operand.vmem [shape: f32[2,8,8,8], index: 3, kind: input, shape index: {}]
  %s4 = inlined_call_operand.vmem [shape: f32[2,8,8,8], index: 4, kind: output, shape index: {}]
  %s5 = sld [smem:[#allocation0]]
  $region26: #{forward.33} parent=0
    _
  %s7 = ssub.s32 1, %s5
  %s8 = scalar_select 0, %s7, %s5
  // Predicated region
  $region2: #{forward.33} parent=0 // pred_check
    _
  $region3: #{forward.33} parent=0 // pred_check_branch
    %10 = sbr.rel (0) target = $region5
  $region4: #{forward.33} parent=0 // pred_region
    _
  $region5: #{forward.33} parent=0 // pred_fallthru
    _
  // Predicated region
  $region6: #{forward.33} parent=0 // pred_check
    _
  $region7: #{forward.33} parent=0 // pred_check_branch
    %12 = sbr.rel (0) target = $region9
  $region8: #{forward.33} parent=0 // pred_region
    _
  $region9: #{forward.33} parent=0 // pred_fallthru
    _
  // Predicated region
  $region10: #{forward.33} parent=0 // pred_check
    _
  $region11: #{forward.33} parent=0 // pred_check_branch
    %14 = sbr.rel (0) target = $region13
  $region12: #{forward.33} parent=0 // pred_region
    _
  $region13: #{forward.33} parent=0 // pred_fallthru
    _
  // Predicated region
  $region14: #{forward.33} parent=0 // pred_check
    _
  $region15: #{forward.33} parent=0 // pred_check_branch
    %16 = sbr.rel (0) target = $region17
  $region16: #{forward.33} parent=0 // pred_region
    _
  $region17: #{forward.33} parent=0 // pred_fallthru
    _
  %v17 = vld [vmem:[%s0] sm:$0xff]
  %v18 = vld [vmem:[%s0 + $0x8] sm:$0x1]
  %v19 = vld [vmem:[%s0 + $0x10] sm:$0xff]
  %v20 = vld [vmem:[%s0 + $0x18] sm:$0x1]
  %v21 = vld [vmem:[%s0 + $0x20] sm:$0xff]
  %v22 = vld [vmem:[%s0 + $0x28] sm:$0x1]
  %v23 = vld [vmem:[%s0 + $0x30] sm:$0xff]
  %v24 = vld [vmem:[%s0 + $0x38] sm:$0x1]
  %v25 = vld [vmem:[%s0 + $0x40] sm:$0xff]
  %v26 = vld [vmem:[%s0 + $0x48] sm:$0x1]
  %v27 = vld [vmem:[%s0 + $0x50] sm:$0xff]
  %v28 = vld [vmem:[%s0 + $0x58] sm:$0x1]
  %v29 = vld [vmem:[%s0 + $0x60] sm:$0xff]
  %v30 = vld [vmem:[%s0 + $0x68] sm:$0x1]
  %v31 = vld [vmem:[%s0 + $0x70] sm:$0xff]
  %v32 = vld [vmem:[%s0 + $0x78] sm:$0x1]
  %v33 = vld [vmem:[%s0 + $0x80] sm:$0xff]
  %v34 = vld [vmem:[%s0 + $0x88] sm:$0x1]
  %v35 = vld [vmem:[%s0 + $0x90] sm:$0xff]
  %v36 = vld [vmem:[%s0 + $0x98] sm:$0x1]
  %v37 = vld [vmem:[%s0 + $0xa0] sm:$0xff]
  %v38 = vld [vmem:[%s0 + $0xa8] sm:$0x1]
  %v39 = vld [vmem:[%s0 + $0xb0] sm:$0xff]
  %v40 = vld [vmem:[%s0 + $0xb8] sm:$0x1]
  %v41 = vld [vmem:[%s0 + $0xc0] sm:$0xff]
  %v42 = vld [vmem:[%s0 + $0xc8] sm:$0x1]
  %v43 = vld [vmem:[%s0 + $0xd0] sm:$0xff]
  %v44 = vld [vmem:[%s0 + $0xd8] sm:$0x1]
  %v45 = vld [vmem:[%s0 + $0xe0] sm:$0xff]
  %v46 = vld [vmem:[%s0 + $0xe8] sm:$0x1]
  %v47 = vld [vmem:[%s0 + $0xf0] sm:$0xff]
  %v48 = vld [vmem:[%s0 + $0xf8] sm:$0x1]
  %v49 = vld [vmem:[%s0 + $0x100] sm:$0xff]
  %v50 = vld [vmem:[%s0 + $0x108] sm:$0x1]
  %v51 = vld [vmem:[%s0 + $0x110] sm:$0xff]
  %v52 = vld [vmem:[%s0 + $0x118] sm:$0x1]
  %v53 = vld [vmem:[%s1] sm:$0xff]
  %v54 = vld [vmem:[%s1 + $0x8] sm:$0xff]
  %v55 = vld [vmem:[%s1 + $0x10] sm:$0xff]
  %v56 = vld [vmem:[%s1 + $0x18] sm:$0xff]
  %v57 = vld [vmem:[%s1 + $0x20] sm:$0xff]
  %v58 = vld [vmem:[%s1 + $0x28] sm:$0xff]
  %v59 = vld [vmem:[%s1 + $0x30] sm:$0xff]
  %v60 = vld [vmem:[%s1 + $0x38] sm:$0xff]
  %v61 = vld [vmem:[%s1 + $0x40] sm:$0xff]
  %v62 = vld [vmem:[%s1 + $0x48] sm:$0xff]
  %v63 = vld [vmem:[%s1 + $0x50] sm:$0xff]
  %v64 = vld [vmem:[%s1 + $0x58] sm:$0xff]
  %v65 = vld [vmem:[%s1 + $0x60] sm:$0xff]
  %v66 = vld [vmem:[%s1 + $0x68] sm:$0xff]
  %v67 = vld [vmem:[%s1 + $0x70] sm:$0xff]
  %v68 = vld [vmem:[%s1 + $0x78] sm:$0xff]
  %v69 = vld [vmem:[%s1 + $0x80] sm:$0xff]
  %v70 = vld [vmem:[%s1 + $0x88] sm:$0xff]
  %v71 = vld [vmem:[%s2] sm:$0xff]
  %v72 = vld [vmem:[%s2 + $0x8] sm:$0x1]
  %v73 = vld [vmem:[%s2 + $0x10] sm:$0xff]
  %v74 = vld [vmem:[%s2 + $0x18] sm:$0x1]
  %v75 = vld [vmem:[%s2 + $0x20] sm:$0xff]
  %v76 = vld [vmem:[%s2 + $0x28] sm:$0x1]
  %v77 = vld [vmem:[%s2 + $0x30] sm:$0xff]
  %v78 = vld [vmem:[%s2 + $0x38] sm:$0x1]
  %v79 = vld [vmem:[%s2 + $0x40] sm:$0xff]
  %v80 = vld [vmem:[%s2 + $0x48] sm:$0x1]
  %v81 = vld [vmem:[%s2 + $0x50] sm:$0xff]
  %v82 = vld [vmem:[%s2 + $0x58] sm:$0x1]
  %v83 = vld [vmem:[%s2 + $0x60] sm:$0xff]
  %v84 = vld [vmem:[%s2 + $0x68] sm:$0x1]
  %v85 = vld [vmem:[%s2 + $0x70] sm:$0xff]
  %v86 = vld [vmem:[%s2 + $0x78] sm:$0x1]
  %v87 = vld [vmem:[%s2 + $0x80] sm:$0xff]
  %v88 = vld [vmem:[%s2 + $0x88] sm:$0x1]
  %v89 = vld [vmem:[%s2 + $0x90] sm:$0xff]
  %v90 = vld [vmem:[%s2 + $0x98] sm:$0x1]
  %v91 = vld [vmem:[%s2 + $0xa0] sm:$0xff]
  %v92 = vld [vmem:[%s2 + $0xa8] sm:$0x1]
  %v93 = vld [vmem:[%s2 + $0xb0] sm:$0xff]
  %v94 = vld [vmem:[%s2 + $0xb8] sm:$0x1]
  %v95 = vld [vmem:[%s2 + $0xc0] sm:$0xff]
  %v96 = vld [vmem:[%s2 + $0xc8] sm:$0x1]
  %v97 = vld [vmem:[%s2 + $0xd0] sm:$0xff]
  %v98 = vld [vmem:[%s2 + $0xd8] sm:$0x1]
  %v99 = vld [vmem:[%s2 + $0xe0] sm:$0xff]
  %v100 = vld [vmem:[%s2 + $0xe8] sm:$0x1]
  %v101 = vld [vmem:[%s2 + $0xf0] sm:$0xff]
  %v102 = vld [vmem:[%s2 + $0xf8] sm:$0x1]
  %v103 = vld [vmem:[%s3] sm:$0xff]
  %v104 = vld [vmem:[%s3 + $0x8] sm:$0xff]
  %v105 = vld [vmem:[%s3 + $0x10] sm:$0xff]
  %v106 = vld [vmem:[%s3 + $0x18] sm:$0xff]
  %v107 = vld [vmem:[%s3 + $0x20] sm:$0xff]
  %v108 = vld [vmem:[%s3 + $0x28] sm:$0xff]
  %v109 = vld [vmem:[%s3 + $0x30] sm:$0xff]
  %v110 = vld [vmem:[%s3 + $0x38] sm:$0xff]
  %v111 = vld [vmem:[%s3 + $0x40] sm:$0xff]
  %v112 = vld [vmem:[%s3 + $0x48] sm:$0xff]
  %v113 = vld [vmem:[%s3 + $0x50] sm:$0xff]
  %v114 = vld [vmem:[%s3 + $0x58] sm:$0xff]
  %v115 = vld [vmem:[%s3 + $0x60] sm:$0xff]
  %v116 = vld [vmem:[%s3 + $0x68] sm:$0xff]
  %v117 = vld [vmem:[%s3 + $0x70] sm:$0xff]
  %v118 = vld [vmem:[%s3 + $0x78] sm:$0xff]
  %v119 = vmax.f32 %v17, %v53
  %v120 = vmax.f32 %v19, %v54
  %v121 = vmax.f32 %v21, %v55
  %v122 = vmax.f32 %v23, %v56
  %v123 = vmax.f32 %v25, %v57
  %v124 = vmax.f32 %v27, %v58
  %v125 = vmax.f32 %v29, %v59
  %v126 = vmax.f32 %v31, %v60
  %v127 = vmax.f32 %v35, %v62
  %v128 = vmax.f32 %v37, %v63
  %v129 = vmax.f32 %v39, %v64
  %v130 = vmax.f32 %v41, %v65
  %v131 = vmax.f32 %v43, %v66
  %v132 = vmax.f32 %v45, %v67
  %v133 = vmax.f32 %v47, %v68
  %v134 = vmax.f32 %v49, %v69
  %vm167 = vcmask 1046528
  %v168 = vrot.slane %v17, 1
  %v169 = vrot.slane %v18, 1
  %v170 = vsel %vm167, %v168, %v169
  %v171 = vrot.slane %v19, 1
  %v172 = vrot.slane %v20, 1
  %v173 = vsel %vm167, %v171, %v172
  %v174 = vrot.slane %v21, 1
  %v175 = vrot.slane %v22, 1
  %v176 = vsel %vm167, %v174, %v175
  %v177 = vrot.slane %v23, 1
  %v178 = vrot.slane %v24, 1
  %v179 = vsel %vm167, %v177, %v178
  %v180 = vrot.slane %v25, 1
  %v181 = vrot.slane %v26, 1
  %v182 = vsel %vm167, %v180, %v181
  %v183 = vrot.slane %v27, 1
  %v184 = vrot.slane %v28, 1
  %v185 = vsel %vm167, %v183, %v184
  %v186 = vrot.slane %v29, 1
  %v187 = vrot.slane %v30, 1
  %v188 = vsel %vm167, %v186, %v187
  %v189 = vrot.slane %v31, 1
  %v190 = vrot.slane %v32, 1
  %v191 = vsel %vm167, %v189, %v190
  %v192 = vrot.slane %v35, 1
  %v193 = vrot.slane %v36, 1
  %v194 = vsel %vm167, %v192, %v193
  %v195 = vrot.slane %v37, 1
  %v196 = vrot.slane %v38, 1
  %v197 = vsel %vm167, %v195, %v196
  %v198 = vrot.slane %v39, 1
  %v199 = vrot.slane %v40, 1
  %v200 = vsel %vm167, %v198, %v199
  %v201 = vrot.slane %v41, 1
  %v202 = vrot.slane %v42, 1
  %v203 = vsel %vm167, %v201, %v202
  %v204 = vrot.slane %v43, 1
  %v205 = vrot.slane %v44, 1
  %v206 = vsel %vm167, %v204, %v205
  %v207 = vrot.slane %v45, 1
  %v208 = vrot.slane %v46, 1
  %v209 = vsel %vm167, %v207, %v208
  %v210 = vrot.slane %v47, 1
  %v211 = vrot.slane %v48, 1
  %v212 = vsel %vm167, %v210, %v211
  %v213 = vrot.slane %v49, 1
  %v214 = vrot.slane %v50, 1
  %v215 = vsel %vm167, %v213, %v214
  %v232 = vmax.f32 %v119, %v170
  %v233 = vmax.f32 %v120, %v173
  %v234 = vmax.f32 %v121, %v176
  %v235 = vmax.f32 %v122, %v179
  %v236 = vmax.f32 %v123, %v182
  %v237 = vmax.f32 %v124, %v185
  %v238 = vmax.f32 %v125, %v188
  %v239 = vmax.f32 %v126, %v191
  %v240 = vmax.f32 %v127, %v194
  %v241 = vmax.f32 %v128, %v197
  %v242 = vmax.f32 %v129, %v200
  %v243 = vmax.f32 %v130, %v203
  %v244 = vmax.f32 %v131, %v206
  %v245 = vmax.f32 %v132, %v209
  %v246 = vmax.f32 %v133, %v212
  %v247 = vmax.f32 %v134, %v215
  %v248 = vmax.f32 %v232, %v71
  %v249 = vmax.f32 %v233, %v73
  %v250 = vmax.f32 %v234, %v75
  %v251 = vmax.f32 %v235, %v77
  %v252 = vmax.f32 %v236, %v79
  %v253 = vmax.f32 %v237, %v81
  %v254 = vmax.f32 %v238, %v83
  %v255 = vmax.f32 %v239, %v85
  %v256 = vmax.f32 %v240, %v87
  %v257 = vmax.f32 %v241, %v89
  %v258 = vmax.f32 %v242, %v91
  %v259 = vmax.f32 %v243, %v93
  %v260 = vmax.f32 %v244, %v95
  %v261 = vmax.f32 %v245, %v97
  %v262 = vmax.f32 %v246, %v99
  %v263 = vmax.f32 %v247, %v101
  %v264 = vmax.f32 %v248, %v103
  %v265 = vmax.f32 %v249, %v104
  %v266 = vmax.f32 %v250, %v105
  %v267 = vmax.f32 %v251, %v106
  %v268 = vmax.f32 %v252, %v107
  %v269 = vmax.f32 %v253, %v108
  %v270 = vmax.f32 %v254, %v109
  %v271 = vmax.f32 %v255, %v110
  %v272 = vmax.f32 %v256, %v111
  %v273 = vmax.f32 %v257, %v112
  %v274 = vmax.f32 %v258, %v113
  %v275 = vmax.f32 %v259, %v114
  %v276 = vmax.f32 %v260, %v115
  %v277 = vmax.f32 %v261, %v116
  %v278 = vmax.f32 %v262, %v117
  %v279 = vmax.f32 %v263, %v118
  %v312 = vrot.slane %v71, 1
  %v313 = vrot.slane %v72, 1
  %v314 = vsel %vm167, %v312, %v313
  %v315 = vrot.slane %v73, 1
  %v316 = vrot.slane %v74, 1
  %v317 = vsel %vm167, %v315, %v316
  %v318 = vrot.slane %v75, 1
  %v319 = vrot.slane %v76, 1
  %v320 = vsel %vm167, %v318, %v319
  %v321 = vrot.slane %v77, 1
  %v322 = vrot.slane %v78, 1
  %v323 = vsel %vm167, %v321, %v322
  %v324 = vrot.slane %v79, 1
  %v325 = vrot.slane %v80, 1
  %v326 = vsel %vm167, %v324, %v325
  %v327 = vrot.slane %v81, 1
  %v328 = vrot.slane %v82, 1
  %v329 = vsel %vm167, %v327, %v328
  %v330 = vrot.slane %v83, 1
  %v331 = vrot.slane %v84, 1
  %v332 = vsel %vm167, %v330, %v331
  %v333 = vrot.slane %v85, 1
  %v334 = vrot.slane %v86, 1
  %v335 = vsel %vm167, %v333, %v334
  %v336 = vrot.slane %v87, 1
  %v337 = vrot.slane %v88, 1
  %v338 = vsel %vm167, %v336, %v337
  %v339 = vrot.slane %v89, 1
  %v340 = vrot.slane %v90, 1
  %v341 = vsel %vm167, %v339, %v340
  %v342 = vrot.slane %v91, 1
  %v343 = vrot.slane %v92, 1
  %v344 = vsel %vm167, %v342, %v343
  %v345 = vrot.slane %v93, 1
  %v346 = vrot.slane %v94, 1
  %v347 = vsel %vm167, %v345, %v346
  %v348 = vrot.slane %v95, 1
  %v349 = vrot.slane %v96, 1
  %v350 = vsel %vm167, %v348, %v349
  %v351 = vrot.slane %v97, 1
  %v352 = vrot.slane %v98, 1
  %v353 = vsel %vm167, %v351, %v352
  %v354 = vrot.slane %v99, 1
  %v355 = vrot.slane %v100, 1
  %v356 = vsel %vm167, %v354, %v355
  %v357 = vrot.slane %v101, 1
  %v358 = vrot.slane %v102, 1
  %v359 = vsel %vm167, %v357, %v358
  %v376 = vmax.f32 %v264, %v314
  %v377 = vmax.f32 %v265, %v317
  %v378 = vmax.f32 %v266, %v320
  %v379 = vmax.f32 %v267, %v323
  %v380 = vmax.f32 %v268, %v326
  %v381 = vmax.f32 %v269, %v329
  %v382 = vmax.f32 %v270, %v332
  %v383 = vmax.f32 %v271, %v335
  %v384 = vmax.f32 %v272, %v338
  %v385 = vmax.f32 %v273, %v341
  %v386 = vmax.f32 %v274, %v344
  %v387 = vmax.f32 %v275, %v347
  %v388 = vmax.f32 %v276, %v350
  %v389 = vmax.f32 %v277, %v353
  %v390 = vmax.f32 %v278, %v356
  %v391 = vmax.f32 %v279, %v359
  %v392 = vmax.f32 %v376, %v19
  %v393 = vmax.f32 %v377, %v21
  %v394 = vmax.f32 %v378, %v23
  %v395 = vmax.f32 %v379, %v25
  %v396 = vmax.f32 %v380, %v27
  %v397 = vmax.f32 %v381, %v29
  %v398 = vmax.f32 %v382, %v31
  %v399 = vmax.f32 %v383, %v33
  %v400 = vmax.f32 %v384, %v37
  %v401 = vmax.f32 %v385, %v39
  %v402 = vmax.f32 %v386, %v41
  %v403 = vmax.f32 %v387, %v43
  %v404 = vmax.f32 %v388, %v45
  %v405 = vmax.f32 %v389, %v47
  %v406 = vmax.f32 %v390, %v49
  %v407 = vmax.f32 %v391, %v51
  %v408 = vmax.f32 %v392, %v54
  %v409 = vmax.f32 %v393, %v55
  %v410 = vmax.f32 %v394, %v56
  %v411 = vmax.f32 %v395, %v57
  %v412 = vmax.f32 %v396, %v58
  %v413 = vmax.f32 %v397, %v59
  %v414 = vmax.f32 %v398, %v60
  %v415 = vmax.f32 %v399, %v61
  %v416 = vmax.f32 %v400, %v63
  %v417 = vmax.f32 %v401, %v64
  %v418 = vmax.f32 %v402, %v65
  %v419 = vmax.f32 %v403, %v66
  %v420 = vmax.f32 %v404, %v67
  %v421 = vmax.f32 %v405, %v68
  %v422 = vmax.f32 %v406, %v69
  %v423 = vmax.f32 %v407, %v70
  %v428 = vrot.slane %v33, 1
  %v429 = vrot.slane %v34, 1
  %v430 = vsel %vm167, %v428, %v429
  %v431 = vrot.slane %v51, 1
  %v432 = vrot.slane %v52, 1
  %v433 = vsel %vm167, %v431, %v432
  %v436 = vmax.f32 %v408, %v173
  %v437 = vmax.f32 %v409, %v176
  %v438 = vmax.f32 %v410, %v179
  %v439 = vmax.f32 %v411, %v182
  %v440 = vmax.f32 %v412, %v185
  %v441 = vmax.f32 %v413, %v188
  %v442 = vmax.f32 %v414, %v191
  %v443 = vmax.f32 %v415, %v430
  %v444 = vmax.f32 %v416, %v197
  %v445 = vmax.f32 %v417, %v200
  %v446 = vmax.f32 %v418, %v203
  %v447 = vmax.f32 %v419, %v206
  %v448 = vmax.f32 %v420, %v209
  %v449 = vmax.f32 %v421, %v212
  %v450 = vmax.f32 %v422, %v215
  %v451 = vmax.f32 %v423, %v433
  %vm452 = vcmask 64512
  %453 = vst.msk [vmem:[%s4] sm:$0xff] %vm452, %v436
  %454 = vst.msk [vmem:[%s4 + $0x8] sm:$0xff] %vm452, %v437
  %455 = vst.msk [vmem:[%s4 + $0x10] sm:$0xff] %vm452, %v438
  %456 = vst.msk [vmem:[%s4 + $0x18] sm:$0xff] %vm452, %v439
  %457 = vst.msk [vmem:[%s4 + $0x20] sm:$0xff] %vm452, %v440
  %458 = vst.msk [vmem:[%s4 + $0x28] sm:$0xff] %vm452, %v441
  %459 = vst.msk [vmem:[%s4 + $0x30] sm:$0xff] %vm452, %v442
  %460 = vst.msk [vmem:[%s4 + $0x38] sm:$0xff] %vm452, %v443
  %461 = vst.msk [vmem:[%s4 + $0x40] sm:$0xff] %vm452, %v444
  %462 = vst.msk [vmem:[%s4 + $0x48] sm:$0xff] %vm452, %v445
  %463 = vst.msk [vmem:[%s4 + $0x50] sm:$0xff] %vm452, %v446
  %464 = vst.msk [vmem:[%s4 + $0x58] sm:$0xff] %vm452, %v447
  %465 = vst.msk [vmem:[%s4 + $0x60] sm:$0xff] %vm452, %v448
  %466 = vst.msk [vmem:[%s4 + $0x68] sm:$0xff] %vm452, %v449
  %467 = vst.msk [vmem:[%s4 + $0x70] sm:$0xff] %vm452, %v450
  %468 = vst.msk [vmem:[%s4 + $0x78] sm:$0xff] %vm452, %v451
  // Predicated region
  $region18: #{forward.33} parent=0 // pred_check
    _
  $region19: #{forward.33} parent=0 // pred_check_branch
    %470 = sbr.rel (0) target = $region21
  $region20: #{forward.33} parent=0 // pred_region
    _
  $region21: #{forward.33} parent=0 // pred_fallthru
    _
  // Predicated region
  $region22: #{forward.33} parent=0 // pred_check
    _
  $region23: #{forward.33} parent=0 // pred_check_branch
    %472 = sbr.rel (0) target = $region25
  $region24: #{forward.33} parent=0 // pred_region
    _
  $region25: #{forward.33} parent=0 // pred_fallthru
    _

// kernel: forward.35
$region0: #{forward.35}
  #allocation0 [shape = 'u32[]', space=smem, size = 0x4, offset = 0x4, fixed_abs, tag = 'smem constant byte address 0x4 - core index']
  #allocation1 [shape = 'u32[72,128]{1,0:T(1,128)}', space=vmem, size = 0x9000, scoped, tag = 'internal scratch']
  #allocation2 [shape = 'f32[128,128]{1,0:T(8,128)}', space=vmem, size = 0x10000, scoped, tag = 'scratch operand']
  %s0 = inlined_call_operand.vmem [shape: bf16[128,128], index: 0, kind: input, shape index: {}]
  %s1 = inlined_call_operand.vmem [shape: bf16[128,128], index: 1, kind: input, shape index: {}]
  %s2 = inlined_call_operand.vmem [shape: f32[1,128], index: 2, kind: input, shape index: {}]
  %s3 = inlined_call_operand.vmem [shape: f32[1,128], index: 3, kind: input, shape index: {}]
  %s4 = inlined_call_operand.vmem [shape: f32[128,128], index: 4, kind: output, shape index: {}]
  %s5 = sld [smem:[#allocation0]]
  $region34: #{forward.35} parent=0
    _
  %s7 = ssub.s32 1, %s5
  %s8 = scalar_select 0, %s7, %s5
  // Predicated region
  $region2: #{forward.35} parent=0 // pred_check
    _
  $region3: #{forward.35} parent=0 // pred_check_branch
    %10 = sbr.rel (0) target = $region5
  $region4: #{forward.35} parent=0 // pred_region
    _
  $region5: #{forward.35} parent=0 // pred_fallthru
    _
  // Predicated region
  $region6: #{forward.35} parent=0 // pred_check
    _
  $region7: #{forward.35} parent=0 // pred_check_branch
    %12 = sbr.rel (0) target = $region9
  $region8: #{forward.35} parent=0 // pred_region
    _
  $region9: #{forward.35} parent=0 // pred_fallthru
    _
  // Predicated region
  $region10: #{forward.35} parent=0 // pred_check
    _
  $region11: #{forward.35} parent=0 // pred_check_branch
    %14 = sbr.rel (0) target = $region13
  $region12: #{forward.35} parent=0 // pred_region
    _
  $region13: #{forward.35} parent=0 // pred_fallthru
    _
  // Predicated region
  $region14: #{forward.35} parent=0 // pred_check
    _
  $region15: #{forward.35} parent=0 // pred_check_branch
    %16 = sbr.rel (0) target = $region17
  $region16: #{forward.35} parent=0 // pred_region
    _
  $region17: #{forward.35} parent=0 // pred_fallthru
    _
  %p17 = scmp.eq.s32.totalorder 0, 0
  // Predicated region
  $region18: #{forward.35} parent=0 // pred_check
    %p18 = pneg %p17
  $region19: #{forward.35} parent=0 // pred_check_branch
    %20 = sbr.rel (%p18) target = $region21
  $region20: #{forward.35} parent=0 // pred_region
    %21 = vst [vmem:[#allocation2] sm:$0xff] 0.0
    %22 = vst [vmem:[#allocation2 + $0x8] sm:$0xff] 0.0
    %23 = vst [vmem:[#allocation2 + $0x10] sm:$0xff] 0.0
    %24 = vst [vmem:[#allocation2 + $0x18] sm:$0xff] 0.0
    %25 = vst [vmem:[#allocation2 + $0x20] sm:$0xff] 0.0
    %26 = vst [vmem:[#allocation2 + $0x28] sm:$0xff] 0.0
    %27 = vst [vmem:[#allocation2 + $0x30] sm:$0xff] 0.0
    %28 = vst [vmem:[#allocation2 + $0x38] sm:$0xff] 0.0
    %29 = vst [vmem:[#allocation2 + $0x40] sm:$0xff] 0.0
    %30 = vst [vmem:[#allocation2 + $0x48] sm:$0xff] 0.0
    %31 = vst [vmem:[#allocation2 + $0x50] sm:$0xff] 0.0
    %32 = vst [vmem:[#allocation2 + $0x58] sm:$0xff] 0.0
    %33 = vst [vmem:[#allocation2 + $0x60] sm:$0xff] 0.0
    %34 = vst [vmem:[#allocation2 + $0x68] sm:$0xff] 0.0
    %35 = vst [vmem:[#allocation2 + $0x70] sm:$0xff] 0.0
    %36 = vst [vmem:[#allocation2 + $0x78] sm:$0xff] 0.0
  $region21: #{forward.35} parent=0 // pred_fallthru
    _
  %v37 = vld [vmem:[#allocation2] sm:$0xff]
  %v38 = vld [vmem:[#allocation2 + $0x8] sm:$0xff]
  %v39 = vld [vmem:[#allocation2 + $0x10] sm:$0xff]
  %v40 = vld [vmem:[#allocation2 + $0x18] sm:$0xff]
  %v41 = vld [vmem:[#allocation2 + $0x20] sm:$0xff]
  %v42 = vld [vmem:[#allocation2 + $0x28] sm:$0xff]
  %v43 = vld [vmem:[#allocation2 + $0x30] sm:$0xff]
  %v44 = vld [vmem:[#allocation2 + $0x38] sm:$0xff]
  %v45 = vld [vmem:[#allocation2 + $0x40] sm:$0xff]
  %v46 = vld [vmem:[#allocation2 + $0x48] sm:$0xff]
  %v47 = vld [vmem:[#allocation2 + $0x50] sm:$0xff]
  %v48 = vld [vmem:[#allocation2 + $0x58] sm:$0xff]
  %v49 = vld [vmem:[#allocation2 + $0x60] sm:$0xff]
  %v50 = vld [vmem:[#allocation2 + $0x68] sm:$0xff]
  %v51 = vld [vmem:[#allocation2 + $0x70] sm:$0xff]
  %v52 = vld [vmem:[#allocation2 + $0x78] sm:$0xff]
  %v53 = vld [vmem:[%s0] sm:$0xf]
  %v54 = vld [vmem:[%s0 + $0x4] sm:$0xf]
  %v55 = vld [vmem:[%s0 + $0x8] sm:$0xf]
  %v56 = vld [vmem:[%s0 + $0xc] sm:$0xf]
  %v57 = vld [vmem:[%s0 + $0x10] sm:$0xf]
  %v58 = vld [vmem:[%s0 + $0x14] sm:$0xf]
  %v59 = vld [vmem:[%s0 + $0x18] sm:$0xf]
  %v60 = vld [vmem:[%s0 + $0x1c] sm:$0xf]
  %v61 = vld [vmem:[%s0 + $0x20] sm:$0xf]
  %v62 = vld [vmem:[%s0 + $0x24] sm:$0xf]
  %v63 = vld [vmem:[%s0 + $0x28] sm:$0xf]
  %v64 = vld [vmem:[%s0 + $0x2c] sm:$0xf]
  %v65 = vld [vmem:[%s0 + $0x30] sm:$0xf]
  %v66 = vld [vmem:[%s0 + $0x34] sm:$0xf]
  %v67 = vld [vmem:[%s0 + $0x38] sm:$0xf]
  %v68 = vld [vmem:[%s0 + $0x3c] sm:$0xf]
  %v69 = vld [vmem:[%s1] sm:$0xf]
  %v70 = vld [vmem:[%s1 + $0x4] sm:$0xf]
  %v71 = vld [vmem:[%s1 + $0x8] sm:$0xf]
  %v72 = vld [vmem:[%s1 + $0xc] sm:$0xf]
  %v73 = vld [vmem:[%s1 + $0x10] sm:$0xf]
  %v74 = vld [vmem:[%s1 + $0x14] sm:$0xf]
  %v75 = vld [vmem:[%s1 + $0x18] sm:$0xf]
  %v76 = vld [vmem:[%s1 + $0x1c] sm:$0xf]
  %v77 = vld [vmem:[%s1 + $0x20] sm:$0xf]
  %v78 = vld [vmem:[%s1 + $0x24] sm:$0xf]
  %v79 = vld [vmem:[%s1 + $0x28] sm:$0xf]
  %v80 = vld [vmem:[%s1 + $0x2c] sm:$0xf]
  %v81 = vld [vmem:[%s1 + $0x30] sm:$0xf]
  %v82 = vld [vmem:[%s1 + $0x34] sm:$0xf]
  %v83 = vld [vmem:[%s1 + $0x38] sm:$0xf]
  %v84 = vld [vmem:[%s1 + $0x3c] sm:$0xf]
  %v101 = vunpack.c.l.b16 %v53
  %v102 = vunpack.c.l.b16 %v54
  %v103 = vunpack.c.l.b16 %v55
  %v104 = vunpack.c.l.b16 %v56
  %v105 = vunpack.c.l.b16 %v57
  %v106 = vunpack.c.l.b16 %v58
  %v107 = vunpack.c.l.b16 %v59
  %v108 = vunpack.c.l.b16 %v60
  %v109 = vunpack.c.l.b16 %v61
  %v110 = vunpack.c.l.b16 %v62
  %v111 = vunpack.c.l.b16 %v63
  %v112 = vunpack.c.l.b16 %v64
  %v113 = vunpack.c.l.b16 %v65
  %v114 = vunpack.c.l.b16 %v66
  %v115 = vunpack.c.l.b16 %v67
  %v116 = vunpack.c.l.b16 %v68
  %v117 = vpack.c.b16 %v102, %v101
  %v118 = vpack.c.b16 %v104, %v103
  %v119 = vpack.c.b16 %v106, %v105
  %v120 = vpack.c.b16 %v108, %v107
  %v121 = vpack.c.b16 %v110, %v109
  %v122 = vpack.c.b16 %v112, %v111
  %v123 = vpack.c.b16 %v114, %v113
  %v124 = vpack.c.b16 %v116, %v115
  %v149 = vunpack.c.l.b16 %v69
  %v150 = vunpack.c.l.b16 %v70
  %v151 = vunpack.c.l.b16 %v71
  %v152 = vunpack.c.l.b16 %v72
  %v153 = vunpack.c.l.b16 %v73
  %v154 = vunpack.c.l.b16 %v74
  %v155 = vunpack.c.l.b16 %v75
  %v156 = vunpack.c.l.b16 %v76
  %v157 = vunpack.c.l.b16 %v77
  %v158 = vunpack.c.l.b16 %v78
  %v159 = vunpack.c.l.b16 %v79
  %v160 = vunpack.c.l.b16 %v80
  %v161 = vunpack.c.l.b16 %v81
  %v162 = vunpack.c.l.b16 %v82
  %v163 = vunpack.c.l.b16 %v83
  %v164 = vunpack.c.l.b16 %v84
  %v165 = vpack.c.b16 %v150, %v149
  %v166 = vpack.c.b16 %v152, %v151
  %v167 = vpack.c.b16 %v154, %v153
  %v168 = vpack.c.b16 %v156, %v155
  %v169 = vpack.c.b16 %v158, %v157
  %v170 = vpack.c.b16 %v160, %v159
  %v171 = vpack.c.b16 %v162, %v161
  %v172 = vpack.c.b16 %v164, %v163
  %181 = vmatpush.bf16.msra.mxu0 %v172
  %182 = vmatpush.bf16.msra.mxu0 %v171
  %183 = vmatpush.bf16.msra.mxu0 %v170
  %184 = vmatpush.bf16.msra.mxu0 %v169
  %185 = vmatpush.bf16.msra.mxu0 %v168
  %186 = vmatpush.bf16.msra.mxu0 %v167
  %187 = vmatpush.bf16.msra.mxu0 %v166
  %188 = vmatpush.bf16.msra.mxu0 %v165
  %189 = vmatmul.bf16.gmra.mxu0 %v117
  %v190 = vpop.f32.mrf.mxu0
  %v191 = vadd.f32 0.0, %v190
  %v192 = vpop.f32.mrf.mxu0
  %v193 = vadd.f32 0.0, %v192
  %194 = vmatmul.bf16.gmra.mxu0 %v118
  %v195 = vpop.f32.mrf.mxu0
  %v196 = vadd.f32 0.0, %v195
  %v197 = vpop.f32.mrf.mxu0
  %v198 = vadd.f32 0.0, %v197
  %199 = vmatmul.bf16.gmra.mxu0 %v119
  %v200 = vpop.f32.mrf.mxu0
  %v201 = vadd.f32 0.0, %v200
  %v202 = vpop.f32.mrf.mxu0
  %v203 = vadd.f32 0.0, %v202
  %204 = vmatmul.bf16.gmra.mxu0 %v120
  %v205 = vpop.f32.mrf.mxu0
  %v206 = vadd.f32 0.0, %v205
  %v207 = vpop.f32.mrf.mxu0
  %v208 = vadd.f32 0.0, %v207
  %209 = vmatmul.bf16.gmra.mxu0 %v121
  %v210 = vpop.f32.mrf.mxu0
  %v211 = vadd.f32 0.0, %v210
  %v212 = vpop.f32.mrf.mxu0
  %v213 = vadd.f32 0.0, %v212
  %214 = vmatmul.bf16.gmra.mxu0 %v122
  %v215 = vpop.f32.mrf.mxu0
  %v216 = vadd.f32 0.0, %v215
  %v217 = vpop.f32.mrf.mxu0
  %v218 = vadd.f32 0.0, %v217
  %219 = vmatmul.bf16.gmra.mxu0 %v123
  %v220 = vpop.f32.mrf.mxu0
  %v221 = vadd.f32 0.0, %v220
  %v222 = vpop.f32.mrf.mxu0
  %v223 = vadd.f32 0.0, %v222
  %224 = vmatmul.bf16.gmra.mxu0 %v124
  %v225 = vpop.f32.mrf.mxu0
  %v226 = vadd.f32 0.0, %v225
  %v227 = vpop.f32.mrf.mxu0
  %v228 = vadd.f32 0.0, %v227
  %229 = vdwg.mxu0
  %v230 = vadd.f32 %v37, %v191
  %v231 = vadd.f32 %v38, %v193
  %v232 = vadd.f32 %v39, %v196
  %v233 = vadd.f32 %v40, %v198
  %v234 = vadd.f32 %v41, %v201
  %v235 = vadd.f32 %v42, %v203
  %v236 = vadd.f32 %v43, %v206
  %v237 = vadd.f32 %v44, %v208
  %v238 = vadd.f32 %v45, %v211
  %v239 = vadd.f32 %v46, %v213
  %v240 = vadd.f32 %v47, %v216
  %v241 = vadd.f32 %v48, %v218
  %v242 = vadd.f32 %v49, %v221
  %v243 = vadd.f32 %v50, %v223
  %v244 = vadd.f32 %v51, %v226
  %v245 = vadd.f32 %v52, %v228
  %246 = vst [vmem:[#allocation2] sm:$0xff] %v230
  %247 = vst [vmem:[#allocation2 + $0x8] sm:$0xff] %v231
  %248 = vst [vmem:[#allocation2 + $0x10] sm:$0xff] %v232
  %249 = vst [vmem:[#allocation2 + $0x18] sm:$0xff] %v233
  %250 = vst [vmem:[#allocation2 + $0x20] sm:$0xff] %v234
  %251 = vst [vmem:[#allocation2 + $0x28] sm:$0xff] %v235
  %252 = vst [vmem:[#allocation2 + $0x30] sm:$0xff] %v236
  %253 = vst [vmem:[#allocation2 + $0x38] sm:$0xff] %v237
  %254 = vst [vmem:[#allocation2 + $0x40] sm:$0xff] %v238
  %255 = vst [vmem:[#allocation2 + $0x48] sm:$0xff] %v239
  %256 = vst [vmem:[#allocation2 + $0x50] sm:$0xff] %v240
  %257 = vst [vmem:[#allocation2 + $0x58] sm:$0xff] %v241
  %258 = vst [vmem:[#allocation2 + $0x60] sm:$0xff] %v242
  %259 = vst [vmem:[#allocation2 + $0x68] sm:$0xff] %v243
  %260 = vst [vmem:[#allocation2 + $0x70] sm:$0xff] %v244
  %261 = vst [vmem:[#allocation2 + $0x78] sm:$0xff] %v245
  // Predicated region
  $region22: #{forward.35} parent=0 // pred_check
    %p262 = pneg %p17
  $region23: #{forward.35} parent=0 // pred_check_branch
    %264 = sbr.rel (%p262) target = $region25
  $region24: #{forward.35} parent=0 // pred_region
    %v265 = vld [vmem:[#allocation2] sm:$0xff]
    %v266 = vld [vmem:[#allocation2 + $0x8] sm:$0xff]
    %v267 = vld [vmem:[#allocation2 + $0x10] sm:$0xff]
    %v268 = vld [vmem:[#allocation2 + $0x18] sm:$0xff]
    %v269 = vld [vmem:[#allocation2 + $0x20] sm:$0xff]
    %v270 = vld [vmem:[#allocation2 + $0x28] sm:$0xff]
    %v271 = vld [vmem:[#allocation2 + $0x30] sm:$0xff]
    %v272 = vld [vmem:[#allocation2 + $0x38] sm:$0xff]
    %v273 = vld [vmem:[#allocation2 + $0x40] sm:$0xff]
    %v274 = vld [vmem:[#allocation2 + $0x48] sm:$0xff]
    %v275 = vld [vmem:[#allocation2 + $0x50] sm:$0xff]
    %v276 = vld [vmem:[#allocation2 + $0x58] sm:$0xff]
    %v277 = vld [vmem:[#allocation2 + $0x60] sm:$0xff]
    %v278 = vld [vmem:[#allocation2 + $0x68] sm:$0xff]
    %v279 = vld [vmem:[#allocation2 + $0x70] sm:$0xff]
    %v280 = vld [vmem:[#allocation2 + $0x78] sm:$0xff]
    %v281 = vld [vmem:[%s2] sm:$0x1]
    %v283 = vperm.slane %v281, 0
    %v285 = vmul.f32 %v265, %v283
    %v286 = vmul.f32 %v266, %v283
    %v287 = vmul.f32 %v267, %v283
    %v288 = vmul.f32 %v268, %v283
    %v289 = vmul.f32 %v269, %v283
    %v290 = vmul.f32 %v270, %v283
    %v291 = vmul.f32 %v271, %v283
    %v292 = vmul.f32 %v272, %v283
    %v293 = vmul.f32 %v273, %v283
    %v294 = vmul.f32 %v274, %v283
    %v295 = vmul.f32 %v275, %v283
    %v296 = vmul.f32 %v276, %v283
    %v297 = vmul.f32 %v277, %v283
    %v298 = vmul.f32 %v278, %v283
    %v299 = vmul.f32 %v279, %v283
    %v300 = vmul.f32 %v280, %v283
    %v301 = vld [vmem:[%s3] sm:$0x1]
    %v303 = vperm.slane %v301, 0
    %v305 = vadd.f32 %v285, %v303
    %v306 = vadd.f32 %v286, %v303
    %v307 = vadd.f32 %v287, %v303
    %v308 = vadd.f32 %v288, %v303
    %v309 = vadd.f32 %v289, %v303
    %v310 = vadd.f32 %v290, %v303
    %v311 = vadd.f32 %v291, %v303
    %v312 = vadd.f32 %v292, %v303
    %v313 = vadd.f32 %v293, %v303
    %v314 = vadd.f32 %v294, %v303
    %v315 = vadd.f32 %v295, %v303
    %v316 = vadd.f32 %v296, %v303
    %v317 = vadd.f32 %v297, %v303
    %v318 = vadd.f32 %v298, %v303
    %v319 = vadd.f32 %v299, %v303
    %v320 = vadd.f32 %v300, %v303
    %v321 = vmax.f32 %v305, 0.0
    %v322 = vmax.f32 %v306, 0.0
    %v323 = vmax.f32 %v307, 0.0
    %v324 = vmax.f32 %v308, 0.0
    %v325 = vmax.f32 %v309, 0.0
    %v326 = vmax.f32 %v310, 0.0
    %v327 = vmax.f32 %v311, 0.0
    %v328 = vmax.f32 %v312, 0.0
    %v329 = vmax.f32 %v313, 0.0
    %v330 = vmax.f32 %v314, 0.0
    %v331 = vmax.f32 %v315, 0.0
    %v332 = vmax.f32 %v316, 0.0
    %v333 = vmax.f32 %v317, 0.0
    %v334 = vmax.f32 %v318, 0.0
    %v335 = vmax.f32 %v319, 0.0
    %v336 = vmax.f32 %v320, 0.0
    %337 = vst [vmem:[%s4] sm:$0xff] %v321
    %338 = vst [vmem:[%s4 + $0x8] sm:$0xff] %v322
    %339 = vst [vmem:[%s4 + $0x10] sm:$0xff] %v323
    %340 = vst [vmem:[%s4 + $0x18] sm:$0xff] %v324
    %341 = vst [vmem:[%s4 + $0x20] sm:$0xff] %v325
    %342 = vst [vmem:[%s4 + $0x28] sm:$0xff] %v326
    %343 = vst [vmem:[%s4 + $0x30] sm:$0xff] %v327
    %344 = vst [vmem:[%s4 + $0x38] sm:$0xff] %v328
    %345 = vst [vmem:[%s4 + $0x40] sm:$0xff] %v329
    %346 = vst [vmem:[%s4 + $0x48] sm:$0xff] %v330
    %347 = vst [vmem:[%s4 + $0x50] sm:$0xff] %v331
    %348 = vst [vmem:[%s4 + $0x58] sm:$0xff] %v332
    %349 = vst [vmem:[%s4 + $0x60] sm:$0xff] %v333
    %350 = vst [vmem:[%s4 + $0x68] sm:$0xff] %v334
    %351 = vst [vmem:[%s4 + $0x70] sm:$0xff] %v335
    %352 = vst [vmem:[%s4 + $0x78] sm:$0xff] %v336
  $region25: #{forward.35} parent=0 // pred_fallthru
    _
  // Predicated region
  $region26: #{forward.35} parent=0 // pred_check
    _
  $region27: #{forward.35} parent=0 // pred_check_branch
    %354 = sbr.rel (0) target = $region29
  $region28: #{forward.35} parent=0 // pred_region
    _
  $region29: #{forward.35} parent=0 // pred_fallthru
    _
  // Predicated region
  $region30: #{forward.35} parent=0 // pred_check
    _
  $region31: #{forward.35} parent=0 // pred_check_branch
    %356 = sbr.rel (0) target = $region33
  $region32: #{forward.35} parent=0 // pred_region
    _
  $region33: #{forward.35} parent=0 // pred_fallthru
    _

// kernel: forward.32
$region0: #{forward.32}
  #allocation0 [shape = 'u32[]', space=smem, size = 0x4, offset = 0x4, fixed_abs, tag = 'smem constant byte address 0x4 - core index']
  #allocation1 [shape = 'u32[72,128]{1,0:T(1,128)}', space=vmem, size = 0x9000, scoped, tag = 'internal scratch']
  #allocation2 [shape = 'f32[256,128]{1,0:T(8,128)}', space=vmem, size = 0x20000, scoped, tag = 'scratch operand']
  %s0 = inlined_call_operand.vmem [shape: bf16[512,256], index: 0, kind: input, shape index: {}]
  %s1 = inlined_call_operand.vmem [shape: bf16[256,128], index: 1, kind: input, shape index: {}]
  %s2 = inlined_call_operand.vmem [shape: f32[1,128], index: 2, kind: input, shape index: {}]
  %s3 = inlined_call_operand.vmem [shape: f32[1,128], index: 3, kind: input, shape index: {}]
  %s4 = inlined_call_operand.vmem [shape: f32[512,128], index: 4, kind: output, shape index: {}]
  %s5 = sld [smem:[#allocation0]]
  $region57: #{forward.32} parent=0
    _
  %s7 = ssub.s32 1, %s5
  %s8 = scalar_select 0, %s7, %s5
  loop: start=0, step=1, limit=4
  $region2: #{forward.32} parent=0 // loop_pre_header
    _
  $region3: #{forward.32} parent=0 // loop_header
    %s10 = sphi 0, %s14
    %p11 = scmp.ge.s32.totalorder %s10, 4
    %s17 = sphi 0, %s36
    %s18 = sphi 0, %s32
    %s19 = sphi 0, %s28
    %s20 = sphi 0, %s17
    %s21 = sphi 0, %s18
    %s22 = sphi 0, %s19
    %s23 = sphi 0, %s20
    %s24 = sphi 0, %s21
    %s25 = sphi 0, %s22
    %s41 = sphi 0, %s43
    %s44 = sphi 0, %s41
    %s45 = sphi 0, %s44
    %s61 = sphi 0, %s45
    %s69 = sphi 0, %s71
    %s72 = sphi 0, %s69
    %s73 = sphi 0, %s72
    %s89 = sphi 0, %s73
    %s95 = sphi 0, %s97
    %s98 = sphi 0, %s95
    %s99 = sphi 0, %s98
    %s115 = sphi 0, %s99
    %s121 = sphi 0, %s123
    %s124 = sphi 0, %s121
    %s125 = sphi 0, %s124
    %s141 = sphi 0, %s125
    %s149 = sphi 0, %s151
    %s152 = sphi 0, %s149
    %s153 = sphi 0, %s152
    %s169 = sphi 0, %s153
  $region4: #{forward.32} parent=0 // loop_header_branch
    %13 = sbr.rel (%p11) target = $region8
  $region5: #{forward.32} parent=0 // loop_body
    %s15 = ssub.s32 %s10, 1
    %s16 = ssub.s32 %s10, 2
    %s26 = sadd.s32 1, %s19
    %p27 = scmp.ge.s32.totalorder %s26, 1
    %s28 = scalar_select %p27, 0, %s26
    %s29 = sadd.s32 1, %s18
    %s30 = scalar_select %p27, %s29, %s18
    %p31 = scmp.ge.s32.totalorder %s30, 1
    %s32 = scalar_select %p31, 0, %s30
    %s33 = sadd.s32 1, %s17
    %s34 = scalar_select %p31, %s33, %s17
    %p35 = scmp.ge.s32.totalorder %s34, 2
    %s36 = scalar_select %p35, 0, %s34
    %s37 = ssub.s32 %s17, %s36
    %s38 = ssub.s32 %s19, %s28
    %s39 = sor.u32 %s37, %s38
    %p40 = scmp.eq.s32.totalorder %s39, 0
    %s42 = sadd.s32 %s41, 1
    %s43 = scalar_select %p40, %s41, %s42
    %p46 = pneg %p40
    %p47 = scmp.eq.s32.totalorder %s10, 1
    %p48 = por %p46, %p47
    %p49 = scmp.ne.s32.totalorder %s41, %s44
    %p50 = scmp.eq.s32.totalorder %s10, 0
    %p51 = por %p49, %p50
    %p52 = scmp.ne.s32.totalorder %s41, %s44
    %p53 = scmp.eq.s32.totalorder %s15, 1
    %p54 = por %p52, %p53
    %p55 = scmp.ne.s32.totalorder %s44, %s45
    %p56 = scmp.eq.s32.totalorder %s15, 0
    %p57 = por %p55, %p56
    %p58 = scmp.ne.s32.totalorder %s44, %s45
    %p59 = scmp.eq.s32.totalorder %s16, 1
    %p60 = por %p58, %p59
    %p62 = scmp.ne.s32.totalorder %s45, %s61
    %p63 = scmp.eq.s32.totalorder %s16, 0
    %p64 = por %p62, %p63
    %s65 = ssub.s32 %s19, %s28
    %s66 = ssub.s32 %s18, %s32
    %s67 = sor.u32 %s65, %s66
    %p68 = scmp.eq.s32.totalorder %s67, 0
    %s70 = sadd.s32 %s69, 1
    %s71 = scalar_select %p68, %s69, %s70
    %p74 = pneg %p68
    %p75 = scmp.eq.s32.totalorder %s10, 1
    %p76 = por %p74, %p75
    %p77 = scmp.ne.s32.totalorder %s69, %s72
    %p78 = scmp.eq.s32.totalorder %s10, 0
    %p79 = por %p77, %p78
    %p80 = scmp.ne.s32.totalorder %s69, %s72
    %p81 = scmp.eq.s32.totalorder %s15, 1
    %p82 = por %p80, %p81
    %p83 = scmp.ne.s32.totalorder %s72, %s73
    %p84 = scmp.eq.s32.totalorder %s15, 0
    %p85 = por %p83, %p84
    %p86 = scmp.ne.s32.totalorder %s72, %s73
    %p87 = scmp.eq.s32.totalorder %s16, 1
    %p88 = por %p86, %p87
    %p90 = scmp.ne.s32.totalorder %s73, %s89
    %p91 = scmp.eq.s32.totalorder %s16, 0
    %p92 = por %p90, %p91
    %s93 = ssub.s32 %s18, %s32
    %p94 = scmp.eq.s32.totalorder %s93, 0
    %s96 = sadd.s32 %s95, 1
    %s97 = scalar_select %p94, %s95, %s96
    %p100 = pneg %p94
    %p101 = scmp.eq.s32.totalorder %s10, 1
    %p102 = por %p100, %p101
    %p103 = scmp.ne.s32.totalorder %s95, %s98
    %p104 = scmp.eq.s32.totalorder %s10, 0
    %p105 = por %p103, %p104
    %p106 = scmp.ne.s32.totalorder %s95, %s98
    %p107 = scmp.eq.s32.totalorder %s15, 1
    %p108 = por %p106, %p107
    %p109 = scmp.ne.s32.totalorder %s98, %s99
    %p110 = scmp.eq.s32.totalorder %s15, 0
    %p111 = por %p109, %p110
    %p112 = scmp.ne.s32.totalorder %s98, %s99
    %p113 = scmp.eq.s32.totalorder %s16, 1
    %p114 = por %p112, %p113
    %p116 = scmp.ne.s32.totalorder %s99, %s115
    %p117 = scmp.eq.s32.totalorder %s16, 0
    %p118 = por %p116, %p117
    %s119 = ssub.s32 %s18, %s32
    %p120 = scmp.eq.s32.totalorder %s119, 0
    %s122 = sadd.s32 %s121, 1
    %s123 = scalar_select %p120, %s121, %s122
    %p126 = pneg %p120
    %p127 = scmp.eq.s32.totalorder %s10, 1
    %p128 = por %p126, %p127
    %p129 = scmp.ne.s32.totalorder %s121, %s124
    %p130 = scmp.eq.s32.totalorder %s10, 0
    %p131 = por %p129, %p130
    %p132 = scmp.ne.s32.totalorder %s121, %s124
    %p133 = scmp.eq.s32.totalorder %s15, 1
    %p134 = por %p132, %p133
    %p135 = scmp.ne.s32.totalorder %s124, %s125
    %p136 = scmp.eq.s32.totalorder %s15, 0
    %p137 = por %p135, %p136
    %p138 = scmp.ne.s32.totalorder %s124, %s125
    %p139 = scmp.eq.s32.totalorder %s16, 1
    %p140 = por %p138, %p139
    %p142 = scmp.ne.s32.totalorder %s125, %s141
    %p143 = scmp.eq.s32.totalorder %s16, 0
    %p144 = por %p142, %p143
    %s145 = ssub.s32 %s17, %s36
    %s146 = ssub.s32 %s18, %s32
    %s147 = sor.u32 %s145, %s146
    %p148 = scmp.eq.s32.totalorder %s147, 0
    %s150 = sadd.s32 %s149, 1
    %s151 = scalar_select %p148, %s149, %s150
    %p154 = pneg %p148
    %p155 = scmp.eq.s32.totalorder %s10, 1
    %p156 = por %p154, %p155
    %p157 = scmp.ne.s32.totalorder %s149, %s152
    %p158 = scmp.eq.s32.totalorder %s10, 0
    %p159 = por %p157, %p158
    %p160 = scmp.ne.s32.totalorder %s149, %s152
    %p161 = scmp.eq.s32.totalorder %s15, 1
    %p162 = por %p160, %p161
    %p163 = scmp.ne.s32.totalorder %s152, %s153
    %p164 = scmp.eq.s32.totalorder %s15, 0
    %p165 = por %p163, %p164
    %p166 = scmp.ne.s32.totalorder %s152, %s153
    %p167 = scmp.eq.s32.totalorder %s16, 1
    %p168 = por %p166, %p167
    %p170 = scmp.ne.s32.totalorder %s153, %s169
    %p171 = scmp.eq.s32.totalorder %s16, 0
    %p172 = por %p170, %p171
    %p173 = scmp.le.s32.totalorder 1, %s10
    %p174 = scmp.lt.s32.totalorder %s10, 3
    %p175 = pnand %p173, %p174
    %p176 = pneg %p175
    // Predicated region
    $region9: #{forward.32} parent=5 // pred_check
      _
    $region10: #{forward.32} parent=5 // pred_check_branch
      %178 = sbr.rel (%p175) target = $region12
    $region11: #{forward.32} parent=5 // pred_region
      %s179 = ssub.s32 %s10, 1
      // Predicated region
      $region13: #{forward.32} parent=11 // pred_check
        %p180 = pneg %p85
      $region14: #{forward.32} parent=11 // pred_check_branch
        %182 = sbr.rel (%p180) target = $region16
      $region15: #{forward.32} parent=11 // pred_region
        %s183 = smul.u32 32, %s22
        %p184 = scmp.lt.s32.totalorder %s183, 31
        %s185 = scalar_select %p184, %s183, 31
        %p186 = scmp.lt.s32.totalorder %s21, 0
        %s187 = scalar_select %p186, %s21, 0
        %s188 = sadd.s32 %s187, %s185
        %s189 = smul.addr %s188, 4
        %s190 = scalar_lea.vmem %s1, %s189
        %s191 = smul.u32 32, %s22
      $region16: #{forward.32} parent=11 // pred_fallthru
        _
      // Predicated region
      $region17: #{forward.32} parent=11 // pred_check
        %p192 = pneg %p111
      $region18: #{forward.32} parent=11 // pred_check_branch
        %194 = sbr.rel (%p192) target = $region20
      $region19: #{forward.32} parent=11 // pred_region
        %p195 = scmp.lt.s32.totalorder %s21, 0
        %s196 = scalar_select %p195, %s21, 0
        %s197 = scalar_lea.vmem %s2, %s196
      $region20: #{forward.32} parent=11 // pred_fallthru
        _
      // Predicated region
      $region21: #{forward.32} parent=11 // pred_check
        %p198 = pneg %p137
      $region22: #{forward.32} parent=11 // pred_check_branch
        %200 = sbr.rel (%p198) target = $region24
      $region23: #{forward.32} parent=11 // pred_region
        %p201 = scmp.lt.s32.totalorder %s21, 0
        %s202 = scalar_select %p201, %s21, 0
        %s203 = scalar_lea.vmem %s3, %s202
      $region24: #{forward.32} parent=11 // pred_fallthru
        _
    $region12: #{forward.32} parent=5 // pred_fallthru
      _
    %p204 = scmp.lt.s32.totalorder %s10, 2
    // Predicated region
    $region25: #{forward.32} parent=5 // pred_check
      %p205 = pneg %p204
    $region26: #{forward.32} parent=5 // pred_check_branch
      %207 = sbr.rel (%p205) target = $region28
    $region27: #{forward.32} parent=5 // pred_region
      // Predicated region
      $region29: #{forward.32} parent=27 // pred_check
        %p208 = pneg %p51
      $region30: #{forward.32} parent=27 // pred_check_branch
        %210 = sbr.rel (%p208) target = $region32
      $region31: #{forward.32} parent=27 // pred_region
        %s211 = smul.u32 32, %s17
        %s212 = smul.u32 2, %s19
        %p213 = scmp.lt.s32.totalorder %s211, 63
        %s214 = scalar_select %p213, %s211, 63
        %p215 = scmp.lt.s32.totalorder %s212, 1
        %s216 = scalar_select %p215, %s212, 1
        %s217 = smul.addr %s214, 2
        %s218 = sadd.s32 %s216, %s217
        %s219 = smul.addr %s218, 4
        %s220 = scalar_lea.vmem %s0, %s219
        %s221 = smul.u32 32, %s17
        %s222 = smul.u32 2, %s19
      $region32: #{forward.32} parent=27 // pred_fallthru
        _
    $region28: #{forward.32} parent=5 // pred_fallthru
      _
    %p223 = scmp.le.s32.totalorder 1, %s10
    %p224 = scmp.lt.s32.totalorder %s10, 3
    %p225 = pnand %p223, %p224
    %p226 = pneg %p225
    // Predicated region
    $region33: #{forward.32} parent=5 // pred_check
      _
    $region34: #{forward.32} parent=5 // pred_check_branch
      %228 = sbr.rel (%p225) target = $region36
    $region35: #{forward.32} parent=5 // pred_region
      %s229 = ssub.s32 %s10, 1
      %s230 = smul.u32 32, %s20
      %s231 = smul.u32 2, %s22
      %p232 = scmp.lt.s32.totalorder %s230, 63
      %s233 = scalar_select %p232, %s230, 63
      %p234 = scmp.lt.s32.totalorder %s231, 1
      %s235 = scalar_select %p234, %s231, 1
      %s236 = smul.addr %s233, 2
      %s237 = sadd.s32 %s235, %s236
      %s238 = smul.addr %s237, 4
      %s239 = scalar_lea.vmem %s0, %s238
      %p240 = pneg %p57
      %p241 = pneg %p54
      %s242 = smul.u32 32, %s22
      %p243 = scmp.lt.s32.totalorder %s242, 31
      %s244 = scalar_select %p243, %s242, 31
      %p245 = scmp.lt.s32.totalorder %s21, 0
      %s246 = scalar_select %p245, %s21, 0
      %s247 = sadd.s32 %s246, %s244
      %s248 = smul.addr %s247, 4
      %s249 = scalar_lea.vmem %s1, %s248
      %p250 = pneg %p85
      %p251 = pneg %p82
      %p252 = scmp.lt.s32.totalorder %s21, 0
      %s253 = scalar_select %p252, %s21, 0
      %s254 = scalar_lea.vmem %s2, %s253
      %p255 = pneg %p111
      %p256 = pneg %p108
      %p257 = scmp.lt.s32.totalorder %s21, 0
      %s258 = scalar_select %p257, %s21, 0
      %s259 = scalar_lea.vmem %s3, %s258
      %p260 = pneg %p137
      %p261 = pneg %p134
      %p262 = pneg %p165
      %p263 = pneg %p162
      %s264 = smul.u32 32, %s20
      %p265 = scmp.lt.s32.totalorder %s264, 63
      %s266 = scalar_select %p265, %s264, 63
      %p267 = scmp.lt.s32.totalorder %s21, 0
      %s268 = scalar_select %p267, %s21, 0
      %s269 = sadd.s32 %s268, %s266
      %s270 = smul.addr %s269, 8
      %s271 = scalar_lea.vmem %s4, %s270
      %s272 = smul.u32 32, %s20
      %s273 = smul.u32 2, %s22
      %p274 = scmp.lt.s32.totalorder %s272, 63
      %s275 = scalar_select %p274, %s272, 63
      %p276 = scmp.lt.s32.totalorder %s273, 1
      %s277 = scalar_select %p276, %s273, 1
      %s278 = smul.addr %s275, 2
      %s279 = sadd.s32 %s277, %s278
      %s280 = smul.addr %s279, 4
      %s281 = scalar_lea.vmem %s0, %s280
      %s282 = smul.u32 32, %s20
      %s283 = smul.u32 2, %s22
      %s284 = smul.u32 32, %s22
      %p285 = scmp.lt.s32.totalorder %s284, 31
      %s286 = scalar_select %p285, %s284, 31
      %p287 = scmp.lt.s32.totalorder %s21, 0
      %s288 = scalar_select %p287, %s21, 0
      %s289 = sadd.s32 %s288, %s286
      %s290 = smul.addr %s289, 4
      %s291 = scalar_lea.vmem %s1, %s290
      %s292 = smul.u32 32, %s22
      %p293 = scmp.lt.s32.totalorder %s21, 0
      %s294 = scalar_select %p293, %s21, 0
      %s295 = scalar_lea.vmem %s2, %s294
      %p296 = scmp.lt.s32.totalorder %s21, 0
      %s297 = scalar_select %p296, %s21, 0
      %s298 = scalar_lea.vmem %s3, %s297
      %s299 = smul.u32 32, %s20
      %p300 = scmp.lt.s32.totalorder %s299, 63
      %s301 = scalar_select %p300, %s299, 63
      %p302 = scmp.lt.s32.totalorder %s21, 0
      %s303 = scalar_select %p302, %s21, 0
      %s304 = sadd.s32 %s303, %s301
      %s305 = smul.addr %s304, 8
      %s306 = scalar_lea.vmem %s4, %s305
      %s307 = smul.u32 32, %s20
      %p308 = scmp.eq.s32.totalorder %s22, 0
      // Predicated region
      $region37: #{forward.32} parent=35 // pred_check
        %p309 = pneg %p308
      $region38: #{forward.32} parent=35 // pred_check_branch
        %311 = sbr.rel (%p309) target = $region40
      $region39: #{forward.32} parent=35 // pred_region
        %312 = vst [vmem:[#allocation2] sm:$0xff] 0.0
        %313 = vst [vmem:[#allocation2 + $0x8] sm:$0xff] 0.0
        %314 = vst [vmem:[#allocation2 + $0x10] sm:$0xff] 0.0
        %315 = vst [vmem:[#allocation2 + $0x18] sm:$0xff] 0.0
        %316 = vst [vmem:[#allocation2 + $0x20] sm:$0xff] 0.0
        %317 = vst [vmem:[#allocation2 + $0x28] sm:$0xff] 0.0
        %318 = vst [vmem:[#allocation2 + $0x30] sm:$0xff] 0.0
        %319 = vst [vmem:[#allocation2 + $0x38] sm:$0xff] 0.0
        %320 = vst [vmem:[#allocation2 + $0x40] sm:$0xff] 0.0
        %321 = vst [vmem:[#allocation2 + $0x48] sm:$0xff] 0.0
        %322 = vst [vmem:[#allocation2 + $0x50] sm:$0xff] 0.0
        %323 = vst [vmem:[#allocation2 + $0x58] sm:$0xff] 0.0
        %324 = vst [vmem:[#allocation2 + $0x60] sm:$0xff] 0.0
        %325 = vst [vmem:[#allocation2 + $0x68] sm:$0xff] 0.0
        %326 = vst [vmem:[#allocation2 + $0x70] sm:$0xff] 0.0
        %327 = vst [vmem:[#allocation2 + $0x78] sm:$0xff] 0.0
        %328 = vst [vmem:[#allocation2 + $0x80] sm:$0xff] 0.0
        %329 = vst [vmem:[#allocation2 + $0x88] sm:$0xff] 0.0
        %330 = vst [vmem:[#allocation2 + $0x90] sm:$0xff] 0.0
        %331 = vst [vmem:[#allocation2 + $0x98] sm:$0xff] 0.0
        %332 = vst [vmem:[#allocation2 + $0xa0] sm:$0xff] 0.0
        %333 = vst [vmem:[#allocation2 + $0xa8] sm:$0xff] 0.0
        %334 = vst [vmem:[#allocation2 + $0xb0] sm:$0xff] 0.0
        %335 = vst [vmem:[#allocation2 + $0xb8] sm:$0xff] 0.0
        %336 = vst [vmem:[#allocation2 + $0xc0] sm:$0xff] 0.0
        %337 = vst [vmem:[#allocation2 + $0xc8] sm:$0xff] 0.0
        %338 = vst [vmem:[#allocation2 + $0xd0] sm:$0xff] 0.0
        %339 = vst [vmem:[#allocation2 + $0xd8] sm:$0xff] 0.0
        %340 = vst [vmem:[#allocation2 + $0xe0] sm:$0xff] 0.0
        %341 = vst [vmem:[#allocation2 + $0xe8] sm:$0xff] 0.0
        %342 = vst [vmem:[#allocation2 + $0xf0] sm:$0xff] 0.0
        %343 = vst [vmem:[#allocation2 + $0xf8] sm:$0xff] 0.0
      $region40: #{forward.32} parent=35 // pred_fallthru
        _
      %v344 = vld [vmem:[#allocation2] sm:$0xff]
      %v345 = vld [vmem:[#allocation2 + $0x8] sm:$0xff]
      %v346 = vld [vmem:[#allocation2 + $0x10] sm:$0xff]
      %v347 = vld [vmem:[#allocation2 + $0x18] sm:$0xff]
      %v348 = vld [vmem:[#allocation2 + $0x20] sm:$0xff]
      %v349 = vld [vmem:[#allocation2 + $0x28] sm:$0xff]
      %v350 = vld [vmem:[#allocation2 + $0x30] sm:$0xff]
      %v351 = vld [vmem:[#allocation2 + $0x38] sm:$0xff]
      %v352 = vld [vmem:[#allocation2 + $0x40] sm:$0xff]
      %v353 = vld [vmem:[#allocation2 + $0x48] sm:$0xff]
      %v354 = vld [vmem:[#allocation2 + $0x50] sm:$0xff]
      %v355 = vld [vmem:[#allocation2 + $0x58] sm:$0xff]
      %v356 = vld [vmem:[#allocation2 + $0x60] sm:$0xff]
      %v357 = vld [vmem:[#allocation2 + $0x68] sm:$0xff]
      %v358 = vld [vmem:[#allocation2 + $0x70] sm:$0xff]
      %v359 = vld [vmem:[#allocation2 + $0x78] sm:$0xff]
      %v360 = vld [vmem:[#allocation2 + $0x80] sm:$0xff]
      %v361 = vld [vmem:[#allocation2 + $0x88] sm:$0xff]
      %v362 = vld [vmem:[#allocation2 + $0x90] sm:$0xff]
      %v363 = vld [vmem:[#allocation2 + $0x98] sm:$0xff]
      %v364 = vld [vmem:[#allocation2 + $0xa0] sm:$0xff]
      %v365 = vld [vmem:[#allocation2 + $0xa8] sm:$0xff]
      %v366 = vld [vmem:[#allocation2 + $0xb0] sm:$0xff]
      %v367 = vld [vmem:[#allocation2 + $0xb8] sm:$0xff]
      %v368 = vld [vmem:[#allocation2 + $0xc0] sm:$0xff]
      %v369 = vld [vmem:[#allocation2 + $0xc8] sm:$0xff]
      %v370 = vld [vmem:[#allocation2 + $0xd0] sm:$0xff]
      %v371 = vld [vmem:[#allocation2 + $0xd8] sm:$0xff]
      %v372 = vld [vmem:[#allocation2 + $0xe0] sm:$0xff]
      %v373 = vld [vmem:[#allocation2 + $0xe8] sm:$0xff]
      %v374 = vld [vmem:[#allocation2 + $0xf0] sm:$0xff]
      %v375 = vld [vmem:[#allocation2 + $0xf8] sm:$0xff]
      %v376 = vld [vmem:[%s281] sm:$0xff]
      %v377 = vld [vmem:[%s281 + $0x8] sm:$0xff]
      %v378 = vld [vmem:[%s281 + $0x10] sm:$0xff]
      %v379 = vld [vmem:[%s281 + $0x18] sm:$0xff]
      %v380 = vld [vmem:[%s281 + $0x20] sm:$0xff]
      %v381 = vld [vmem:[%s281 + $0x28] sm:$0xff]
      %v382 = vld [vmem:[%s281 + $0x30] sm:$0xff]
      %v383 = vld [vmem:[%s281 + $0x38] sm:$0xff]
      %v384 = vld [vmem:[%s281 + $0x40] sm:$0xff]
      %v385 = vld [vmem:[%s281 + $0x48] sm:$0xff]
      %v386 = vld [vmem:[%s281 + $0x50] sm:$0xff]
      %v387 = vld [vmem:[%s281 + $0x58] sm:$0xff]
      %v388 = vld [vmem:[%s281 + $0x60] sm:$0xff]
      %v389 = vld [vmem:[%s281 + $0x68] sm:$0xff]
      %v390 = vld [vmem:[%s281 + $0x70] sm:$0xff]
      %v391 = vld [vmem:[%s281 + $0x78] sm:$0xff]
      %v392 = vld [vmem:[%s281 + $0x80] sm:$0xff]
      %v393 = vld [vmem:[%s281 + $0x88] sm:$0xff]
      %v394 = vld [vmem:[%s281 + $0x90] sm:$0xff]
      %v395 = vld [vmem:[%s281 + $0x98] sm:$0xff]
      %v396 = vld [vmem:[%s281 + $0xa0] sm:$0xff]
      %v397 = vld [vmem:[%s281 + $0xa8] sm:$0xff]
      %v398 = vld [vmem:[%s281 + $0xb0] sm:$0xff]
      %v399 = vld [vmem:[%s281 + $0xb8] sm:$0xff]
      %v400 = vld [vmem:[%s281 + $0xc0] sm:$0xff]
      %v401 = vld [vmem:[%s281 + $0xc8] sm:$0xff]
      %v402 = vld [vmem:[%s281 + $0xd0] sm:$0xff]
      %v403 = vld [vmem:[%s281 + $0xd8] sm:$0xff]
      %v404 = vld [vmem:[%s281 + $0xe0] sm:$0xff]
      %v405 = vld [vmem:[%s281 + $0xe8] sm:$0xff]
      %v406 = vld [vmem:[%s281 + $0xf0] sm:$0xff]
      %v407 = vld [vmem:[%s281 + $0xf8] sm:$0xff]
      %v408 = vld [vmem:[%s291] sm:$0xf]
      %v409 = vld [vmem:[%s291 + $0x4] sm:$0xf]
      %v410 = vld [vmem:[%s291 + $0x8] sm:$0xf]
      %v411 = vld [vmem:[%s291 + $0xc] sm:$0xf]
      %v412 = vld [vmem:[%s291 + $0x10] sm:$0xf]
      %v413 = vld [vmem:[%s291 + $0x14] sm:$0xf]
      %v414 = vld [vmem:[%s291 + $0x18] sm:$0xf]
      %v415 = vld [vmem:[%s291 + $0x1c] sm:$0xf]
      %v416 = vld [vmem:[%s291 + $0x20] sm:$0xf]
      %v417 = vld [vmem:[%s291 + $0x24] sm:$0xf]
      %v418 = vld [vmem:[%s291 + $0x28] sm:$0xf]
      %v419 = vld [vmem:[%s291 + $0x2c] sm:$0xf]
      %v420 = vld [vmem:[%s291 + $0x30] sm:$0xf]
      %v421 = vld [vmem:[%s291 + $0x34] sm:$0xf]
      %v422 = vld [vmem:[%s291 + $0x38] sm:$0xf]
      %v423 = vld [vmem:[%s291 + $0x3c] sm:$0xf]
      %v424 = vld [vmem:[%s291 + $0x40] sm:$0xf]
      %v425 = vld [vmem:[%s291 + $0x44] sm:$0xf]
      %v426 = vld [vmem:[%s291 + $0x48] sm:$0xf]
      %v427 = vld [vmem:[%s291 + $0x4c] sm:$0xf]
      %v428 = vld [vmem:[%s291 + $0x50] sm:$0xf]
      %v429 = vld [vmem:[%s291 + $0x54] sm:$0xf]
      %v430 = vld [vmem:[%s291 + $0x58] sm:$0xf]
      %v431 = vld [vmem:[%s291 + $0x5c] sm:$0xf]
      %v432 = vld [vmem:[%s291 + $0x60] sm:$0xf]
      %v433 = vld [vmem:[%s291 + $0x64] sm:$0xf]
      %v434 = vld [vmem:[%s291 + $0x68] sm:$0xf]
      %v435 = vld [vmem:[%s291 + $0x6c] sm:$0xf]
      %v436 = vld [vmem:[%s291 + $0x70] sm:$0xf]
      %v437 = vld [vmem:[%s291 + $0x74] sm:$0xf]
      %v438 = vld [vmem:[%s291 + $0x78] sm:$0xf]
      %v439 = vld [vmem:[%s291 + $0x7c] sm:$0xf]
      %v472 = vunpack.c.l.b16 %v376
      %v473 = vunpack.c.h.b16 %v376
      %v474 = vunpack.c.l.b16 %v377
      %v475 = vunpack.c.h.b16 %v377
      %v476 = vunpack.c.l.b16 %v378
      %v477 = vunpack.c.h.b16 %v378
      %v478 = vunpack.c.l.b16 %v379
      %v479 = vunpack.c.h.b16 %v379
      %v480 = vunpack.c.l.b16 %v380
      %v481 = vunpack.c.h.b16 %v380
      %v482 = vunpack.c.l.b16 %v381
      %v483 = vunpack.c.h.b16 %v381
      %v484 = vunpack.c.l.b16 %v382
      %v485 = vunpack.c.h.b16 %v382
      %v486 = vunpack.c.l.b16 %v383
      %v487 = vunpack.c.h.b16 %v383
      %v488 = vunpack.c.l.b16 %v384
      %v489 = vunpack.c.h.b16 %v384
      %v490 = vunpack.c.l.b16 %v385
      %v491 = vunpack.c.h.b16 %v385
      %v492 = vunpack.c.l.b16 %v386
      %v493 = vunpack.c.h.b16 %v386
      %v494 = vunpack.c.l.b16 %v387
      %v495 = vunpack.c.h.b16 %v387
      %v496 = vunpack.c.l.b16 %v388
      %v497 = vunpack.c.h.b16 %v388
      %v498 = vunpack.c.l.b16 %v389
      %v499 = vunpack.c.h.b16 %v389
      %v500 = vunpack.c.l.b16 %v390
      %v501 = vunpack.c.h.b16 %v390
      %v502 = vunpack.c.l.b16 %v391
      %v503 = vunpack.c.h.b16 %v391
      %v504 = vunpack.c.l.b16 %v392
      %v505 = vunpack.c.h.b16 %v392
      %v506 = vunpack.c.l.b16 %v393
      %v507 = vunpack.c.h.b16 %v393
      %v508 = vunpack.c.l.b16 %v394
      %v509 = vunpack.c.h.b16 %v394
      %v510 = vunpack.c.l.b16 %v395
      %v511 = vunpack.c.h.b16 %v395
      %v512 = vunpack.c.l.b16 %v396
      %v513 = vunpack.c.h.b16 %v396
      %v514 = vunpack.c.l.b16 %v397
      %v515 = vunpack.c.h.b16 %v397
      %v516 = vunpack.c.l.b16 %v398
      %v517 = vunpack.c.h.b16 %v398
      %v518 = vunpack.c.l.b16 %v399
      %v519 = vunpack.c.h.b16 %v399
      %v520 = vunpack.c.l.b16 %v400
      %v521 = vunpack.c.h.b16 %v400
      %v522 = vunpack.c.l.b16 %v401
      %v523 = vunpack.c.h.b16 %v401
      %v524 = vunpack.c.l.b16 %v402
      %v525 = vunpack.c.h.b16 %v402
      %v526 = vunpack.c.l.b16 %v403
      %v527 = vunpack.c.h.b16 %v403
      %v528 = vunpack.c.l.b16 %v404
      %v529 = vunpack.c.h.b16 %v404
      %v530 = vunpack.c.l.b16 %v405
      %v531 = vunpack.c.h.b16 %v405
      %v532 = vunpack.c.l.b16 %v406
      %v533 = vunpack.c.h.b16 %v406
      %v534 = vunpack.c.l.b16 %v407
      %v535 = vunpack.c.h.b16 %v407
      %v536 = vpack.c.b16 %v474, %v472
      %v537 = vpack.c.b16 %v475, %v473
      %v538 = vpack.c.b16 %v478, %v476
      %v539 = vpack.c.b16 %v479, %v477
      %v540 = vpack.c.b16 %v482, %v480
      %v541 = vpack.c.b16 %v483, %v481
      %v542 = vpack.c.b16 %v486, %v484
      %v543 = vpack.c.b16 %v487, %v485
      %v544 = vpack.c.b16 %v490, %v488
      %v545 = vpack.c.b16 %v491, %v489
      %v546 = vpack.c.b16 %v494, %v492
      %v547 = vpack.c.b16 %v495, %v493
      %v548 = vpack.c.b16 %v498, %v496
      %v549 = vpack.c.b16 %v499, %v497
      %v550 = vpack.c.b16 %v502, %v500
      %v551 = vpack.c.b16 %v503, %v501
      %v552 = vpack.c.b16 %v506, %v504
      %v553 = vpack.c.b16 %v507, %v505
      %v554 = vpack.c.b16 %v510, %v508
      %v555 = vpack.c.b16 %v511, %v509
      %v556 = vpack.c.b16 %v514, %v512
      %v557 = vpack.c.b16 %v515, %v513
      %v558 = vpack.c.b16 %v518, %v516
      %v559 = vpack.c.b16 %v519, %v517
      %v560 = vpack.c.b16 %v522, %v520
      %v561 = vpack.c.b16 %v523, %v521
      %v562 = vpack.c.b16 %v526, %v524
      %v563 = vpack.c.b16 %v527, %v525
      %v564 = vpack.c.b16 %v530, %v528
      %v565 = vpack.c.b16 %v531, %v529
      %v566 = vpack.c.b16 %v534, %v532
      %v567 = vpack.c.b16 %v535, %v533
      %v632 = vunpack.c.l.b16 %v408
      %v633 = vunpack.c.l.b16 %v409
      %v634 = vunpack.c.l.b16 %v410
      %v635 = vunpack.c.l.b16 %v411
      %v636 = vunpack.c.l.b16 %v412
      %v637 = vunpack.c.l.b16 %v413
      %v638 = vunpack.c.l.b16 %v414
      %v639 = vunpack.c.l.b16 %v415
      %v640 = vunpack.c.l.b16 %v416
      %v641 = vunpack.c.l.b16 %v417
      %v642 = vunpack.c.l.b16 %v418
      %v643 = vunpack.c.l.b16 %v419
      %v644 = vunpack.c.l.b16 %v420
      %v645 = vunpack.c.l.b16 %v421
      %v646 = vunpack.c.l.b16 %v422
      %v647 = vunpack.c.l.b16 %v423
      %v648 = vunpack.c.l.b16 %v424
      %v649 = vunpack.c.l.b16 %v425
      %v650 = vunpack.c.l.b16 %v426
      %v651 = vunpack.c.l.b16 %v427
      %v652 = vunpack.c.l.b16 %v428
      %v653 = vunpack.c.l.b16 %v429
      %v654 = vunpack.c.l.b16 %v430
      %v655 = vunpack.c.l.b16 %v431
      %v656 = vunpack.c.l.b16 %v432
      %v657 = vunpack.c.l.b16 %v433
      %v658 = vunpack.c.l.b16 %v434
      %v659 = vunpack.c.l.b16 %v435
      %v660 = vunpack.c.l.b16 %v436
      %v661 = vunpack.c.l.b16 %v437
      %v662 = vunpack.c.l.b16 %v438
      %v663 = vunpack.c.l.b16 %v439
      %v664 = vpack.c.b16 %v633, %v632
      %v665 = vpack.c.b16 %v635, %v634
      %v666 = vpack.c.b16 %v637, %v636
      %v667 = vpack.c.b16 %v639, %v638
      %v668 = vpack.c.b16 %v641, %v640
      %v669 = vpack.c.b16 %v643, %v642
      %v670 = vpack.c.b16 %v645, %v644
      %v671 = vpack.c.b16 %v647, %v646
      %v672 = vpack.c.b16 %v649, %v648
      %v673 = vpack.c.b16 %v651, %v650
      %v674 = vpack.c.b16 %v653, %v652
      %v675 = vpack.c.b16 %v655, %v654
      %v676 = vpack.c.b16 %v657, %v656
      %v677 = vpack.c.b16 %v659, %v658
      %v678 = vpack.c.b16 %v661, %v660
      %v679 = vpack.c.b16 %v663, %v662
      %696 = vmatpush.bf16.msra.mxu0 %v671
      %697 = vmatpush.bf16.msra.mxu0 %v670
      %698 = vmatpush.bf16.msra.mxu0 %v669
      %699 = vmatpush.bf16.msra.mxu0 %v668
      %700 = vmatpush.bf16.msra.mxu0 %v667
      %701 = vmatpush.bf16.msra.mxu0 %v666
      %702 = vmatpush.bf16.msra.mxu0 %v665
      %703 = vmatpush.bf16.msra.mxu0 %v664
      %704 = vmatmul.bf16.gmra.mxu0 %v536
      %v705 = vpop.f32.mrf.mxu0
      %v706 = vadd.f32 0.0, %v705
      %v707 = vpop.f32.mrf.mxu0
      %v708 = vadd.f32 0.0, %v707
      %709 = vmatmul.bf16.gmra.mxu0 %v538
      %v710 = vpop.f32.mrf.mxu0
      %v711 = vadd.f32 0.0, %v710
      %v712 = vpop.f32.mrf.mxu0
      %v713 = vadd.f32 0.0, %v712
      %714 = vmatmul.bf16.gmra.mxu0 %v540
      %v715 = vpop.f32.mrf.mxu0
      %v716 = vadd.f32 0.0, %v715
      %v717 = vpop.f32.mrf.mxu0
      %v718 = vadd.f32 0.0, %v717
      %719 = vmatmul.bf16.gmra.mxu0 %v542
      %v720 = vpop.f32.mrf.mxu0
      %v721 = vadd.f32 0.0, %v720
      %v722 = vpop.f32.mrf.mxu0
      %v723 = vadd.f32 0.0, %v722
      %724 = vmatmul.bf16.gmra.mxu0 %v544
      %v725 = vpop.f32.mrf.mxu0
      %v726 = vadd.f32 0.0, %v725
      %v727 = vpop.f32.mrf.mxu0
      %v728 = vadd.f32 0.0, %v727
      %729 = vmatmul.bf16.gmra.mxu0 %v546
      %v730 = vpop.f32.mrf.mxu0
      %v731 = vadd.f32 0.0, %v730
      %v732 = vpop.f32.mrf.mxu0
      %v733 = vadd.f32 0.0, %v732
      %734 = vmatmul.bf16.gmra.mxu0 %v548
      %v735 = vpop.f32.mrf.mxu0
      %v736 = vadd.f32 0.0, %v735
      %v737 = vpop.f32.mrf.mxu0
      %v738 = vadd.f32 0.0, %v737
      %739 = vmatmul.bf16.gmra.mxu0 %v550
      %v740 = vpop.f32.mrf.mxu0
      %v741 = vadd.f32 0.0, %v740
      %v742 = vpop.f32.mrf.mxu0
      %v743 = vadd.f32 0.0, %v742
      %744 = vmatmul.bf16.gmra.mxu0 %v552
      %v745 = vpop.f32.mrf.mxu0
      %v746 = vadd.f32 0.0, %v745
      %v747 = vpop.f32.mrf.mxu0
      %v748 = vadd.f32 0.0, %v747
      %749 = vmatmul.bf16.gmra.mxu0 %v554
      %v750 = vpop.f32.mrf.mxu0
      %v751 = vadd.f32 0.0, %v750
      %v752 = vpop.f32.mrf.mxu0
      %v753 = vadd.f32 0.0, %v752
      %754 = vmatmul.bf16.gmra.mxu0 %v556
      %v755 = vpop.f32.mrf.mxu0
      %v756 = vadd.f32 0.0, %v755
      %v757 = vpop.f32.mrf.mxu0
      %v758 = vadd.f32 0.0, %v757
      %759 = vmatmul.bf16.gmra.mxu0 %v558
      %v760 = vpop.f32.mrf.mxu0
      %v761 = vadd.f32 0.0, %v760
      %v762 = vpop.f32.mrf.mxu0
      %v763 = vadd.f32 0.0, %v762
      %764 = vmatmul.bf16.gmra.mxu0 %v560
      %v765 = vpop.f32.mrf.mxu0
      %v766 = vadd.f32 0.0, %v765
      %v767 = vpop.f32.mrf.mxu0
      %v768 = vadd.f32 0.0, %v767
      %769 = vmatmul.bf16.gmra.mxu0 %v562
      %v770 = vpop.f32.mrf.mxu0
      %v771 = vadd.f32 0.0, %v770
      %v772 = vpop.f32.mrf.mxu0
      %v773 = vadd.f32 0.0, %v772
      %774 = vmatmul.bf16.gmra.mxu0 %v564
      %v775 = vpop.f32.mrf.mxu0
      %v776 = vadd.f32 0.0, %v775
      %v777 = vpop.f32.mrf.mxu0
      %v778 = vadd.f32 0.0, %v777
      %779 = vmatmul.bf16.gmra.mxu0 %v566
      %v780 = vpop.f32.mrf.mxu0
      %v781 = vadd.f32 0.0, %v780
      %v782 = vpop.f32.mrf.mxu0
      %v783 = vadd.f32 0.0, %v782
      %784 = vdwg.mxu0
      %785 = vmatpush.bf16.msra.mxu0 %v679
      %786 = vmatpush.bf16.msra.mxu0 %v678
      %787 = vmatpush.bf16.msra.mxu0 %v677
      %788 = vmatpush.bf16.msra.mxu0 %v676
      %789 = vmatpush.bf16.msra.mxu0 %v675
      %790 = vmatpush.bf16.msra.mxu0 %v674
      %791 = vmatpush.bf16.msra.mxu0 %v673
      %792 = vmatpush.bf16.msra.mxu0 %v672
      %793 = vmatmul.bf16.gmra.mxu0 %v537
      %v794 = vpop.f32.mrf.mxu0
      %v795 = vadd.f32 %v706, %v794
      %v796 = vpop.f32.mrf.mxu0
      %v797 = vadd.f32 %v708, %v796
      %798 = vmatmul.bf16.gmra.mxu0 %v539
      %v799 = vpop.f32.mrf.mxu0
      %v800 = vadd.f32 %v711, %v799
      %v801 = vpop.f32.mrf.mxu0
      %v802 = vadd.f32 %v713, %v801
      %803 = vmatmul.bf16.gmra.mxu0 %v541
      %v804 = vpop.f32.mrf.mxu0
      %v805 = vadd.f32 %v716, %v804
      %v806 = vpop.f32.mrf.mxu0
      %v807 = vadd.f32 %v718, %v806
      %808 = vmatmul.bf16.gmra.mxu0 %v543
      %v809 = vpop.f32.mrf.mxu0
      %v810 = vadd.f32 %v721, %v809
      %v811 = vpop.f32.mrf.mxu0
      %v812 = vadd.f32 %v723, %v811
      %813 = vmatmul.bf16.gmra.mxu0 %v545
      %v814 = vpop.f32.mrf.mxu0
      %v815 = vadd.f32 %v726, %v814
      %v816 = vpop.f32.mrf.mxu0
      %v817 = vadd.f32 %v728, %v816
      %818 = vmatmul.bf16.gmra.mxu0 %v547
      %v819 = vpop.f32.mrf.mxu0
      %v820 = vadd.f32 %v731, %v819
      %v821 = vpop.f32.mrf.mxu0
      %v822 = vadd.f32 %v733, %v821
      %823 = vmatmul.bf16.gmra.mxu0 %v549
      %v824 = vpop.f32.mrf.mxu0
      %v825 = vadd.f32 %v736, %v824
      %v826 = vpop.f32.mrf.mxu0
      %v827 = vadd.f32 %v738, %v826
      %828 = vmatmul.bf16.gmra.mxu0 %v551
      %v829 = vpop.f32.mrf.mxu0
      %v830 = vadd.f32 %v741, %v829
      %v831 = vpop.f32.mrf.mxu0
      %v832 = vadd.f32 %v743, %v831
      %833 = vmatmul.bf16.gmra.mxu0 %v553
      %v834 = vpop.f32.mrf.mxu0
      %v835 = vadd.f32 %v746, %v834
      %v836 = vpop.f32.mrf.mxu0
      %v837 = vadd.f32 %v748, %v836
      %838 = vmatmul.bf16.gmra.mxu0 %v555
      %v839 = vpop.f32.mrf.mxu0
      %v840 = vadd.f32 %v751, %v839
      %v841 = vpop.f32.mrf.mxu0
      %v842 = vadd.f32 %v753, %v841
      %843 = vmatmul.bf16.gmra.mxu0 %v557
      %v844 = vpop.f32.mrf.mxu0
      %v845 = vadd.f32 %v756, %v844
      %v846 = vpop.f32.mrf.mxu0
      %v847 = vadd.f32 %v758, %v846
      %848 = vmatmul.bf16.gmra.mxu0 %v559
      %v849 = vpop.f32.mrf.mxu0
      %v850 = vadd.f32 %v761, %v849
      %v851 = vpop.f32.mrf.mxu0
      %v852 = vadd.f32 %v763, %v851
      %853 = vmatmul.bf16.gmra.mxu0 %v561
      %v854 = vpop.f32.mrf.mxu0
      %v855 = vadd.f32 %v766, %v854
      %v856 = vpop.f32.mrf.mxu0
      %v857 = vadd.f32 %v768, %v856
      %858 = vmatmul.bf16.gmra.mxu0 %v563
      %v859 = vpop.f32.mrf.mxu0
      %v860 = vadd.f32 %v771, %v859
      %v861 = vpop.f32.mrf.mxu0
      %v862 = vadd.f32 %v773, %v861
      %863 = vmatmul.bf16.gmra.mxu0 %v565
      %v864 = vpop.f32.mrf.mxu0
      %v865 = vadd.f32 %v776, %v864
      %v866 = vpop.f32.mrf.mxu0
      %v867 = vadd.f32 %v778, %v866
      %868 = vmatmul.bf16.gmra.mxu0 %v567
      %v869 = vpop.f32.mrf.mxu0
      %v870 = vadd.f32 %v781, %v869
      %v871 = vpop.f32.mrf.mxu0
      %v872 = vadd.f32 %v783, %v871
      %873 = vdwg.mxu0
      %v874 = vadd.f32 %v344, %v795
      %v875 = vadd.f32 %v345, %v797
      %v876 = vadd.f32 %v346, %v800
      %v877 = vadd.f32 %v347, %v802
      %v878 = vadd.f32 %v348, %v805
      %v879 = vadd.f32 %v349, %v807
      %v880 = vadd.f32 %v350, %v810
      %v881 = vadd.f32 %v351, %v812
      %v882 = vadd.f32 %v352, %v815
      %v883 = vadd.f32 %v353, %v817
      %v884 = vadd.f32 %v354, %v820
      %v885 = vadd.f32 %v355, %v822
      %v886 = vadd.f32 %v356, %v825
      %v887 = vadd.f32 %v357, %v827
      %v888 = vadd.f32 %v358, %v830
      %v889 = vadd.f32 %v359, %v832
      %v890 = vadd.f32 %v360, %v835
      %v891 = vadd.f32 %v361, %v837
      %v892 = vadd.f32 %v362, %v840
      %v893 = vadd.f32 %v363, %v842
      %v894 = vadd.f32 %v364, %v845
      %v895 = vadd.f32 %v365, %v847
      %v896 = vadd.f32 %v366, %v850
      %v897 = vadd.f32 %v367, %v852
      %v898 = vadd.f32 %v368, %v855
      %v899 = vadd.f32 %v369, %v857
      %v900 = vadd.f32 %v370, %v860
      %v901 = vadd.f32 %v371, %v862
      %v902 = vadd.f32 %v372, %v865
      %v903 = vadd.f32 %v373, %v867
      %v904 = vadd.f32 %v374, %v870
      %v905 = vadd.f32 %v375, %v872
      %906 = vst [vmem:[#allocation2] sm:$0xff] %v874
      %907 = vst [vmem:[#allocation2 + $0x8] sm:$0xff] %v875
      %908 = vst [vmem:[#allocation2 + $0x10] sm:$0xff] %v876
      %909 = vst [vmem:[#allocation2 + $0x18] sm:$0xff] %v877
      %910 = vst [vmem:[#allocation2 + $0x20] sm:$0xff] %v878
      %911 = vst [vmem:[#allocation2 + $0x28] sm:$0xff] %v879
      %912 = vst [vmem:[#allocation2 + $0x30] sm:$0xff] %v880
      %913 = vst [vmem:[#allocation2 + $0x38] sm:$0xff] %v881
      %914 = vst [vmem:[#allocation2 + $0x40] sm:$0xff] %v882
      %915 = vst [vmem:[#allocation2 + $0x48] sm:$0xff] %v883
      %916 = vst [vmem:[#allocation2 + $0x50] sm:$0xff] %v884
      %917 = vst [vmem:[#allocation2 + $0x58] sm:$0xff] %v885
      %918 = vst [vmem:[#allocation2 + $0x60] sm:$0xff] %v886
      %919 = vst [vmem:[#allocation2 + $0x68] sm:$0xff] %v887
      %920 = vst [vmem:[#allocation2 + $0x70] sm:$0xff] %v888
      %921 = vst [vmem:[#allocation2 + $0x78] sm:$0xff] %v889
      %922 = vst [vmem:[#allocation2 + $0x80] sm:$0xff] %v890
      %923 = vst [vmem:[#allocation2 + $0x88] sm:$0xff] %v891
      %924 = vst [vmem:[#allocation2 + $0x90] sm:$0xff] %v892
      %925 = vst [vmem:[#allocation2 + $0x98] sm:$0xff] %v893
      %926 = vst [vmem:[#allocation2 + $0xa0] sm:$0xff] %v894
      %927 = vst [vmem:[#allocation2 + $0xa8] sm:$0xff] %v895
      %928 = vst [vmem:[#allocation2 + $0xb0] sm:$0xff] %v896
      %929 = vst [vmem:[#allocation2 + $0xb8] sm:$0xff] %v897
      %930 = vst [vmem:[#allocation2 + $0xc0] sm:$0xff] %v898
      %931 = vst [vmem:[#allocation2 + $0xc8] sm:$0xff] %v899
      %932 = vst [vmem:[#allocation2 + $0xd0] sm:$0xff] %v900
      %933 = vst [vmem:[#allocation2 + $0xd8] sm:$0xff] %v901
      %934 = vst [vmem:[#allocation2 + $0xe0] sm:$0xff] %v902
      %935 = vst [vmem:[#allocation2 + $0xe8] sm:$0xff] %v903
      %936 = vst [vmem:[#allocation2 + $0xf0] sm:$0xff] %v904
      %937 = vst [vmem:[#allocation2 + $0xf8] sm:$0xff] %v905
      // Predicated region
      $region41: #{forward.32} parent=35 // pred_check
        %p938 = pneg %p308
      $region42: #{forward.32} parent=35 // pred_check_branch
        %940 = sbr.rel (%p938) target = $region44
      $region43: #{forward.32} parent=35 // pred_region
        %v941 = vld [vmem:[#allocation2] sm:$0xff]
        %v942 = vld [vmem:[#allocation2 + $0x8] sm:$0xff]
        %v943 = vld [vmem:[#allocation2 + $0x10] sm:$0xff]
        %v944 = vld [vmem:[#allocation2 + $0x18] sm:$0xff]
        %v945 = vld [vmem:[#allocation2 + $0x20] sm:$0xff]
        %v946 = vld [vmem:[#allocation2 + $0x28] sm:$0xff]
        %v947 = vld [vmem:[#allocation2 + $0x30] sm:$0xff]
        %v948 = vld [vmem:[#allocation2 + $0x38] sm:$0xff]
        %v949 = vld [vmem:[#allocation2 + $0x40] sm:$0xff]
        %v950 = vld [vmem:[#allocation2 + $0x48] sm:$0xff]
        %v951 = vld [vmem:[#allocation2 + $0x50] sm:$0xff]
        %v952 = vld [vmem:[#allocation2 + $0x58] sm:$0xff]
        %v953 = vld [vmem:[#allocation2 + $0x60] sm:$0xff]
        %v954 = vld [vmem:[#allocation2 + $0x68] sm:$0xff]
        %v955 = vld [vmem:[#allocation2 + $0x70] sm:$0xff]
        %v956 = vld [vmem:[#allocation2 + $0x78] sm:$0xff]
        %v957 = vld [vmem:[#allocation2 + $0x80] sm:$0xff]
        %v958 = vld [vmem:[#allocation2 + $0x88] sm:$0xff]
        %v959 = vld [vmem:[#allocation2 + $0x90] sm:$0xff]
        %v960 = vld [vmem:[#allocation2 + $0x98] sm:$0xff]
        %v961 = vld [vmem:[#allocation2 + $0xa0] sm:$0xff]
        %v962 = vld [vmem:[#allocation2 + $0xa8] sm:$0xff]
        %v963 = vld [vmem:[#allocation2 + $0xb0] sm:$0xff]
        %v964 = vld [vmem:[#allocation2 + $0xb8] sm:$0xff]
        %v965 = vld [vmem:[#allocation2 + $0xc0] sm:$0xff]
        %v966 = vld [vmem:[#allocation2 + $0xc8] sm:$0xff]
        %v967 = vld [vmem:[#allocation2 + $0xd0] sm:$0xff]
        %v968 = vld [vmem:[#allocation2 + $0xd8] sm:$0xff]
        %v969 = vld [vmem:[#allocation2 + $0xe0] sm:$0xff]
        %v970 = vld [vmem:[#allocation2 + $0xe8] sm:$0xff]
        %v971 = vld [vmem:[#allocation2 + $0xf0] sm:$0xff]
        %v972 = vld [vmem:[#allocation2 + $0xf8] sm:$0xff]
        %v973 = vld [vmem:[%s295] sm:$0x1]
        %v975 = vperm.slane %v973, 0
        %v977 = vmul.f32 %v941, %v975
        %v978 = vmul.f32 %v942, %v975
        %v979 = vmul.f32 %v943, %v975
        %v980 = vmul.f32 %v944, %v975
        %v981 = vmul.f32 %v945, %v975
        %v982 = vmul.f32 %v946, %v975
        %v983 = vmul.f32 %v947, %v975
        %v984 = vmul.f32 %v948, %v975
        %v985 = vmul.f32 %v949, %v975
        %v986 = vmul.f32 %v950, %v975
        %v987 = vmul.f32 %v951, %v975
        %v988 = vmul.f32 %v952, %v975
        %v989 = vmul.f32 %v953, %v975
        %v990 = vmul.f32 %v954, %v975
        %v991 = vmul.f32 %v955, %v975
        %v992 = vmul.f32 %v956, %v975
        %v993 = vmul.f32 %v957, %v975
        %v994 = vmul.f32 %v958, %v975
        %v995 = vmul.f32 %v959, %v975
        %v996 = vmul.f32 %v960, %v975
        %v997 = vmul.f32 %v961, %v975
        %v998 = vmul.f32 %v962, %v975
        %v999 = vmul.f32 %v963, %v975
        %v1000 = vmul.f32 %v964, %v975
        %v1001 = vmul.f32 %v965, %v975
        %v1002 = vmul.f32 %v966, %v975
        %v1003 = vmul.f32 %v967, %v975
        %v1004 = vmul.f32 %v968, %v975
        %v1005 = vmul.f32 %v969, %v975
        %v1006 = vmul.f32 %v970, %v975
        %v1007 = vmul.f32 %v971, %v975
        %v1008 = vmul.f32 %v972, %v975
        %v1009 = vld [vmem:[%s298] sm:$0x1]
        %v1011 = vperm.slane %v1009, 0
        %v1013 = vadd.f32 %v977, %v1011
        %v1014 = vadd.f32 %v978, %v1011
        %v1015 = vadd.f32 %v979, %v1011
        %v1016 = vadd.f32 %v980, %v1011
        %v1017 = vadd.f32 %v981, %v1011
        %v1018 = vadd.f32 %v982, %v1011
        %v1019 = vadd.f32 %v983, %v1011
        %v1020 = vadd.f32 %v984, %v1011
        %v1021 = vadd.f32 %v985, %v1011
        %v1022 = vadd.f32 %v986, %v1011
        %v1023 = vadd.f32 %v987, %v1011
        %v1024 = vadd.f32 %v988, %v1011
        %v1025 = vadd.f32 %v989, %v1011
        %v1026 = vadd.f32 %v990, %v1011
        %v1027 = vadd.f32 %v991, %v1011
        %v1028 = vadd.f32 %v992, %v1011
        %v1029 = vadd.f32 %v993, %v1011
        %v1030 = vadd.f32 %v994, %v1011
        %v1031 = vadd.f32 %v995, %v1011
        %v1032 = vadd.f32 %v996, %v1011
        %v1033 = vadd.f32 %v997, %v1011
        %v1034 = vadd.f32 %v998, %v1011
        %v1035 = vadd.f32 %v999, %v1011
        %v1036 = vadd.f32 %v1000, %v1011
        %v1037 = vadd.f32 %v1001, %v1011
        %v1038 = vadd.f32 %v1002, %v1011
        %v1039 = vadd.f32 %v1003, %v1011
        %v1040 = vadd.f32 %v1004, %v1011
        %v1041 = vadd.f32 %v1005, %v1011
        %v1042 = vadd.f32 %v1006, %v1011
        %v1043 = vadd.f32 %v1007, %v1011
        %v1044 = vadd.f32 %v1008, %v1011
        %v1045 = vmax.f32 %v1013, 0.0
        %v1046 = vmax.f32 %v1014, 0.0
        %v1047 = vmax.f32 %v1015, 0.0
        %v1048 = vmax.f32 %v1016, 0.0
        %v1049 = vmax.f32 %v1017, 0.0
        %v1050 = vmax.f32 %v1018, 0.0
        %v1051 = vmax.f32 %v1019, 0.0
        %v1052 = vmax.f32 %v1020, 0.0
        %v1053 = vmax.f32 %v1021, 0.0
        %v1054 = vmax.f32 %v1022, 0.0
        %v1055 = vmax.f32 %v1023, 0.0
        %v1056 = vmax.f32 %v1024, 0.0
        %v1057 = vmax.f32 %v1025, 0.0
        %v1058 = vmax.f32 %v1026, 0.0
        %v1059 = vmax.f32 %v1027, 0.0
        %v1060 = vmax.f32 %v1028, 0.0
        %v1061 = vmax.f32 %v1029, 0.0
        %v1062 = vmax.f32 %v1030, 0.0
        %v1063 = vmax.f32 %v1031, 0.0
        %v1064 = vmax.f32 %v1032, 0.0
        %v1065 = vmax.f32 %v1033, 0.0
        %v1066 = vmax.f32 %v1034, 0.0
        %v1067 = vmax.f32 %v1035, 0.0
        %v1068 = vmax.f32 %v1036, 0.0
        %v1069 = vmax.f32 %v1037, 0.0
        %v1070 = vmax.f32 %v1038, 0.0
        %v1071 = vmax.f32 %v1039, 0.0
        %v1072 = vmax.f32 %v1040, 0.0
        %v1073 = vmax.f32 %v1041, 0.0
        %v1074 = vmax.f32 %v1042, 0.0
        %v1075 = vmax.f32 %v1043, 0.0
        %v1076 = vmax.f32 %v1044, 0.0
        %1077 = vst [vmem:[%s306] sm:$0xff] %v1045
        %1078 = vst [vmem:[%s306 + $0x8] sm:$0xff] %v1046
        %1079 = vst [vmem:[%s306 + $0x10] sm:$0xff] %v1047
        %1080 = vst [vmem:[%s306 + $0x18] sm:$0xff] %v1048
        %1081 = vst [vmem:[%s306 + $0x20] sm:$0xff] %v1049
        %1082 = vst [vmem:[%s306 + $0x28] sm:$0xff] %v1050
        %1083 = vst [vmem:[%s306 + $0x30] sm:$0xff] %v1051
        %1084 = vst [vmem:[%s306 + $0x38] sm:$0xff] %v1052
        %1085 = vst [vmem:[%s306 + $0x40] sm:$0xff] %v1053
        %1086 = vst [vmem:[%s306 + $0x48] sm:$0xff] %v1054
        %1087 = vst [vmem:[%s306 + $0x50] sm:$0xff] %v1055
        %1088 = vst [vmem:[%s306 + $0x58] sm:$0xff] %v1056
        %1089 = vst [vmem:[%s306 + $0x60] sm:$0xff] %v1057
        %1090 = vst [vmem:[%s306 + $0x68] sm:$0xff] %v1058
        %1091 = vst [vmem:[%s306 + $0x70] sm:$0xff] %v1059
        %1092 = vst [vmem:[%s306 + $0x78] sm:$0xff] %v1060
        %1093 = vst [vmem:[%s306 + $0x80] sm:$0xff] %v1061
        %1094 = vst [vmem:[%s306 + $0x88] sm:$0xff] %v1062
        %1095 = vst [vmem:[%s306 + $0x90] sm:$0xff] %v1063
        %1096 = vst [vmem:[%s306 + $0x98] sm:$0xff] %v1064
        %1097 = vst [vmem:[%s306 + $0xa0] sm:$0xff] %v1065
        %1098 = vst [vmem:[%s306 + $0xa8] sm:$0xff] %v1066
        %1099 = vst [vmem:[%s306 + $0xb0] sm:$0xff] %v1067
        %1100 = vst [vmem:[%s306 + $0xb8] sm:$0xff] %v1068
        %1101 = vst [vmem:[%s306 + $0xc0] sm:$0xff] %v1069
        %1102 = vst [vmem:[%s306 + $0xc8] sm:$0xff] %v1070
        %1103 = vst [vmem:[%s306 + $0xd0] sm:$0xff] %v1071
        %1104 = vst [vmem:[%s306 + $0xd8] sm:$0xff] %v1072
        %1105 = vst [vmem:[%s306 + $0xe0] sm:$0xff] %v1073
        %1106 = vst [vmem:[%s306 + $0xe8] sm:$0xff] %v1074
        %1107 = vst [vmem:[%s306 + $0xf0] sm:$0xff] %v1075
        %1108 = vst [vmem:[%s306 + $0xf8] sm:$0xff] %v1076
      $region44: #{forward.32} parent=35 // pred_fallthru
        _
      %s1109 = smul.u32 32, %s20
      %p1110 = scmp.lt.s32.totalorder %s1109, 63
      %s1111 = scalar_select %p1110, %s1109, 63
      %p1112 = scmp.lt.s32.totalorder %s21, 0
      %s1113 = scalar_select %p1112, %s21, 0
      %s1114 = sadd.s32 %s1113, %s1111
      %s1115 = smul.addr %s1114, 8
      %s1116 = scalar_lea.vmem %s4, %s1115
      // Predicated region
      $region45: #{forward.32} parent=35 // pred_check
        %p1117 = pneg %p162
      $region46: #{forward.32} parent=35 // pred_check_branch
        %1119 = sbr.rel (%p1117) target = $region48
      $region47: #{forward.32} parent=35 // pred_region
        %s1120 = smul.u32 32, %s20
      $region48: #{forward.32} parent=35 // pred_fallthru
        _
    $region36: #{forward.32} parent=5 // pred_fallthru
      _
    %p1121 = scmp.le.s32.totalorder 2, %s10
    // Predicated region
    $region49: #{forward.32} parent=5 // pred_check
      %p1122 = pneg %p1121
    $region50: #{forward.32} parent=5 // pred_check_branch
      %1124 = sbr.rel (%p1122) target = $region52
    $region51: #{forward.32} parent=5 // pred_region
      %s1125 = ssub.s32 %s10, 2
      // Predicated region
      $region53: #{forward.32} parent=51 // pred_check
        %p1126 = pneg %p168
      $region54: #{forward.32} parent=51 // pred_check_branch
        %1128 = sbr.rel (%p1126) target = $region56
      $region55: #{forward.32} parent=51 // pred_region
        %s1129 = smul.u32 32, %s23
        %p1130 = scmp.lt.s32.totalorder %s1129, 63
        %s1131 = scalar_select %p1130, %s1129, 63
        %p1132 = scmp.lt.s32.totalorder %s24, 0
        %s1133 = scalar_select %p1132, %s24, 0
        %s1134 = sadd.s32 %s1133, %s1131
        %s1135 = smul.addr %s1134, 8
        %s1136 = scalar_lea.vmem %s4, %s1135
      $region56: #{forward.32} parent=51 // pred_fallthru
        _
    $region52: #{forward.32} parent=5 // pred_fallthru
      _
  $region6: #{forward.32} parent=0 // loop_footer
    %s14 = sadd.s32 1, %s10
  $region7: #{forward.32} parent=0 // loop_footer_branch
    %9 = sbr.rel target = $region3
  $region8: #{forward.32} parent=0 // loop_exit
    _

// kernel: forward.37
$region0: #{forward.37}
  #allocation0 [shape = 'u32[]', space=smem, size = 0x4, offset = 0x4, fixed_abs, tag = 'smem constant byte address 0x4 - core index']
  #allocation1 [shape = 'u32[72,128]{1,0:T(1,128)}', space=vmem, size = 0x9000, scoped, tag = 'internal scratch']
  #allocation2 [shape = 'f32[128,128]{1,0:T(8,128)}', space=vmem, size = 0x10000, scoped, tag = 'scratch operand']
  %s0 = inlined_call_operand.vmem [shape: bf16[128,128], index: 0, kind: input, shape index: {}]
  %s1 = inlined_call_operand.vmem [shape: bf16[128,128], index: 1, kind: input, shape index: {}]
  %s2 = inlined_call_operand.vmem [shape: f32[1,128], index: 2, kind: input, shape index: {}]
  %s3 = inlined_call_operand.vmem [shape: f32[1,128], index: 3, kind: input, shape index: {}]
  %s4 = inlined_call_operand.vmem [shape: f32[128,128], index: 4, kind: input, shape index: {}]
  %s5 = inlined_call_operand.vmem [shape: f32[128,128], index: 5, kind: output, shape index: {}]
  %s6 = sld [smem:[#allocation0]]
  $region38: #{forward.37} parent=0
    _
  %s8 = ssub.s32 1, %s6
  %s9 = scalar_select 0, %s8, %s6
  // Predicated region
  $region2: #{forward.37} parent=0 // pred_check
    _
  $region3: #{forward.37} parent=0 // pred_check_branch
    %11 = sbr.rel (0) target = $region5
  $region4: #{forward.37} parent=0 // pred_region
    _
  $region5: #{forward.37} parent=0 // pred_fallthru
    _
  // Predicated region
  $region6: #{forward.37} parent=0 // pred_check
    _
  $region7: #{forward.37} parent=0 // pred_check_branch
    %13 = sbr.rel (0) target = $region9
  $region8: #{forward.37} parent=0 // pred_region
    _
  $region9: #{forward.37} parent=0 // pred_fallthru
    _
  // Predicated region
  $region10: #{forward.37} parent=0 // pred_check
    _
  $region11: #{forward.37} parent=0 // pred_check_branch
    %15 = sbr.rel (0) target = $region13
  $region12: #{forward.37} parent=0 // pred_region
    _
  $region13: #{forward.37} parent=0 // pred_fallthru
    _
  // Predicated region
  $region14: #{forward.37} parent=0 // pred_check
    _
  $region15: #{forward.37} parent=0 // pred_check_branch
    %17 = sbr.rel (0) target = $region17
  $region16: #{forward.37} parent=0 // pred_region
    _
  $region17: #{forward.37} parent=0 // pred_fallthru
    _
  // Predicated region
  $region18: #{forward.37} parent=0 // pred_check
    _
  $region19: #{forward.37} parent=0 // pred_check_branch
    %19 = sbr.rel (0) target = $region21
  $region20: #{forward.37} parent=0 // pred_region
    _
  $region21: #{forward.37} parent=0 // pred_fallthru
    _
  %p20 = scmp.eq.s32.totalorder 0, 0
  // Predicated region
  $region22: #{forward.37} parent=0 // pred_check
    %p21 = pneg %p20
  $region23: #{forward.37} parent=0 // pred_check_branch
    %23 = sbr.rel (%p21) target = $region25
  $region24: #{forward.37} parent=0 // pred_region
    %24 = vst [vmem:[#allocation2] sm:$0xff] 0.0
    %25 = vst [vmem:[#allocation2 + $0x8] sm:$0xff] 0.0
    %26 = vst [vmem:[#allocation2 + $0x10] sm:$0xff] 0.0
    %27 = vst [vmem:[#allocation2 + $0x18] sm:$0xff] 0.0
    %28 = vst [vmem:[#allocation2 + $0x20] sm:$0xff] 0.0
    %29 = vst [vmem:[#allocation2 + $0x28] sm:$0xff] 0.0
    %30 = vst [vmem:[#allocation2 + $0x30] sm:$0xff] 0.0
    %31 = vst [vmem:[#allocation2 + $0x38] sm:$0xff] 0.0
    %32 = vst [vmem:[#allocation2 + $0x40] sm:$0xff] 0.0
    %33 = vst [vmem:[#allocation2 + $0x48] sm:$0xff] 0.0
    %34 = vst [vmem:[#allocation2 + $0x50] sm:$0xff] 0.0
    %35 = vst [vmem:[#allocation2 + $0x58] sm:$0xff] 0.0
    %36 = vst [vmem:[#allocation2 + $0x60] sm:$0xff] 0.0
    %37 = vst [vmem:[#allocation2 + $0x68] sm:$0xff] 0.0
    %38 = vst [vmem:[#allocation2 + $0x70] sm:$0xff] 0.0
    %39 = vst [vmem:[#allocation2 + $0x78] sm:$0xff] 0.0
  $region25: #{forward.37} parent=0 // pred_fallthru
    _
  %v40 = vld [vmem:[#allocation2] sm:$0xff]
  %v41 = vld [vmem:[#allocation2 + $0x8] sm:$0xff]
  %v42 = vld [vmem:[#allocation2 + $0x10] sm:$0xff]
  %v43 = vld [vmem:[#allocation2 + $0x18] sm:$0xff]
  %v44 = vld [vmem:[#allocation2 + $0x20] sm:$0xff]
  %v45 = vld [vmem:[#allocation2 + $0x28] sm:$0xff]
  %v46 = vld [vmem:[#allocation2 + $0x30] sm:$0xff]
  %v47 = vld [vmem:[#allocation2 + $0x38] sm:$0xff]
  %v48 = vld [vmem:[#allocation2 + $0x40] sm:$0xff]
  %v49 = vld [vmem:[#allocation2 + $0x48] sm:$0xff]
  %v50 = vld [vmem:[#allocation2 + $0x50] sm:$0xff]
  %v51 = vld [vmem:[#allocation2 + $0x58] sm:$0xff]
  %v52 = vld [vmem:[#allocation2 + $0x60] sm:$0xff]
  %v53 = vld [vmem:[#allocation2 + $0x68] sm:$0xff]
  %v54 = vld [vmem:[#allocation2 + $0x70] sm:$0xff]
  %v55 = vld [vmem:[#allocation2 + $0x78] sm:$0xff]
  %v56 = vld [vmem:[%s0] sm:$0xf]
  %v57 = vld [vmem:[%s0 + $0x4] sm:$0xf]
  %v58 = vld [vmem:[%s0 + $0x8] sm:$0xf]
  %v59 = vld [vmem:[%s0 + $0xc] sm:$0xf]
  %v60 = vld [vmem:[%s0 + $0x10] sm:$0xf]
  %v61 = vld [vmem:[%s0 + $0x14] sm:$0xf]
  %v62 = vld [vmem:[%s0 + $0x18] sm:$0xf]
  %v63 = vld [vmem:[%s0 + $0x1c] sm:$0xf]
  %v64 = vld [vmem:[%s0 + $0x20] sm:$0xf]
  %v65 = vld [vmem:[%s0 + $0x24] sm:$0xf]
  %v66 = vld [vmem:[%s0 + $0x28] sm:$0xf]
  %v67 = vld [vmem:[%s0 + $0x2c] sm:$0xf]
  %v68 = vld [vmem:[%s0 + $0x30] sm:$0xf]
  %v69 = vld [vmem:[%s0 + $0x34] sm:$0xf]
  %v70 = vld [vmem:[%s0 + $0x38] sm:$0xf]
  %v71 = vld [vmem:[%s0 + $0x3c] sm:$0xf]
  %v72 = vld [vmem:[%s1] sm:$0xf]
  %v73 = vld [vmem:[%s1 + $0x4] sm:$0xf]
  %v74 = vld [vmem:[%s1 + $0x8] sm:$0xf]
  %v75 = vld [vmem:[%s1 + $0xc] sm:$0xf]
  %v76 = vld [vmem:[%s1 + $0x10] sm:$0xf]
  %v77 = vld [vmem:[%s1 + $0x14] sm:$0xf]
  %v78 = vld [vmem:[%s1 + $0x18] sm:$0xf]
  %v79 = vld [vmem:[%s1 + $0x1c] sm:$0xf]
  %v80 = vld [vmem:[%s1 + $0x20] sm:$0xf]
  %v81 = vld [vmem:[%s1 + $0x24] sm:$0xf]
  %v82 = vld [vmem:[%s1 + $0x28] sm:$0xf]
  %v83 = vld [vmem:[%s1 + $0x2c] sm:$0xf]
  %v84 = vld [vmem:[%s1 + $0x30] sm:$0xf]
  %v85 = vld [vmem:[%s1 + $0x34] sm:$0xf]
  %v86 = vld [vmem:[%s1 + $0x38] sm:$0xf]
  %v87 = vld [vmem:[%s1 + $0x3c] sm:$0xf]
  %v104 = vunpack.c.l.b16 %v56
  %v105 = vunpack.c.l.b16 %v57
  %v106 = vunpack.c.l.b16 %v58
  %v107 = vunpack.c.l.b16 %v59
  %v108 = vunpack.c.l.b16 %v60
  %v109 = vunpack.c.l.b16 %v61
  %v110 = vunpack.c.l.b16 %v62
  %v111 = vunpack.c.l.b16 %v63
  %v112 = vunpack.c.l.b16 %v64
  %v113 = vunpack.c.l.b16 %v65
  %v114 = vunpack.c.l.b16 %v66
  %v115 = vunpack.c.l.b16 %v67
  %v116 = vunpack.c.l.b16 %v68
  %v117 = vunpack.c.l.b16 %v69
  %v118 = vunpack.c.l.b16 %v70
  %v119 = vunpack.c.l.b16 %v71
  %v120 = vpack.c.b16 %v105, %v104
  %v121 = vpack.c.b16 %v107, %v106
  %v122 = vpack.c.b16 %v109, %v108
  %v123 = vpack.c.b16 %v111, %v110
  %v124 = vpack.c.b16 %v113, %v112
  %v125 = vpack.c.b16 %v115, %v114
  %v126 = vpack.c.b16 %v117, %v116
  %v127 = vpack.c.b16 %v119, %v118
  %v152 = vunpack.c.l.b16 %v72
  %v153 = vunpack.c.l.b16 %v73
  %v154 = vunpack.c.l.b16 %v74
  %v155 = vunpack.c.l.b16 %v75
  %v156 = vunpack.c.l.b16 %v76
  %v157 = vunpack.c.l.b16 %v77
  %v158 = vunpack.c.l.b16 %v78
  %v159 = vunpack.c.l.b16 %v79
  %v160 = vunpack.c.l.b16 %v80
  %v161 = vunpack.c.l.b16 %v81
  %v162 = vunpack.c.l.b16 %v82
  %v163 = vunpack.c.l.b16 %v83
  %v164 = vunpack.c.l.b16 %v84
  %v165 = vunpack.c.l.b16 %v85
  %v166 = vunpack.c.l.b16 %v86
  %v167 = vunpack.c.l.b16 %v87
  %v168 = vpack.c.b16 %v153, %v152
  %v169 = vpack.c.b16 %v155, %v154
  %v170 = vpack.c.b16 %v157, %v156
  %v171 = vpack.c.b16 %v159, %v158
  %v172 = vpack.c.b16 %v161, %v160
  %v173 = vpack.c.b16 %v163, %v162
  %v174 = vpack.c.b16 %v165, %v164
  %v175 = vpack.c.b16 %v167, %v166
  %184 = vmatpush.bf16.msra.mxu0 %v175
  %185 = vmatpush.bf16.msra.mxu0 %v174
  %186 = vmatpush.bf16.msra.mxu0 %v173
  %187 = vmatpush.bf16.msra.mxu0 %v172
  %188 = vmatpush.bf16.msra.mxu0 %v171
  %189 = vmatpush.bf16.msra.mxu0 %v170
  %190 = vmatpush.bf16.msra.mxu0 %v169
  %191 = vmatpush.bf16.msra.mxu0 %v168
  %192 = vmatmul.bf16.gmra.mxu0 %v120
  %v193 = vpop.f32.mrf.mxu0
  %v194 = vadd.f32 0.0, %v193
  %v195 = vpop.f32.mrf.mxu0
  %v196 = vadd.f32 0.0, %v195
  %197 = vmatmul.bf16.gmra.mxu0 %v121
  %v198 = vpop.f32.mrf.mxu0
  %v199 = vadd.f32 0.0, %v198
  %v200 = vpop.f32.mrf.mxu0
  %v201 = vadd.f32 0.0, %v200
  %202 = vmatmul.bf16.gmra.mxu0 %v122
  %v203 = vpop.f32.mrf.mxu0
  %v204 = vadd.f32 0.0, %v203
  %v205 = vpop.f32.mrf.mxu0
  %v206 = vadd.f32 0.0, %v205
  %207 = vmatmul.bf16.gmra.mxu0 %v123
  %v208 = vpop.f32.mrf.mxu0
  %v209 = vadd.f32 0.0, %v208
  %v210 = vpop.f32.mrf.mxu0
  %v211 = vadd.f32 0.0, %v210
  %212 = vmatmul.bf16.gmra.mxu0 %v124
  %v213 = vpop.f32.mrf.mxu0
  %v214 = vadd.f32 0.0, %v213
  %v215 = vpop.f32.mrf.mxu0
  %v216 = vadd.f32 0.0, %v215
  %217 = vmatmul.bf16.gmra.mxu0 %v125
  %v218 = vpop.f32.mrf.mxu0
  %v219 = vadd.f32 0.0, %v218
  %v220 = vpop.f32.mrf.mxu0
  %v221 = vadd.f32 0.0, %v220
  %222 = vmatmul.bf16.gmra.mxu0 %v126
  %v223 = vpop.f32.mrf.mxu0
  %v224 = vadd.f32 0.0, %v223
  %v225 = vpop.f32.mrf.mxu0
  %v226 = vadd.f32 0.0, %v225
  %227 = vmatmul.bf16.gmra.mxu0 %v127
  %v228 = vpop.f32.mrf.mxu0
  %v229 = vadd.f32 0.0, %v228
  %v230 = vpop.f32.mrf.mxu0
  %v231 = vadd.f32 0.0, %v230
  %232 = vdwg.mxu0
  %v233 = vadd.f32 %v40, %v194
  %v234 = vadd.f32 %v41, %v196
  %v235 = vadd.f32 %v42, %v199
  %v236 = vadd.f32 %v43, %v201
  %v237 = vadd.f32 %v44, %v204
  %v238 = vadd.f32 %v45, %v206
  %v239 = vadd.f32 %v46, %v209
  %v240 = vadd.f32 %v47, %v211
  %v241 = vadd.f32 %v48, %v214
  %v242 = vadd.f32 %v49, %v216
  %v243 = vadd.f32 %v50, %v219
  %v244 = vadd.f32 %v51, %v221
  %v245 = vadd.f32 %v52, %v224
  %v246 = vadd.f32 %v53, %v226
  %v247 = vadd.f32 %v54, %v229
  %v248 = vadd.f32 %v55, %v231
  %249 = vst [vmem:[#allocation2] sm:$0xff] %v233
  %250 = vst [vmem:[#allocation2 + $0x8] sm:$0xff] %v234
  %251 = vst [vmem:[#allocation2 + $0x10] sm:$0xff] %v235
  %252 = vst [vmem:[#allocation2 + $0x18] sm:$0xff] %v236
  %253 = vst [vmem:[#allocation2 + $0x20] sm:$0xff] %v237
  %254 = vst [vmem:[#allocation2 + $0x28] sm:$0xff] %v238
  %255 = vst [vmem:[#allocation2 + $0x30] sm:$0xff] %v239
  %256 = vst [vmem:[#allocation2 + $0x38] sm:$0xff] %v240
  %257 = vst [vmem:[#allocation2 + $0x40] sm:$0xff] %v241
  %258 = vst [vmem:[#allocation2 + $0x48] sm:$0xff] %v242
  %259 = vst [vmem:[#allocation2 + $0x50] sm:$0xff] %v243
  %260 = vst [vmem:[#allocation2 + $0x58] sm:$0xff] %v244
  %261 = vst [vmem:[#allocation2 + $0x60] sm:$0xff] %v245
  %262 = vst [vmem:[#allocation2 + $0x68] sm:$0xff] %v246
  %263 = vst [vmem:[#allocation2 + $0x70] sm:$0xff] %v247
  %264 = vst [vmem:[#allocation2 + $0x78] sm:$0xff] %v248
  // Predicated region
  $region26: #{forward.37} parent=0 // pred_check
    %p265 = pneg %p20
  $region27: #{forward.37} parent=0 // pred_check_branch
    %267 = sbr.rel (%p265) target = $region29
  $region28: #{forward.37} parent=0 // pred_region
    %v268 = vld [vmem:[#allocation2] sm:$0xff]
    %v269 = vld [vmem:[#allocation2 + $0x8] sm:$0xff]
    %v270 = vld [vmem:[#allocation2 + $0x10] sm:$0xff]
    %v271 = vld [vmem:[#allocation2 + $0x18] sm:$0xff]
    %v272 = vld [vmem:[#allocation2 + $0x20] sm:$0xff]
    %v273 = vld [vmem:[#allocation2 + $0x28] sm:$0xff]
    %v274 = vld [vmem:[#allocation2 + $0x30] sm:$0xff]
    %v275 = vld [vmem:[#allocation2 + $0x38] sm:$0xff]
    %v276 = vld [vmem:[#allocation2 + $0x40] sm:$0xff]
    %v277 = vld [vmem:[#allocation2 + $0x48] sm:$0xff]
    %v278 = vld [vmem:[#allocation2 + $0x50] sm:$0xff]
    %v279 = vld [vmem:[#allocation2 + $0x58] sm:$0xff]
    %v280 = vld [vmem:[#allocation2 + $0x60] sm:$0xff]
    %v281 = vld [vmem:[#allocation2 + $0x68] sm:$0xff]
    %v282 = vld [vmem:[#allocation2 + $0x70] sm:$0xff]
    %v283 = vld [vmem:[#allocation2 + $0x78] sm:$0xff]
    %v284 = vld [vmem:[%s2] sm:$0x1]
    %v286 = vperm.slane %v284, 0
    %v288 = vmul.f32 %v268, %v286
    %v289 = vmul.f32 %v269, %v286
    %v290 = vmul.f32 %v270, %v286
    %v291 = vmul.f32 %v271, %v286
    %v292 = vmul.f32 %v272, %v286
    %v293 = vmul.f32 %v273, %v286
    %v294 = vmul.f32 %v274, %v286
    %v295 = vmul.f32 %v275, %v286
    %v296 = vmul.f32 %v276, %v286
    %v297 = vmul.f32 %v277, %v286
    %v298 = vmul.f32 %v278, %v286
    %v299 = vmul.f32 %v279, %v286
    %v300 = vmul.f32 %v280, %v286
    %v301 = vmul.f32 %v281, %v286
    %v302 = vmul.f32 %v282, %v286
    %v303 = vmul.f32 %v283, %v286
    %v304 = vld [vmem:[%s3] sm:$0x1]
    %v306 = vperm.slane %v304, 0
    %v308 = vadd.f32 %v288, %v306
    %v309 = vadd.f32 %v289, %v306
    %v310 = vadd.f32 %v290, %v306
    %v311 = vadd.f32 %v291, %v306
    %v312 = vadd.f32 %v292, %v306
    %v313 = vadd.f32 %v293, %v306
    %v314 = vadd.f32 %v294, %v306
    %v315 = vadd.f32 %v295, %v306
    %v316 = vadd.f32 %v296, %v306
    %v317 = vadd.f32 %v297, %v306
    %v318 = vadd.f32 %v298, %v306
    %v319 = vadd.f32 %v299, %v306
    %v320 = vadd.f32 %v300, %v306
    %v321 = vadd.f32 %v301, %v306
    %v322 = vadd.f32 %v302, %v306
    %v323 = vadd.f32 %v303, %v306
    %v324 = vld [vmem:[%s4] sm:$0xff]
    %v325 = vld [vmem:[%s4 + $0x8] sm:$0xff]
    %v326 = vld [vmem:[%s4 + $0x10] sm:$0xff]
    %v327 = vld [vmem:[%s4 + $0x18] sm:$0xff]
    %v328 = vld [vmem:[%s4 + $0x20] sm:$0xff]
    %v329 = vld [vmem:[%s4 + $0x28] sm:$0xff]
    %v330 = vld [vmem:[%s4 + $0x30] sm:$0xff]
    %v331 = vld [vmem:[%s4 + $0x38] sm:$0xff]
    %v332 = vld [vmem:[%s4 + $0x40] sm:$0xff]
    %v333 = vld [vmem:[%s4 + $0x48] sm:$0xff]
    %v334 = vld [vmem:[%s4 + $0x50] sm:$0xff]
    %v335 = vld [vmem:[%s4 + $0x58] sm:$0xff]
    %v336 = vld [vmem:[%s4 + $0x60] sm:$0xff]
    %v337 = vld [vmem:[%s4 + $0x68] sm:$0xff]
    %v338 = vld [vmem:[%s4 + $0x70] sm:$0xff]
    %v339 = vld [vmem:[%s4 + $0x78] sm:$0xff]
    %v340 = vadd.f32 %v308, %v324
    %v341 = vadd.f32 %v309, %v325
    %v342 = vadd.f32 %v310, %v326
    %v343 = vadd.f32 %v311, %v327
    %v344 = vadd.f32 %v312, %v328
    %v345 = vadd.f32 %v313, %v329
    %v346 = vadd.f32 %v314, %v330
    %v347 = vadd.f32 %v315, %v331
    %v348 = vadd.f32 %v316, %v332
    %v349 = vadd.f32 %v317, %v333
    %v350 = vadd.f32 %v318, %v334
    %v351 = vadd.f32 %v319, %v335
    %v352 = vadd.f32 %v320, %v336
    %v353 = vadd.f32 %v321, %v337
    %v354 = vadd.f32 %v322, %v338
    %v355 = vadd.f32 %v323, %v339
    %v356 = vmax.f32 %v340, 0.0
    %v357 = vmax.f32 %v341, 0.0
    %v358 = vmax.f32 %v342, 0.0
    %v359 = vmax.f32 %v343, 0.0
    %v360 = vmax.f32 %v344, 0.0
    %v361 = vmax.f32 %v345, 0.0
    %v362 = vmax.f32 %v346, 0.0
    %v363 = vmax.f32 %v347, 0.0
    %v364 = vmax.f32 %v348, 0.0
    %v365 = vmax.f32 %v349, 0.0
    %v366 = vmax.f32 %v350, 0.0
    %v367 = vmax.f32 %v351, 0.0
    %v368 = vmax.f32 %v352, 0.0
    %v369 = vmax.f32 %v353, 0.0
    %v370 = vmax.f32 %v354, 0.0
    %v371 = vmax.f32 %v355, 0.0
    %372 = vst [vmem:[%s5] sm:$0xff] %v356
    %373 = vst [vmem:[%s5 + $0x8] sm:$0xff] %v357
    %374 = vst [vmem:[%s5 + $0x10] sm:$0xff] %v358
    %375 = vst [vmem:[%s5 + $0x18] sm:$0xff] %v359
    %376 = vst [vmem:[%s5 + $0x20] sm:$0xff] %v360
    %377 = vst [vmem:[%s5 + $0x28] sm:$0xff] %v361
    %378 = vst [vmem:[%s5 + $0x30] sm:$0xff] %v362
    %379 = vst [vmem:[%s5 + $0x38] sm:$0xff] %v363
    %380 = vst [vmem:[%s5 + $0x40] sm:$0xff] %v364
    %381 = vst [vmem:[%s5 + $0x48] sm:$0xff] %v365
    %382 = vst [vmem:[%s5 + $0x50] sm:$0xff] %v366
    %383 = vst [vmem:[%s5 + $0x58] sm:$0xff] %v367
    %384 = vst [vmem:[%s5 + $0x60] sm:$0xff] %v368
    %385 = vst [vmem:[%s5 + $0x68] sm:$0xff] %v369
    %386 = vst [vmem:[%s5 + $0x70] sm:$0xff] %v370
    %387 = vst [vmem:[%s5 + $0x78] sm:$0xff] %v371
  $region29: #{forward.37} parent=0 // pred_fallthru
    _
  // Predicated region
  $region30: #{forward.37} parent=0 // pred_check
    _
  $region31: #{forward.37} parent=0 // pred_check_branch
    %389 = sbr.rel (0) target = $region33
  $region32: #{forward.37} parent=0 // pred_region
    _
  $region33: #{forward.37} parent=0 // pred_fallthru
    _
  // Predicated region
  $region34: #{forward.37} parent=0 // pred_check
    _
  $region35: #{forward.37} parent=0 // pred_check_branch
    %391 = sbr.rel (0) target = $region37
  $region36: #{forward.37} parent=0 // pred_region
    _
  $region37: #{forward.37} parent=0 // pred_fallthru
    _

// kernel: forward.34
$region0: #{forward.34}
  #allocation0 [shape = 'u32[]', space=smem, size = 0x4, offset = 0x4, fixed_abs, tag = 'smem constant byte address 0x4 - core index']
  #allocation1 [shape = 'u32[72,128]{1,0:T(1,128)}', space=vmem, size = 0x9000, scoped, tag = 'internal scratch']
  #allocation2 [shape = 'f32[128,128]{1,0:T(8,128)}', space=vmem, size = 0x10000, scoped, tag = 'scratch operand']
  %s0 = inlined_call_operand.vmem [shape: bf16[128,128], index: 0, kind: input, shape index: {}]
  %s1 = inlined_call_operand.vmem [shape: bf16[128,128], index: 1, kind: input, shape index: {}]
  %s2 = inlined_call_operand.vmem [shape: f32[1,128], index: 2, kind: input, shape index: {}]
  %s3 = inlined_call_operand.vmem [shape: f32[1,128], index: 3, kind: input, shape index: {}]
  %s4 = inlined_call_operand.vmem [shape: f32[128,128], index: 4, kind: output, shape index: {}]
  %s5 = sld [smem:[#allocation0]]
  $region34: #{forward.34} parent=0
    _
  %s7 = ssub.s32 1, %s5
  %s8 = scalar_select 0, %s7, %s5
  // Predicated region
  $region2: #{forward.34} parent=0 // pred_check
    _
  $region3: #{forward.34} parent=0 // pred_check_branch
    %10 = sbr.rel (0) target = $region5
  $region4: #{forward.34} parent=0 // pred_region
    _
  $region5: #{forward.34} parent=0 // pred_fallthru
    _
  // Predicated region
  $region6: #{forward.34} parent=0 // pred_check
    _
  $region7: #{forward.34} parent=0 // pred_check_branch
    %12 = sbr.rel (0) target = $region9
  $region8: #{forward.34} parent=0 // pred_region
    _
  $region9: #{forward.34} parent=0 // pred_fallthru
    _
  // Predicated region
  $region10: #{forward.34} parent=0 // pred_check
    _
  $region11: #{forward.34} parent=0 // pred_check_branch
    %14 = sbr.rel (0) target = $region13
  $region12: #{forward.34} parent=0 // pred_region
    _
  $region13: #{forward.34} parent=0 // pred_fallthru
    _
  // Predicated region
  $region14: #{forward.34} parent=0 // pred_check
    _
  $region15: #{forward.34} parent=0 // pred_check_branch
    %16 = sbr.rel (0) target = $region17
  $region16: #{forward.34} parent=0 // pred_region
    _
  $region17: #{forward.34} parent=0 // pred_fallthru
    _
  %p17 = scmp.eq.s32.totalorder 0, 0
  // Predicated region
  $region18: #{forward.34} parent=0 // pred_check
    %p18 = pneg %p17
  $region19: #{forward.34} parent=0 // pred_check_branch
    %20 = sbr.rel (%p18) target = $region21
  $region20: #{forward.34} parent=0 // pred_region
    %21 = vst [vmem:[#allocation2] sm:$0xff] 0.0
    %22 = vst [vmem:[#allocation2 + $0x8] sm:$0xff] 0.0
    %23 = vst [vmem:[#allocation2 + $0x10] sm:$0xff] 0.0
    %24 = vst [vmem:[#allocation2 + $0x18] sm:$0xff] 0.0
    %25 = vst [vmem:[#allocation2 + $0x20] sm:$0xff] 0.0
    %26 = vst [vmem:[#allocation2 + $0x28] sm:$0xff] 0.0
    %27 = vst [vmem:[#allocation2 + $0x30] sm:$0xff] 0.0
    %28 = vst [vmem:[#allocation2 + $0x38] sm:$0xff] 0.0
    %29 = vst [vmem:[#allocation2 + $0x40] sm:$0xff] 0.0
    %30 = vst [vmem:[#allocation2 + $0x48] sm:$0xff] 0.0
    %31 = vst [vmem:[#allocation2 + $0x50] sm:$0xff] 0.0
    %32 = vst [vmem:[#allocation2 + $0x58] sm:$0xff] 0.0
    %33 = vst [vmem:[#allocation2 + $0x60] sm:$0xff] 0.0
    %34 = vst [vmem:[#allocation2 + $0x68] sm:$0xff] 0.0
    %35 = vst [vmem:[#allocation2 + $0x70] sm:$0xff] 0.0
    %36 = vst [vmem:[#allocation2 + $0x78] sm:$0xff] 0.0
  $region21: #{forward.34} parent=0 // pred_fallthru
    _
  %v37 = vld [vmem:[#allocation2] sm:$0xff]
  %v38 = vld [vmem:[#allocation2 + $0x8] sm:$0xff]
  %v39 = vld [vmem:[#allocation2 + $0x10] sm:$0xff]
  %v40 = vld [vmem:[#allocation2 + $0x18] sm:$0xff]
  %v41 = vld [vmem:[#allocation2 + $0x20] sm:$0xff]
  %v42 = vld [vmem:[#allocation2 + $0x28] sm:$0xff]
  %v43 = vld [vmem:[#allocation2 + $0x30] sm:$0xff]
  %v44 = vld [vmem:[#allocation2 + $0x38] sm:$0xff]
  %v45 = vld [vmem:[#allocation2 + $0x40] sm:$0xff]
  %v46 = vld [vmem:[#allocation2 + $0x48] sm:$0xff]
  %v47 = vld [vmem:[#allocation2 + $0x50] sm:$0xff]
  %v48 = vld [vmem:[#allocation2 + $0x58] sm:$0xff]
  %v49 = vld [vmem:[#allocation2 + $0x60] sm:$0xff]
  %v50 = vld [vmem:[#allocation2 + $0x68] sm:$0xff]
  %v51 = vld [vmem:[#allocation2 + $0x70] sm:$0xff]
  %v52 = vld [vmem:[#allocation2 + $0x78] sm:$0xff]
  %v53 = vld [vmem:[%s0] sm:$0xf]
  %v54 = vld [vmem:[%s0 + $0x4] sm:$0xf]
  %v55 = vld [vmem:[%s0 + $0x8] sm:$0xf]
  %v56 = vld [vmem:[%s0 + $0xc] sm:$0xf]
  %v57 = vld [vmem:[%s0 + $0x10] sm:$0xf]
  %v58 = vld [vmem:[%s0 + $0x14] sm:$0xf]
  %v59 = vld [vmem:[%s0 + $0x18] sm:$0xf]
  %v60 = vld [vmem:[%s0 + $0x1c] sm:$0xf]
  %v61 = vld [vmem:[%s0 + $0x20] sm:$0xf]
  %v62 = vld [vmem:[%s0 + $0x24] sm:$0xf]
  %v63 = vld [vmem:[%s0 + $0x28] sm:$0xf]
  %v64 = vld [vmem:[%s0 + $0x2c] sm:$0xf]
  %v65 = vld [vmem:[%s0 + $0x30] sm:$0xf]
  %v66 = vld [vmem:[%s0 + $0x34] sm:$0xf]
  %v67 = vld [vmem:[%s0 + $0x38] sm:$0xf]
  %v68 = vld [vmem:[%s0 + $0x3c] sm:$0xf]
  %v69 = vld [vmem:[%s1] sm:$0xf]
  %v70 = vld [vmem:[%s1 + $0x4] sm:$0xf]
  %v71 = vld [vmem:[%s1 + $0x8] sm:$0xf]
  %v72 = vld [vmem:[%s1 + $0xc] sm:$0xf]
  %v73 = vld [vmem:[%s1 + $0x10] sm:$0xf]
  %v74 = vld [vmem:[%s1 + $0x14] sm:$0xf]
  %v75 = vld [vmem:[%s1 + $0x18] sm:$0xf]
  %v76 = vld [vmem:[%s1 + $0x1c] sm:$0xf]
  %v77 = vld [vmem:[%s1 + $0x20] sm:$0xf]
  %v78 = vld [vmem:[%s1 + $0x24] sm:$0xf]
  %v79 = vld [vmem:[%s1 + $0x28] sm:$0xf]
  %v80 = vld [vmem:[%s1 + $0x2c] sm:$0xf]
  %v81 = vld [vmem:[%s1 + $0x30] sm:$0xf]
  %v82 = vld [vmem:[%s1 + $0x34] sm:$0xf]
  %v83 = vld [vmem:[%s1 + $0x38] sm:$0xf]
  %v84 = vld [vmem:[%s1 + $0x3c] sm:$0xf]
  %v101 = vunpack.c.l.b16 %v53
  %v102 = vunpack.c.l.b16 %v54
  %v103 = vunpack.c.l.b16 %v55
  %v104 = vunpack.c.l.b16 %v56
  %v105 = vunpack.c.l.b16 %v57
  %v106 = vunpack.c.l.b16 %v58
  %v107 = vunpack.c.l.b16 %v59
  %v108 = vunpack.c.l.b16 %v60
  %v109 = vunpack.c.l.b16 %v61
  %v110 = vunpack.c.l.b16 %v62
  %v111 = vunpack.c.l.b16 %v63
  %v112 = vunpack.c.l.b16 %v64
  %v113 = vunpack.c.l.b16 %v65
  %v114 = vunpack.c.l.b16 %v66
  %v115 = vunpack.c.l.b16 %v67
  %v116 = vunpack.c.l.b16 %v68
  %v117 = vpack.c.b16 %v102, %v101
  %v118 = vpack.c.b16 %v104, %v103
  %v119 = vpack.c.b16 %v106, %v105
  %v120 = vpack.c.b16 %v108, %v107
  %v121 = vpack.c.b16 %v110, %v109
  %v122 = vpack.c.b16 %v112, %v111
  %v123 = vpack.c.b16 %v114, %v113
  %v124 = vpack.c.b16 %v116, %v115
  %v149 = vunpack.c.l.b16 %v69
  %v150 = vunpack.c.l.b16 %v70
  %v151 = vunpack.c.l.b16 %v71
  %v152 = vunpack.c.l.b16 %v72
  %v153 = vunpack.c.l.b16 %v73
  %v154 = vunpack.c.l.b16 %v74
  %v155 = vunpack.c.l.b16 %v75
  %v156 = vunpack.c.l.b16 %v76
  %v157 = vunpack.c.l.b16 %v77
  %v158 = vunpack.c.l.b16 %v78
  %v159 = vunpack.c.l.b16 %v79
  %v160 = vunpack.c.l.b16 %v80
  %v161 = vunpack.c.l.b16 %v81
  %v162 = vunpack.c.l.b16 %v82
  %v163 = vunpack.c.l.b16 %v83
  %v164 = vunpack.c.l.b16 %v84
  %v165 = vpack.c.b16 %v150, %v149
  %v166 = vpack.c.b16 %v152, %v151
  %v167 = vpack.c.b16 %v154, %v153
  %v168 = vpack.c.b16 %v156, %v155
  %v169 = vpack.c.b16 %v158, %v157
  %v170 = vpack.c.b16 %v160, %v159
  %v171 = vpack.c.b16 %v162, %v161
  %v172 = vpack.c.b16 %v164, %v163
  %181 = vmatpush.bf16.msra.mxu0 %v172
  %182 = vmatpush.bf16.msra.mxu0 %v171
  %183 = vmatpush.bf16.msra.mxu0 %v170
  %184 = vmatpush.bf16.msra.mxu0 %v169
  %185 = vmatpush.bf16.msra.mxu0 %v168
  %186 = vmatpush.bf16.msra.mxu0 %v167
  %187 = vmatpush.bf16.msra.mxu0 %v166
  %188 = vmatpush.bf16.msra.mxu0 %v165
  %189 = vmatmul.bf16.gmra.mxu0 %v117
  %v190 = vpop.f32.mrf.mxu0
  %v191 = vadd.f32 0.0, %v190
  %v192 = vpop.f32.mrf.mxu0
  %v193 = vadd.f32 0.0, %v192
  %194 = vmatmul.bf16.gmra.mxu0 %v118
  %v195 = vpop.f32.mrf.mxu0
  %v196 = vadd.f32 0.0, %v195
  %v197 = vpop.f32.mrf.mxu0
  %v198 = vadd.f32 0.0, %v197
  %199 = vmatmul.bf16.gmra.mxu0 %v119
  %v200 = vpop.f32.mrf.mxu0
  %v201 = vadd.f32 0.0, %v200
  %v202 = vpop.f32.mrf.mxu0
  %v203 = vadd.f32 0.0, %v202
  %204 = vmatmul.bf16.gmra.mxu0 %v120
  %v205 = vpop.f32.mrf.mxu0
  %v206 = vadd.f32 0.0, %v205
  %v207 = vpop.f32.mrf.mxu0
  %v208 = vadd.f32 0.0, %v207
  %209 = vmatmul.bf16.gmra.mxu0 %v121
  %v210 = vpop.f32.mrf.mxu0
  %v211 = vadd.f32 0.0, %v210
  %v212 = vpop.f32.mrf.mxu0
  %v213 = vadd.f32 0.0, %v212
  %214 = vmatmul.bf16.gmra.mxu0 %v122
  %v215 = vpop.f32.mrf.mxu0
  %v216 = vadd.f32 0.0, %v215
  %v217 = vpop.f32.mrf.mxu0
  %v218 = vadd.f32 0.0, %v217
  %219 = vmatmul.bf16.gmra.mxu0 %v123
  %v220 = vpop.f32.mrf.mxu0
  %v221 = vadd.f32 0.0, %v220
  %v222 = vpop.f32.mrf.mxu0
  %v223 = vadd.f32 0.0, %v222
  %224 = vmatmul.bf16.gmra.mxu0 %v124
  %v225 = vpop.f32.mrf.mxu0
  %v226 = vadd.f32 0.0, %v225
  %v227 = vpop.f32.mrf.mxu0
  %v228 = vadd.f32 0.0, %v227
  %229 = vdwg.mxu0
  %v230 = vadd.f32 %v37, %v191
  %v231 = vadd.f32 %v38, %v193
  %v232 = vadd.f32 %v39, %v196
  %v233 = vadd.f32 %v40, %v198
  %v234 = vadd.f32 %v41, %v201
  %v235 = vadd.f32 %v42, %v203
  %v236 = vadd.f32 %v43, %v206
  %v237 = vadd.f32 %v44, %v208
  %v238 = vadd.f32 %v45, %v211
  %v239 = vadd.f32 %v46, %v213
  %v240 = vadd.f32 %v47, %v216
  %v241 = vadd.f32 %v48, %v218
  %v242 = vadd.f32 %v49, %v221
  %v243 = vadd.f32 %v50, %v223
  %v244 = vadd.f32 %v51, %v226
  %v245 = vadd.f32 %v52, %v228
  %246 = vst [vmem:[#allocation2] sm:$0xff] %v230
  %247 = vst [vmem:[#allocation2 + $0x8] sm:$0xff] %v231
  %248 = vst [vmem:[#allocation2 + $0x10] sm:$0xff] %v232
  %249 = vst [vmem:[#allocation2 + $0x18] sm:$0xff] %v233
  %250 = vst [vmem:[#allocation2 + $0x20] sm:$0xff] %v234
  %251 = vst [vmem:[#allocation2 + $0x28] sm:$0xff] %v235
  %252 = vst [vmem:[#allocation2 + $0x30] sm:$0xff] %v236
  %253 = vst [vmem:[#allocation2 + $0x38] sm:$0xff] %v237
  %254 = vst [vmem:[#allocation2 + $0x40] sm:$0xff] %v238
  %255 = vst [vmem:[#allocation2 + $0x48] sm:$0xff] %v239
  %256 = vst [vmem:[#allocation2 + $0x50] sm:$0xff] %v240
  %257 = vst [vmem:[#allocation2 + $0x58] sm:$0xff] %v241
  %258 = vst [vmem:[#allocation2 + $0x60] sm:$0xff] %v242
  %259 = vst [vmem:[#allocation2 + $0x68] sm:$0xff] %v243
  %260 = vst [vmem:[#allocation2 + $0x70] sm:$0xff] %v244
  %261 = vst [vmem:[#allocation2 + $0x78] sm:$0xff] %v245
  // Predicated region
  $region22: #{forward.34} parent=0 // pred_check
    %p262 = pneg %p17
  $region23: #{forward.34} parent=0 // pred_check_branch
    %264 = sbr.rel (%p262) target = $region25
  $region24: #{forward.34} parent=0 // pred_region
    %v265 = vld [vmem:[#allocation2] sm:$0xff]
    %v266 = vld [vmem:[#allocation2 + $0x8] sm:$0xff]
    %v267 = vld [vmem:[#allocation2 + $0x10] sm:$0xff]
    %v268 = vld [vmem:[#allocation2 + $0x18] sm:$0xff]
    %v269 = vld [vmem:[#allocation2 + $0x20] sm:$0xff]
    %v270 = vld [vmem:[#allocation2 + $0x28] sm:$0xff]
    %v271 = vld [vmem:[#allocation2 + $0x30] sm:$0xff]
    %v272 = vld [vmem:[#allocation2 + $0x38] sm:$0xff]
    %v273 = vld [vmem:[#allocation2 + $0x40] sm:$0xff]
    %v274 = vld [vmem:[#allocation2 + $0x48] sm:$0xff]
    %v275 = vld [vmem:[#allocation2 + $0x50] sm:$0xff]
    %v276 = vld [vmem:[#allocation2 + $0x58] sm:$0xff]
    %v277 = vld [vmem:[#allocation2 + $0x60] sm:$0xff]
    %v278 = vld [vmem:[#allocation2 + $0x68] sm:$0xff]
    %v279 = vld [vmem:[#allocation2 + $0x70] sm:$0xff]
    %v280 = vld [vmem:[#allocation2 + $0x78] sm:$0xff]
    %v281 = vld [vmem:[%s2] sm:$0x1]
    %v283 = vperm.slane %v281, 0
    %v285 = vmul.f32 %v265, %v283
    %v286 = vmul.f32 %v266, %v283
    %v287 = vmul.f32 %v267, %v283
    %v288 = vmul.f32 %v268, %v283
    %v289 = vmul.f32 %v269, %v283
    %v290 = vmul.f32 %v270, %v283
    %v291 = vmul.f32 %v271, %v283
    %v292 = vmul.f32 %v272, %v283
    %v293 = vmul.f32 %v273, %v283
    %v294 = vmul.f32 %v274, %v283
    %v295 = vmul.f32 %v275, %v283
    %v296 = vmul.f32 %v276, %v283
    %v297 = vmul.f32 %v277, %v283
    %v298 = vmul.f32 %v278, %v283
    %v299 = vmul.f32 %v279, %v283
    %v300 = vmul.f32 %v280, %v283
    %v301 = vld [vmem:[%s3] sm:$0x1]
    %v303 = vperm.slane %v301, 0
    %v305 = vadd.f32 %v285, %v303
    %v306 = vadd.f32 %v286, %v303
    %v307 = vadd.f32 %v287, %v303
    %v308 = vadd.f32 %v288, %v303
    %v309 = vadd.f32 %v289, %v303
    %v310 = vadd.f32 %v290, %v303
    %v311 = vadd.f32 %v291, %v303
    %v312 = vadd.f32 %v292, %v303
    %v313 = vadd.f32 %v293, %v303
    %v314 = vadd.f32 %v294, %v303
    %v315 = vadd.f32 %v295, %v303
    %v316 = vadd.f32 %v296, %v303
    %v317 = vadd.f32 %v297, %v303
    %v318 = vadd.f32 %v298, %v303
    %v319 = vadd.f32 %v299, %v303
    %v320 = vadd.f32 %v300, %v303
    %321 = vst [vmem:[%s4] sm:$0xff] %v305
    %322 = vst [vmem:[%s4 + $0x8] sm:$0xff] %v306
    %323 = vst [vmem:[%s4 + $0x10] sm:$0xff] %v307
    %324 = vst [vmem:[%s4 + $0x18] sm:$0xff] %v308
    %325 = vst [vmem:[%s4 + $0x20] sm:$0xff] %v309
    %326 = vst [vmem:[%s4 + $0x28] sm:$0xff] %v310
    %327 = vst [vmem:[%s4 + $0x30] sm:$0xff] %v311
    %328 = vst [vmem:[%s4 + $0x38] sm:$0xff] %v312
    %329 = vst [vmem:[%s4 + $0x40] sm:$0xff] %v313
    %330 = vst [vmem:[%s4 + $0x48] sm:$0xff] %v314
    %331 = vst [vmem:[%s4 + $0x50] sm:$0xff] %v315
    %332 = vst [vmem:[%s4 + $0x58] sm:$0xff] %v316
    %333 = vst [vmem:[%s4 + $0x60] sm:$0xff] %v317
    %334 = vst [vmem:[%s4 + $0x68] sm:$0xff] %v318
    %335 = vst [vmem:[%s4 + $0x70] sm:$0xff] %v319
    %336 = vst [vmem:[%s4 + $0x78] sm:$0xff] %v320
  $region25: #{forward.34} parent=0 // pred_fallthru
    _
  // Predicated region
  $region26: #{forward.34} parent=0 // pred_check
    _
  $region27: #{forward.34} parent=0 // pred_check_branch
    %338 = sbr.rel (0) target = $region29
  $region28: #{forward.34} parent=0 // pred_region
    _
  $region29: #{forward.34} parent=0 // pred_fallthru
    _
  // Predicated region
  $region30: #{forward.34} parent=0 // pred_check
    _
  $region31: #{forward.34} parent=0 // pred_check_branch
    %340 = sbr.rel (0) target = $region33
  $region32: #{forward.34} parent=0 // pred_region
    _
  $region33: #{forward.34} parent=0 // pred_fallthru
    _

// kernel: forward.43
$region0: #{forward.43}
  #allocation0 [shape = 'u32[]', space=smem, size = 0x4, offset = 0x4, fixed_abs, tag = 'smem constant byte address 0x4 - core index']
  #allocation1 [shape = 'u32[72,128]{1,0:T(1,128)}', space=vmem, size = 0x9000, scoped, tag = 'internal scratch']
  #allocation2 [shape = 'f32[32,128]{1,0:T(8,128)}', space=vmem, size = 0x4000, scoped, tag = 'scratch operand']
  %s0 = inlined_call_operand.vmem [shape: bf16[32,256], index: 0, kind: input, shape index: {}]
  %s1 = inlined_call_operand.vmem [shape: bf16[256,128], index: 1, kind: input, shape index: {}]
  %s2 = inlined_call_operand.vmem [shape: f32[1,128], index: 2, kind: input, shape index: {}]
  %s3 = inlined_call_operand.vmem [shape: f32[1,128], index: 3, kind: input, shape index: {}]
  %s4 = inlined_call_operand.vmem [shape: f32[32,128], index: 4, kind: output, shape index: {}]
  %s5 = sld [smem:[#allocation0]]
  $region34: #{forward.43} parent=0
    _
  %s7 = ssub.s32 1, %s5
  %s8 = scalar_select 0, %s7, %s5
  // Predicated region
  $region2: #{forward.43} parent=0 // pred_check
    _
  $region3: #{forward.43} parent=0 // pred_check_branch
    %10 = sbr.rel (0) target = $region5
  $region4: #{forward.43} parent=0 // pred_region
    _
  $region5: #{forward.43} parent=0 // pred_fallthru
    _
  // Predicated region
  $region6: #{forward.43} parent=0 // pred_check
    _
  $region7: #{forward.43} parent=0 // pred_check_branch
    %12 = sbr.rel (0) target = $region9
  $region8: #{forward.43} parent=0 // pred_region
    _
  $region9: #{forward.43} parent=0 // pred_fallthru
    _
  // Predicated region
  $region10: #{forward.43} parent=0 // pred_check
    _
  $region11: #{forward.43} parent=0 // pred_check_branch
    %14 = sbr.rel (0) target = $region13
  $region12: #{forward.43} parent=0 // pred_region
    _
  $region13: #{forward.43} parent=0 // pred_fallthru
    _
  // Predicated region
  $region14: #{forward.43} parent=0 // pred_check
    _
  $region15: #{forward.43} parent=0 // pred_check_branch
    %16 = sbr.rel (0) target = $region17
  $region16: #{forward.43} parent=0 // pred_region
    _
  $region17: #{forward.43} parent=0 // pred_fallthru
    _
  %p17 = scmp.eq.s32.totalorder 0, 0
  // Predicated region
  $region18: #{forward.43} parent=0 // pred_check
    %p18 = pneg %p17
  $region19: #{forward.43} parent=0 // pred_check_branch
    %20 = sbr.rel (%p18) target = $region21
  $region20: #{forward.43} parent=0 // pred_region
    %21 = vst [vmem:[#allocation2] sm:$0xff] 0.0
    %22 = vst [vmem:[#allocation2 + $0x8] sm:$0xff] 0.0
    %23 = vst [vmem:[#allocation2 + $0x10] sm:$0xff] 0.0
    %24 = vst [vmem:[#allocation2 + $0x18] sm:$0xff] 0.0
  $region21: #{forward.43} parent=0 // pred_fallthru
    _
  %v25 = vld [vmem:[#allocation2] sm:$0xff]
  %v26 = vld [vmem:[#allocation2 + $0x8] sm:$0xff]
  %v27 = vld [vmem:[#allocation2 + $0x10] sm:$0xff]
  %v28 = vld [vmem:[#allocation2 + $0x18] sm:$0xff]
  %v29 = vld [vmem:[%s0] sm:$0xff]
  %v30 = vld [vmem:[%s0 + $0x8] sm:$0xff]
  %v31 = vld [vmem:[%s0 + $0x10] sm:$0xff]
  %v32 = vld [vmem:[%s0 + $0x18] sm:$0xff]
  %v33 = vld [vmem:[%s1] sm:$0xf]
  %v34 = vld [vmem:[%s1 + $0x4] sm:$0xf]
  %v35 = vld [vmem:[%s1 + $0x8] sm:$0xf]
  %v36 = vld [vmem:[%s1 + $0xc] sm:$0xf]
  %v37 = vld [vmem:[%s1 + $0x10] sm:$0xf]
  %v38 = vld [vmem:[%s1 + $0x14] sm:$0xf]
  %v39 = vld [vmem:[%s1 + $0x18] sm:$0xf]
  %v40 = vld [vmem:[%s1 + $0x1c] sm:$0xf]
  %v41 = vld [vmem:[%s1 + $0x20] sm:$0xf]
  %v42 = vld [vmem:[%s1 + $0x24] sm:$0xf]
  %v43 = vld [vmem:[%s1 + $0x28] sm:$0xf]
  %v44 = vld [vmem:[%s1 + $0x2c] sm:$0xf]
  %v45 = vld [vmem:[%s1 + $0x30] sm:$0xf]
  %v46 = vld [vmem:[%s1 + $0x34] sm:$0xf]
  %v47 = vld [vmem:[%s1 + $0x38] sm:$0xf]
  %v48 = vld [vmem:[%s1 + $0x3c] sm:$0xf]
  %v49 = vld [vmem:[%s1 + $0x40] sm:$0xf]
  %v50 = vld [vmem:[%s1 + $0x44] sm:$0xf]
  %v51 = vld [vmem:[%s1 + $0x48] sm:$0xf]
  %v52 = vld [vmem:[%s1 + $0x4c] sm:$0xf]
  %v53 = vld [vmem:[%s1 + $0x50] sm:$0xf]
  %v54 = vld [vmem:[%s1 + $0x54] sm:$0xf]
  %v55 = vld [vmem:[%s1 + $0x58] sm:$0xf]
  %v56 = vld [vmem:[%s1 + $0x5c] sm:$0xf]
  %v57 = vld [vmem:[%s1 + $0x60] sm:$0xf]
  %v58 = vld [vmem:[%s1 + $0x64] sm:$0xf]
  %v59 = vld [vmem:[%s1 + $0x68] sm:$0xf]
  %v60 = vld [vmem:[%s1 + $0x6c] sm:$0xf]
  %v61 = vld [vmem:[%s1 + $0x70] sm:$0xf]
  %v62 = vld [vmem:[%s1 + $0x74] sm:$0xf]
  %v63 = vld [vmem:[%s1 + $0x78] sm:$0xf]
  %v64 = vld [vmem:[%s1 + $0x7c] sm:$0xf]
  %v69 = vunpack.c.l.b16 %v29
  %v70 = vunpack.c.h.b16 %v29
  %v71 = vunpack.c.l.b16 %v30
  %v72 = vunpack.c.h.b16 %v30
  %v73 = vunpack.c.l.b16 %v31
  %v74 = vunpack.c.h.b16 %v31
  %v75 = vunpack.c.l.b16 %v32
  %v76 = vunpack.c.h.b16 %v32
  %v77 = vpack.c.b16 %v71, %v69
  %v78 = vpack.c.b16 %v72, %v70
  %v79 = vpack.c.b16 %v75, %v73
  %v80 = vpack.c.b16 %v76, %v74
  %v117 = vunpack.c.l.b16 %v33
  %v118 = vunpack.c.l.b16 %v34
  %v119 = vunpack.c.l.b16 %v35
  %v120 = vunpack.c.l.b16 %v36
  %v121 = vunpack.c.l.b16 %v37
  %v122 = vunpack.c.l.b16 %v38
  %v123 = vunpack.c.l.b16 %v39
  %v124 = vunpack.c.l.b16 %v40
  %v125 = vunpack.c.l.b16 %v41
  %v126 = vunpack.c.l.b16 %v42
  %v127 = vunpack.c.l.b16 %v43
  %v128 = vunpack.c.l.b16 %v44
  %v129 = vunpack.c.l.b16 %v45
  %v130 = vunpack.c.l.b16 %v46
  %v131 = vunpack.c.l.b16 %v47
  %v132 = vunpack.c.l.b16 %v48
  %v133 = vunpack.c.l.b16 %v49
  %v134 = vunpack.c.l.b16 %v50
  %v135 = vunpack.c.l.b16 %v51
  %v136 = vunpack.c.l.b16 %v52
  %v137 = vunpack.c.l.b16 %v53
  %v138 = vunpack.c.l.b16 %v54
  %v139 = vunpack.c.l.b16 %v55
  %v140 = vunpack.c.l.b16 %v56
  %v141 = vunpack.c.l.b16 %v57
  %v142 = vunpack.c.l.b16 %v58
  %v143 = vunpack.c.l.b16 %v59
  %v144 = vunpack.c.l.b16 %v60
  %v145 = vunpack.c.l.b16 %v61
  %v146 = vunpack.c.l.b16 %v62
  %v147 = vunpack.c.l.b16 %v63
  %v148 = vunpack.c.l.b16 %v64
  %v149 = vpack.c.b16 %v118, %v117
  %v150 = vpack.c.b16 %v120, %v119
  %v151 = vpack.c.b16 %v122, %v121
  %v152 = vpack.c.b16 %v124, %v123
  %v153 = vpack.c.b16 %v126, %v125
  %v154 = vpack.c.b16 %v128, %v127
  %v155 = vpack.c.b16 %v130, %v129
  %v156 = vpack.c.b16 %v132, %v131
  %v157 = vpack.c.b16 %v134, %v133
  %v158 = vpack.c.b16 %v136, %v135
  %v159 = vpack.c.b16 %v138, %v137
  %v160 = vpack.c.b16 %v140, %v139
  %v161 = vpack.c.b16 %v142, %v141
  %v162 = vpack.c.b16 %v144, %v143
  %v163 = vpack.c.b16 %v146, %v145
  %v164 = vpack.c.b16 %v148, %v147
  %181 = vmatpush.bf16.msra.mxu0 %v156
  %182 = vmatpush.bf16.msra.mxu0 %v155
  %183 = vmatpush.bf16.msra.mxu0 %v154
  %184 = vmatpush.bf16.msra.mxu0 %v153
  %185 = vmatpush.bf16.msra.mxu0 %v152
  %186 = vmatpush.bf16.msra.mxu0 %v151
  %187 = vmatpush.bf16.msra.mxu0 %v150
  %188 = vmatpush.bf16.msra.mxu0 %v149
  %189 = vmatmul.bf16.gmra.mxu0 %v77
  %v190 = vpop.f32.mrf.mxu0
  %v191 = vadd.f32 0.0, %v190
  %v192 = vpop.f32.mrf.mxu0
  %v193 = vadd.f32 0.0, %v192
  %194 = vmatmul.bf16.gmra.mxu0 %v79
  %v195 = vpop.f32.mrf.mxu0
  %v196 = vadd.f32 0.0, %v195
  %v197 = vpop.f32.mrf.mxu0
  %v198 = vadd.f32 0.0, %v197
  %199 = vdwg.mxu0
  %200 = vmatpush.bf16.msra.mxu0 %v164
  %201 = vmatpush.bf16.msra.mxu0 %v163
  %202 = vmatpush.bf16.msra.mxu0 %v162
  %203 = vmatpush.bf16.msra.mxu0 %v161
  %204 = vmatpush.bf16.msra.mxu0 %v160
  %205 = vmatpush.bf16.msra.mxu0 %v159
  %206 = vmatpush.bf16.msra.mxu0 %v158
  %207 = vmatpush.bf16.msra.mxu0 %v157
  %208 = vmatmul.bf16.gmra.mxu0 %v78
  %v209 = vpop.f32.mrf.mxu0
  %v210 = vadd.f32 %v191, %v209
  %v211 = vpop.f32.mrf.mxu0
  %v212 = vadd.f32 %v193, %v211
  %213 = vmatmul.bf16.gmra.mxu0 %v80
  %v214 = vpop.f32.mrf.mxu0
  %v215 = vadd.f32 %v196, %v214
  %v216 = vpop.f32.mrf.mxu0
  %v217 = vadd.f32 %v198, %v216
  %218 = vdwg.mxu0
  %v219 = vadd.f32 %v25, %v210
  %v220 = vadd.f32 %v26, %v212
  %v221 = vadd.f32 %v27, %v215
  %v222 = vadd.f32 %v28, %v217
  %223 = vst [vmem:[#allocation2] sm:$0xff] %v219
  %224 = vst [vmem:[#allocation2 + $0x8] sm:$0xff] %v220
  %225 = vst [vmem:[#allocation2 + $0x10] sm:$0xff] %v221
  %226 = vst [vmem:[#allocation2 + $0x18] sm:$0xff] %v222
  // Predicated region
  $region22: #{forward.43} parent=0 // pred_check
    %p227 = pneg %p17
  $region23: #{forward.43} parent=0 // pred_check_branch
    %229 = sbr.rel (%p227) target = $region25
  $region24: #{forward.43} parent=0 // pred_region
    %v230 = vld [vmem:[#allocation2] sm:$0xff]
    %v231 = vld [vmem:[#allocation2 + $0x8] sm:$0xff]
    %v232 = vld [vmem:[#allocation2 + $0x10] sm:$0xff]
    %v233 = vld [vmem:[#allocation2 + $0x18] sm:$0xff]
    %v234 = vld [vmem:[%s2] sm:$0x1]
    %v236 = vperm.slane %v234, 0
    %v238 = vmul.f32 %v230, %v236
    %v239 = vmul.f32 %v231, %v236
    %v240 = vmul.f32 %v232, %v236
    %v241 = vmul.f32 %v233, %v236
    %v242 = vld [vmem:[%s3] sm:$0x1]
    %v244 = vperm.slane %v242, 0
    %v246 = vadd.f32 %v238, %v244
    %v247 = vadd.f32 %v239, %v244
    %v248 = vadd.f32 %v240, %v244
    %v249 = vadd.f32 %v241, %v244
    %v250 = vmax.f32 %v246, 0.0
    %v251 = vmax.f32 %v247, 0.0
    %v252 = vmax.f32 %v248, 0.0
    %v253 = vmax.f32 %v249, 0.0
    %254 = vst [vmem:[%s4] sm:$0xff] %v250
    %255 = vst [vmem:[%s4 + $0x8] sm:$0xff] %v251
    %256 = vst [vmem:[%s4 + $0x10] sm:$0xff] %v252
    %257 = vst [vmem:[%s4 + $0x18] sm:$0xff] %v253
  $region25: #{forward.43} parent=0 // pred_fallthru
    _
  // Predicated region
  $region26: #{forward.43} parent=0 // pred_check
    _
  $region27: #{forward.43} parent=0 // pred_check_branch
    %259 = sbr.rel (0) target = $region29
  $region28: #{forward.43} parent=0 // pred_region
    _
  $region29: #{forward.43} parent=0 // pred_fallthru
    _
  // Predicated region
  $region30: #{forward.43} parent=0 // pred_check
    _
  $region31: #{forward.43} parent=0 // pred_check_branch
    %261 = sbr.rel (0) target = $region33
  $region32: #{forward.43} parent=0 // pred_region
    _
  $region33: #{forward.43} parent=0 // pred_fallthru
    _

// kernel: forward.41
$region0: #{forward.41}
  #allocation0 [shape = 'u32[]', space=smem, size = 0x4, offset = 0x4, fixed_abs, tag = 'smem constant byte address 0x4 - core index']
  #allocation1 [shape = 'u32[72,128]{1,0:T(1,128)}', space=vmem, size = 0x9000, scoped, tag = 'internal scratch']
  #allocation2 [shape = 'f32[32,128]{1,0:T(8,128)}', space=vmem, size = 0x4000, scoped, tag = 'scratch operand']
  %s0 = inlined_call_operand.vmem [shape: bf16[32,128], index: 0, kind: input, shape index: {}]
  %s1 = inlined_call_operand.vmem [shape: bf16[128,128], index: 1, kind: input, shape index: {}]
  %s2 = inlined_call_operand.vmem [shape: f32[1,128], index: 2, kind: input, shape index: {}]
  %s3 = inlined_call_operand.vmem [shape: f32[1,128], index: 3, kind: input, shape index: {}]
  %s4 = inlined_call_operand.vmem [shape: f32[32,128], index: 4, kind: output, shape index: {}]
  %s5 = sld [smem:[#allocation0]]
  $region34: #{forward.41} parent=0
    _
  %s7 = ssub.s32 1, %s5
  %s8 = scalar_select 0, %s7, %s5
  // Predicated region
  $region2: #{forward.41} parent=0 // pred_check
    _
  $region3: #{forward.41} parent=0 // pred_check_branch
    %10 = sbr.rel (0) target = $region5
  $region4: #{forward.41} parent=0 // pred_region
    _
  $region5: #{forward.41} parent=0 // pred_fallthru
    _
  // Predicated region
  $region6: #{forward.41} parent=0 // pred_check
    _
  $region7: #{forward.41} parent=0 // pred_check_branch
    %12 = sbr.rel (0) target = $region9
  $region8: #{forward.41} parent=0 // pred_region
    _
  $region9: #{forward.41} parent=0 // pred_fallthru
    _
  // Predicated region
  $region10: #{forward.41} parent=0 // pred_check
    _
  $region11: #{forward.41} parent=0 // pred_check_branch
    %14 = sbr.rel (0) target = $region13
  $region12: #{forward.41} parent=0 // pred_region
    _
  $region13: #{forward.41} parent=0 // pred_fallthru
    _
  // Predicated region
  $region14: #{forward.41} parent=0 // pred_check
    _
  $region15: #{forward.41} parent=0 // pred_check_branch
    %16 = sbr.rel (0) target = $region17
  $region16: #{forward.41} parent=0 // pred_region
    _
  $region17: #{forward.41} parent=0 // pred_fallthru
    _
  %p17 = scmp.eq.s32.totalorder 0, 0
  // Predicated region
  $region18: #{forward.41} parent=0 // pred_check
    %p18 = pneg %p17
  $region19: #{forward.41} parent=0 // pred_check_branch
    %20 = sbr.rel (%p18) target = $region21
  $region20: #{forward.41} parent=0 // pred_region
    %21 = vst [vmem:[#allocation2] sm:$0xff] 0.0
    %22 = vst [vmem:[#allocation2 + $0x8] sm:$0xff] 0.0
    %23 = vst [vmem:[#allocation2 + $0x10] sm:$0xff] 0.0
    %24 = vst [vmem:[#allocation2 + $0x18] sm:$0xff] 0.0
  $region21: #{forward.41} parent=0 // pred_fallthru
    _
  %v25 = vld [vmem:[#allocation2] sm:$0xff]
  %v26 = vld [vmem:[#allocation2 + $0x8] sm:$0xff]
  %v27 = vld [vmem:[#allocation2 + $0x10] sm:$0xff]
  %v28 = vld [vmem:[#allocation2 + $0x18] sm:$0xff]
  %v29 = vld [vmem:[%s0] sm:$0xf]
  %v30 = vld [vmem:[%s0 + $0x4] sm:$0xf]
  %v31 = vld [vmem:[%s0 + $0x8] sm:$0xf]
  %v32 = vld [vmem:[%s0 + $0xc] sm:$0xf]
  %v33 = vld [vmem:[%s1] sm:$0xf]
  %v34 = vld [vmem:[%s1 + $0x4] sm:$0xf]
  %v35 = vld [vmem:[%s1 + $0x8] sm:$0xf]
  %v36 = vld [vmem:[%s1 + $0xc] sm:$0xf]
  %v37 = vld [vmem:[%s1 + $0x10] sm:$0xf]
  %v38 = vld [vmem:[%s1 + $0x14] sm:$0xf]
  %v39 = vld [vmem:[%s1 + $0x18] sm:$0xf]
  %v40 = vld [vmem:[%s1 + $0x1c] sm:$0xf]
  %v41 = vld [vmem:[%s1 + $0x20] sm:$0xf]
  %v42 = vld [vmem:[%s1 + $0x24] sm:$0xf]
  %v43 = vld [vmem:[%s1 + $0x28] sm:$0xf]
  %v44 = vld [vmem:[%s1 + $0x2c] sm:$0xf]
  %v45 = vld [vmem:[%s1 + $0x30] sm:$0xf]
  %v46 = vld [vmem:[%s1 + $0x34] sm:$0xf]
  %v47 = vld [vmem:[%s1 + $0x38] sm:$0xf]
  %v48 = vld [vmem:[%s1 + $0x3c] sm:$0xf]
  %v53 = vunpack.c.l.b16 %v29
  %v54 = vunpack.c.l.b16 %v30
  %v55 = vunpack.c.l.b16 %v31
  %v56 = vunpack.c.l.b16 %v32
  %v57 = vpack.c.b16 %v54, %v53
  %v58 = vpack.c.b16 %v56, %v55
  %v77 = vunpack.c.l.b16 %v33
  %v78 = vunpack.c.l.b16 %v34
  %v79 = vunpack.c.l.b16 %v35
  %v80 = vunpack.c.l.b16 %v36
  %v81 = vunpack.c.l.b16 %v37
  %v82 = vunpack.c.l.b16 %v38
  %v83 = vunpack.c.l.b16 %v39
  %v84 = vunpack.c.l.b16 %v40
  %v85 = vunpack.c.l.b16 %v41
  %v86 = vunpack.c.l.b16 %v42
  %v87 = vunpack.c.l.b16 %v43
  %v88 = vunpack.c.l.b16 %v44
  %v89 = vunpack.c.l.b16 %v45
  %v90 = vunpack.c.l.b16 %v46
  %v91 = vunpack.c.l.b16 %v47
  %v92 = vunpack.c.l.b16 %v48
  %v93 = vpack.c.b16 %v78, %v77
  %v94 = vpack.c.b16 %v80, %v79
  %v95 = vpack.c.b16 %v82, %v81
  %v96 = vpack.c.b16 %v84, %v83
  %v97 = vpack.c.b16 %v86, %v85
  %v98 = vpack.c.b16 %v88, %v87
  %v99 = vpack.c.b16 %v90, %v89
  %v100 = vpack.c.b16 %v92, %v91
  %109 = vmatpush.bf16.msra.mxu0 %v100
  %110 = vmatpush.bf16.msra.mxu0 %v99
  %111 = vmatpush.bf16.msra.mxu0 %v98
  %112 = vmatpush.bf16.msra.mxu0 %v97
  %113 = vmatpush.bf16.msra.mxu0 %v96
  %114 = vmatpush.bf16.msra.mxu0 %v95
  %115 = vmatpush.bf16.msra.mxu0 %v94
  %116 = vmatpush.bf16.msra.mxu0 %v93
  %117 = vmatmul.bf16.gmra.mxu0 %v57
  %v118 = vpop.f32.mrf.mxu0
  %v119 = vadd.f32 0.0, %v118
  %v120 = vpop.f32.mrf.mxu0
  %v121 = vadd.f32 0.0, %v120
  %122 = vmatmul.bf16.gmra.mxu0 %v58
  %v123 = vpop.f32.mrf.mxu0
  %v124 = vadd.f32 0.0, %v123
  %v125 = vpop.f32.mrf.mxu0
  %v126 = vadd.f32 0.0, %v125
  %127 = vdwg.mxu0
  %v128 = vadd.f32 %v25, %v119
  %v129 = vadd.f32 %v26, %v121
  %v130 = vadd.f32 %v27, %v124
  %v131 = vadd.f32 %v28, %v126
  %132 = vst [vmem:[#allocation2] sm:$0xff] %v128
  %133 = vst [vmem:[#allocation2 + $0x8] sm:$0xff] %v129
  %134 = vst [vmem:[#allocation2 + $0x10] sm:$0xff] %v130
  %135 = vst [vmem:[#allocation2 + $0x18] sm:$0xff] %v131
  // Predicated region
  $region22: #{forward.41} parent=0 // pred_check
    %p136 = pneg %p17
  $region23: #{forward.41} parent=0 // pred_check_branch
    %138 = sbr.rel (%p136) target = $region25
  $region24: #{forward.41} parent=0 // pred_region
    %v139 = vld [vmem:[#allocation2] sm:$0xff]
    %v140 = vld [vmem:[#allocation2 + $0x8] sm:$0xff]
    %v141 = vld [vmem:[#allocation2 + $0x10] sm:$0xff]
    %v142 = vld [vmem:[#allocation2 + $0x18] sm:$0xff]
    %v143 = vld [vmem:[%s2] sm:$0x1]
    %v145 = vperm.slane %v143, 0
    %v147 = vmul.f32 %v139, %v145
    %v148 = vmul.f32 %v140, %v145
    %v149 = vmul.f32 %v141, %v145
    %v150 = vmul.f32 %v142, %v145
    %v151 = vld [vmem:[%s3] sm:$0x1]
    %v153 = vperm.slane %v151, 0
    %v155 = vadd.f32 %v147, %v153
    %v156 = vadd.f32 %v148, %v153
    %v157 = vadd.f32 %v149, %v153
    %v158 = vadd.f32 %v150, %v153
    %159 = vst [vmem:[%s4] sm:$0xff] %v155
    %160 = vst [vmem:[%s4 + $0x8] sm:$0xff] %v156
    %161 = vst [vmem:[%s4 + $0x10] sm:$0xff] %v157
    %162 = vst [vmem:[%s4 + $0x18] sm:$0xff] %v158
  $region25: #{forward.41} parent=0 // pred_fallthru
    _
  // Predicated region
  $region26: #{forward.41} parent=0 // pred_check
    _
  $region27: #{forward.41} parent=0 // pred_check_branch
    %164 = sbr.rel (0) target = $region29
  $region28: #{forward.41} parent=0 // pred_region
    _
  $region29: #{forward.41} parent=0 // pred_fallthru
    _
  // Predicated region
  $region30: #{forward.41} parent=0 // pred_check
    _
  $region31: #{forward.41} parent=0 // pred_check_branch
    %166 = sbr.rel (0) target = $region33
  $region32: #{forward.41} parent=0 // pred_region
    _
  $region33: #{forward.41} parent=0 // pred_fallthru
    _

// kernel: forward.44
$region0: #{forward.44}
  #allocation0 [shape = 'u32[]', space=smem, size = 0x4, offset = 0x4, fixed_abs, tag = 'smem constant byte address 0x4 - core index']
  #allocation1 [shape = 'u32[72,128]{1,0:T(1,128)}', space=vmem, size = 0x9000, scoped, tag = 'internal scratch']
  #allocation2 [shape = 'f32[32,128]{1,0:T(8,128)}', space=vmem, size = 0x4000, scoped, tag = 'scratch operand']
  %s0 = inlined_call_operand.vmem [shape: bf16[32,128], index: 0, kind: input, shape index: {}]
  %s1 = inlined_call_operand.vmem [shape: bf16[128,128], index: 1, kind: input, shape index: {}]
  %s2 = inlined_call_operand.vmem [shape: f32[1,128], index: 2, kind: input, shape index: {}]
  %s3 = inlined_call_operand.vmem [shape: f32[1,128], index: 3, kind: input, shape index: {}]
  %s4 = inlined_call_operand.vmem [shape: f32[32,128], index: 4, kind: input, shape index: {}]
  %s5 = inlined_call_operand.vmem [shape: f32[32,128], index: 5, kind: output, shape index: {}]
  %s6 = sld [smem:[#allocation0]]
  $region38: #{forward.44} parent=0
    _
  %s8 = ssub.s32 1, %s6
  %s9 = scalar_select 0, %s8, %s6
  // Predicated region
  $region2: #{forward.44} parent=0 // pred_check
    _
  $region3: #{forward.44} parent=0 // pred_check_branch
    %11 = sbr.rel (0) target = $region5
  $region4: #{forward.44} parent=0 // pred_region
    _
  $region5: #{forward.44} parent=0 // pred_fallthru
    _
  // Predicated region
  $region6: #{forward.44} parent=0 // pred_check
    _
  $region7: #{forward.44} parent=0 // pred_check_branch
    %13 = sbr.rel (0) target = $region9
  $region8: #{forward.44} parent=0 // pred_region
    _
  $region9: #{forward.44} parent=0 // pred_fallthru
    _
  // Predicated region
  $region10: #{forward.44} parent=0 // pred_check
    _
  $region11: #{forward.44} parent=0 // pred_check_branch
    %15 = sbr.rel (0) target = $region13
  $region12: #{forward.44} parent=0 // pred_region
    _
  $region13: #{forward.44} parent=0 // pred_fallthru
    _
  // Predicated region
  $region14: #{forward.44} parent=0 // pred_check
    _
  $region15: #{forward.44} parent=0 // pred_check_branch
    %17 = sbr.rel (0) target = $region17
  $region16: #{forward.44} parent=0 // pred_region
    _
  $region17: #{forward.44} parent=0 // pred_fallthru
    _
  // Predicated region
  $region18: #{forward.44} parent=0 // pred_check
    _
  $region19: #{forward.44} parent=0 // pred_check_branch
    %19 = sbr.rel (0) target = $region21
  $region20: #{forward.44} parent=0 // pred_region
    _
  $region21: #{forward.44} parent=0 // pred_fallthru
    _
  %p20 = scmp.eq.s32.totalorder 0, 0
  // Predicated region
  $region22: #{forward.44} parent=0 // pred_check
    %p21 = pneg %p20
  $region23: #{forward.44} parent=0 // pred_check_branch
    %23 = sbr.rel (%p21) target = $region25
  $region24: #{forward.44} parent=0 // pred_region
    %24 = vst [vmem:[#allocation2] sm:$0xff] 0.0
    %25 = vst [vmem:[#allocation2 + $0x8] sm:$0xff] 0.0
    %26 = vst [vmem:[#allocation2 + $0x10] sm:$0xff] 0.0
    %27 = vst [vmem:[#allocation2 + $0x18] sm:$0xff] 0.0
  $region25: #{forward.44} parent=0 // pred_fallthru
    _
  %v28 = vld [vmem:[#allocation2] sm:$0xff]
  %v29 = vld [vmem:[#allocation2 + $0x8] sm:$0xff]
  %v30 = vld [vmem:[#allocation2 + $0x10] sm:$0xff]
  %v31 = vld [vmem:[#allocation2 + $0x18] sm:$0xff]
  %v32 = vld [vmem:[%s0] sm:$0xf]
  %v33 = vld [vmem:[%s0 + $0x4] sm:$0xf]
  %v34 = vld [vmem:[%s0 + $0x8] sm:$0xf]
  %v35 = vld [vmem:[%s0 + $0xc] sm:$0xf]
  %v36 = vld [vmem:[%s1] sm:$0xf]
  %v37 = vld [vmem:[%s1 + $0x4] sm:$0xf]
  %v38 = vld [vmem:[%s1 + $0x8] sm:$0xf]
  %v39 = vld [vmem:[%s1 + $0xc] sm:$0xf]
  %v40 = vld [vmem:[%s1 + $0x10] sm:$0xf]
  %v41 = vld [vmem:[%s1 + $0x14] sm:$0xf]
  %v42 = vld [vmem:[%s1 + $0x18] sm:$0xf]
  %v43 = vld [vmem:[%s1 + $0x1c] sm:$0xf]
  %v44 = vld [vmem:[%s1 + $0x20] sm:$0xf]
  %v45 = vld [vmem:[%s1 + $0x24] sm:$0xf]
  %v46 = vld [vmem:[%s1 + $0x28] sm:$0xf]
  %v47 = vld [vmem:[%s1 + $0x2c] sm:$0xf]
  %v48 = vld [vmem:[%s1 + $0x30] sm:$0xf]
  %v49 = vld [vmem:[%s1 + $0x34] sm:$0xf]
  %v50 = vld [vmem:[%s1 + $0x38] sm:$0xf]
  %v51 = vld [vmem:[%s1 + $0x3c] sm:$0xf]
  %v56 = vunpack.c.l.b16 %v32
  %v57 = vunpack.c.l.b16 %v33
  %v58 = vunpack.c.l.b16 %v34
  %v59 = vunpack.c.l.b16 %v35
  %v60 = vpack.c.b16 %v57, %v56
  %v61 = vpack.c.b16 %v59, %v58
  %v80 = vunpack.c.l.b16 %v36
  %v81 = vunpack.c.l.b16 %v37
  %v82 = vunpack.c.l.b16 %v38
  %v83 = vunpack.c.l.b16 %v39
  %v84 = vunpack.c.l.b16 %v40
  %v85 = vunpack.c.l.b16 %v41
  %v86 = vunpack.c.l.b16 %v42
  %v87 = vunpack.c.l.b16 %v43
  %v88 = vunpack.c.l.b16 %v44
  %v89 = vunpack.c.l.b16 %v45
  %v90 = vunpack.c.l.b16 %v46
  %v91 = vunpack.c.l.b16 %v47
  %v92 = vunpack.c.l.b16 %v48
  %v93 = vunpack.c.l.b16 %v49
  %v94 = vunpack.c.l.b16 %v50
  %v95 = vunpack.c.l.b16 %v51
  %v96 = vpack.c.b16 %v81, %v80
  %v97 = vpack.c.b16 %v83, %v82
  %v98 = vpack.c.b16 %v85, %v84
  %v99 = vpack.c.b16 %v87, %v86
  %v100 = vpack.c.b16 %v89, %v88
  %v101 = vpack.c.b16 %v91, %v90
  %v102 = vpack.c.b16 %v93, %v92
  %v103 = vpack.c.b16 %v95, %v94
  %112 = vmatpush.bf16.msra.mxu0 %v103
  %113 = vmatpush.bf16.msra.mxu0 %v102
  %114 = vmatpush.bf16.msra.mxu0 %v101
  %115 = vmatpush.bf16.msra.mxu0 %v100
  %116 = vmatpush.bf16.msra.mxu0 %v99
  %117 = vmatpush.bf16.msra.mxu0 %v98
  %118 = vmatpush.bf16.msra.mxu0 %v97
  %119 = vmatpush.bf16.msra.mxu0 %v96
  %120 = vmatmul.bf16.gmra.mxu0 %v60
  %v121 = vpop.f32.mrf.mxu0
  %v122 = vadd.f32 0.0, %v121
  %v123 = vpop.f32.mrf.mxu0
  %v124 = vadd.f32 0.0, %v123
  %125 = vmatmul.bf16.gmra.mxu0 %v61
  %v126 = vpop.f32.mrf.mxu0
  %v127 = vadd.f32 0.0, %v126
  %v128 = vpop.f32.mrf.mxu0
  %v129 = vadd.f32 0.0, %v128
  %130 = vdwg.mxu0
  %v131 = vadd.f32 %v28, %v122
  %v132 = vadd.f32 %v29, %v124
  %v133 = vadd.f32 %v30, %v127
  %v134 = vadd.f32 %v31, %v129
  %135 = vst [vmem:[#allocation2] sm:$0xff] %v131
  %136 = vst [vmem:[#allocation2 + $0x8] sm:$0xff] %v132
  %137 = vst [vmem:[#allocation2 + $0x10] sm:$0xff] %v133
  %138 = vst [vmem:[#allocation2 + $0x18] sm:$0xff] %v134
  // Predicated region
  $region26: #{forward.44} parent=0 // pred_check
    %p139 = pneg %p20
  $region27: #{forward.44} parent=0 // pred_check_branch
    %141 = sbr.rel (%p139) target = $region29
  $region28: #{forward.44} parent=0 // pred_region
    %v142 = vld [vmem:[#allocation2] sm:$0xff]
    %v143 = vld [vmem:[#allocation2 + $0x8] sm:$0xff]
    %v144 = vld [vmem:[#allocation2 + $0x10] sm:$0xff]
    %v145 = vld [vmem:[#allocation2 + $0x18] sm:$0xff]
    %v146 = vld [vmem:[%s2] sm:$0x1]
    %v148 = vperm.slane %v146, 0
    %v150 = vmul.f32 %v142, %v148
    %v151 = vmul.f32 %v143, %v148
    %v152 = vmul.f32 %v144, %v148
    %v153 = vmul.f32 %v145, %v148
    %v154 = vld [vmem:[%s3] sm:$0x1]
    %v156 = vperm.slane %v154, 0
    %v158 = vadd.f32 %v150, %v156
    %v159 = vadd.f32 %v151, %v156
    %v160 = vadd.f32 %v152, %v156
    %v161 = vadd.f32 %v153, %v156
    %v162 = vld [vmem:[%s4] sm:$0xff]
    %v163 = vld [vmem:[%s4 + $0x8] sm:$0xff]
    %v164 = vld [vmem:[%s4 + $0x10] sm:$0xff]
    %v165 = vld [vmem:[%s4 + $0x18] sm:$0xff]
    %v166 = vadd.f32 %v158, %v162
    %v167 = vadd.f32 %v159, %v163
    %v168 = vadd.f32 %v160, %v164
    %v169 = vadd.f32 %v161, %v165
    %v170 = vmax.f32 %v166, 0.0
    %v171 = vmax.f32 %v167, 0.0
    %v172 = vmax.f32 %v168, 0.0
    %v173 = vmax.f32 %v169, 0.0
    %174 = vst [vmem:[%s5] sm:$0xff] %v170
    %175 = vst [vmem:[%s5 + $0x8] sm:$0xff] %v171
    %176 = vst [vmem:[%s5 + $0x10] sm:$0xff] %v172
    %177 = vst [vmem:[%s5 + $0x18] sm:$0xff] %v173
  $region29: #{forward.44} parent=0 // pred_fallthru
    _
  // Predicated region
  $region30: #{forward.44} parent=0 // pred_check
    _
  $region31: #{forward.44} parent=0 // pred_check_branch
    %179 = sbr.rel (0) target = $region33
  $region32: #{forward.44} parent=0 // pred_region
    _
  $region33: #{forward.44} parent=0 // pred_fallthru
    _
  // Predicated region
  $region34: #{forward.44} parent=0 // pred_check
    _
  $region35: #{forward.44} parent=0 // pred_check_branch
    %181 = sbr.rel (0) target = $region37
  $region36: #{forward.44} parent=0 // pred_region
    _
  $region37: #{forward.44} parent=0 // pred_fallthru
    _

// kernel: forward.45
$region0: #{forward.45}
  #allocation0 [shape = 'u32[]', space=smem, size = 0x4, offset = 0x4, fixed_abs, tag = 'smem constant byte address 0x4 - core index']
  #allocation1 [shape = 'u32[72,128]{1,0:T(1,128)}', space=vmem, size = 0x9000, scoped, tag = 'internal scratch']
  #allocation2 [shape = 'f32[32,128]{1,0:T(8,128)}', space=vmem, size = 0x4000, scoped, tag = 'scratch operand']
  %s0 = inlined_call_operand.vmem [shape: bf16[32,128], index: 0, kind: input, shape index: {}]
  %s1 = inlined_call_operand.vmem [shape: bf16[128,128], index: 1, kind: input, shape index: {}]
  %s2 = inlined_call_operand.vmem [shape: f32[1,128], index: 2, kind: input, shape index: {}]
  %s3 = inlined_call_operand.vmem [shape: f32[1,128], index: 3, kind: input, shape index: {}]
  %s4 = inlined_call_operand.vmem [shape: f32[32,128], index: 4, kind: output, shape index: {}]
  %s5 = sld [smem:[#allocation0]]
  $region34: #{forward.45} parent=0
    _
  %s7 = ssub.s32 1, %s5
  %s8 = scalar_select 0, %s7, %s5
  // Predicated region
  $region2: #{forward.45} parent=0 // pred_check
    _
  $region3: #{forward.45} parent=0 // pred_check_branch
    %10 = sbr.rel (0) target = $region5
  $region4: #{forward.45} parent=0 // pred_region
    _
  $region5: #{forward.45} parent=0 // pred_fallthru
    _
  // Predicated region
  $region6: #{forward.45} parent=0 // pred_check
    _
  $region7: #{forward.45} parent=0 // pred_check_branch
    %12 = sbr.rel (0) target = $region9
  $region8: #{forward.45} parent=0 // pred_region
    _
  $region9: #{forward.45} parent=0 // pred_fallthru
    _
  // Predicated region
  $region10: #{forward.45} parent=0 // pred_check
    _
  $region11: #{forward.45} parent=0 // pred_check_branch
    %14 = sbr.rel (0) target = $region13
  $region12: #{forward.45} parent=0 // pred_region
    _
  $region13: #{forward.45} parent=0 // pred_fallthru
    _
  // Predicated region
  $region14: #{forward.45} parent=0 // pred_check
    _
  $region15: #{forward.45} parent=0 // pred_check_branch
    %16 = sbr.rel (0) target = $region17
  $region16: #{forward.45} parent=0 // pred_region
    _
  $region17: #{forward.45} parent=0 // pred_fallthru
    _
  %p17 = scmp.eq.s32.totalorder 0, 0
  // Predicated region
  $region18: #{forward.45} parent=0 // pred_check
    %p18 = pneg %p17
  $region19: #{forward.45} parent=0 // pred_check_branch
    %20 = sbr.rel (%p18) target = $region21
  $region20: #{forward.45} parent=0 // pred_region
    %21 = vst [vmem:[#allocation2] sm:$0xff] 0.0
    %22 = vst [vmem:[#allocation2 + $0x8] sm:$0xff] 0.0
    %23 = vst [vmem:[#allocation2 + $0x10] sm:$0xff] 0.0
    %24 = vst [vmem:[#allocation2 + $0x18] sm:$0xff] 0.0
  $region21: #{forward.45} parent=0 // pred_fallthru
    _
  %v25 = vld [vmem:[#allocation2] sm:$0xff]
  %v26 = vld [vmem:[#allocation2 + $0x8] sm:$0xff]
  %v27 = vld [vmem:[#allocation2 + $0x10] sm:$0xff]
  %v28 = vld [vmem:[#allocation2 + $0x18] sm:$0xff]
  %v29 = vld [vmem:[%s0] sm:$0xf]
  %v30 = vld [vmem:[%s0 + $0x4] sm:$0xf]
  %v31 = vld [vmem:[%s0 + $0x8] sm:$0xf]
  %v32 = vld [vmem:[%s0 + $0xc] sm:$0xf]
  %v33 = vld [vmem:[%s1] sm:$0xf]
  %v34 = vld [vmem:[%s1 + $0x4] sm:$0xf]
  %v35 = vld [vmem:[%s1 + $0x8] sm:$0xf]
  %v36 = vld [vmem:[%s1 + $0xc] sm:$0xf]
  %v37 = vld [vmem:[%s1 + $0x10] sm:$0xf]
  %v38 = vld [vmem:[%s1 + $0x14] sm:$0xf]
  %v39 = vld [vmem:[%s1 + $0x18] sm:$0xf]
  %v40 = vld [vmem:[%s1 + $0x1c] sm:$0xf]
  %v41 = vld [vmem:[%s1 + $0x20] sm:$0xf]
  %v42 = vld [vmem:[%s1 + $0x24] sm:$0xf]
  %v43 = vld [vmem:[%s1 + $0x28] sm:$0xf]
  %v44 = vld [vmem:[%s1 + $0x2c] sm:$0xf]
  %v45 = vld [vmem:[%s1 + $0x30] sm:$0xf]
  %v46 = vld [vmem:[%s1 + $0x34] sm:$0xf]
  %v47 = vld [vmem:[%s1 + $0x38] sm:$0xf]
  %v48 = vld [vmem:[%s1 + $0x3c] sm:$0xf]
  %v53 = vunpack.c.l.b16 %v29
  %v54 = vunpack.c.l.b16 %v30
  %v55 = vunpack.c.l.b16 %v31
  %v56 = vunpack.c.l.b16 %v32
  %v57 = vpack.c.b16 %v54, %v53
  %v58 = vpack.c.b16 %v56, %v55
  %v77 = vunpack.c.l.b16 %v33
  %v78 = vunpack.c.l.b16 %v34
  %v79 = vunpack.c.l.b16 %v35
  %v80 = vunpack.c.l.b16 %v36
  %v81 = vunpack.c.l.b16 %v37
  %v82 = vunpack.c.l.b16 %v38
  %v83 = vunpack.c.l.b16 %v39
  %v84 = vunpack.c.l.b16 %v40
  %v85 = vunpack.c.l.b16 %v41
  %v86 = vunpack.c.l.b16 %v42
  %v87 = vunpack.c.l.b16 %v43
  %v88 = vunpack.c.l.b16 %v44
  %v89 = vunpack.c.l.b16 %v45
  %v90 = vunpack.c.l.b16 %v46
  %v91 = vunpack.c.l.b16 %v47
  %v92 = vunpack.c.l.b16 %v48
  %v93 = vpack.c.b16 %v78, %v77
  %v94 = vpack.c.b16 %v80, %v79
  %v95 = vpack.c.b16 %v82, %v81
  %v96 = vpack.c.b16 %v84, %v83
  %v97 = vpack.c.b16 %v86, %v85
  %v98 = vpack.c.b16 %v88, %v87
  %v99 = vpack.c.b16 %v90, %v89
  %v100 = vpack.c.b16 %v92, %v91
  %109 = vmatpush.bf16.msra.mxu0 %v100
  %110 = vmatpush.bf16.msra.mxu0 %v99
  %111 = vmatpush.bf16.msra.mxu0 %v98
  %112 = vmatpush.bf16.msra.mxu0 %v97
  %113 = vmatpush.bf16.msra.mxu0 %v96
  %114 = vmatpush.bf16.msra.mxu0 %v95
  %115 = vmatpush.bf16.msra.mxu0 %v94
  %116 = vmatpush.bf16.msra.mxu0 %v93
  %117 = vmatmul.bf16.gmra.mxu0 %v57
  %v118 = vpop.f32.mrf.mxu0
  %v119 = vadd.f32 0.0, %v118
  %v120 = vpop.f32.mrf.mxu0
  %v121 = vadd.f32 0.0, %v120
  %122 = vmatmul.bf16.gmra.mxu0 %v58
  %v123 = vpop.f32.mrf.mxu0
  %v124 = vadd.f32 0.0, %v123
  %v125 = vpop.f32.mrf.mxu0
  %v126 = vadd.f32 0.0, %v125
  %127 = vdwg.mxu0
  %v128 = vadd.f32 %v25, %v119
  %v129 = vadd.f32 %v26, %v121
  %v130 = vadd.f32 %v27, %v124
  %v131 = vadd.f32 %v28, %v126
  %132 = vst [vmem:[#allocation2] sm:$0xff] %v128
  %133 = vst [vmem:[#allocation2 + $0x8] sm:$0xff] %v129
  %134 = vst [vmem:[#allocation2 + $0x10] sm:$0xff] %v130
  %135 = vst [vmem:[#allocation2 + $0x18] sm:$0xff] %v131
  // Predicated region
  $region22: #{forward.45} parent=0 // pred_check
    %p136 = pneg %p17
  $region23: #{forward.45} parent=0 // pred_check_branch
    %138 = sbr.rel (%p136) target = $region25
  $region24: #{forward.45} parent=0 // pred_region
    %v139 = vld [vmem:[#allocation2] sm:$0xff]
    %v140 = vld [vmem:[#allocation2 + $0x8] sm:$0xff]
    %v141 = vld [vmem:[#allocation2 + $0x10] sm:$0xff]
    %v142 = vld [vmem:[#allocation2 + $0x18] sm:$0xff]
    %v143 = vld [vmem:[%s2] sm:$0x1]
    %v145 = vperm.slane %v143, 0
    %v147 = vmul.f32 %v139, %v145
    %v148 = vmul.f32 %v140, %v145
    %v149 = vmul.f32 %v141, %v145
    %v150 = vmul.f32 %v142, %v145
    %v151 = vld [vmem:[%s3] sm:$0x1]
    %v153 = vperm.slane %v151, 0
    %v155 = vadd.f32 %v147, %v153
    %v156 = vadd.f32 %v148, %v153
    %v157 = vadd.f32 %v149, %v153
    %v158 = vadd.f32 %v150, %v153
    %v159 = vmax.f32 %v155, 0.0
    %v160 = vmax.f32 %v156, 0.0
    %v161 = vmax.f32 %v157, 0.0
    %v162 = vmax.f32 %v158, 0.0
    %163 = vst [vmem:[%s4] sm:$0xff] %v159
    %164 = vst [vmem:[%s4 + $0x8] sm:$0xff] %v160
    %165 = vst [vmem:[%s4 + $0x10] sm:$0xff] %v161
    %166 = vst [vmem:[%s4 + $0x18] sm:$0xff] %v162
  $region25: #{forward.45} parent=0 // pred_fallthru
    _
  // Predicated region
  $region26: #{forward.45} parent=0 // pred_check
    _
  $region27: #{forward.45} parent=0 // pred_check_branch
    %168 = sbr.rel (0) target = $region29
  $region28: #{forward.45} parent=0 // pred_region
    _
  $region29: #{forward.45} parent=0 // pred_fallthru
    _
  // Predicated region
  $region30: #{forward.45} parent=0 // pred_check
    _
  $region31: #{forward.45} parent=0 // pred_check_branch
    %170 = sbr.rel (0) target = $region33
  $region32: #{forward.45} parent=0 // pred_region
    _
  $region33: #{forward.45} parent=0 // pred_fallthru
    _

// kernel: forward.50
$region0: #{forward.50}
  #allocation0 [shape = 'u32[]', space=smem, size = 0x4, offset = 0x4, fixed_abs, tag = 'smem constant byte address 0x4 - core index']
  #allocation1 [shape = 'u32[72,128]{1,0:T(1,128)}', space=vmem, size = 0x9000, scoped, tag = 'internal scratch']
  #allocation2 [shape = 'f32[8,128]{1,0:T(8,128)}', space=vmem, size = 0x1000, scoped, tag = 'scratch operand']
  %s0 = inlined_call_operand.vmem [shape: bf16[8,384], index: 0, kind: input, shape index: {}]
  %s1 = inlined_call_operand.vmem [shape: bf16[384,128], index: 1, kind: input, shape index: {}]
  %s2 = inlined_call_operand.vmem [shape: f32[1,128], index: 2, kind: input, shape index: {}]
  %s3 = inlined_call_operand.vmem [shape: f32[1,128], index: 3, kind: input, shape index: {}]
  %s4 = inlined_call_operand.vmem [shape: f32[8,128], index: 4, kind: output, shape index: {}]
  %s5 = sld [smem:[#allocation0]]
  $region34: #{forward.50} parent=0
    _
  %s7 = ssub.s32 1, %s5
  %s8 = scalar_select 0, %s7, %s5
  // Predicated region
  $region2: #{forward.50} parent=0 // pred_check
    _
  $region3: #{forward.50} parent=0 // pred_check_branch
    %10 = sbr.rel (0) target = $region5
  $region4: #{forward.50} parent=0 // pred_region
    _
  $region5: #{forward.50} parent=0 // pred_fallthru
    _
  // Predicated region
  $region6: #{forward.50} parent=0 // pred_check
    _
  $region7: #{forward.50} parent=0 // pred_check_branch
    %12 = sbr.rel (0) target = $region9
  $region8: #{forward.50} parent=0 // pred_region
    _
  $region9: #{forward.50} parent=0 // pred_fallthru
    _
  // Predicated region
  $region10: #{forward.50} parent=0 // pred_check
    _
  $region11: #{forward.50} parent=0 // pred_check_branch
    %14 = sbr.rel (0) target = $region13
  $region12: #{forward.50} parent=0 // pred_region
    _
  $region13: #{forward.50} parent=0 // pred_fallthru
    _
  // Predicated region
  $region14: #{forward.50} parent=0 // pred_check
    _
  $region15: #{forward.50} parent=0 // pred_check_branch
    %16 = sbr.rel (0) target = $region17
  $region16: #{forward.50} parent=0 // pred_region
    _
  $region17: #{forward.50} parent=0 // pred_fallthru
    _
  %p17 = scmp.eq.s32.totalorder 0, 0
  // Predicated region
  $region18: #{forward.50} parent=0 // pred_check
    %p18 = pneg %p17
  $region19: #{forward.50} parent=0 // pred_check_branch
    %20 = sbr.rel (%p18) target = $region21
  $region20: #{forward.50} parent=0 // pred_region
    %21 = vst [vmem:[#allocation2] sm:$0xff] 0.0
  $region21: #{forward.50} parent=0 // pred_fallthru
    _
  %v22 = vld [vmem:[#allocation2] sm:$0xff]
  %v23 = vld [vmem:[%s0] sm:$0xff]
  %v24 = vld [vmem:[%s0 + $0x8] sm:$0xf]
  %v25 = vld [vmem:[%s1] sm:$0xf]
  %v26 = vld [vmem:[%s1 + $0x4] sm:$0xf]
  %v27 = vld [vmem:[%s1 + $0x8] sm:$0xf]
  %v28 = vld [vmem:[%s1 + $0xc] sm:$0xf]
  %v29 = vld [vmem:[%s1 + $0x10] sm:$0xf]
  %v30 = vld [vmem:[%s1 + $0x14] sm:$0xf]
  %v31 = vld [vmem:[%s1 + $0x18] sm:$0xf]
  %v32 = vld [vmem:[%s1 + $0x1c] sm:$0xf]
  %v33 = vld [vmem:[%s1 + $0x20] sm:$0xf]
  %v34 = vld [vmem:[%s1 + $0x24] sm:$0xf]
  %v35 = vld [vmem:[%s1 + $0x28] sm:$0xf]
  %v36 = vld [vmem:[%s1 + $0x2c] sm:$0xf]
  %v37 = vld [vmem:[%s1 + $0x30] sm:$0xf]
  %v38 = vld [vmem:[%s1 + $0x34] sm:$0xf]
  %v39 = vld [vmem:[%s1 + $0x38] sm:$0xf]
  %v40 = vld [vmem:[%s1 + $0x3c] sm:$0xf]
  %v41 = vld [vmem:[%s1 + $0x40] sm:$0xf]
  %v42 = vld [vmem:[%s1 + $0x44] sm:$0xf]
  %v43 = vld [vmem:[%s1 + $0x48] sm:$0xf]
  %v44 = vld [vmem:[%s1 + $0x4c] sm:$0xf]
  %v45 = vld [vmem:[%s1 + $0x50] sm:$0xf]
  %v46 = vld [vmem:[%s1 + $0x54] sm:$0xf]
  %v47 = vld [vmem:[%s1 + $0x58] sm:$0xf]
  %v48 = vld [vmem:[%s1 + $0x5c] sm:$0xf]
  %v49 = vld [vmem:[%s1 + $0x60] sm:$0xf]
  %v50 = vld [vmem:[%s1 + $0x64] sm:$0xf]
  %v51 = vld [vmem:[%s1 + $0x68] sm:$0xf]
  %v52 = vld [vmem:[%s1 + $0x6c] sm:$0xf]
  %v53 = vld [vmem:[%s1 + $0x70] sm:$0xf]
  %v54 = vld [vmem:[%s1 + $0x74] sm:$0xf]
  %v55 = vld [vmem:[%s1 + $0x78] sm:$0xf]
  %v56 = vld [vmem:[%s1 + $0x7c] sm:$0xf]
  %v57 = vld [vmem:[%s1 + $0x80] sm:$0xf]
  %v58 = vld [vmem:[%s1 + $0x84] sm:$0xf]
  %v59 = vld [vmem:[%s1 + $0x88] sm:$0xf]
  %v60 = vld [vmem:[%s1 + $0x8c] sm:$0xf]
  %v61 = vld [vmem:[%s1 + $0x90] sm:$0xf]
  %v62 = vld [vmem:[%s1 + $0x94] sm:$0xf]
  %v63 = vld [vmem:[%s1 + $0x98] sm:$0xf]
  %v64 = vld [vmem:[%s1 + $0x9c] sm:$0xf]
  %v65 = vld [vmem:[%s1 + $0xa0] sm:$0xf]
  %v66 = vld [vmem:[%s1 + $0xa4] sm:$0xf]
  %v67 = vld [vmem:[%s1 + $0xa8] sm:$0xf]
  %v68 = vld [vmem:[%s1 + $0xac] sm:$0xf]
  %v69 = vld [vmem:[%s1 + $0xb0] sm:$0xf]
  %v70 = vld [vmem:[%s1 + $0xb4] sm:$0xf]
  %v71 = vld [vmem:[%s1 + $0xb8] sm:$0xf]
  %v72 = vld [vmem:[%s1 + $0xbc] sm:$0xf]
  %v75 = vunpack.c.l.b16 %v23
  %v76 = vunpack.c.h.b16 %v23
  %v77 = vunpack.c.l.b16 %v24
  %v78 = vpack.c.b16 %v75, %v75
  %v79 = vpack.c.b16 %v76, %v76
  %v80 = vpack.c.b16 %v77, %v77
  %v132 = vunpack.c.l.b16 %v25
  %v133 = vunpack.c.l.b16 %v26
  %v134 = vunpack.c.l.b16 %v27
  %v135 = vunpack.c.l.b16 %v28
  %v136 = vunpack.c.l.b16 %v29
  %v137 = vunpack.c.l.b16 %v30
  %v138 = vunpack.c.l.b16 %v31
  %v139 = vunpack.c.l.b16 %v32
  %v140 = vunpack.c.l.b16 %v33
  %v141 = vunpack.c.l.b16 %v34
  %v142 = vunpack.c.l.b16 %v35
  %v143 = vunpack.c.l.b16 %v36
  %v144 = vunpack.c.l.b16 %v37
  %v145 = vunpack.c.l.b16 %v38
  %v146 = vunpack.c.l.b16 %v39
  %v147 = vunpack.c.l.b16 %v40
  %v148 = vunpack.c.l.b16 %v41
  %v149 = vunpack.c.l.b16 %v42
  %v150 = vunpack.c.l.b16 %v43
  %v151 = vunpack.c.l.b16 %v44
  %v152 = vunpack.c.l.b16 %v45
  %v153 = vunpack.c.l.b16 %v46
  %v154 = vunpack.c.l.b16 %v47
  %v155 = vunpack.c.l.b16 %v48
  %v156 = vunpack.c.l.b16 %v49
  %v157 = vunpack.c.l.b16 %v50
  %v158 = vunpack.c.l.b16 %v51
  %v159 = vunpack.c.l.b16 %v52
  %v160 = vunpack.c.l.b16 %v53
  %v161 = vunpack.c.l.b16 %v54
  %v162 = vunpack.c.l.b16 %v55
  %v163 = vunpack.c.l.b16 %v56
  %v164 = vunpack.c.l.b16 %v57
  %v165 = vunpack.c.l.b16 %v58
  %v166 = vunpack.c.l.b16 %v59
  %v167 = vunpack.c.l.b16 %v60
  %v168 = vunpack.c.l.b16 %v61
  %v169 = vunpack.c.l.b16 %v62
  %v170 = vunpack.c.l.b16 %v63
  %v171 = vunpack.c.l.b16 %v64
  %v172 = vunpack.c.l.b16 %v65
  %v173 = vunpack.c.l.b16 %v66
  %v174 = vunpack.c.l.b16 %v67
  %v175 = vunpack.c.l.b16 %v68
  %v176 = vunpack.c.l.b16 %v69
  %v177 = vunpack.c.l.b16 %v70
  %v178 = vunpack.c.l.b16 %v71
  %v179 = vunpack.c.l.b16 %v72
  %v180 = vpack.c.b16 %v133, %v132
  %v181 = vpack.c.b16 %v135, %v134
  %v182 = vpack.c.b16 %v137, %v136
  %v183 = vpack.c.b16 %v139, %v138
  %v184 = vpack.c.b16 %v141, %v140
  %v185 = vpack.c.b16 %v143, %v142
  %v186 = vpack.c.b16 %v145, %v144
  %v187 = vpack.c.b16 %v147, %v146
  %v188 = vpack.c.b16 %v149, %v148
  %v189 = vpack.c.b16 %v151, %v150
  %v190 = vpack.c.b16 %v153, %v152
  %v191 = vpack.c.b16 %v155, %v154
  %v192 = vpack.c.b16 %v157, %v156
  %v193 = vpack.c.b16 %v159, %v158
  %v194 = vpack.c.b16 %v161, %v160
  %v195 = vpack.c.b16 %v163, %v162
  %v196 = vpack.c.b16 %v165, %v164
  %v197 = vpack.c.b16 %v167, %v166
  %v198 = vpack.c.b16 %v169, %v168
  %v199 = vpack.c.b16 %v171, %v170
  %v200 = vpack.c.b16 %v173, %v172
  %v201 = vpack.c.b16 %v175, %v174
  %v202 = vpack.c.b16 %v177, %v176
  %v203 = vpack.c.b16 %v179, %v178
  %228 = vmatpush.bf16.msra.mxu0 %v187
  %229 = vmatpush.bf16.msra.mxu0 %v186
  %230 = vmatpush.bf16.msra.mxu0 %v185
  %231 = vmatpush.bf16.msra.mxu0 %v184
  %232 = vmatpush.bf16.msra.mxu0 %v183
  %233 = vmatpush.bf16.msra.mxu0 %v182
  %234 = vmatpush.bf16.msra.mxu0 %v181
  %235 = vmatpush.bf16.msra.mxu0 %v180
  %236 = vmatmul.bf16.gmra.mxu0 %v78
  %v237 = vpop.f32.mrf.mxu0
  %v238 = vadd.f32 0.0, %v237
  %v239 = vpop.f32.mrf.mxu0
  %240 = vdwg.mxu0
  %241 = vmatpush.bf16.msra.mxu0 %v195
  %242 = vmatpush.bf16.msra.mxu0 %v194
  %243 = vmatpush.bf16.msra.mxu0 %v193
  %244 = vmatpush.bf16.msra.mxu0 %v192
  %245 = vmatpush.bf16.msra.mxu0 %v191
  %246 = vmatpush.bf16.msra.mxu0 %v190
  %247 = vmatpush.bf16.msra.mxu0 %v189
  %248 = vmatpush.bf16.msra.mxu0 %v188
  %249 = vmatmul.bf16.gmra.mxu0 %v79
  %v250 = vpop.f32.mrf.mxu0
  %v251 = vadd.f32 %v238, %v250
  %v252 = vpop.f32.mrf.mxu0
  %253 = vdwg.mxu0
  %254 = vmatpush.bf16.msra.mxu0 %v203
  %255 = vmatpush.bf16.msra.mxu0 %v202
  %256 = vmatpush.bf16.msra.mxu0 %v201
  %257 = vmatpush.bf16.msra.mxu0 %v200
  %258 = vmatpush.bf16.msra.mxu0 %v199
  %259 = vmatpush.bf16.msra.mxu0 %v198
  %260 = vmatpush.bf16.msra.mxu0 %v197
  %261 = vmatpush.bf16.msra.mxu0 %v196
  %262 = vmatmul.bf16.gmra.mxu0 %v80
  %v263 = vpop.f32.mrf.mxu0
  %v264 = vadd.f32 %v251, %v263
  %v265 = vpop.f32.mrf.mxu0
  %266 = vdwg.mxu0
  %v267 = vadd.f32 %v22, %v264
  %268 = vst [vmem:[#allocation2] sm:$0xff] %v267
  // Predicated region
  $region22: #{forward.50} parent=0 // pred_check
    %p269 = pneg %p17
  $region23: #{forward.50} parent=0 // pred_check_branch
    %271 = sbr.rel (%p269) target = $region25
  $region24: #{forward.50} parent=0 // pred_region
    %v272 = vld [vmem:[#allocation2] sm:$0xff]
    %v273 = vld [vmem:[%s2] sm:$0x1]
    %v275 = vperm.slane %v273, 0
    %v277 = vmul.f32 %v272, %v275
    %v278 = vld [vmem:[%s3] sm:$0x1]
    %v280 = vperm.slane %v278, 0
    %v282 = vadd.f32 %v277, %v280
    %v283 = vmax.f32 %v282, 0.0
    %284 = vst [vmem:[%s4] sm:$0xff] %v283
  $region25: #{forward.50} parent=0 // pred_fallthru
    _
  // Predicated region
  $region26: #{forward.50} parent=0 // pred_check
    _
  $region27: #{forward.50} parent=0 // pred_check_branch
    %286 = sbr.rel (0) target = $region29
  $region28: #{forward.50} parent=0 // pred_region
    _
  $region29: #{forward.50} parent=0 // pred_fallthru
    _
  // Predicated region
  $region30: #{forward.50} parent=0 // pred_check
    _
  $region31: #{forward.50} parent=0 // pred_check_branch
    %288 = sbr.rel (0) target = $region33
  $region32: #{forward.50} parent=0 // pred_region
    _
  $region33: #{forward.50} parent=0 // pred_fallthru
    _

// kernel: forward.48
$region0: #{forward.48}
  #allocation0 [shape = 'u32[]', space=smem, size = 0x4, offset = 0x4, fixed_abs, tag = 'smem constant byte address 0x4 - core index']
  #allocation1 [shape = 'u32[72,128]{1,0:T(1,128)}', space=vmem, size = 0x9000, scoped, tag = 'internal scratch']
  #allocation2 [shape = 'f32[8,128]{1,0:T(8,128)}', space=vmem, size = 0x1000, scoped, tag = 'scratch operand']
  %s0 = inlined_call_operand.vmem [shape: bf16[8,128], index: 0, kind: input, shape index: {}]
  %s1 = inlined_call_operand.vmem [shape: bf16[128,128], index: 1, kind: input, shape index: {}]
  %s2 = inlined_call_operand.vmem [shape: f32[1,128], index: 2, kind: input, shape index: {}]
  %s3 = inlined_call_operand.vmem [shape: f32[1,128], index: 3, kind: input, shape index: {}]
  %s4 = inlined_call_operand.vmem [shape: f32[8,128], index: 4, kind: output, shape index: {}]
  %s5 = sld [smem:[#allocation0]]
  $region34: #{forward.48} parent=0
    _
  %s7 = ssub.s32 1, %s5
  %s8 = scalar_select 0, %s7, %s5
  // Predicated region
  $region2: #{forward.48} parent=0 // pred_check
    _
  $region3: #{forward.48} parent=0 // pred_check_branch
    %10 = sbr.rel (0) target = $region5
  $region4: #{forward.48} parent=0 // pred_region
    _
  $region5: #{forward.48} parent=0 // pred_fallthru
    _
  // Predicated region
  $region6: #{forward.48} parent=0 // pred_check
    _
  $region7: #{forward.48} parent=0 // pred_check_branch
    %12 = sbr.rel (0) target = $region9
  $region8: #{forward.48} parent=0 // pred_region
    _
  $region9: #{forward.48} parent=0 // pred_fallthru
    _
  // Predicated region
  $region10: #{forward.48} parent=0 // pred_check
    _
  $region11: #{forward.48} parent=0 // pred_check_branch
    %14 = sbr.rel (0) target = $region13
  $region12: #{forward.48} parent=0 // pred_region
    _
  $region13: #{forward.48} parent=0 // pred_fallthru
    _
  // Predicated region
  $region14: #{forward.48} parent=0 // pred_check
    _
  $region15: #{forward.48} parent=0 // pred_check_branch
    %16 = sbr.rel (0) target = $region17
  $region16: #{forward.48} parent=0 // pred_region
    _
  $region17: #{forward.48} parent=0 // pred_fallthru
    _
  %p17 = scmp.eq.s32.totalorder 0, 0
  // Predicated region
  $region18: #{forward.48} parent=0 // pred_check
    %p18 = pneg %p17
  $region19: #{forward.48} parent=0 // pred_check_branch
    %20 = sbr.rel (%p18) target = $region21
  $region20: #{forward.48} parent=0 // pred_region
    %21 = vst [vmem:[#allocation2] sm:$0xff] 0.0
  $region21: #{forward.48} parent=0 // pred_fallthru
    _
  %v22 = vld [vmem:[#allocation2] sm:$0xff]
  %v23 = vld [vmem:[%s0] sm:$0xf]
  %v24 = vld [vmem:[%s1] sm:$0xf]
  %v25 = vld [vmem:[%s1 + $0x4] sm:$0xf]
  %v26 = vld [vmem:[%s1 + $0x8] sm:$0xf]
  %v27 = vld [vmem:[%s1 + $0xc] sm:$0xf]
  %v28 = vld [vmem:[%s1 + $0x10] sm:$0xf]
  %v29 = vld [vmem:[%s1 + $0x14] sm:$0xf]
  %v30 = vld [vmem:[%s1 + $0x18] sm:$0xf]
  %v31 = vld [vmem:[%s1 + $0x1c] sm:$0xf]
  %v32 = vld [vmem:[%s1 + $0x20] sm:$0xf]
  %v33 = vld [vmem:[%s1 + $0x24] sm:$0xf]
  %v34 = vld [vmem:[%s1 + $0x28] sm:$0xf]
  %v35 = vld [vmem:[%s1 + $0x2c] sm:$0xf]
  %v36 = vld [vmem:[%s1 + $0x30] sm:$0xf]
  %v37 = vld [vmem:[%s1 + $0x34] sm:$0xf]
  %v38 = vld [vmem:[%s1 + $0x38] sm:$0xf]
  %v39 = vld [vmem:[%s1 + $0x3c] sm:$0xf]
  %v56 = vunpack.c.l.b16 %v24
  %v57 = vunpack.c.l.b16 %v25
  %v58 = vunpack.c.l.b16 %v26
  %v59 = vunpack.c.l.b16 %v27
  %v60 = vunpack.c.l.b16 %v28
  %v61 = vunpack.c.l.b16 %v29
  %v62 = vunpack.c.l.b16 %v30
  %v63 = vunpack.c.l.b16 %v31
  %v64 = vunpack.c.l.b16 %v32
  %v65 = vunpack.c.l.b16 %v33
  %v66 = vunpack.c.l.b16 %v34
  %v67 = vunpack.c.l.b16 %v35
  %v68 = vunpack.c.l.b16 %v36
  %v69 = vunpack.c.l.b16 %v37
  %v70 = vunpack.c.l.b16 %v38
  %v71 = vunpack.c.l.b16 %v39
  %v72 = vpack.c.b16 %v57, %v56
  %v73 = vpack.c.b16 %v59, %v58
  %v74 = vpack.c.b16 %v61, %v60
  %v75 = vpack.c.b16 %v63, %v62
  %v76 = vpack.c.b16 %v65, %v64
  %v77 = vpack.c.b16 %v67, %v66
  %v78 = vpack.c.b16 %v69, %v68
  %v79 = vpack.c.b16 %v71, %v70
  %88 = vmatpush.bf16.msra.mxu0 %v79
  %89 = vmatpush.bf16.msra.mxu0 %v78
  %90 = vmatpush.bf16.msra.mxu0 %v77
  %91 = vmatpush.bf16.msra.mxu0 %v76
  %92 = vmatpush.bf16.msra.mxu0 %v75
  %93 = vmatpush.bf16.msra.mxu0 %v74
  %94 = vmatpush.bf16.msra.mxu0 %v73
  %95 = vmatpush.bf16.msra.mxu0 %v72
  %96 = vmatmul.bf16.gmra.mxu0 %v23
  %v97 = vpop.f32.mrf.mxu0
  %v98 = vadd.f32 0.0, %v97
  %v99 = vpop.f32.mrf.mxu0
  %100 = vdwg.mxu0
  %v101 = vadd.f32 %v22, %v98
  %102 = vst [vmem:[#allocation2] sm:$0xff] %v101
  // Predicated region
  $region22: #{forward.48} parent=0 // pred_check
    %p103 = pneg %p17
  $region23: #{forward.48} parent=0 // pred_check_branch
    %105 = sbr.rel (%p103) target = $region25
  $region24: #{forward.48} parent=0 // pred_region
    %v106 = vld [vmem:[#allocation2] sm:$0xff]
    %v107 = vld [vmem:[%s2] sm:$0x1]
    %v109 = vperm.slane %v107, 0
    %v111 = vmul.f32 %v106, %v109
    %v112 = vld [vmem:[%s3] sm:$0x1]
    %v114 = vperm.slane %v112, 0
    %v116 = vadd.f32 %v111, %v114
    %117 = vst [vmem:[%s4] sm:$0xff] %v116
  $region25: #{forward.48} parent=0 // pred_fallthru
    _
  // Predicated region
  $region26: #{forward.48} parent=0 // pred_check
    _
  $region27: #{forward.48} parent=0 // pred_check_branch
    %119 = sbr.rel (0) target = $region29
  $region28: #{forward.48} parent=0 // pred_region
    _
  $region29: #{forward.48} parent=0 // pred_fallthru
    _
  // Predicated region
  $region30: #{forward.48} parent=0 // pred_check
    _
  $region31: #{forward.48} parent=0 // pred_check_branch
    %121 = sbr.rel (0) target = $region33
  $region32: #{forward.48} parent=0 // pred_region
    _
  $region33: #{forward.48} parent=0 // pred_fallthru
    _

// kernel: forward.51
$region0: #{forward.51}
  #allocation0 [shape = 'u32[]', space=smem, size = 0x4, offset = 0x4, fixed_abs, tag = 'smem constant byte address 0x4 - core index']
  #allocation1 [shape = 'u32[72,128]{1,0:T(1,128)}', space=vmem, size = 0x9000, scoped, tag = 'internal scratch']
  #allocation2 [shape = 'f32[8,128]{1,0:T(8,128)}', space=vmem, size = 0x1000, scoped, tag = 'scratch operand']
  %s0 = inlined_call_operand.vmem [shape: bf16[8,128], index: 0, kind: input, shape index: {}]
  %s1 = inlined_call_operand.vmem [shape: bf16[128,128], index: 1, kind: input, shape index: {}]
  %s2 = inlined_call_operand.vmem [shape: f32[1,128], index: 2, kind: input, shape index: {}]
  %s3 = inlined_call_operand.vmem [shape: f32[1,128], index: 3, kind: input, shape index: {}]
  %s4 = inlined_call_operand.vmem [shape: f32[8,128], index: 4, kind: input, shape index: {}]
  %s5 = inlined_call_operand.vmem [shape: f32[8,128], index: 5, kind: output, shape index: {}]
  %s6 = sld [smem:[#allocation0]]
  $region38: #{forward.51} parent=0
    _
  %s8 = ssub.s32 1, %s6
  %s9 = scalar_select 0, %s8, %s6
  // Predicated region
  $region2: #{forward.51} parent=0 // pred_check
    _
  $region3: #{forward.51} parent=0 // pred_check_branch
    %11 = sbr.rel (0) target = $region5
  $region4: #{forward.51} parent=0 // pred_region
    _
  $region5: #{forward.51} parent=0 // pred_fallthru
    _
  // Predicated region
  $region6: #{forward.51} parent=0 // pred_check
    _
  $region7: #{forward.51} parent=0 // pred_check_branch
    %13 = sbr.rel (0) target = $region9
  $region8: #{forward.51} parent=0 // pred_region
    _
  $region9: #{forward.51} parent=0 // pred_fallthru
    _
  // Predicated region
  $region10: #{forward.51} parent=0 // pred_check
    _
  $region11: #{forward.51} parent=0 // pred_check_branch
    %15 = sbr.rel (0) target = $region13
  $region12: #{forward.51} parent=0 // pred_region
    _
  $region13: #{forward.51} parent=0 // pred_fallthru
    _
  // Predicated region
  $region14: #{forward.51} parent=0 // pred_check
    _
  $region15: #{forward.51} parent=0 // pred_check_branch
    %17 = sbr.rel (0) target = $region17
  $region16: #{forward.51} parent=0 // pred_region
    _
  $region17: #{forward.51} parent=0 // pred_fallthru
    _
  // Predicated region
  $region18: #{forward.51} parent=0 // pred_check
    _
  $region19: #{forward.51} parent=0 // pred_check_branch
    %19 = sbr.rel (0) target = $region21
  $region20: #{forward.51} parent=0 // pred_region
    _
  $region21: #{forward.51} parent=0 // pred_fallthru
    _
  %p20 = scmp.eq.s32.totalorder 0, 0
  // Predicated region
  $region22: #{forward.51} parent=0 // pred_check
    %p21 = pneg %p20
  $region23: #{forward.51} parent=0 // pred_check_branch
    %23 = sbr.rel (%p21) target = $region25
  $region24: #{forward.51} parent=0 // pred_region
    %24 = vst [vmem:[#allocation2] sm:$0xff] 0.0
  $region25: #{forward.51} parent=0 // pred_fallthru
    _
  %v25 = vld [vmem:[#allocation2] sm:$0xff]
  %v26 = vld [vmem:[%s0] sm:$0xf]
  %v27 = vld [vmem:[%s1] sm:$0xf]
  %v28 = vld [vmem:[%s1 + $0x4] sm:$0xf]
  %v29 = vld [vmem:[%s1 + $0x8] sm:$0xf]
  %v30 = vld [vmem:[%s1 + $0xc] sm:$0xf]
  %v31 = vld [vmem:[%s1 + $0x10] sm:$0xf]
  %v32 = vld [vmem:[%s1 + $0x14] sm:$0xf]
  %v33 = vld [vmem:[%s1 + $0x18] sm:$0xf]
  %v34 = vld [vmem:[%s1 + $0x1c] sm:$0xf]
  %v35 = vld [vmem:[%s1 + $0x20] sm:$0xf]
  %v36 = vld [vmem:[%s1 + $0x24] sm:$0xf]
  %v37 = vld [vmem:[%s1 + $0x28] sm:$0xf]
  %v38 = vld [vmem:[%s1 + $0x2c] sm:$0xf]
  %v39 = vld [vmem:[%s1 + $0x30] sm:$0xf]
  %v40 = vld [vmem:[%s1 + $0x34] sm:$0xf]
  %v41 = vld [vmem:[%s1 + $0x38] sm:$0xf]
  %v42 = vld [vmem:[%s1 + $0x3c] sm:$0xf]
  %v59 = vunpack.c.l.b16 %v27
  %v60 = vunpack.c.l.b16 %v28
  %v61 = vunpack.c.l.b16 %v29
  %v62 = vunpack.c.l.b16 %v30
  %v63 = vunpack.c.l.b16 %v31
  %v64 = vunpack.c.l.b16 %v32
  %v65 = vunpack.c.l.b16 %v33
  %v66 = vunpack.c.l.b16 %v34
  %v67 = vunpack.c.l.b16 %v35
  %v68 = vunpack.c.l.b16 %v36
  %v69 = vunpack.c.l.b16 %v37
  %v70 = vunpack.c.l.b16 %v38
  %v71 = vunpack.c.l.b16 %v39
  %v72 = vunpack.c.l.b16 %v40
  %v73 = vunpack.c.l.b16 %v41
  %v74 = vunpack.c.l.b16 %v42
  %v75 = vpack.c.b16 %v60, %v59
  %v76 = vpack.c.b16 %v62, %v61
  %v77 = vpack.c.b16 %v64, %v63
  %v78 = vpack.c.b16 %v66, %v65
  %v79 = vpack.c.b16 %v68, %v67
  %v80 = vpack.c.b16 %v70, %v69
  %v81 = vpack.c.b16 %v72, %v71
  %v82 = vpack.c.b16 %v74, %v73
  %91 = vmatpush.bf16.msra.mxu0 %v82
  %92 = vmatpush.bf16.msra.mxu0 %v81
  %93 = vmatpush.bf16.msra.mxu0 %v80
  %94 = vmatpush.bf16.msra.mxu0 %v79
  %95 = vmatpush.bf16.msra.mxu0 %v78
  %96 = vmatpush.bf16.msra.mxu0 %v77
  %97 = vmatpush.bf16.msra.mxu0 %v76
  %98 = vmatpush.bf16.msra.mxu0 %v75
  %99 = vmatmul.bf16.gmra.mxu0 %v26
  %v100 = vpop.f32.mrf.mxu0
  %v101 = vadd.f32 0.0, %v100
  %v102 = vpop.f32.mrf.mxu0
  %103 = vdwg.mxu0
  %v104 = vadd.f32 %v25, %v101
  %105 = vst [vmem:[#allocation2] sm:$0xff] %v104
  // Predicated region
  $region26: #{forward.51} parent=0 // pred_check
    %p106 = pneg %p20
  $region27: #{forward.51} parent=0 // pred_check_branch
    %108 = sbr.rel (%p106) target = $region29
  $region28: #{forward.51} parent=0 // pred_region
    %v109 = vld [vmem:[#allocation2] sm:$0xff]
    %v110 = vld [vmem:[%s2] sm:$0x1]
    %v112 = vperm.slane %v110, 0
    %v114 = vmul.f32 %v109, %v112
    %v115 = vld [vmem:[%s3] sm:$0x1]
    %v117 = vperm.slane %v115, 0
    %v119 = vadd.f32 %v114, %v117
    %v120 = vld [vmem:[%s4] sm:$0xff]
    %v121 = vadd.f32 %v119, %v120
    %v122 = vmax.f32 %v121, 0.0
    %123 = vst [vmem:[%s5] sm:$0xff] %v122
  $region29: #{forward.51} parent=0 // pred_fallthru
    _
  // Predicated region
  $region30: #{forward.51} parent=0 // pred_check
    _
  $region31: #{forward.51} parent=0 // pred_check_branch
    %125 = sbr.rel (0) target = $region33
  $region32: #{forward.51} parent=0 // pred_region
    _
  $region33: #{forward.51} parent=0 // pred_fallthru
    _
  // Predicated region
  $region34: #{forward.51} parent=0 // pred_check
    _
  $region35: #{forward.51} parent=0 // pred_check_branch
    %127 = sbr.rel (0) target = $region37
  $region36: #{forward.51} parent=0 // pred_region
    _
  $region37: #{forward.51} parent=0 // pred_fallthru
    _

// kernel: forward.52
$region0: #{forward.52}
  #allocation0 [shape = 'u32[]', space=smem, size = 0x4, offset = 0x4, fixed_abs, tag = 'smem constant byte address 0x4 - core index']
  #allocation1 [shape = 'u32[72,128]{1,0:T(1,128)}', space=vmem, size = 0x9000, scoped, tag = 'internal scratch']
  #allocation2 [shape = 'f32[8,128]{1,0:T(8,128)}', space=vmem, size = 0x1000, scoped, tag = 'scratch operand']
  %s0 = inlined_call_operand.vmem [shape: bf16[8,128], index: 0, kind: input, shape index: {}]
  %s1 = inlined_call_operand.vmem [shape: bf16[128,128], index: 1, kind: input, shape index: {}]
  %s2 = inlined_call_operand.vmem [shape: f32[1,128], index: 2, kind: input, shape index: {}]
  %s3 = inlined_call_operand.vmem [shape: f32[1,128], index: 3, kind: input, shape index: {}]
  %s4 = inlined_call_operand.vmem [shape: f32[8,128], index: 4, kind: output, shape index: {}]
  %s5 = sld [smem:[#allocation0]]
  $region34: #{forward.52} parent=0
    _
  %s7 = ssub.s32 1, %s5
  %s8 = scalar_select 0, %s7, %s5
  // Predicated region
  $region2: #{forward.52} parent=0 // pred_check
    _
  $region3: #{forward.52} parent=0 // pred_check_branch
    %10 = sbr.rel (0) target = $region5
  $region4: #{forward.52} parent=0 // pred_region
    _
  $region5: #{forward.52} parent=0 // pred_fallthru
    _
  // Predicated region
  $region6: #{forward.52} parent=0 // pred_check
    _
  $region7: #{forward.52} parent=0 // pred_check_branch
    %12 = sbr.rel (0) target = $region9
  $region8: #{forward.52} parent=0 // pred_region
    _
  $region9: #{forward.52} parent=0 // pred_fallthru
    _
  // Predicated region
  $region10: #{forward.52} parent=0 // pred_check
    _
  $region11: #{forward.52} parent=0 // pred_check_branch
    %14 = sbr.rel (0) target = $region13
  $region12: #{forward.52} parent=0 // pred_region
    _
  $region13: #{forward.52} parent=0 // pred_fallthru
    _
  // Predicated region
  $region14: #{forward.52} parent=0 // pred_check
    _
  $region15: #{forward.52} parent=0 // pred_check_branch
    %16 = sbr.rel (0) target = $region17
  $region16: #{forward.52} parent=0 // pred_region
    _
  $region17: #{forward.52} parent=0 // pred_fallthru
    _
  %p17 = scmp.eq.s32.totalorder 0, 0
  // Predicated region
  $region18: #{forward.52} parent=0 // pred_check
    %p18 = pneg %p17
  $region19: #{forward.52} parent=0 // pred_check_branch
    %20 = sbr.rel (%p18) target = $region21
  $region20: #{forward.52} parent=0 // pred_region
    %21 = vst [vmem:[#allocation2] sm:$0xff] 0.0
  $region21: #{forward.52} parent=0 // pred_fallthru
    _
  %v22 = vld [vmem:[#allocation2] sm:$0xff]
  %v23 = vld [vmem:[%s0] sm:$0xf]
  %v24 = vld [vmem:[%s1] sm:$0xf]
  %v25 = vld [vmem:[%s1 + $0x4] sm:$0xf]
  %v26 = vld [vmem:[%s1 + $0x8] sm:$0xf]
  %v27 = vld [vmem:[%s1 + $0xc] sm:$0xf]
  %v28 = vld [vmem:[%s1 + $0x10] sm:$0xf]
  %v29 = vld [vmem:[%s1 + $0x14] sm:$0xf]
  %v30 = vld [vmem:[%s1 + $0x18] sm:$0xf]
  %v31 = vld [vmem:[%s1 + $0x1c] sm:$0xf]
  %v32 = vld [vmem:[%s1 + $0x20] sm:$0xf]
  %v33 = vld [vmem:[%s1 + $0x24] sm:$0xf]
  %v34 = vld [vmem:[%s1 + $0x28] sm:$0xf]
  %v35 = vld [vmem:[%s1 + $0x2c] sm:$0xf]
  %v36 = vld [vmem:[%s1 + $0x30] sm:$0xf]
  %v37 = vld [vmem:[%s1 + $0x34] sm:$0xf]
  %v38 = vld [vmem:[%s1 + $0x38] sm:$0xf]
  %v39 = vld [vmem:[%s1 + $0x3c] sm:$0xf]
  %v56 = vunpack.c.l.b16 %v24
  %v57 = vunpack.c.l.b16 %v25
  %v58 = vunpack.c.l.b16 %v26
  %v59 = vunpack.c.l.b16 %v27
  %v60 = vunpack.c.l.b16 %v28
  %v61 = vunpack.c.l.b16 %v29
  %v62 = vunpack.c.l.b16 %v30
  %v63 = vunpack.c.l.b16 %v31
  %v64 = vunpack.c.l.b16 %v32
  %v65 = vunpack.c.l.b16 %v33
  %v66 = vunpack.c.l.b16 %v34
  %v67 = vunpack.c.l.b16 %v35
  %v68 = vunpack.c.l.b16 %v36
  %v69 = vunpack.c.l.b16 %v37
  %v70 = vunpack.c.l.b16 %v38
  %v71 = vunpack.c.l.b16 %v39
  %v72 = vpack.c.b16 %v57, %v56
  %v73 = vpack.c.b16 %v59, %v58
  %v74 = vpack.c.b16 %v61, %v60
  %v75 = vpack.c.b16 %v63, %v62
  %v76 = vpack.c.b16 %v65, %v64
  %v77 = vpack.c.b16 %v67, %v66
  %v78 = vpack.c.b16 %v69, %v68
  %v79 = vpack.c.b16 %v71, %v70
  %88 = vmatpush.bf16.msra.mxu0 %v79
  %89 = vmatpush.bf16.msra.mxu0 %v78
  %90 = vmatpush.bf16.msra.mxu0 %v77
  %91 = vmatpush.bf16.msra.mxu0 %v76
  %92 = vmatpush.bf16.msra.mxu0 %v75
  %93 = vmatpush.bf16.msra.mxu0 %v74
  %94 = vmatpush.bf16.msra.mxu0 %v73
  %95 = vmatpush.bf16.msra.mxu0 %v72
  %96 = vmatmul.bf16.gmra.mxu0 %v23
  %v97 = vpop.f32.mrf.mxu0
  %v98 = vadd.f32 0.0, %v97
  %v99 = vpop.f32.mrf.mxu0
  %100 = vdwg.mxu0
  %v101 = vadd.f32 %v22, %v98
  %102 = vst [vmem:[#allocation2] sm:$0xff] %v101
  // Predicated region
  $region22: #{forward.52} parent=0 // pred_check
    %p103 = pneg %p17
  $region23: #{forward.52} parent=0 // pred_check_branch
    %105 = sbr.rel (%p103) target = $region25
  $region24: #{forward.52} parent=0 // pred_region
    %v106 = vld [vmem:[#allocation2] sm:$0xff]
    %v107 = vld [vmem:[%s2] sm:$0x1]
    %v109 = vperm.slane %v107, 0
    %v111 = vmul.f32 %v106, %v109
    %v112 = vld [vmem:[%s3] sm:$0x1]
    %v114 = vperm.slane %v112, 0
    %v116 = vadd.f32 %v111, %v114
    %v117 = vmax.f32 %v116, 0.0
    %118 = vst [vmem:[%s4] sm:$0xff] %v117
  $region25: #{forward.52} parent=0 // pred_fallthru
    _
  // Predicated region
  $region26: #{forward.52} parent=0 // pred_check
    _
  $region27: #{forward.52} parent=0 // pred_check_branch
    %120 = sbr.rel (0) target = $region29
  $region28: #{forward.52} parent=0 // pred_region
    _
  $region29: #{forward.52} parent=0 // pred_fallthru
    _
  // Predicated region
  $region30: #{forward.52} parent=0 // pred_check
    _
  $region31: #{forward.52} parent=0 // pred_check_branch
    %122 = sbr.rel (0) target = $region33
  $region32: #{forward.52} parent=0 // pred_region
    _
  $region33: #{forward.52} parent=0 // pred_fallthru
    _

// kernel: forward.57
$region0: #{forward.57}
  #allocation0 [shape = 'u32[]', space=smem, size = 0x4, offset = 0x4, fixed_abs, tag = 'smem constant byte address 0x4 - core index']
  #allocation1 [shape = 'u32[72,128]{1,0:T(1,128)}', space=vmem, size = 0x9000, scoped, tag = 'internal scratch']
  #allocation2 [shape = 'f32[8,128]{1,0:T(8,128)}', space=vmem, size = 0x1000, scoped, tag = 'scratch operand']
  %s0 = inlined_call_operand.vmem [shape: bf16[8,640], index: 0, kind: input, shape index: {}]
  %s1 = inlined_call_operand.vmem [shape: bf16[640,128], index: 1, kind: input, shape index: {}]
  %s2 = inlined_call_operand.vmem [shape: f32[1,128], index: 2, kind: input, shape index: {}]
  %s3 = inlined_call_operand.vmem [shape: f32[1,128], index: 3, kind: input, shape index: {}]
  %s4 = inlined_call_operand.vmem [shape: f32[8,128], index: 4, kind: output, shape index: {}]
  %s5 = sld [smem:[#allocation0]]
  $region57: #{forward.57} parent=0
    _
  %s7 = ssub.s32 1, %s5
  %s8 = scalar_select 0, %s7, %s5
  loop: start=0, step=1, limit=7
  $region2: #{forward.57} parent=0 // loop_pre_header
    _
  $region3: #{forward.57} parent=0 // loop_header
    %s10 = sphi 0, %s14
    %p11 = scmp.ge.s32.totalorder %s10, 7
    %s17 = sphi 0, %s36
    %s18 = sphi 0, %s32
    %s19 = sphi 0, %s28
    %s20 = sphi 0, %s17
    %s21 = sphi 0, %s18
    %s22 = sphi 0, %s19
    %s23 = sphi 0, %s20
    %s24 = sphi 0, %s21
    %s25 = sphi 0, %s22
    %s41 = sphi 0, %s43
    %s44 = sphi 0, %s41
    %s45 = sphi 0, %s44
    %s61 = sphi 0, %s45
    %s69 = sphi 0, %s71
    %s72 = sphi 0, %s69
    %s73 = sphi 0, %s72
    %s89 = sphi 0, %s73
    %s95 = sphi 0, %s97
    %s98 = sphi 0, %s95
    %s99 = sphi 0, %s98
    %s115 = sphi 0, %s99
    %s121 = sphi 0, %s123
    %s124 = sphi 0, %s121
    %s125 = sphi 0, %s124
    %s141 = sphi 0, %s125
    %s149 = sphi 0, %s151
    %s152 = sphi 0, %s149
    %s153 = sphi 0, %s152
    %s169 = sphi 0, %s153
  $region4: #{forward.57} parent=0 // loop_header_branch
    %13 = sbr.rel (%p11) target = $region8
  $region5: #{forward.57} parent=0 // loop_body
    %s15 = ssub.s32 %s10, 1
    %s16 = ssub.s32 %s10, 2
    %s26 = sadd.s32 1, %s19
    %p27 = scmp.ge.s32.totalorder %s26, 5
    %s28 = scalar_select %p27, 0, %s26
    %s29 = sadd.s32 1, %s18
    %s30 = scalar_select %p27, %s29, %s18
    %p31 = scmp.ge.s32.totalorder %s30, 1
    %s32 = scalar_select %p31, 0, %s30
    %s33 = sadd.s32 1, %s17
    %s34 = scalar_select %p31, %s33, %s17
    %p35 = scmp.ge.s32.totalorder %s34, 1
    %s36 = scalar_select %p35, 0, %s34
    %s37 = ssub.s32 %s17, %s36
    %s38 = ssub.s32 %s19, %s28
    %s39 = sor.u32 %s37, %s38
    %p40 = scmp.eq.s32.totalorder %s39, 0
    %s42 = sadd.s32 %s41, 1
    %s43 = scalar_select %p40, %s41, %s42
    %p46 = pneg %p40
    %p47 = scmp.eq.s32.totalorder %s10, 4
    %p48 = por %p46, %p47
    %p49 = scmp.ne.s32.totalorder %s41, %s44
    %p50 = scmp.eq.s32.totalorder %s10, 0
    %p51 = por %p49, %p50
    %p52 = scmp.ne.s32.totalorder %s41, %s44
    %p53 = scmp.eq.s32.totalorder %s15, 4
    %p54 = por %p52, %p53
    %p55 = scmp.ne.s32.totalorder %s44, %s45
    %p56 = scmp.eq.s32.totalorder %s15, 0
    %p57 = por %p55, %p56
    %p58 = scmp.ne.s32.totalorder %s44, %s45
    %p59 = scmp.eq.s32.totalorder %s16, 4
    %p60 = por %p58, %p59
    %p62 = scmp.ne.s32.totalorder %s45, %s61
    %p63 = scmp.eq.s32.totalorder %s16, 0
    %p64 = por %p62, %p63
    %s65 = ssub.s32 %s19, %s28
    %s66 = ssub.s32 %s18, %s32
    %s67 = sor.u32 %s65, %s66
    %p68 = scmp.eq.s32.totalorder %s67, 0
    %s70 = sadd.s32 %s69, 1
    %s71 = scalar_select %p68, %s69, %s70
    %p74 = pneg %p68
    %p75 = scmp.eq.s32.totalorder %s10, 4
    %p76 = por %p74, %p75
    %p77 = scmp.ne.s32.totalorder %s69, %s72
    %p78 = scmp.eq.s32.totalorder %s10, 0
    %p79 = por %p77, %p78
    %p80 = scmp.ne.s32.totalorder %s69, %s72
    %p81 = scmp.eq.s32.totalorder %s15, 4
    %p82 = por %p80, %p81
    %p83 = scmp.ne.s32.totalorder %s72, %s73
    %p84 = scmp.eq.s32.totalorder %s15, 0
    %p85 = por %p83, %p84
    %p86 = scmp.ne.s32.totalorder %s72, %s73
    %p87 = scmp.eq.s32.totalorder %s16, 4
    %p88 = por %p86, %p87
    %p90 = scmp.ne.s32.totalorder %s73, %s89
    %p91 = scmp.eq.s32.totalorder %s16, 0
    %p92 = por %p90, %p91
    %s93 = ssub.s32 %s18, %s32
    %p94 = scmp.eq.s32.totalorder %s93, 0
    %s96 = sadd.s32 %s95, 1
    %s97 = scalar_select %p94, %s95, %s96
    %p100 = pneg %p94
    %p101 = scmp.eq.s32.totalorder %s10, 4
    %p102 = por %p100, %p101
    %p103 = scmp.ne.s32.totalorder %s95, %s98
    %p104 = scmp.eq.s32.totalorder %s10, 0
    %p105 = por %p103, %p104
    %p106 = scmp.ne.s32.totalorder %s95, %s98
    %p107 = scmp.eq.s32.totalorder %s15, 4
    %p108 = por %p106, %p107
    %p109 = scmp.ne.s32.totalorder %s98, %s99
    %p110 = scmp.eq.s32.totalorder %s15, 0
    %p111 = por %p109, %p110
    %p112 = scmp.ne.s32.totalorder %s98, %s99
    %p113 = scmp.eq.s32.totalorder %s16, 4
    %p114 = por %p112, %p113
    %p116 = scmp.ne.s32.totalorder %s99, %s115
    %p117 = scmp.eq.s32.totalorder %s16, 0
    %p118 = por %p116, %p117
    %s119 = ssub.s32 %s18, %s32
    %p120 = scmp.eq.s32.totalorder %s119, 0
    %s122 = sadd.s32 %s121, 1
    %s123 = scalar_select %p120, %s121, %s122
    %p126 = pneg %p120
    %p127 = scmp.eq.s32.totalorder %s10, 4
    %p128 = por %p126, %p127
    %p129 = scmp.ne.s32.totalorder %s121, %s124
    %p130 = scmp.eq.s32.totalorder %s10, 0
    %p131 = por %p129, %p130
    %p132 = scmp.ne.s32.totalorder %s121, %s124
    %p133 = scmp.eq.s32.totalorder %s15, 4
    %p134 = por %p132, %p133
    %p135 = scmp.ne.s32.totalorder %s124, %s125
    %p136 = scmp.eq.s32.totalorder %s15, 0
    %p137 = por %p135, %p136
    %p138 = scmp.ne.s32.totalorder %s124, %s125
    %p139 = scmp.eq.s32.totalorder %s16, 4
    %p140 = por %p138, %p139
    %p142 = scmp.ne.s32.totalorder %s125, %s141
    %p143 = scmp.eq.s32.totalorder %s16, 0
    %p144 = por %p142, %p143
    %s145 = ssub.s32 %s17, %s36
    %s146 = ssub.s32 %s18, %s32
    %s147 = sor.u32 %s145, %s146
    %p148 = scmp.eq.s32.totalorder %s147, 0
    %s150 = sadd.s32 %s149, 1
    %s151 = scalar_select %p148, %s149, %s150
    %p154 = pneg %p148
    %p155 = scmp.eq.s32.totalorder %s10, 4
    %p156 = por %p154, %p155
    %p157 = scmp.ne.s32.totalorder %s149, %s152
    %p158 = scmp.eq.s32.totalorder %s10, 0
    %p159 = por %p157, %p158
    %p160 = scmp.ne.s32.totalorder %s149, %s152
    %p161 = scmp.eq.s32.totalorder %s15, 4
    %p162 = por %p160, %p161
    %p163 = scmp.ne.s32.totalorder %s152, %s153
    %p164 = scmp.eq.s32.totalorder %s15, 0
    %p165 = por %p163, %p164
    %p166 = scmp.ne.s32.totalorder %s152, %s153
    %p167 = scmp.eq.s32.totalorder %s16, 4
    %p168 = por %p166, %p167
    %p170 = scmp.ne.s32.totalorder %s153, %s169
    %p171 = scmp.eq.s32.totalorder %s16, 0
    %p172 = por %p170, %p171
    %p173 = scmp.le.s32.totalorder 1, %s10
    %p174 = scmp.lt.s32.totalorder %s10, 6
    %p175 = pnand %p173, %p174
    %p176 = pneg %p175
    // Predicated region
    $region9: #{forward.57} parent=5 // pred_check
      _
    $region10: #{forward.57} parent=5 // pred_check_branch
      %178 = sbr.rel (%p175) target = $region12
    $region11: #{forward.57} parent=5 // pred_region
      %s179 = ssub.s32 %s10, 1
      // Predicated region
      $region13: #{forward.57} parent=11 // pred_check
        %p180 = pneg %p111
      $region14: #{forward.57} parent=11 // pred_check_branch
        %182 = sbr.rel (%p180) target = $region16
      $region15: #{forward.57} parent=11 // pred_region
        %p183 = scmp.lt.s32.totalorder %s21, 0
        %s184 = scalar_select %p183, %s21, 0
        %s185 = scalar_lea.vmem %s2, %s184
      $region16: #{forward.57} parent=11 // pred_fallthru
        _
      // Predicated region
      $region17: #{forward.57} parent=11 // pred_check
        %p186 = pneg %p137
      $region18: #{forward.57} parent=11 // pred_check_branch
        %188 = sbr.rel (%p186) target = $region20
      $region19: #{forward.57} parent=11 // pred_region
        %p189 = scmp.lt.s32.totalorder %s21, 0
        %s190 = scalar_select %p189, %s21, 0
        %s191 = scalar_lea.vmem %s3, %s190
      $region20: #{forward.57} parent=11 // pred_fallthru
        _
    $region12: #{forward.57} parent=5 // pred_fallthru
      _
    %p192 = scmp.lt.s32.totalorder %s10, 5
    // Predicated region
    $region21: #{forward.57} parent=5 // pred_check
      %p193 = pneg %p192
    $region22: #{forward.57} parent=5 // pred_check_branch
      %195 = sbr.rel (%p193) target = $region24
    $region23: #{forward.57} parent=5 // pred_region
      // Predicated region
      $region25: #{forward.57} parent=23 // pred_check
        %p196 = pneg %p51
      $region26: #{forward.57} parent=23 // pred_check_branch
        %198 = sbr.rel (%p196) target = $region28
      $region27: #{forward.57} parent=23 // pred_region
        %p199 = scmp.lt.s32.totalorder %s17, 0
        %s200 = scalar_select %p199, %s17, 0
        %p201 = scmp.lt.s32.totalorder %s19, 4
        %s202 = scalar_select %p201, %s19, 4
        %s203 = smul.addr %s200, 5
        %s204 = sadd.s32 %s202, %s203
        %s205 = smul.addr %s204, 4
        %s206 = scalar_lea.vmem %s0, %s205
      $region28: #{forward.57} parent=23 // pred_fallthru
        _
      // Predicated region
      $region29: #{forward.57} parent=23 // pred_check
        %p207 = pneg %p79
      $region30: #{forward.57} parent=23 // pred_check_branch
        %209 = sbr.rel (%p207) target = $region32
      $region31: #{forward.57} parent=23 // pred_region
        %s210 = smul.u32 16, %s19
        %p211 = scmp.lt.s32.totalorder %s210, 79
        %s212 = scalar_select %p211, %s210, 79
        %p213 = scmp.lt.s32.totalorder %s18, 0
        %s214 = scalar_select %p213, %s18, 0
        %s215 = sadd.s32 %s214, %s212
        %s216 = smul.addr %s215, 4
        %s217 = scalar_lea.vmem %s1, %s216
        %s218 = smul.u32 16, %s19
      $region32: #{forward.57} parent=23 // pred_fallthru
        _
    $region24: #{forward.57} parent=5 // pred_fallthru
      _
    %p219 = scmp.le.s32.totalorder 1, %s10
    %p220 = scmp.lt.s32.totalorder %s10, 6
    %p221 = pnand %p219, %p220
    %p222 = pneg %p221
    // Predicated region
    $region33: #{forward.57} parent=5 // pred_check
      _
    $region34: #{forward.57} parent=5 // pred_check_branch
      %224 = sbr.rel (%p221) target = $region36
    $region35: #{forward.57} parent=5 // pred_region
      %s225 = ssub.s32 %s10, 1
      %p226 = scmp.lt.s32.totalorder %s20, 0
      %s227 = scalar_select %p226, %s20, 0
      %p228 = scmp.lt.s32.totalorder %s22, 4
      %s229 = scalar_select %p228, %s22, 4
      %s230 = smul.addr %s227, 5
      %s231 = sadd.s32 %s229, %s230
      %s232 = smul.addr %s231, 4
      %s233 = scalar_lea.vmem %s0, %s232
      %p234 = pneg %p57
      %p235 = pneg %p54
      %s236 = smul.u32 16, %s22
      %p237 = scmp.lt.s32.totalorder %s236, 79
      %s238 = scalar_select %p237, %s236, 79
      %p239 = scmp.lt.s32.totalorder %s21, 0
      %s240 = scalar_select %p239, %s21, 0
      %s241 = sadd.s32 %s240, %s238
      %s242 = smul.addr %s241, 4
      %s243 = scalar_lea.vmem %s1, %s242
      %p244 = pneg %p85
      %p245 = pneg %p82
      %p246 = scmp.lt.s32.totalorder %s21, 0
      %s247 = scalar_select %p246, %s21, 0
      %s248 = scalar_lea.vmem %s2, %s247
      %p249 = pneg %p111
      %p250 = pneg %p108
      %p251 = scmp.lt.s32.totalorder %s21, 0
      %s252 = scalar_select %p251, %s21, 0
      %s253 = scalar_lea.vmem %s3, %s252
      %p254 = pneg %p137
      %p255 = pneg %p134
      %p256 = pneg %p165
      %p257 = pneg %p162
      %p258 = scmp.lt.s32.totalorder %s20, 0
      %s259 = scalar_select %p258, %s20, 0
      %p260 = scmp.lt.s32.totalorder %s21, 0
      %s261 = scalar_select %p260, %s21, 0
      %s262 = sadd.s32 %s261, %s259
      %s263 = smul.addr %s262, 8
      %s264 = scalar_lea.vmem %s4, %s263
      %p265 = scmp.lt.s32.totalorder %s20, 0
      %s266 = scalar_select %p265, %s20, 0
      %p267 = scmp.lt.s32.totalorder %s22, 4
      %s268 = scalar_select %p267, %s22, 4
      %s269 = smul.addr %s266, 5
      %s270 = sadd.s32 %s268, %s269
      %s271 = smul.addr %s270, 4
      %s272 = scalar_lea.vmem %s0, %s271
      %s273 = smul.u32 16, %s22
      %p274 = scmp.lt.s32.totalorder %s273, 79
      %s275 = scalar_select %p274, %s273, 79
      %p276 = scmp.lt.s32.totalorder %s21, 0
      %s277 = scalar_select %p276, %s21, 0
      %s278 = sadd.s32 %s277, %s275
      %s279 = smul.addr %s278, 4
      %s280 = scalar_lea.vmem %s1, %s279
      %s281 = smul.u32 16, %s22
      %p282 = scmp.lt.s32.totalorder %s21, 0
      %s283 = scalar_select %p282, %s21, 0
      %s284 = scalar_lea.vmem %s2, %s283
      %p285 = scmp.lt.s32.totalorder %s21, 0
      %s286 = scalar_select %p285, %s21, 0
      %s287 = scalar_lea.vmem %s3, %s286
      %p288 = scmp.lt.s32.totalorder %s20, 0
      %s289 = scalar_select %p288, %s20, 0
      %p290 = scmp.lt.s32.totalorder %s21, 0
      %s291 = scalar_select %p290, %s21, 0
      %s292 = sadd.s32 %s291, %s289
      %s293 = smul.addr %s292, 8
      %s294 = scalar_lea.vmem %s4, %s293
      %p295 = scmp.eq.s32.totalorder %s22, 0
      // Predicated region
      $region37: #{forward.57} parent=35 // pred_check
        %p296 = pneg %p295
      $region38: #{forward.57} parent=35 // pred_check_branch
        %298 = sbr.rel (%p296) target = $region40
      $region39: #{forward.57} parent=35 // pred_region
        %299 = vst [vmem:[#allocation2] sm:$0xff] 0.0
      $region40: #{forward.57} parent=35 // pred_fallthru
        _
      %v300 = vld [vmem:[#allocation2] sm:$0xff]
      %v301 = vld [vmem:[%s272] sm:$0xf]
      %v302 = vld [vmem:[%s280] sm:$0xf]
      %v303 = vld [vmem:[%s280 + $0x4] sm:$0xf]
      %v304 = vld [vmem:[%s280 + $0x8] sm:$0xf]
      %v305 = vld [vmem:[%s280 + $0xc] sm:$0xf]
      %v306 = vld [vmem:[%s280 + $0x10] sm:$0xf]
      %v307 = vld [vmem:[%s280 + $0x14] sm:$0xf]
      %v308 = vld [vmem:[%s280 + $0x18] sm:$0xf]
      %v309 = vld [vmem:[%s280 + $0x1c] sm:$0xf]
      %v310 = vld [vmem:[%s280 + $0x20] sm:$0xf]
      %v311 = vld [vmem:[%s280 + $0x24] sm:$0xf]
      %v312 = vld [vmem:[%s280 + $0x28] sm:$0xf]
      %v313 = vld [vmem:[%s280 + $0x2c] sm:$0xf]
      %v314 = vld [vmem:[%s280 + $0x30] sm:$0xf]
      %v315 = vld [vmem:[%s280 + $0x34] sm:$0xf]
      %v316 = vld [vmem:[%s280 + $0x38] sm:$0xf]
      %v317 = vld [vmem:[%s280 + $0x3c] sm:$0xf]
      %v334 = vunpack.c.l.b16 %v302
      %v335 = vunpack.c.l.b16 %v303
      %v336 = vunpack.c.l.b16 %v304
      %v337 = vunpack.c.l.b16 %v305
      %v338 = vunpack.c.l.b16 %v306
      %v339 = vunpack.c.l.b16 %v307
      %v340 = vunpack.c.l.b16 %v308
      %v341 = vunpack.c.l.b16 %v309
      %v342 = vunpack.c.l.b16 %v310
      %v343 = vunpack.c.l.b16 %v311
      %v344 = vunpack.c.l.b16 %v312
      %v345 = vunpack.c.l.b16 %v313
      %v346 = vunpack.c.l.b16 %v314
      %v347 = vunpack.c.l.b16 %v315
      %v348 = vunpack.c.l.b16 %v316
      %v349 = vunpack.c.l.b16 %v317
      %v350 = vpack.c.b16 %v335, %v334
      %v351 = vpack.c.b16 %v337, %v336
      %v352 = vpack.c.b16 %v339, %v338
      %v353 = vpack.c.b16 %v341, %v340
      %v354 = vpack.c.b16 %v343, %v342
      %v355 = vpack.c.b16 %v345, %v344
      %v356 = vpack.c.b16 %v347, %v346
      %v357 = vpack.c.b16 %v349, %v348
      %366 = vmatpush.bf16.msra.mxu0 %v357
      %367 = vmatpush.bf16.msra.mxu0 %v356
      %368 = vmatpush.bf16.msra.mxu0 %v355
      %369 = vmatpush.bf16.msra.mxu0 %v354
      %370 = vmatpush.bf16.msra.mxu0 %v353
      %371 = vmatpush.bf16.msra.mxu0 %v352
      %372 = vmatpush.bf16.msra.mxu0 %v351
      %373 = vmatpush.bf16.msra.mxu0 %v350
      %374 = vmatmul.bf16.gmra.mxu0 %v301
      %v375 = vpop.f32.mrf.mxu0
      %v376 = vadd.f32 0.0, %v375
      %v377 = vpop.f32.mrf.mxu0
      %378 = vdwg.mxu0
      %v379 = vadd.f32 %v300, %v376
      %380 = vst [vmem:[#allocation2] sm:$0xff] %v379
      %p381 = scmp.eq.s32.totalorder %s22, 4
      // Predicated region
      $region41: #{forward.57} parent=35 // pred_check
        %p382 = pneg %p381
      $region42: #{forward.57} parent=35 // pred_check_branch
        %384 = sbr.rel (%p382) target = $region44
      $region43: #{forward.57} parent=35 // pred_region
        %v385 = vld [vmem:[#allocation2] sm:$0xff]
        %v386 = vld [vmem:[%s284] sm:$0x1]
        %v388 = vperm.slane %v386, 0
        %v390 = vmul.f32 %v385, %v388
        %v391 = vld [vmem:[%s287] sm:$0x1]
        %v393 = vperm.slane %v391, 0
        %v395 = vadd.f32 %v390, %v393
        %v396 = vmax.f32 %v395, 0.0
        %397 = vst [vmem:[%s294] sm:$0xff] %v396
      $region44: #{forward.57} parent=35 // pred_fallthru
        _
      %p398 = scmp.lt.s32.totalorder %s20, 0
      %s399 = scalar_select %p398, %s20, 0
      %p400 = scmp.lt.s32.totalorder %s21, 0
      %s401 = scalar_select %p400, %s21, 0
      %s402 = sadd.s32 %s401, %s399
      %s403 = smul.addr %s402, 8
      %s404 = scalar_lea.vmem %s4, %s403
      // Predicated region
      $region45: #{forward.57} parent=35 // pred_check
        %p405 = pneg %p162
      $region46: #{forward.57} parent=35 // pred_check_branch
        %407 = sbr.rel (%p405) target = $region48
      $region47: #{forward.57} parent=35 // pred_region
        _
      $region48: #{forward.57} parent=35 // pred_fallthru
        _
      // Predicated region
      $region49: #{forward.57} parent=35 // pred_check
        %p408 = pneg %p162
      $region50: #{forward.57} parent=35 // pred_check_branch
        %410 = sbr.rel (%p408) target = $region52
      $region51: #{forward.57} parent=35 // pred_region
        %p411 = scmp.lt.s32.totalorder %s20, 0
        %s412 = scalar_select %p411, %s20, 0
        %p413 = scmp.lt.s32.totalorder %s21, 0
        %s414 = scalar_select %p413, %s21, 0
        %s415 = sadd.s32 %s414, %s412
        %s416 = smul.addr %s415, 8
        %s417 = scalar_lea.vmem %s4, %s416
      $region52: #{forward.57} parent=35 // pred_fallthru
        _
    $region36: #{forward.57} parent=5 // pred_fallthru
      _
    %p418 = scmp.le.s32.totalorder 2, %s10
    // Predicated region
    $region53: #{forward.57} parent=5 // pred_check
      %p419 = pneg %p418
    $region54: #{forward.57} parent=5 // pred_check_branch
      %421 = sbr.rel (%p419) target = $region56
    $region55: #{forward.57} parent=5 // pred_region
      %s422 = ssub.s32 %s10, 2
    $region56: #{forward.57} parent=5 // pred_fallthru
      _
  $region6: #{forward.57} parent=0 // loop_footer
    %s14 = sadd.s32 1, %s10
  $region7: #{forward.57} parent=0 // loop_footer_branch
    %9 = sbr.rel target = $region3
  $region8: #{forward.57} parent=0 // loop_exit
    _

// kernel: forward.55
$region0: #{forward.55}
  #allocation0 [shape = 'u32[]', space=smem, size = 0x4, offset = 0x4, fixed_abs, tag = 'smem constant byte address 0x4 - core index']
  #allocation1 [shape = 'u32[72,128]{1,0:T(1,128)}', space=vmem, size = 0x9000, scoped, tag = 'internal scratch']
  #allocation2 [shape = 'f32[8,256]{1,0:T(8,128)}', space=vmem, size = 0x2000, scoped, tag = 'scratch operand']
  %s0 = inlined_call_operand.vmem [shape: bf16[8,128], index: 0, kind: input, shape index: {}]
  %s1 = inlined_call_operand.vmem [shape: bf16[128,256], index: 1, kind: input, shape index: {}]
  %s2 = inlined_call_operand.vmem [shape: f32[1,256], index: 2, kind: input, shape index: {}]
  %s3 = inlined_call_operand.vmem [shape: f32[1,256], index: 3, kind: input, shape index: {}]
  %s4 = inlined_call_operand.vmem [shape: f32[8,256], index: 4, kind: output, shape index: {}]
  %s5 = sld [smem:[#allocation0]]
  $region34: #{forward.55} parent=0
    _
  %s7 = ssub.s32 1, %s5
  %s8 = scalar_select 0, %s7, %s5
  // Predicated region
  $region2: #{forward.55} parent=0 // pred_check
    _
  $region3: #{forward.55} parent=0 // pred_check_branch
    %10 = sbr.rel (0) target = $region5
  $region4: #{forward.55} parent=0 // pred_region
    _
  $region5: #{forward.55} parent=0 // pred_fallthru
    _
  // Predicated region
  $region6: #{forward.55} parent=0 // pred_check
    _
  $region7: #{forward.55} parent=0 // pred_check_branch
    %12 = sbr.rel (0) target = $region9
  $region8: #{forward.55} parent=0 // pred_region
    _
  $region9: #{forward.55} parent=0 // pred_fallthru
    _
  // Predicated region
  $region10: #{forward.55} parent=0 // pred_check
    _
  $region11: #{forward.55} parent=0 // pred_check_branch
    %14 = sbr.rel (0) target = $region13
  $region12: #{forward.55} parent=0 // pred_region
    _
  $region13: #{forward.55} parent=0 // pred_fallthru
    _
  // Predicated region
  $region14: #{forward.55} parent=0 // pred_check
    _
  $region15: #{forward.55} parent=0 // pred_check_branch
    %16 = sbr.rel (0) target = $region17
  $region16: #{forward.55} parent=0 // pred_region
    _
  $region17: #{forward.55} parent=0 // pred_fallthru
    _
  %p17 = scmp.eq.s32.totalorder 0, 0
  // Predicated region
  $region18: #{forward.55} parent=0 // pred_check
    %p18 = pneg %p17
  $region19: #{forward.55} parent=0 // pred_check_branch
    %20 = sbr.rel (%p18) target = $region21
  $region20: #{forward.55} parent=0 // pred_region
    %21 = vst [vmem:[#allocation2] sm:$0xff] 0.0
    %22 = vst [vmem:[#allocation2 + $0x8] sm:$0xff] 0.0
  $region21: #{forward.55} parent=0 // pred_fallthru
    _
  %v23 = vld [vmem:[#allocation2] sm:$0xff]
  %v24 = vld [vmem:[#allocation2 + $0x8] sm:$0xff]
  %v25 = vld [vmem:[%s0] sm:$0xf]
  %v26 = vld [vmem:[%s1] sm:$0xff]
  %v27 = vld [vmem:[%s1 + $0x8] sm:$0xff]
  %v28 = vld [vmem:[%s1 + $0x10] sm:$0xff]
  %v29 = vld [vmem:[%s1 + $0x18] sm:$0xff]
  %v30 = vld [vmem:[%s1 + $0x20] sm:$0xff]
  %v31 = vld [vmem:[%s1 + $0x28] sm:$0xff]
  %v32 = vld [vmem:[%s1 + $0x30] sm:$0xff]
  %v33 = vld [vmem:[%s1 + $0x38] sm:$0xff]
  %v34 = vld [vmem:[%s1 + $0x40] sm:$0xff]
  %v35 = vld [vmem:[%s1 + $0x48] sm:$0xff]
  %v36 = vld [vmem:[%s1 + $0x50] sm:$0xff]
  %v37 = vld [vmem:[%s1 + $0x58] sm:$0xff]
  %v38 = vld [vmem:[%s1 + $0x60] sm:$0xff]
  %v39 = vld [vmem:[%s1 + $0x68] sm:$0xff]
  %v40 = vld [vmem:[%s1 + $0x70] sm:$0xff]
  %v41 = vld [vmem:[%s1 + $0x78] sm:$0xff]
  %v58 = vunpack.c.l.b16 %v26
  %v59 = vunpack.c.h.b16 %v26
  %v60 = vunpack.c.l.b16 %v27
  %v61 = vunpack.c.h.b16 %v27
  %v62 = vunpack.c.l.b16 %v28
  %v63 = vunpack.c.h.b16 %v28
  %v64 = vunpack.c.l.b16 %v29
  %v65 = vunpack.c.h.b16 %v29
  %v66 = vunpack.c.l.b16 %v30
  %v67 = vunpack.c.h.b16 %v30
  %v68 = vunpack.c.l.b16 %v31
  %v69 = vunpack.c.h.b16 %v31
  %v70 = vunpack.c.l.b16 %v32
  %v71 = vunpack.c.h.b16 %v32
  %v72 = vunpack.c.l.b16 %v33
  %v73 = vunpack.c.h.b16 %v33
  %v74 = vunpack.c.l.b16 %v34
  %v75 = vunpack.c.h.b16 %v34
  %v76 = vunpack.c.l.b16 %v35
  %v77 = vunpack.c.h.b16 %v35
  %v78 = vunpack.c.l.b16 %v36
  %v79 = vunpack.c.h.b16 %v36
  %v80 = vunpack.c.l.b16 %v37
  %v81 = vunpack.c.h.b16 %v37
  %v82 = vunpack.c.l.b16 %v38
  %v83 = vunpack.c.h.b16 %v38
  %v84 = vunpack.c.l.b16 %v39
  %v85 = vunpack.c.h.b16 %v39
  %v86 = vunpack.c.l.b16 %v40
  %v87 = vunpack.c.h.b16 %v40
  %v88 = vunpack.c.l.b16 %v41
  %v89 = vunpack.c.h.b16 %v41
  %v90 = vpack.c.b16 %v60, %v58
  %v91 = vpack.c.b16 %v61, %v59
  %v92 = vpack.c.b16 %v64, %v62
  %v93 = vpack.c.b16 %v65, %v63
  %v94 = vpack.c.b16 %v68, %v66
  %v95 = vpack.c.b16 %v69, %v67
  %v96 = vpack.c.b16 %v72, %v70
  %v97 = vpack.c.b16 %v73, %v71
  %v98 = vpack.c.b16 %v76, %v74
  %v99 = vpack.c.b16 %v77, %v75
  %v100 = vpack.c.b16 %v80, %v78
  %v101 = vpack.c.b16 %v81, %v79
  %v102 = vpack.c.b16 %v84, %v82
  %v103 = vpack.c.b16 %v85, %v83
  %v104 = vpack.c.b16 %v88, %v86
  %v105 = vpack.c.b16 %v89, %v87
  %122 = vmatpush.bf16.msra.mxu0 %v104
  %123 = vmatpush.bf16.msra.mxu0 %v102
  %124 = vmatpush.bf16.msra.mxu0 %v100
  %125 = vmatpush.bf16.msra.mxu0 %v98
  %126 = vmatpush.bf16.msra.mxu0 %v96
  %127 = vmatpush.bf16.msra.mxu0 %v94
  %128 = vmatpush.bf16.msra.mxu0 %v92
  %129 = vmatpush.bf16.msra.mxu0 %v90
  %130 = vmatmul.bf16.gmra.mxu0 %v25
  %v131 = vpop.f32.mrf.mxu0
  %v132 = vadd.f32 0.0, %v131
  %v133 = vpop.f32.mrf.mxu0
  %134 = vdwg.mxu0
  %135 = vmatpush.bf16.msra.mxu0 %v105
  %136 = vmatpush.bf16.msra.mxu0 %v103
  %137 = vmatpush.bf16.msra.mxu0 %v101
  %138 = vmatpush.bf16.msra.mxu0 %v99
  %139 = vmatpush.bf16.msra.mxu0 %v97
  %140 = vmatpush.bf16.msra.mxu0 %v95
  %141 = vmatpush.bf16.msra.mxu0 %v93
  %142 = vmatpush.bf16.msra.mxu0 %v91
  %143 = vmatmul.bf16.gmra.mxu0 %v25
  %v144 = vpop.f32.mrf.mxu0
  %v145 = vadd.f32 0.0, %v144
  %v146 = vpop.f32.mrf.mxu0
  %147 = vdwg.mxu0
  %v148 = vadd.f32 %v23, %v132
  %v149 = vadd.f32 %v24, %v145
  %150 = vst [vmem:[#allocation2] sm:$0xff] %v148
  %151 = vst [vmem:[#allocation2 + $0x8] sm:$0xff] %v149
  // Predicated region
  $region22: #{forward.55} parent=0 // pred_check
    %p152 = pneg %p17
  $region23: #{forward.55} parent=0 // pred_check_branch
    %154 = sbr.rel (%p152) target = $region25
  $region24: #{forward.55} parent=0 // pred_region
    %v155 = vld [vmem:[#allocation2] sm:$0xff]
    %v156 = vld [vmem:[#allocation2 + $0x8] sm:$0xff]
    %v157 = vld [vmem:[%s2] sm:$0x3]
    %v159 = vperm.slane %v157, 0
    %v160 = vperm.slane %v157, 1
    %v163 = vmul.f32 %v155, %v159
    %v164 = vmul.f32 %v156, %v160
    %v165 = vld [vmem:[%s3] sm:$0x3]
    %v167 = vperm.slane %v165, 0
    %v168 = vperm.slane %v165, 1
    %v171 = vadd.f32 %v163, %v167
    %v172 = vadd.f32 %v164, %v168
    %173 = vst [vmem:[%s4] sm:$0xff] %v171
    %174 = vst [vmem:[%s4 + $0x8] sm:$0xff] %v172
  $region25: #{forward.55} parent=0 // pred_fallthru
    _
  // Predicated region
  $region26: #{forward.55} parent=0 // pred_check
    _
  $region27: #{forward.55} parent=0 // pred_check_branch
    %176 = sbr.rel (0) target = $region29
  $region28: #{forward.55} parent=0 // pred_region
    _
  $region29: #{forward.55} parent=0 // pred_fallthru
    _
  // Predicated region
  $region30: #{forward.55} parent=0 // pred_check
    _
  $region31: #{forward.55} parent=0 // pred_check_branch
    %178 = sbr.rel (0) target = $region33
  $region32: #{forward.55} parent=0 // pred_region
    _
  $region33: #{forward.55} parent=0 // pred_fallthru
    _

// kernel: forward.58
$region0: #{forward.58}
  #allocation0 [shape = 'u32[]', space=smem, size = 0x4, offset = 0x4, fixed_abs, tag = 'smem constant byte address 0x4 - core index']
  #allocation1 [shape = 'u32[72,128]{1,0:T(1,128)}', space=vmem, size = 0x9000, scoped, tag = 'internal scratch']
  #allocation2 [shape = 'f32[8,256]{1,0:T(8,128)}', space=vmem, size = 0x2000, scoped, tag = 'scratch operand']
  %s0 = inlined_call_operand.vmem [shape: bf16[8,128], index: 0, kind: input, shape index: {}]
  %s1 = inlined_call_operand.vmem [shape: bf16[128,256], index: 1, kind: input, shape index: {}]
  %s2 = inlined_call_operand.vmem [shape: f32[1,256], index: 2, kind: input, shape index: {}]
  %s3 = inlined_call_operand.vmem [shape: f32[1,256], index: 3, kind: input, shape index: {}]
  %s4 = inlined_call_operand.vmem [shape: f32[8,256], index: 4, kind: input, shape index: {}]
  %s5 = inlined_call_operand.vmem [shape: f32[8,256], index: 5, kind: output, shape index: {}]
  %s6 = sld [smem:[#allocation0]]
  $region38: #{forward.58} parent=0
    _
  %s8 = ssub.s32 1, %s6
  %s9 = scalar_select 0, %s8, %s6
  // Predicated region
  $region2: #{forward.58} parent=0 // pred_check
    _
  $region3: #{forward.58} parent=0 // pred_check_branch
    %11 = sbr.rel (0) target = $region5
  $region4: #{forward.58} parent=0 // pred_region
    _
  $region5: #{forward.58} parent=0 // pred_fallthru
    _
  // Predicated region
  $region6: #{forward.58} parent=0 // pred_check
    _
  $region7: #{forward.58} parent=0 // pred_check_branch
    %13 = sbr.rel (0) target = $region9
  $region8: #{forward.58} parent=0 // pred_region
    _
  $region9: #{forward.58} parent=0 // pred_fallthru
    _
  // Predicated region
  $region10: #{forward.58} parent=0 // pred_check
    _
  $region11: #{forward.58} parent=0 // pred_check_branch
    %15 = sbr.rel (0) target = $region13
  $region12: #{forward.58} parent=0 // pred_region
    _
  $region13: #{forward.58} parent=0 // pred_fallthru
    _
  // Predicated region
  $region14: #{forward.58} parent=0 // pred_check
    _
  $region15: #{forward.58} parent=0 // pred_check_branch
    %17 = sbr.rel (0) target = $region17
  $region16: #{forward.58} parent=0 // pred_region
    _
  $region17: #{forward.58} parent=0 // pred_fallthru
    _
  // Predicated region
  $region18: #{forward.58} parent=0 // pred_check
    _
  $region19: #{forward.58} parent=0 // pred_check_branch
    %19 = sbr.rel (0) target = $region21
  $region20: #{forward.58} parent=0 // pred_region
    _
  $region21: #{forward.58} parent=0 // pred_fallthru
    _
  %p20 = scmp.eq.s32.totalorder 0, 0
  // Predicated region
  $region22: #{forward.58} parent=0 // pred_check
    %p21 = pneg %p20
  $region23: #{forward.58} parent=0 // pred_check_branch
    %23 = sbr.rel (%p21) target = $region25
  $region24: #{forward.58} parent=0 // pred_region
    %24 = vst [vmem:[#allocation2] sm:$0xff] 0.0
    %25 = vst [vmem:[#allocation2 + $0x8] sm:$0xff] 0.0
  $region25: #{forward.58} parent=0 // pred_fallthru
    _
  %v26 = vld [vmem:[#allocation2] sm:$0xff]
  %v27 = vld [vmem:[#allocation2 + $0x8] sm:$0xff]
  %v28 = vld [vmem:[%s0] sm:$0xf]
  %v29 = vld [vmem:[%s1] sm:$0xff]
  %v30 = vld [vmem:[%s1 + $0x8] sm:$0xff]
  %v31 = vld [vmem:[%s1 + $0x10] sm:$0xff]
  %v32 = vld [vmem:[%s1 + $0x18] sm:$0xff]
  %v33 = vld [vmem:[%s1 + $0x20] sm:$0xff]
  %v34 = vld [vmem:[%s1 + $0x28] sm:$0xff]
  %v35 = vld [vmem:[%s1 + $0x30] sm:$0xff]
  %v36 = vld [vmem:[%s1 + $0x38] sm:$0xff]
  %v37 = vld [vmem:[%s1 + $0x40] sm:$0xff]
  %v38 = vld [vmem:[%s1 + $0x48] sm:$0xff]
  %v39 = vld [vmem:[%s1 + $0x50] sm:$0xff]
  %v40 = vld [vmem:[%s1 + $0x58] sm:$0xff]
  %v41 = vld [vmem:[%s1 + $0x60] sm:$0xff]
  %v42 = vld [vmem:[%s1 + $0x68] sm:$0xff]
  %v43 = vld [vmem:[%s1 + $0x70] sm:$0xff]
  %v44 = vld [vmem:[%s1 + $0x78] sm:$0xff]
  %v61 = vunpack.c.l.b16 %v29
  %v62 = vunpack.c.h.b16 %v29
  %v63 = vunpack.c.l.b16 %v30
  %v64 = vunpack.c.h.b16 %v30
  %v65 = vunpack.c.l.b16 %v31
  %v66 = vunpack.c.h.b16 %v31
  %v67 = vunpack.c.l.b16 %v32
  %v68 = vunpack.c.h.b16 %v32
  %v69 = vunpack.c.l.b16 %v33
  %v70 = vunpack.c.h.b16 %v33
  %v71 = vunpack.c.l.b16 %v34
  %v72 = vunpack.c.h.b16 %v34
  %v73 = vunpack.c.l.b16 %v35
  %v74 = vunpack.c.h.b16 %v35
  %v75 = vunpack.c.l.b16 %v36
  %v76 = vunpack.c.h.b16 %v36
  %v77 = vunpack.c.l.b16 %v37
  %v78 = vunpack.c.h.b16 %v37
  %v79 = vunpack.c.l.b16 %v38
  %v80 = vunpack.c.h.b16 %v38
  %v81 = vunpack.c.l.b16 %v39
  %v82 = vunpack.c.h.b16 %v39
  %v83 = vunpack.c.l.b16 %v40
  %v84 = vunpack.c.h.b16 %v40
  %v85 = vunpack.c.l.b16 %v41
  %v86 = vunpack.c.h.b16 %v41
  %v87 = vunpack.c.l.b16 %v42
  %v88 = vunpack.c.h.b16 %v42
  %v89 = vunpack.c.l.b16 %v43
  %v90 = vunpack.c.h.b16 %v43
  %v91 = vunpack.c.l.b16 %v44
  %v92 = vunpack.c.h.b16 %v44
  %v93 = vpack.c.b16 %v63, %v61
  %v94 = vpack.c.b16 %v64, %v62
  %v95 = vpack.c.b16 %v67, %v65
  %v96 = vpack.c.b16 %v68, %v66
  %v97 = vpack.c.b16 %v71, %v69
  %v98 = vpack.c.b16 %v72, %v70
  %v99 = vpack.c.b16 %v75, %v73
  %v100 = vpack.c.b16 %v76, %v74
  %v101 = vpack.c.b16 %v79, %v77
  %v102 = vpack.c.b16 %v80, %v78
  %v103 = vpack.c.b16 %v83, %v81
  %v104 = vpack.c.b16 %v84, %v82
  %v105 = vpack.c.b16 %v87, %v85
  %v106 = vpack.c.b16 %v88, %v86
  %v107 = vpack.c.b16 %v91, %v89
  %v108 = vpack.c.b16 %v92, %v90
  %125 = vmatpush.bf16.msra.mxu0 %v107
  %126 = vmatpush.bf16.msra.mxu0 %v105
  %127 = vmatpush.bf16.msra.mxu0 %v103
  %128 = vmatpush.bf16.msra.mxu0 %v101
  %129 = vmatpush.bf16.msra.mxu0 %v99
  %130 = vmatpush.bf16.msra.mxu0 %v97
  %131 = vmatpush.bf16.msra.mxu0 %v95
  %132 = vmatpush.bf16.msra.mxu0 %v93
  %133 = vmatmul.bf16.gmra.mxu0 %v28
  %v134 = vpop.f32.mrf.mxu0
  %v135 = vadd.f32 0.0, %v134
  %v136 = vpop.f32.mrf.mxu0
  %137 = vdwg.mxu0
  %138 = vmatpush.bf16.msra.mxu0 %v108
  %139 = vmatpush.bf16.msra.mxu0 %v106
  %140 = vmatpush.bf16.msra.mxu0 %v104
  %141 = vmatpush.bf16.msra.mxu0 %v102
  %142 = vmatpush.bf16.msra.mxu0 %v100
  %143 = vmatpush.bf16.msra.mxu0 %v98
  %144 = vmatpush.bf16.msra.mxu0 %v96
  %145 = vmatpush.bf16.msra.mxu0 %v94
  %146 = vmatmul.bf16.gmra.mxu0 %v28
  %v147 = vpop.f32.mrf.mxu0
  %v148 = vadd.f32 0.0, %v147
  %v149 = vpop.f32.mrf.mxu0
  %150 = vdwg.mxu0
  %v151 = vadd.f32 %v26, %v135
  %v152 = vadd.f32 %v27, %v148
  %153 = vst [vmem:[#allocation2] sm:$0xff] %v151
  %154 = vst [vmem:[#allocation2 + $0x8] sm:$0xff] %v152
  // Predicated region
  $region26: #{forward.58} parent=0 // pred_check
    %p155 = pneg %p20
  $region27: #{forward.58} parent=0 // pred_check_branch
    %157 = sbr.rel (%p155) target = $region29
  $region28: #{forward.58} parent=0 // pred_region
    %v158 = vld [vmem:[#allocation2] sm:$0xff]
    %v159 = vld [vmem:[#allocation2 + $0x8] sm:$0xff]
    %v160 = vld [vmem:[%s2] sm:$0x3]
    %v162 = vperm.slane %v160, 0
    %v163 = vperm.slane %v160, 1
    %v166 = vmul.f32 %v158, %v162
    %v167 = vmul.f32 %v159, %v163
    %v168 = vld [vmem:[%s3] sm:$0x3]
    %v170 = vperm.slane %v168, 0
    %v171 = vperm.slane %v168, 1
    %v174 = vadd.f32 %v166, %v170
    %v175 = vadd.f32 %v167, %v171
    %v176 = vld [vmem:[%s4] sm:$0xff]
    %v177 = vld [vmem:[%s4 + $0x8] sm:$0xff]
    %v178 = vadd.f32 %v174, %v176
    %v179 = vadd.f32 %v175, %v177
    %v180 = vmax.f32 %v178, 0.0
    %v181 = vmax.f32 %v179, 0.0
    %182 = vst [vmem:[%s5] sm:$0xff] %v180
    %183 = vst [vmem:[%s5 + $0x8] sm:$0xff] %v181
  $region29: #{forward.58} parent=0 // pred_fallthru
    _
  // Predicated region
  $region30: #{forward.58} parent=0 // pred_check
    _
  $region31: #{forward.58} parent=0 // pred_check_branch
    %185 = sbr.rel (0) target = $region33
  $region32: #{forward.58} parent=0 // pred_region
    _
  $region33: #{forward.58} parent=0 // pred_fallthru
    _
  // Predicated region
  $region34: #{forward.58} parent=0 // pred_check
    _
  $region35: #{forward.58} parent=0 // pred_check_branch
    %187 = sbr.rel (0) target = $region37
  $region36: #{forward.58} parent=0 // pred_region
    _
  $region37: #{forward.58} parent=0 // pred_fallthru
    _

// kernel: forward.59
$region0: #{forward.59}
  #allocation0 [shape = 'u32[]', space=smem, size = 0x4, offset = 0x4, fixed_abs, tag = 'smem constant byte address 0x4 - core index']
  #allocation1 [shape = 'u32[72,128]{1,0:T(1,128)}', space=vmem, size = 0x9000, scoped, tag = 'internal scratch']
  #allocation2 [shape = 'f32[8,128]{1,0:T(8,128)}', space=vmem, size = 0x1000, scoped, tag = 'scratch operand']
  %s0 = inlined_call_operand.vmem [shape: bf16[8,256], index: 0, kind: input, shape index: {}]
  %s1 = inlined_call_operand.vmem [shape: bf16[256,128], index: 1, kind: input, shape index: {}]
  %s2 = inlined_call_operand.vmem [shape: f32[1,128], index: 2, kind: input, shape index: {}]
  %s3 = inlined_call_operand.vmem [shape: f32[1,128], index: 3, kind: input, shape index: {}]
  %s4 = inlined_call_operand.vmem [shape: f32[8,128], index: 4, kind: output, shape index: {}]
  %s5 = sld [smem:[#allocation0]]
  $region34: #{forward.59} parent=0
    _
  %s7 = ssub.s32 1, %s5
  %s8 = scalar_select 0, %s7, %s5
  // Predicated region
  $region2: #{forward.59} parent=0 // pred_check
    _
  $region3: #{forward.59} parent=0 // pred_check_branch
    %10 = sbr.rel (0) target = $region5
  $region4: #{forward.59} parent=0 // pred_region
    _
  $region5: #{forward.59} parent=0 // pred_fallthru
    _
  // Predicated region
  $region6: #{forward.59} parent=0 // pred_check
    _
  $region7: #{forward.59} parent=0 // pred_check_branch
    %12 = sbr.rel (0) target = $region9
  $region8: #{forward.59} parent=0 // pred_region
    _
  $region9: #{forward.59} parent=0 // pred_fallthru
    _
  // Predicated region
  $region10: #{forward.59} parent=0 // pred_check
    _
  $region11: #{forward.59} parent=0 // pred_check_branch
    %14 = sbr.rel (0) target = $region13
  $region12: #{forward.59} parent=0 // pred_region
    _
  $region13: #{forward.59} parent=0 // pred_fallthru
    _
  // Predicated region
  $region14: #{forward.59} parent=0 // pred_check
    _
  $region15: #{forward.59} parent=0 // pred_check_branch
    %16 = sbr.rel (0) target = $region17
  $region16: #{forward.59} parent=0 // pred_region
    _
  $region17: #{forward.59} parent=0 // pred_fallthru
    _
  %p17 = scmp.eq.s32.totalorder 0, 0
  // Predicated region
  $region18: #{forward.59} parent=0 // pred_check
    %p18 = pneg %p17
  $region19: #{forward.59} parent=0 // pred_check_branch
    %20 = sbr.rel (%p18) target = $region21
  $region20: #{forward.59} parent=0 // pred_region
    %21 = vst [vmem:[#allocation2] sm:$0xff] 0.0
  $region21: #{forward.59} parent=0 // pred_fallthru
    _
  %v22 = vld [vmem:[#allocation2] sm:$0xff]
  %v23 = vld [vmem:[%s0] sm:$0xff]
  %v24 = vld [vmem:[%s1] sm:$0xf]
  %v25 = vld [vmem:[%s1 + $0x4] sm:$0xf]
  %v26 = vld [vmem:[%s1 + $0x8] sm:$0xf]
  %v27 = vld [vmem:[%s1 + $0xc] sm:$0xf]
  %v28 = vld [vmem:[%s1 + $0x10] sm:$0xf]
  %v29 = vld [vmem:[%s1 + $0x14] sm:$0xf]
  %v30 = vld [vmem:[%s1 + $0x18] sm:$0xf]
  %v31 = vld [vmem:[%s1 + $0x1c] sm:$0xf]
  %v32 = vld [vmem:[%s1 + $0x20] sm:$0xf]
  %v33 = vld [vmem:[%s1 + $0x24] sm:$0xf]
  %v34 = vld [vmem:[%s1 + $0x28] sm:$0xf]
  %v35 = vld [vmem:[%s1 + $0x2c] sm:$0xf]
  %v36 = vld [vmem:[%s1 + $0x30] sm:$0xf]
  %v37 = vld [vmem:[%s1 + $0x34] sm:$0xf]
  %v38 = vld [vmem:[%s1 + $0x38] sm:$0xf]
  %v39 = vld [vmem:[%s1 + $0x3c] sm:$0xf]
  %v40 = vld [vmem:[%s1 + $0x40] sm:$0xf]
  %v41 = vld [vmem:[%s1 + $0x44] sm:$0xf]
  %v42 = vld [vmem:[%s1 + $0x48] sm:$0xf]
  %v43 = vld [vmem:[%s1 + $0x4c] sm:$0xf]
  %v44 = vld [vmem:[%s1 + $0x50] sm:$0xf]
  %v45 = vld [vmem:[%s1 + $0x54] sm:$0xf]
  %v46 = vld [vmem:[%s1 + $0x58] sm:$0xf]
  %v47 = vld [vmem:[%s1 + $0x5c] sm:$0xf]
  %v48 = vld [vmem:[%s1 + $0x60] sm:$0xf]
  %v49 = vld [vmem:[%s1 + $0x64] sm:$0xf]
  %v50 = vld [vmem:[%s1 + $0x68] sm:$0xf]
  %v51 = vld [vmem:[%s1 + $0x6c] sm:$0xf]
  %v52 = vld [vmem:[%s1 + $0x70] sm:$0xf]
  %v53 = vld [vmem:[%s1 + $0x74] sm:$0xf]
  %v54 = vld [vmem:[%s1 + $0x78] sm:$0xf]
  %v55 = vld [vmem:[%s1 + $0x7c] sm:$0xf]
  %v57 = vunpack.c.l.b16 %v23
  %v58 = vunpack.c.h.b16 %v23
  %v59 = vpack.c.b16 %v57, %v57
  %v60 = vpack.c.b16 %v58, %v58
  %v95 = vunpack.c.l.b16 %v24
  %v96 = vunpack.c.l.b16 %v25
  %v97 = vunpack.c.l.b16 %v26
  %v98 = vunpack.c.l.b16 %v27
  %v99 = vunpack.c.l.b16 %v28
  %v100 = vunpack.c.l.b16 %v29
  %v101 = vunpack.c.l.b16 %v30
  %v102 = vunpack.c.l.b16 %v31
  %v103 = vunpack.c.l.b16 %v32
  %v104 = vunpack.c.l.b16 %v33
  %v105 = vunpack.c.l.b16 %v34
  %v106 = vunpack.c.l.b16 %v35
  %v107 = vunpack.c.l.b16 %v36
  %v108 = vunpack.c.l.b16 %v37
  %v109 = vunpack.c.l.b16 %v38
  %v110 = vunpack.c.l.b16 %v39
  %v111 = vunpack.c.l.b16 %v40
  %v112 = vunpack.c.l.b16 %v41
  %v113 = vunpack.c.l.b16 %v42
  %v114 = vunpack.c.l.b16 %v43
  %v115 = vunpack.c.l.b16 %v44
  %v116 = vunpack.c.l.b16 %v45
  %v117 = vunpack.c.l.b16 %v46
  %v118 = vunpack.c.l.b16 %v47
  %v119 = vunpack.c.l.b16 %v48
  %v120 = vunpack.c.l.b16 %v49
  %v121 = vunpack.c.l.b16 %v50
  %v122 = vunpack.c.l.b16 %v51
  %v123 = vunpack.c.l.b16 %v52
  %v124 = vunpack.c.l.b16 %v53
  %v125 = vunpack.c.l.b16 %v54
  %v126 = vunpack.c.l.b16 %v55
  %v127 = vpack.c.b16 %v96, %v95
  %v128 = vpack.c.b16 %v98, %v97
  %v129 = vpack.c.b16 %v100, %v99
  %v130 = vpack.c.b16 %v102, %v101
  %v131 = vpack.c.b16 %v104, %v103
  %v132 = vpack.c.b16 %v106, %v105
  %v133 = vpack.c.b16 %v108, %v107
  %v134 = vpack.c.b16 %v110, %v109
  %v135 = vpack.c.b16 %v112, %v111
  %v136 = vpack.c.b16 %v114, %v113
  %v137 = vpack.c.b16 %v116, %v115
  %v138 = vpack.c.b16 %v118, %v117
  %v139 = vpack.c.b16 %v120, %v119
  %v140 = vpack.c.b16 %v122, %v121
  %v141 = vpack.c.b16 %v124, %v123
  %v142 = vpack.c.b16 %v126, %v125
  %159 = vmatpush.bf16.msra.mxu0 %v134
  %160 = vmatpush.bf16.msra.mxu0 %v133
  %161 = vmatpush.bf16.msra.mxu0 %v132
  %162 = vmatpush.bf16.msra.mxu0 %v131
  %163 = vmatpush.bf16.msra.mxu0 %v130
  %164 = vmatpush.bf16.msra.mxu0 %v129
  %165 = vmatpush.bf16.msra.mxu0 %v128
  %166 = vmatpush.bf16.msra.mxu0 %v127
  %167 = vmatmul.bf16.gmra.mxu0 %v59
  %v168 = vpop.f32.mrf.mxu0
  %v169 = vadd.f32 0.0, %v168
  %v170 = vpop.f32.mrf.mxu0
  %171 = vdwg.mxu0
  %172 = vmatpush.bf16.msra.mxu0 %v142
  %173 = vmatpush.bf16.msra.mxu0 %v141
  %174 = vmatpush.bf16.msra.mxu0 %v140
  %175 = vmatpush.bf16.msra.mxu0 %v139
  %176 = vmatpush.bf16.msra.mxu0 %v138
  %177 = vmatpush.bf16.msra.mxu0 %v137
  %178 = vmatpush.bf16.msra.mxu0 %v136
  %179 = vmatpush.bf16.msra.mxu0 %v135
  %180 = vmatmul.bf16.gmra.mxu0 %v60
  %v181 = vpop.f32.mrf.mxu0
  %v182 = vadd.f32 %v169, %v181
  %v183 = vpop.f32.mrf.mxu0
  %184 = vdwg.mxu0
  %v185 = vadd.f32 %v22, %v182
  %186 = vst [vmem:[#allocation2] sm:$0xff] %v185
  // Predicated region
  $region22: #{forward.59} parent=0 // pred_check
    %p187 = pneg %p17
  $region23: #{forward.59} parent=0 // pred_check_branch
    %189 = sbr.rel (%p187) target = $region25
  $region24: #{forward.59} parent=0 // pred_region
    %v190 = vld [vmem:[#allocation2] sm:$0xff]
    %v191 = vld [vmem:[%s2] sm:$0x1]
    %v193 = vperm.slane %v191, 0
    %v195 = vmul.f32 %v190, %v193
    %v196 = vld [vmem:[%s3] sm:$0x1]
    %v198 = vperm.slane %v196, 0
    %v200 = vadd.f32 %v195, %v198
    %v201 = vmax.f32 %v200, 0.0
    %202 = vst [vmem:[%s4] sm:$0xff] %v201
  $region25: #{forward.59} parent=0 // pred_fallthru
    _
  // Predicated region
  $region26: #{forward.59} parent=0 // pred_check
    _
  $region27: #{forward.59} parent=0 // pred_check_branch
    %204 = sbr.rel (0) target = $region29
  $region28: #{forward.59} parent=0 // pred_region
    _
  $region29: #{forward.59} parent=0 // pred_fallthru
    _
  // Predicated region
  $region30: #{forward.59} parent=0 // pred_check
    _
  $region31: #{forward.59} parent=0 // pred_check_branch
    %206 = sbr.rel (0) target = $region33
  $region32: #{forward.59} parent=0 // pred_region
    _
  $region33: #{forward.59} parent=0 // pred_fallthru
    _

// kernel: forward.62
$region0: #{forward.62}
  #allocation0 [shape = 'u32[]', space=smem, size = 0x4, offset = 0x4, fixed_abs, tag = 'smem constant byte address 0x4 - core index']
  #allocation1 [shape = 'u32[72,128]{1,0:T(1,128)}', space=vmem, size = 0x9000, scoped, tag = 'internal scratch']
  %s0 = inlined_call_operand.vmem [shape: f32[2,1,256], index: 0, kind: input, shape index: {}]
  %s1 = inlined_call_operand.vmem [shape: f32[1,256], index: 1, kind: input, shape index: {}]
  %s2 = inlined_call_operand.vmem [shape: f32[1,256], index: 2, kind: input, shape index: {}]
  %s3 = inlined_call_operand.vmem [shape: f32[2,256], index: 3, kind: output, shape index: {}]
  %s4 = sld [smem:[#allocation0]]
  $region22: #{forward.62} parent=0
    _
  %s6 = ssub.s32 1, %s4
  %s7 = scalar_select 0, %s6, %s4
  // Predicated region
  $region2: #{forward.62} parent=0 // pred_check
    _
  $region3: #{forward.62} parent=0 // pred_check_branch
    %9 = sbr.rel (0) target = $region5
  $region4: #{forward.62} parent=0 // pred_region
    _
  $region5: #{forward.62} parent=0 // pred_fallthru
    _
  // Predicated region
  $region6: #{forward.62} parent=0 // pred_check
    _
  $region7: #{forward.62} parent=0 // pred_check_branch
    %11 = sbr.rel (0) target = $region9
  $region8: #{forward.62} parent=0 // pred_region
    _
  $region9: #{forward.62} parent=0 // pred_fallthru
    _
  // Predicated region
  $region10: #{forward.62} parent=0 // pred_check
    _
  $region11: #{forward.62} parent=0 // pred_check_branch
    %13 = sbr.rel (0) target = $region13
  $region12: #{forward.62} parent=0 // pred_region
    _
  $region13: #{forward.62} parent=0 // pred_fallthru
    _
  %v14 = vld [vmem:[%s0] sm:$0x3]
  %v15 = vld [vmem:[%s0 + $0x2] sm:$0x3]
  %v16 = vadd.f32 %v14, 0.0
  %v17 = vadd.f32 %v15, 0.0
  %v18 = vld [vmem:[%s1] sm:$0x3]
  %v20 = vperm.slane %v18, 0
  %v21 = vperm.slane %v18, 1
  %v22 = vrot.slane %v21, 7
  %vm23 = vcmask 1040384
  %v24 = vsel %vm23, %v20, %v22
  %vm25 = vcmask 1041409
  %v26 = vsel %vm25, %v20, %v22
  %v27 = vrot.slane %v26, 1
  %v30 = vmul.f32 %v16, %v24
  %v31 = vmul.f32 %v17, %v27
  %v32 = vld [vmem:[%s2] sm:$0x3]
  %v34 = vperm.slane %v32, 0
  %v35 = vperm.slane %v32, 1
  %v36 = vrot.slane %v35, 7
  %v37 = vsel %vm23, %v34, %v36
  %v38 = vsel %vm25, %v34, %v36
  %v39 = vrot.slane %v38, 1
  %v42 = vadd.f32 %v30, %v37
  %v43 = vadd.f32 %v31, %v39
  %46 = vst [vmem:[#allocation1] ss:$2 sm:$0xff] %v42
  %s47 = scalar_lea.vmem [#allocation1], 1
  %48 = vst [vmem:[%s47] ss:$2 sm:$0xff] %v43
  %v49 = vld [vmem:[#allocation1] sm:$0xff]
  %51 = vst [vmem:[%s3] sm:$0xf] %v49
  // Predicated region
  $region14: #{forward.62} parent=0 // pred_check
    _
  $region15: #{forward.62} parent=0 // pred_check_branch
    %53 = sbr.rel (0) target = $region17
  $region16: #{forward.62} parent=0 // pred_region
    _
  $region17: #{forward.62} parent=0 // pred_fallthru
    _
  // Predicated region
  $region18: #{forward.62} parent=0 // pred_check
    _
  $region19: #{forward.62} parent=0 // pred_check_branch
    %55 = sbr.rel (0) target = $region21
  $region20: #{forward.62} parent=0 // pred_region
    _
  $region21: #{forward.62} parent=0 // pred_fallthru
    _

// kernel: forward.63
$region0: #{forward.63}
  #allocation0 [shape = 'u32[]', space=smem, size = 0x4, offset = 0x4, fixed_abs, tag = 'smem constant byte address 0x4 - core index']
  #allocation1 [shape = 'u32[72,128]{1,0:T(1,128)}', space=vmem, size = 0x9000, scoped, tag = 'internal scratch']
  %s0 = inlined_call_operand.vmem [shape: f32[2,256], index: 0, kind: input, shape index: {}]
  %s1 = inlined_call_operand.vmem [shape: f32[256,64], index: 1, kind: input, shape index: {}]
  %s2 = inlined_call_operand.vmem [shape: f32[1,64], index: 2, kind: input, shape index: {}]
  %s3 = inlined_call_operand.vmem [shape: f32[2,64], index: 3, kind: output, shape index: {}]
  %s4 = sld [smem:[#allocation0]]
  $region22: #{forward.63} parent=0
    _
  %s6 = ssub.s32 1, %s4
  %s7 = scalar_select 0, %s6, %s4
  // Predicated region
  $region2: #{forward.63} parent=0 // pred_check
    _
  $region3: #{forward.63} parent=0 // pred_check_branch
    %9 = sbr.rel (0) target = $region5
  $region4: #{forward.63} parent=0 // pred_region
    _
  $region5: #{forward.63} parent=0 // pred_fallthru
    _
  // Predicated region
  $region6: #{forward.63} parent=0 // pred_check
    _
  $region7: #{forward.63} parent=0 // pred_check_branch
    %11 = sbr.rel (0) target = $region9
  $region8: #{forward.63} parent=0 // pred_region
    _
  $region9: #{forward.63} parent=0 // pred_fallthru
    _
  // Predicated region
  $region10: #{forward.63} parent=0 // pred_check
    _
  $region11: #{forward.63} parent=0 // pred_check_branch
    %13 = sbr.rel (0) target = $region13
  $region12: #{forward.63} parent=0 // pred_region
    _
  $region13: #{forward.63} parent=0 // pred_fallthru
    _
  %v14 = vld [vmem:[%s0] sm:$0xf]
  %v15 = vmul.f32 %v14, %v14
  %17 = vst [vmem:[#allocation1] ss:$4 sm:$0xff] %v15
  %v18 = vld.sshfl [vmem:[#allocation1] sm:$0xff pattern:$0x73625140]
  %v19 = vld.sshfl [vmem:[#allocation1 + $0x8] sm:$0xff pattern:$0x73625140]
  %vm22 = vcmask 1041408
  %v23 = vsel %vm22, %v18, 0.0
  %v24 = vsel %vm22, %v19, 0.0
  %v25 = vadd.f32 %v23, %v24
  %26 = vadd.xlane.f32.xlu0 %v25
  %v27 = vpop.xlane.xlu0 %26
  %v28 = vadd.f32 %v27, 1e-12
  %v29 = vrsqrt.pop %v28
  %v30 = vmul.f32 %v29, %v28
  %v31 = vmul.f32 %v30, %v29
  %v32 = vmul.f32 0.5, %v31
  %v33 = vsub.f32 1.5, %v32
  %v34 = vmul.f32 %v29, %v33
  %vm35 = vweird.f32 %v28
  %vm36 = vweird.f32 %v29
  %vm37 = vmor %vm35, %vm36
  %v38 = vsel %vm37, %v29, %v34
  %v41 = vunpack.c.l.s4 269488144
  %v42 = vunpack.c.0.s8 %v41
  %v43 = vperm.slane %v38, %v42
  %v45 = vmul.f32 %v14, %v43
  %v46 = vld [vmem:[%s1] sm:$0xff]
  %v47 = vld [vmem:[%s1 + $0x8] sm:$0xff]
  %v48 = vld [vmem:[%s1 + $0x10] sm:$0xff]
  %v49 = vld [vmem:[%s1 + $0x18] sm:$0xff]
  %v50 = vld [vmem:[%s1 + $0x20] sm:$0xff]
  %v51 = vld [vmem:[%s1 + $0x28] sm:$0xff]
  %v52 = vld [vmem:[%s1 + $0x30] sm:$0xff]
  %v53 = vld [vmem:[%s1 + $0x38] sm:$0xff]
  %v54 = vld [vmem:[%s1 + $0x40] sm:$0xff]
  %v55 = vld [vmem:[%s1 + $0x48] sm:$0xff]
  %v56 = vld [vmem:[%s1 + $0x50] sm:$0xff]
  %v57 = vld [vmem:[%s1 + $0x58] sm:$0xff]
  %v58 = vld [vmem:[%s1 + $0x60] sm:$0xff]
  %v59 = vld [vmem:[%s1 + $0x68] sm:$0xff]
  %v60 = vld [vmem:[%s1 + $0x70] sm:$0xff]
  %v61 = vld [vmem:[%s1 + $0x78] sm:$0xff]
  %v62 = vld [vmem:[%s1 + $0x80] sm:$0xff]
  %v63 = vld [vmem:[%s1 + $0x88] sm:$0xff]
  %v64 = vld [vmem:[%s1 + $0x90] sm:$0xff]
  %v65 = vld [vmem:[%s1 + $0x98] sm:$0xff]
  %v66 = vld [vmem:[%s1 + $0xa0] sm:$0xff]
  %v67 = vld [vmem:[%s1 + $0xa8] sm:$0xff]
  %v68 = vld [vmem:[%s1 + $0xb0] sm:$0xff]
  %v69 = vld [vmem:[%s1 + $0xb8] sm:$0xff]
  %v70 = vld [vmem:[%s1 + $0xc0] sm:$0xff]
  %v71 = vld [vmem:[%s1 + $0xc8] sm:$0xff]
  %v72 = vld [vmem:[%s1 + $0xd0] sm:$0xff]
  %v73 = vld [vmem:[%s1 + $0xd8] sm:$0xff]
  %v74 = vld [vmem:[%s1 + $0xe0] sm:$0xff]
  %v75 = vld [vmem:[%s1 + $0xe8] sm:$0xff]
  %v76 = vld [vmem:[%s1 + $0xf0] sm:$0xff]
  %v77 = vld [vmem:[%s1 + $0xf8] sm:$0xff]
  %v78 = vld [vmem:[%s2] sm:$0x1]
  %v80 = vperm.slane %v78, 0
  %83 = vst [vmem:[#allocation1] ss:$4 sm:$0xff] %v45
  %v84 = vld.sshfl [vmem:[#allocation1] sm:$0xff pattern:$0x73625140]
  %v85 = vld.sshfl [vmem:[#allocation1 + $0x8] sm:$0xff pattern:$0x73625140]
  %88 = vmatpush.msra.mxu0 %v61
  %89 = vmatpush.msra.mxu0 %v60
  %90 = vmatpush.msra.mxu0 %v59
  %91 = vmatpush.msra.mxu0 %v58
  %92 = vmatpush.msra.mxu0 %v57
  %93 = vmatpush.msra.mxu0 %v56
  %94 = vmatpush.msra.mxu0 %v55
  %95 = vmatpush.msra.mxu0 %v54
  %96 = vmatpush.msra.mxu0 %v53
  %97 = vmatpush.msra.mxu0 %v52
  %98 = vmatpush.msra.mxu0 %v51
  %99 = vmatpush.msra.mxu0 %v50
  %100 = vmatpush.msra.mxu0 %v49
  %101 = vmatpush.msra.mxu0 %v48
  %102 = vmatpush.msra.mxu0 %v47
  %103 = vmatpush.msra.mxu0 %v46
  %104 = vmatmul.f32.gmra.mxu0 %v84
  %v105 = vpop.f32.mrf.mxu0
  %v106 = vadd.f32 %v80, %v105
  %107 = vdwg.mxu0
  %108 = vmatpush.msra.mxu0 %v77
  %109 = vmatpush.msra.mxu0 %v76
  %110 = vmatpush.msra.mxu0 %v75
  %111 = vmatpush.msra.mxu0 %v74
  %112 = vmatpush.msra.mxu0 %v73
  %113 = vmatpush.msra.mxu0 %v72
  %114 = vmatpush.msra.mxu0 %v71
  %115 = vmatpush.msra.mxu0 %v70
  %116 = vmatpush.msra.mxu0 %v69
  %117 = vmatpush.msra.mxu0 %v68
  %118 = vmatpush.msra.mxu0 %v67
  %119 = vmatpush.msra.mxu0 %v66
  %120 = vmatpush.msra.mxu0 %v65
  %121 = vmatpush.msra.mxu0 %v64
  %122 = vmatpush.msra.mxu0 %v63
  %123 = vmatpush.msra.mxu0 %v62
  %124 = vmatmul.f32.gmra.mxu0 %v85
  %v125 = vpop.f32.mrf.mxu0
  %v126 = vadd.f32 %v106, %v125
  %127 = vdwg.mxu0
  %v128 = vlaneseq
  %v129 = vand.u32 %v128, 127
  %vm130 = vcmp.lt.s32.totalorder %v129, 32
  %v131 = vmul.f32 %v126, 64.0
  %v132 = vmax.f32 %v126, -1.0
  %v133 = vmin.f32 %v132, 1.0
  %v134 = vsel %vm130, %v131, %v133
  %vm135 = vcmask 517120
  %136 = vst.msk [vmem:[%s3] sm:$0x3] %vm135, %v134
  // Predicated region
  $region14: #{forward.63} parent=0 // pred_check
    _
  $region15: #{forward.63} parent=0 // pred_check_branch
    %138 = sbr.rel (0) target = $region17
  $region16: #{forward.63} parent=0 // pred_region
    _
  $region17: #{forward.63} parent=0 // pred_fallthru
    _
  // Predicated region
  $region18: #{forward.63} parent=0 // pred_check
    _
  $region19: #{forward.63} parent=0 // pred_check_branch
    %140 = sbr.rel (0) target = $region21
  $region20: #{forward.63} parent=0 // pred_region
    _
  $region21: #{forward.63} parent=0 // pred_fallthru
    _

</llo_original>
